<compile_context>
chip_gen: v5e
topology: v5e:2x2
jax: 0.10.0
libtpu: 0.0.40
codegen_flags: <defaults>
</compile_context>

<pallas_src>
import functools

import jax
import jax.numpy as jnp
from jax.experimental import pallas as pl
from jax.experimental.pallas import tpu as pltpu


def _pick_time_block(T, cap=8):
    """Largest divisor of T that is <= cap (timesteps per grid step)."""
    for tt in range(min(cap, T), 0, -1):
        if T % tt == 0:
            return tt
    return 1


def _resident_spec(block_shape, index_map):
    """BlockSpec for a loop-invariant operand: single VMEM buffer if supported."""
    try:
        return pl.BlockSpec(block_shape, index_map, pipeline_mode=pl.Buffered(1))
    except Exception:  # pragma: no cover - fallback if pipeline_mode unsupported
        return pl.BlockSpec(block_shape, index_map)


# -----------------------------------------------------------------------------
# Fused LSTM cell: bf16 MXU matmuls with f32 accumulation, f32 gate math
# -----------------------------------------------------------------------------
def _lstm_cell(x_t, h, c, wih, whh, bias, H):
    # x_t: (B, Din) bf16, h/c: (B, H) f32, wih: (Din, 4H) bf16, whh: (H, 4H) bf16
    g = (jnp.dot(x_t, wih, preferred_element_type=jnp.float32)
         + jnp.dot(h.astype(jnp.bfloat16), whh, preferred_element_type=jnp.float32)
         + bias)
    i_g = jax.nn.sigmoid(g[:, 0 * H:1 * H])
    f_g = jax.nn.sigmoid(g[:, 1 * H:2 * H])
    g_g = jnp.tanh(g[:, 2 * H:3 * H])
    o_g = jax.nn.sigmoid(g[:, 3 * H:4 * H])
    c_new = f_g * c + i_g * g_g
    h_new = o_g * jnp.tanh(c_new)
    return h_new, c_new


# -----------------------------------------------------------------------------
# Layer 0: bidirectional, variable-length (packed semantics), both directions in
# one kernel with a leading "parallel" grid axis (d=0 forward, d=1 backward).
# -----------------------------------------------------------------------------
def _bilstm_block_kernel(x_ref, wih_ref, whh_ref, b_ref, len_ref, out_ref,
                         h_sc, c_sc, *, hidden, tt, ntb):
    d = pl.program_id(0)      # direction: 0 = forward, 1 = backward
    tb = pl.program_id(1)     # time-block index (sequential)

    @pl.when(tb == 0)
    def _init():
        h_sc[...] = jnp.zeros_like(h_sc)
        c_sc[...] = jnp.zeros_like(c_sc)

    H = hidden
    wih = wih_ref[...]        # (Din, 4H) bf16, VMEM-resident
    whh = whh_ref[...]        # (H,   4H) bf16, VMEM-resident
    bias = b_ref[...]         # (1,   4H) f32
    lens = len_ref[...]       # (B, 1) int32

    blk = tb + d * (ntb - 1 - 2 * tb)     # fwd: tb, bwd: ntb-1-tb
    base_t = blk * tt

    h = h_sc[...]
    c = c_sc[...]
    for step in range(tt):                # statically unrolled time block
        loc = step + d * (tt - 1 - 2 * step)   # fwd: step, bwd: tt-1-step
        x_t = x_ref[loc]                       # (B, Din) bf16 (dynamic 1st-axis read)
        h_new, c_new = _lstm_cell(x_t, h, c, wih, whh, bias, H)
        t_idx = base_t + loc
        valid = lens > t_idx                   # (B, 1) packed-sequence mask
        h = jnp.where(valid, h_new, h)
        c = jnp.where(valid, c_new, c)
        out_ref[loc] = jnp.where(valid, h_new, 0.0).astype(out_ref.dtype)
    h_sc[...] = h
    c_sc[...] = c


def bilstm_layer0(x, wih, whh, bias, lengths, *, tt):
    """x: (T,B,Din) bf16; wih/whh: (2,Din,4H)/(2,H,4H) bf16; bias: (2,1,4H) f32."""
    T, B, Din = x.shape
    H = whh.shape[1]
    G = 4 * H
    ntb = T // tt
    len2d = lengths.astype(jnp.int32).reshape(B, 1)

    def x_map(d, tb):
        return (tb + d * (ntb - 1 - 2 * tb), 0, 0)

    def w_map(d, tb):
        return (d, 0, 0)

    def out_map(d, tb):
        return (d, tb + d * (ntb - 1 - 2 * tb), 0, 0)

    kernel = functools.partial(_bilstm_block_kernel, hidden=H, tt=tt, ntb=ntb)

    flops = 2 * T * B * 2 * G * (Din + H)
    transcend = 2 * T * B * 5 * H
    bytes_acc = (2 * T * B * Din * 2          # x read once per direction (bf16)
                 + 2 * (Din + H) * G * 2      # weights (bf16)
                 + 2 * G * 4 + B * 4          # bias + lengths
                 + 2 * T * B * H * 2)         # output (bf16)

    return pl.pallas_call(
        kernel,
        out_shape=jax.ShapeDtypeStruct((2, T, B, H), x.dtype),
        grid_spec=pltpu.PrefetchScalarGridSpec(
            num_scalar_prefetch=0,
            grid=(2, ntb),
            in_specs=[
                pl.BlockSpec((tt, B, Din), x_map),
                _resident_spec((None, Din, G), w_map),
                _resident_spec((None, H, G), w_map),
                _resident_spec((None, 1, G), w_map),
                _resident_spec((B, 1), lambda d, tb: (0, 0)),
            ],
            out_specs=pl.BlockSpec((None, tt, B, H), out_map),
            scratch_shapes=[pltpu.VMEM((B, H), jnp.float32),
                            pltpu.VMEM((B, H), jnp.float32)],
        ),
        compiler_params=pltpu.CompilerParams(
            dimension_semantics=("parallel", "arbitrary")),
        cost_estimate=pl.CostEstimate(
            flops=flops, transcendentals=transcend, bytes_accessed=bytes_acc),
    )(x, wih, whh, bias, len2d)


# -----------------------------------------------------------------------------
# Unidirectional LSTM layer (no masking needed), optional fused residual add
# -----------------------------------------------------------------------------
def _lstm_block_kernel(x_ref, wih_ref, whh_ref, b_ref, *rest,
                       hidden, tt, has_residual):
    if has_residual:
        res_ref, out_ref, h_sc, c_sc = rest
    else:
        out_ref, h_sc, c_sc = rest
    tb = pl.program_id(0)

    @pl.when(tb == 0)
    def _init():
        h_sc[...] = jnp.zeros_like(h_sc)
        c_sc[...] = jnp.zeros_like(c_sc)

    H = hidden
    wih = wih_ref[...]
    whh = whh_ref[...]
    bias = b_ref[...]

    h = h_sc[...]
    c = c_sc[...]
    for step in range(tt):                # statically unrolled time block
        h, c = _lstm_cell(x_ref[step], h, c, wih, whh, bias, H)
        o = h
        if has_residual:
            o = o + res_ref[step].astype(jnp.float32)
        out_ref[step] = o.astype(out_ref.dtype)
    h_sc[...] = h
    c_sc[...] = c


def lstm_layer(x, wih, whh, bias, *, tt, residual=None):
    """x: (T,B,Din) bf16; wih: (Din,4H) bf16; whh: (H,4H) bf16; bias: (1,4H) f32."""
    T, B, Din = x.shape
    H = whh.shape[0]
    G = 4 * H
    ntb = T // tt
    has_res = residual is not None

    t_map = lambda tb: (tb, 0, 0)
    in_specs = [
        pl.BlockSpec((tt, B, Din), t_map),
        _resident_spec((Din, G), lambda tb: (0, 0)),
        _resident_spec((H, G), lambda tb: (0, 0)),
        _resident_spec((1, G), lambda tb: (0, 0)),
    ]
    args = [x, wih, whh, bias]
    if has_res:
        in_specs.append(pl.BlockSpec((tt, B, H), t_map))
        args.append(residual)

    kernel = functools.partial(
        _lstm_block_kernel, hidden=H, tt=tt, has_residual=has_res)

    flops = T * B * 2 * G * (Din + H)
    transcend = T * B * 5 * H
    bytes_acc = (T * B * Din * 2 + (Din + H) * G * 2 + G * 4
                 + T * B * H * 2 + (T * B * H * 2 if has_res else 0))

    return pl.pallas_call(
        kernel,
        out_shape=jax.ShapeDtypeStruct((T, B, H), x.dtype),
        grid_spec=pltpu.PrefetchScalarGridSpec(
            num_scalar_prefetch=0,
            grid=(ntb,),
            in_specs=in_specs,
            out_specs=pl.BlockSpec((tt, B, H), t_map),
            scratch_shapes=[pltpu.VMEM((B, H), jnp.float32),
                            pltpu.VMEM((B, H), jnp.float32)],
        ),
        compiler_params=pltpu.CompilerParams(
            dimension_semantics=("arbitrary",)),   # time recurrence is sequential
        cost_estimate=pl.CostEstimate(
            flops=flops, transcendentals=transcend, bytes_accessed=bytes_acc),
    )(*args)


# -----------------------------------------------------------------------------
# Full encoder forward
# -----------------------------------------------------------------------------
def _encoder_forward_impl(params, inputs, lengths):
    T, B = inputs.shape
    x = jnp.take(params["embedding"], inputs, axis=0).astype(jnp.bfloat16)  # (T,B,H)
    # dropout == identity (eval mode)

    tt = _pick_time_block(T)

    # ---- layer 0: bidirectional, variable-length (packed semantics) ----
    l0 = params["layer0"]
    H = l0["whh"].shape[1]
    out2 = bilstm_layer0(x, l0["wih"], l0["whh"], l0["bias"], lengths, tt=tt)
    x = out2.transpose(1, 2, 0, 3).reshape(T, B, 2 * H)      # [fwd | bwd] along features

    # ---- layer 1 (no residual) then layers 2.. (residual fused in the kernel) ----
    for idx, l in enumerate(params["layers"]):
        res = x if idx >= 1 else None
        x = lstm_layer(x, l["wih"], l["whh"], l["bias"], tt=tt, residual=res)
    return x


encoder_forward = jax.jit(_encoder_forward_impl)


# -----------------------------------------------------------------------------
# Parameter init (matches init_lstm_ / nn.init.uniform_ semantics, deterministic)
# Weights are stored pre-transposed to (K, 4H) and cast to bf16 once.
# -----------------------------------------------------------------------------
def init_encoder_params(key, vocab_size, hidden_size, num_layers, init_weight=0.1):
    H = hidden_size

    def uni(k, shape):
        return jax.random.uniform(k, shape, jnp.float32,
                                  minval=-init_weight, maxval=init_weight)

    n_keys = 1 + 6 + 3 * (num_layers - 1)
    keys = iter(jax.random.split(key, n_keys))

    def lstm_dir(din):
        w_ih = uni(next(keys), (4 * H, din))        # PyTorch layout (4H, Din)
        w_hh = uni(next(keys), (4 * H, H))
        b_ih = uni(next(keys), (4 * H,))
        b_hh = jnp.zeros((4 * H,), jnp.float32)     # init_lstm_: bias_hh = 0
        return (w_ih.T.astype(jnp.bfloat16),        # (Din, 4H) bf16
                w_hh.T.astype(jnp.bfloat16),        # (H,   4H) bf16
                (b_ih + b_hh).reshape(1, 4 * H))    # (1,   4H) f32, pre-added

    params = {"embedding": uni(next(keys), (vocab_size, H))}

    fwd = lstm_dir(H)
    bwd = lstm_dir(H)
    params["layer0"] = {
        "wih": jnp.stack([fwd[0], bwd[0]]),     # (2, H, 4H) bf16
        "whh": jnp.stack([fwd[1], bwd[1]]),     # (2, H, 4H) bf16
        "bias": jnp.stack([fwd[2], bwd[2]]),    # (2, 1, 4H) f32
    }

    layers = []
    for li in range(1, num_layers):
        din = 2 * H if li == 1 else H
        wih, whh, bias = lstm_dir(din)
        layers.append({"wih": wih, "whh": whh, "bias": bias})
    params["layers"] = tuple(layers)
    return params


# -----------------------------------------------------------------------------
# Pure-JAX reference mirroring the kernel's precision (bf16 matmul / f32 acc)
# -----------------------------------------------------------------------------
def _ref_lstm_dir(x, wih, whh, bias, lengths, reverse):
    T, B, _ = x.shape
    H = whh.shape[0]
    h = jnp.zeros((B, H), jnp.float32)
    c = jnp.zeros((B, H), jnp.float32)
    outs = [None] * T
    order = range(T - 1, -1, -1) if reverse else range(T)
    for t in order:
        g = (jnp.dot(x[t], wih, preferred_element_type=jnp.float32)
             + jnp.dot(h.astype(jnp.bfloat16), whh, preferred_element_type=jnp.float32)
             + bias)
        i = jax.nn.sigmoid(g[:, :H])
        f = jax.nn.sigmoid(g[:, H:2 * H])
        gg = jnp.tanh(g[:, 2 * H:3 * H])
        o = jax.nn.sigmoid(g[:, 3 * H:])
        c_new = f * c + i * gg
        h_new = o * jnp.tanh(c_new)
        valid = (lengths > t).reshape(B, 1)
        h = jnp.where(valid, h_new, h)
        c = jnp.where(valid, c_new, c)
        outs[t] = jnp.where(valid, h_new, 0.0).astype(jnp.bfloat16)
    return jnp.stack(outs, axis=0)


def _ref_lstm_uni(x, wih, whh, bias, residual=None):
    T, B, _ = x.shape
    H = whh.shape[0]
    h = jnp.zeros((B, H), jnp.float32)
    c = jnp.zeros((B, H), jnp.float32)
    outs = []
    for t in range(T):
        g = (jnp.dot(x[t], wih, preferred_element_type=jnp.float32)
             + jnp.dot(h.astype(jnp.bfloat16), whh, preferred_element_type=jnp.float32)
             + bias)
        i = jax.nn.sigmoid(g[:, :H])
        f = jax.nn.sigmoid(g[:, H:2 * H])
        gg = jnp.tanh(g[:, 2 * H:3 * H])
        o = jax.nn.sigmoid(g[:, 3 * H:])
        c = f * c + i * gg
        h = o * jnp.tanh(c)
        out = h
        if residual is not None:
            out = out + residual[t].astype(jnp.float32)
        outs.append(out.astype(jnp.bfloat16))
    return jnp.stack(outs, axis=0)


def ref_encoder(params, inputs, lengths):
    x = jnp.take(params["embedding"], inputs, axis=0).astype(jnp.bfloat16)
    l0 = params["layer0"]
    hf = _ref_lstm_dir(x, l0["wih"][0], l0["whh"][0], l0["bias"][0], lengths, False)
    hb = _ref_lstm_dir(x, l0["wih"][1], l0["whh"][1], l0["bias"][1], lengths, True)
    x = jnp.concatenate([hf, hb], axis=-1)
    for idx, l in enumerate(params["layers"]):
        res = x if idx >= 1 else None
        x = _ref_lstm_uni(x, l["wih"], l["whh"], l["bias"], residual=res)
    return x


if __name__ == "__main__":
    key = jax.random.PRNGKey(0)
    k_p, k_in = jax.random.split(key)

    # Small shapes consistent with the module: (seq, batch) int tokens + lengths.
    seq_len, batch, hidden, vocab, num_layers = 8, 2, 32, 64, 4

    params = init_encoder_params(k_p, vocab, hidden, num_layers, init_weight=0.1)

    inputs = jax.random.randint(k_in, (seq_len, batch), 0, vocab, dtype=jnp.int32)
    lengths = jnp.array([8, 5], dtype=jnp.int32)   # sorted descending, max == seq_len
    # positions beyond each sequence's length carry the PAD token (0), as in real data
    t_ids = jnp.arange(seq_len)[:, None]
    inputs = jnp.where(t_ids < lengths[None, :], inputs, 0)

    out = encoder_forward(params, inputs, lengths)
    out = jax.block_until_ready(out)

    ref = ref_encoder(params, inputs, lengths)
    assert out.shape == (seq_len, batch, hidden), out.shape
    err = float(jnp.max(jnp.abs(out.astype(jnp.float32) - ref.astype(jnp.float32))))
    assert err < 1e-2, "mismatch vs reference, max abs err = %e" % err

    print("KERNEL_OK")
</pallas_src>

<mosaic_0001>
module attributes {stable_mosaic.version = 11 : i64} {
  func.func @_lstm_block_kernel(%arg0: i32, %arg1: memref<8x2x64xbf16, #tpu.memory_space<vmem>>, %arg2: memref<64x128xbf16, #tpu.memory_space<vmem>>, %arg3: memref<32x128xbf16, #tpu.memory_space<vmem>>, %arg4: memref<1x128xf32, #tpu.memory_space<vmem>>, %arg5: memref<8x2x32xbf16, #tpu.memory_space<vmem>>, %arg6: memref<2x32xf32, #tpu.memory_space<vmem>>, %arg7: memref<2x32xf32, #tpu.memory_space<vmem>>) attributes {dimension_semantics = [#tpu.dimension_semantics<arbitrary>], iteration_bounds = array<i64: 1>, scalar_prefetch = 0 : i64, scratch_operands = 2 : i64, tpu.core_type = #tpu.core_type<tc>, window_params = [{transform_indices = @transform_0, window_bounds = array<i64: 8, 2, 64>}, {pipeline_mode = #tpu.pipeline_mode<synchronous>, transform_indices = @transform_1, window_bounds = array<i64: 64, 128>}, {pipeline_mode = #tpu.pipeline_mode<synchronous>, transform_indices = @transform_2, window_bounds = array<i64: 32, 128>}, {pipeline_mode = #tpu.pipeline_mode<synchronous>, transform_indices = @transform_3, window_bounds = array<i64: 1, 128>}, {transform_indices = @transform_4, window_bounds = array<i64: 8, 2, 32>}]} {
    %c0_i32 = arith.constant 0 : i32
    %0 = arith.cmpi eq, %arg0, %c0_i32 : i32
    %1 = arith.extui %0 : i1 to i32
    %c0_i32_0 = arith.constant 0 : i32
    %2 = arith.cmpi ne, %1, %c0_i32_0 : i32
    scf.if %2 {
      %cst_94 = arith.constant 0.000000e+00 : f32
      %306 = vector.broadcast %cst_94 : f32 to vector<2x32xf32>
      %c0_95 = arith.constant 0 : index
      %c0_96 = arith.constant 0 : index
      %307 = vector.load %arg6[%c0_95, %c0_96] : memref<2x32xf32, #tpu.memory_space<vmem>>, vector<2x32xf32>
      tpu.vector_store %arg6[%c0_95, %c0_96], %306 {strides = array<i32>} : memref<2x32xf32, #tpu.memory_space<vmem>>, vector<2x32xf32>,
      %cst_97 = arith.constant 0.000000e+00 : f32
      %308 = vector.broadcast %cst_97 : f32 to vector<2x32xf32>
      %c0_98 = arith.constant 0 : index
      %c0_99 = arith.constant 0 : index
      %309 = vector.load %arg7[%c0_98, %c0_99] : memref<2x32xf32, #tpu.memory_space<vmem>>, vector<2x32xf32>
      tpu.vector_store %arg7[%c0_98, %c0_99], %308 {strides = array<i32>} : memref<2x32xf32, #tpu.memory_space<vmem>>, vector<2x32xf32>,
    } else {
    }
    %c0 = arith.constant 0 : index
    %c0_1 = arith.constant 0 : index
    %3 = vector.load %arg2[%c0, %c0_1] : memref<64x128xbf16, #tpu.memory_space<vmem>>, vector<64x128xbf16>
    %c0_2 = arith.constant 0 : index
    %c0_3 = arith.constant 0 : index
    %4 = vector.load %arg3[%c0_2, %c0_3] : memref<32x128xbf16, #tpu.memory_space<vmem>>, vector<32x128xbf16>
    %c0_4 = arith.constant 0 : index
    %c0_5 = arith.constant 0 : index
    %5 = vector.load %arg4[%c0_4, %c0_5] : memref<1x128xf32, #tpu.memory_space<vmem>>, vector<1x128xf32>
    %c0_6 = arith.constant 0 : index
    %c0_7 = arith.constant 0 : index
    %6 = vector.load %arg6[%c0_6, %c0_7] : memref<2x32xf32, #tpu.memory_space<vmem>>, vector<2x32xf32>
    %c0_8 = arith.constant 0 : index
    %c0_9 = arith.constant 0 : index
    %7 = vector.load %arg7[%c0_8, %c0_9] : memref<2x32xf32, #tpu.memory_space<vmem>>, vector<2x32xf32>
    %c0_10 = arith.constant 0 : index
    %c0_11 = arith.constant 0 : index
    %c0_12 = arith.constant 0 : index
    %8 = vector.load %arg1[%c0_10, %c0_11, %c0_12] : memref<8x2x64xbf16, #tpu.memory_space<vmem>>, vector<1x2x64xbf16>
    %9 = vector.shape_cast %8 : vector<1x2x64xbf16> to vector<2x64xbf16>
    %cst = arith.constant dense<0.000000e+00> : vector<2x128xf32>
    %10 = tpu.matmul %9, %3, %cst {dimension_numbers = #tpu.dot_dimension_numbers<[1], [0], [0], [1], [0, 0, 1, 1], [], []>} : vector<2x64xbf16>, vector<64x128xbf16>, vector<2x128xf32> -> vector<2x128xf32>
    %11 = arith.truncf %6 : vector<2x32xf32> to vector<2x32xbf16>
    %cst_13 = arith.constant dense<0.000000e+00> : vector<2x128xf32>
    %12 = tpu.matmul %11, %4, %cst_13 {dimension_numbers = #tpu.dot_dimension_numbers<[1], [0], [0], [1], [0, 0, 1, 1], [], []>} : vector<2x32xbf16>, vector<32x128xbf16>, vector<2x128xf32> -> vector<2x128xf32>
    %13 = arith.addf %10, %12 : vector<2x128xf32>
    %14 = vector.broadcast %5 : vector<1x128xf32> to vector<2x128xf32>
    %15 = arith.addf %13, %14 : vector<2x128xf32>
    %16 = vector.extract_strided_slice %15 {offsets = [0, 0], sizes = [2, 32], strides = [1, 1]} : vector<2x128xf32> to vector<2x32xf32>
    %17 = arith.negf %16 : vector<2x32xf32>
    %18 = math.exp %17 : vector<2x32xf32>
    %cst_14 = arith.constant 1.000000e+00 : f32
    %19 = vector.broadcast %cst_14 : f32 to vector<2x32xf32>
    %20 = arith.addf %19, %18 : vector<2x32xf32>
    %21 = arith.divf %19, %20 : vector<2x32xf32>
    %22 = vector.extract_strided_slice %15 {offsets = [0, 32], sizes = [2, 32], strides = [1, 1]} : vector<2x128xf32> to vector<2x32xf32>
    %23 = arith.negf %22 : vector<2x32xf32>
    %24 = math.exp %23 : vector<2x32xf32>
    %cst_15 = arith.constant 1.000000e+00 : f32
    %25 = vector.broadcast %cst_15 : f32 to vector<2x32xf32>
    %26 = arith.addf %25, %24 : vector<2x32xf32>
    %27 = arith.divf %25, %26 : vector<2x32xf32>
    %28 = vector.extract_strided_slice %15 {offsets = [0, 64], sizes = [2, 32], strides = [1, 1]} : vector<2x128xf32> to vector<2x32xf32>
    %29 = math.tanh %28 : vector<2x32xf32>
    %30 = vector.extract_strided_slice %15 {offsets = [0, 96], sizes = [2, 32], strides = [1, 1]} : vector<2x128xf32> to vector<2x32xf32>
    %31 = arith.negf %30 : vector<2x32xf32>
    %32 = math.exp %31 : vector<2x32xf32>
    %cst_16 = arith.constant 1.000000e+00 : f32
    %33 = vector.broadcast %cst_16 : f32 to vector<2x32xf32>
    %34 = arith.addf %33, %32 : vector<2x32xf32>
    %35 = arith.divf %33, %34 : vector<2x32xf32>
    %36 = arith.mulf %27, %7 : vector<2x32xf32>
    %37 = arith.mulf %21, %29 : vector<2x32xf32>
    %38 = arith.addf %36, %37 : vector<2x32xf32>
    %39 = math.tanh %38 : vector<2x32xf32>
    %40 = arith.mulf %35, %39 : vector<2x32xf32>
    %41 = arith.truncf %40 : vector<2x32xf32> to vector<2x32xbf16>
    %c0_17 = arith.constant 0 : index
    %c0_18 = arith.constant 0 : index
    %c0_19 = arith.constant 0 : index
    %42 = vector.load %arg5[%c0_17, %c0_18, %c0_19] : memref<8x2x32xbf16, #tpu.memory_space<vmem>>, vector<1x2x32xbf16>
    %43 = vector.shape_cast %42 : vector<1x2x32xbf16> to vector<2x32xbf16>
    %44 = vector.shape_cast %41 : vector<2x32xbf16> to vector<1x2x32xbf16>
    tpu.vector_store %arg5[%c0_17, %c0_18, %c0_19], %44 {strides = array<i32>} : memref<8x2x32xbf16, #tpu.memory_space<vmem>>, vector<1x2x32xbf16>,
    %c1 = arith.constant 1 : index
    %c0_20 = arith.constant 0 : index
    %c0_21 = arith.constant 0 : index
    %45 = vector.load %arg1[%c1, %c0_20, %c0_21] : memref<8x2x64xbf16, #tpu.memory_space<vmem>>, vector<1x2x64xbf16>
    %46 = vector.shape_cast %45 : vector<1x2x64xbf16> to vector<2x64xbf16>
    %cst_22 = arith.constant dense<0.000000e+00> : vector<2x128xf32>
    %47 = tpu.matmul %46, %3, %cst_22 {dimension_numbers = #tpu.dot_dimension_numbers<[1], [0], [0], [1], [0, 0, 1, 1], [], []>} : vector<2x64xbf16>, vector<64x128xbf16>, vector<2x128xf32> -> vector<2x128xf32>
    %48 = arith.truncf %40 : vector<2x32xf32> to vector<2x32xbf16>
    %cst_23 = arith.constant dense<0.000000e+00> : vector<2x128xf32>
    %49 = tpu.matmul %48, %4, %cst_23 {dimension_numbers = #tpu.dot_dimension_numbers<[1], [0], [0], [1], [0, 0, 1, 1], [], []>} : vector<2x32xbf16>, vector<32x128xbf16>, vector<2x128xf32> -> vector<2x128xf32>
    %50 = arith.addf %47, %49 : vector<2x128xf32>
    %51 = vector.broadcast %5 : vector<1x128xf32> to vector<2x128xf32>
    %52 = arith.addf %50, %51 : vector<2x128xf32>
    %53 = vector.extract_strided_slice %52 {offsets = [0, 0], sizes = [2, 32], strides = [1, 1]} : vector<2x128xf32> to vector<2x32xf32>
    %54 = arith.negf %53 : vector<2x32xf32>
    %55 = math.exp %54 : vector<2x32xf32>
    %cst_24 = arith.constant 1.000000e+00 : f32
    %56 = vector.broadcast %cst_24 : f32 to vector<2x32xf32>
    %57 = arith.addf %56, %55 : vector<2x32xf32>
    %58 = arith.divf %56, %57 : vector<2x32xf32>
    %59 = vector.extract_strided_slice %52 {offsets = [0, 32], sizes = [2, 32], strides = [1, 1]} : vector<2x128xf32> to vector<2x32xf32>
    %60 = arith.negf %59 : vector<2x32xf32>
    %61 = math.exp %60 : vector<2x32xf32>
    %cst_25 = arith.constant 1.000000e+00 : f32
    %62 = vector.broadcast %cst_25 : f32 to vector<2x32xf32>
    %63 = arith.addf %62, %61 : vector<2x32xf32>
    %64 = arith.divf %62, %63 : vector<2x32xf32>
    %65 = vector.extract_strided_slice %52 {offsets = [0, 64], sizes = [2, 32], strides = [1, 1]} : vector<2x128xf32> to vector<2x32xf32>
    %66 = math.tanh %65 : vector<2x32xf32>
    %67 = vector.extract_strided_slice %52 {offsets = [0, 96], sizes = [2, 32], strides = [1, 1]} : vector<2x128xf32> to vector<2x32xf32>
    %68 = arith.negf %67 : vector<2x32xf32>
    %69 = math.exp %68 : vector<2x32xf32>
    %cst_26 = arith.constant 1.000000e+00 : f32
    %70 = vector.broadcast %cst_26 : f32 to vector<2x32xf32>
    %71 = arith.addf %70, %69 : vector<2x32xf32>
    %72 = arith.divf %70, %71 : vector<2x32xf32>
    %73 = arith.mulf %64, %38 : vector<2x32xf32>
    %74 = arith.mulf %58, %66 : vector<2x32xf32>
    %75 = arith.addf %73, %74 : vector<2x32xf32>
    %76 = math.tanh %75 : vector<2x32xf32>
    %77 = arith.mulf %72, %76 : vector<2x32xf32>
    %78 = arith.truncf %77 : vector<2x32xf32> to vector<2x32xbf16>
    %c1_27 = arith.constant 1 : index
    %c0_28 = arith.constant 0 : index
    %c0_29 = arith.constant 0 : index
    %79 = vector.load %arg5[%c1_27, %c0_28, %c0_29] : memref<8x2x32xbf16, #tpu.memory_space<vmem>>, vector<1x2x32xbf16>
    %80 = vector.shape_cast %79 : vector<1x2x32xbf16> to vector<2x32xbf16>
    %81 = vector.shape_cast %78 : vector<2x32xbf16> to vector<1x2x32xbf16>
    tpu.vector_store %arg5[%c1_27, %c0_28, %c0_29], %81 {strides = array<i32>} : memref<8x2x32xbf16, #tpu.memory_space<vmem>>, vector<1x2x32xbf16>,
    %c2 = arith.constant 2 : index
    %c0_30 = arith.constant 0 : index
    %c0_31 = arith.constant 0 : index
    %82 = vector.load %arg1[%c2, %c0_30, %c0_31] : memref<8x2x64xbf16, #tpu.memory_space<vmem>>, vector<1x2x64xbf16>
    %83 = vector.shape_cast %82 : vector<1x2x64xbf16> to vector<2x64xbf16>
    %cst_32 = arith.constant dense<0.000000e+00> : vector<2x128xf32>
    %84 = tpu.matmul %83, %3, %cst_32 {dimension_numbers = #tpu.dot_dimension_numbers<[1], [0], [0], [1], [0, 0, 1, 1], [], []>} : vector<2x64xbf16>, vector<64x128xbf16>, vector<2x128xf32> -> vector<2x128xf32>
    %85 = arith.truncf %77 : vector<2x32xf32> to vector<2x32xbf16>
    %cst_33 = arith.constant dense<0.000000e+00> : vector<2x128xf32>
    %86 = tpu.matmul %85, %4, %cst_33 {dimension_numbers = #tpu.dot_dimension_numbers<[1], [0], [0], [1], [0, 0, 1, 1], [], []>} : vector<2x32xbf16>, vector<32x128xbf16>, vector<2x128xf32> -> vector<2x128xf32>
    %87 = arith.addf %84, %86 : vector<2x128xf32>
    %88 = vector.broadcast %5 : vector<1x128xf32> to vector<2x128xf32>
    %89 = arith.addf %87, %88 : vector<2x128xf32>
    %90 = vector.extract_strided_slice %89 {offsets = [0, 0], sizes = [2, 32], strides = [1, 1]} : vector<2x128xf32> to vector<2x32xf32>
    %91 = arith.negf %90 : vector<2x32xf32>
    %92 = math.exp %91 : vector<2x32xf32>
    %cst_34 = arith.constant 1.000000e+00 : f32
    %93 = vector.broadcast %cst_34 : f32 to vector<2x32xf32>
    %94 = arith.addf %93, %92 : vector<2x32xf32>
    %95 = arith.divf %93, %94 : vector<2x32xf32>
    %96 = vector.extract_strided_slice %89 {offsets = [0, 32], sizes = [2, 32], strides = [1, 1]} : vector<2x128xf32> to vector<2x32xf32>
    %97 = arith.negf %96 : vector<2x32xf32>
    %98 = math.exp %97 : vector<2x32xf32>
    %cst_35 = arith.constant 1.000000e+00 : f32
    %99 = vector.broadcast %cst_35 : f32 to vector<2x32xf32>
    %100 = arith.addf %99, %98 : vector<2x32xf32>
    %101 = arith.divf %99, %100 : vector<2x32xf32>
    %102 = vector.extract_strided_slice %89 {offsets = [0, 64], sizes = [2, 32], strides = [1, 1]} : vector<2x128xf32> to vector<2x32xf32>
    %103 = math.tanh %102 : vector<2x32xf32>
    %104 = vector.extract_strided_slice %89 {offsets = [0, 96], sizes = [2, 32], strides = [1, 1]} : vector<2x128xf32> to vector<2x32xf32>
    %105 = arith.negf %104 : vector<2x32xf32>
    %106 = math.exp %105 : vector<2x32xf32>
    %cst_36 = arith.constant 1.000000e+00 : f32
    %107 = vector.broadcast %cst_36 : f32 to vector<2x32xf32>
    %108 = arith.addf %107, %106 : vector<2x32xf32>
    %109 = arith.divf %107, %108 : vector<2x32xf32>
    %110 = arith.mulf %101, %75 : vector<2x32xf32>
    %111 = arith.mulf %95, %103 : vector<2x32xf32>
    %112 = arith.addf %110, %111 : vector<2x32xf32>
    %113 = math.tanh %112 : vector<2x32xf32>
    %114 = arith.mulf %109, %113 : vector<2x32xf32>
    %115 = arith.truncf %114 : vector<2x32xf32> to vector<2x32xbf16>
    %c2_37 = arith.constant 2 : index
    %c0_38 = arith.constant 0 : index
    %c0_39 = arith.constant 0 : index
    %116 = vector.load %arg5[%c2_37, %c0_38, %c0_39] : memref<8x2x32xbf16, #tpu.memory_space<vmem>>, vector<1x2x32xbf16>
    %117 = vector.shape_cast %116 : vector<1x2x32xbf16> to vector<2x32xbf16>
    %118 = vector.shape_cast %115 : vector<2x32xbf16> to vector<1x2x32xbf16>
    tpu.vector_store %arg5[%c2_37, %c0_38, %c0_39], %118 {strides = array<i32>} : memref<8x2x32xbf16, #tpu.memory_space<vmem>>, vector<1x2x32xbf16>,
    %c3 = arith.constant 3 : index
    %c0_40 = arith.constant 0 : index
    %c0_41 = arith.constant 0 : index
    %119 = vector.load %arg1[%c3, %c0_40, %c0_41] : memref<8x2x64xbf16, #tpu.memory_space<vmem>>, vector<1x2x64xbf16>
    %120 = vector.shape_cast %119 : vector<1x2x64xbf16> to vector<2x64xbf16>
    %cst_42 = arith.constant dense<0.000000e+00> : vector<2x128xf32>
    %121 = tpu.matmul %120, %3, %cst_42 {dimension_numbers = #tpu.dot_dimension_numbers<[1], [0], [0], [1], [0, 0, 1, 1], [], []>} : vector<2x64xbf16>, vector<64x128xbf16>, vector<2x128xf32> -> vector<2x128xf32>
    %122 = arith.truncf %114 : vector<2x32xf32> to vector<2x32xbf16>
    %cst_43 = arith.constant dense<0.000000e+00> : vector<2x128xf32>
    %123 = tpu.matmul %122, %4, %cst_43 {dimension_numbers = #tpu.dot_dimension_numbers<[1], [0], [0], [1], [0, 0, 1, 1], [], []>} : vector<2x32xbf16>, vector<32x128xbf16>, vector<2x128xf32> -> vector<2x128xf32>
    %124 = arith.addf %121, %123 : vector<2x128xf32>
    %125 = vector.broadcast %5 : vector<1x128xf32> to vector<2x128xf32>
    %126 = arith.addf %124, %125 : vector<2x128xf32>
    %127 = vector.extract_strided_slice %126 {offsets = [0, 0], sizes = [2, 32], strides = [1, 1]} : vector<2x128xf32> to vector<2x32xf32>
    %128 = arith.negf %127 : vector<2x32xf32>
    %129 = math.exp %128 : vector<2x32xf32>
    %cst_44 = arith.constant 1.000000e+00 : f32
    %130 = vector.broadcast %cst_44 : f32 to vector<2x32xf32>
    %131 = arith.addf %130, %129 : vector<2x32xf32>
    %132 = arith.divf %130, %131 : vector<2x32xf32>
    %133 = vector.extract_strided_slice %126 {offsets = [0, 32], sizes = [2, 32], strides = [1, 1]} : vector<2x128xf32> to vector<2x32xf32>
    %134 = arith.negf %133 : vector<2x32xf32>
    %135 = math.exp %134 : vector<2x32xf32>
    %cst_45 = arith.constant 1.000000e+00 : f32
    %136 = vector.broadcast %cst_45 : f32 to vector<2x32xf32>
    %137 = arith.addf %136, %135 : vector<2x32xf32>
    %138 = arith.divf %136, %137 : vector<2x32xf32>
    %139 = vector.extract_strided_slice %126 {offsets = [0, 64], sizes = [2, 32], strides = [1, 1]} : vector<2x128xf32> to vector<2x32xf32>
    %140 = math.tanh %139 : vector<2x32xf32>
    %141 = vector.extract_strided_slice %126 {offsets = [0, 96], sizes = [2, 32], strides = [1, 1]} : vector<2x128xf32> to vector<2x32xf32>
    %142 = arith.negf %141 : vector<2x32xf32>
    %143 = math.exp %142 : vector<2x32xf32>
    %cst_46 = arith.constant 1.000000e+00 : f32
    %144 = vector.broadcast %cst_46 : f32 to vector<2x32xf32>
    %145 = arith.addf %144, %143 : vector<2x32xf32>
    %146 = arith.divf %144, %145 : vector<2x32xf32>
    %147 = arith.mulf %138, %112 : vector<2x32xf32>
    %148 = arith.mulf %132, %140 : vector<2x32xf32>
    %149 = arith.addf %147, %148 : vector<2x32xf32>
    %150 = math.tanh %149 : vector<2x32xf32>
    %151 = arith.mulf %146, %150 : vector<2x32xf32>
    %152 = arith.truncf %151 : vector<2x32xf32> to vector<2x32xbf16>
    %c3_47 = arith.constant 3 : index
    %c0_48 = arith.constant 0 : index
    %c0_49 = arith.constant 0 : index
    %153 = vector.load %arg5[%c3_47, %c0_48, %c0_49] : memref<8x2x32xbf16, #tpu.memory_space<vmem>>, vector<1x2x32xbf16>
    %154 = vector.shape_cast %153 : vector<1x2x32xbf16> to vector<2x32xbf16>
    %155 = vector.shape_cast %152 : vector<2x32xbf16> to vector<1x2x32xbf16>
    tpu.vector_store %arg5[%c3_47, %c0_48, %c0_49], %155 {strides = array<i32>} : memref<8x2x32xbf16, #tpu.memory_space<vmem>>, vector<1x2x32xbf16>,
    %c4 = arith.constant 4 : index
    %c0_50 = arith.constant 0 : index
    %c0_51 = arith.constant 0 : index
    %156 = vector.load %arg1[%c4, %c0_50, %c0_51] : memref<8x2x64xbf16, #tpu.memory_space<vmem>>, vector<1x2x64xbf16>
    %157 = vector.shape_cast %156 : vector<1x2x64xbf16> to vector<2x64xbf16>
    %cst_52 = arith.constant dense<0.000000e+00> : vector<2x128xf32>
    %158 = tpu.matmul %157, %3, %cst_52 {dimension_numbers = #tpu.dot_dimension_numbers<[1], [0], [0], [1], [0, 0, 1, 1], [], []>} : vector<2x64xbf16>, vector<64x128xbf16>, vector<2x128xf32> -> vector<2x128xf32>
    %159 = arith.truncf %151 : vector<2x32xf32> to vector<2x32xbf16>
    %cst_53 = arith.constant dense<0.000000e+00> : vector<2x128xf32>
    %160 = tpu.matmul %159, %4, %cst_53 {dimension_numbers = #tpu.dot_dimension_numbers<[1], [0], [0], [1], [0, 0, 1, 1], [], []>} : vector<2x32xbf16>, vector<32x128xbf16>, vector<2x128xf32> -> vector<2x128xf32>
    %161 = arith.addf %158, %160 : vector<2x128xf32>
    %162 = vector.broadcast %5 : vector<1x128xf32> to vector<2x128xf32>
    %163 = arith.addf %161, %162 : vector<2x128xf32>
    %164 = vector.extract_strided_slice %163 {offsets = [0, 0], sizes = [2, 32], strides = [1, 1]} : vector<2x128xf32> to vector<2x32xf32>
    %165 = arith.negf %164 : vector<2x32xf32>
    %166 = math.exp %165 : vector<2x32xf32>
    %cst_54 = arith.constant 1.000000e+00 : f32
    %167 = vector.broadcast %cst_54 : f32 to vector<2x32xf32>
    %168 = arith.addf %167, %166 : vector<2x32xf32>
    %169 = arith.divf %167, %168 : vector<2x32xf32>
    %170 = vector.extract_strided_slice %163 {offsets = [0, 32], sizes = [2, 32], strides = [1, 1]} : vector<2x128xf32> to vector<2x32xf32>
    %171 = arith.negf %170 : vector<2x32xf32>
    %172 = math.exp %171 : vector<2x32xf32>
    %cst_55 = arith.constant 1.000000e+00 : f32
    %173 = vector.broadcast %cst_55 : f32 to vector<2x32xf32>
    %174 = arith.addf %173, %172 : vector<2x32xf32>
    %175 = arith.divf %173, %174 : vector<2x32xf32>
    %176 = vector.extract_strided_slice %163 {offsets = [0, 64], sizes = [2, 32], strides = [1, 1]} : vector<2x128xf32> to vector<2x32xf32>
    %177 = math.tanh %176 : vector<2x32xf32>
    %178 = vector.extract_strided_slice %163 {offsets = [0, 96], sizes = [2, 32], strides = [1, 1]} : vector<2x128xf32> to vector<2x32xf32>
    %179 = arith.negf %178 : vector<2x32xf32>
    %180 = math.exp %179 : vector<2x32xf32>
    %cst_56 = arith.constant 1.000000e+00 : f32
    %181 = vector.broadcast %cst_56 : f32 to vector<2x32xf32>
    %182 = arith.addf %181, %180 : vector<2x32xf32>
    %183 = arith.divf %181, %182 : vector<2x32xf32>
    %184 = arith.mulf %175, %149 : vector<2x32xf32>
    %185 = arith.mulf %169, %177 : vector<2x32xf32>
    %186 = arith.addf %184, %185 : vector<2x32xf32>
    %187 = math.tanh %186 : vector<2x32xf32>
    %188 = arith.mulf %183, %187 : vector<2x32xf32>
    %189 = arith.truncf %188 : vector<2x32xf32> to vector<2x32xbf16>
    %c4_57 = arith.constant 4 : index
    %c0_58 = arith.constant 0 : index
    %c0_59 = arith.constant 0 : index
    %190 = vector.load %arg5[%c4_57, %c0_58, %c0_59] : memref<8x2x32xbf16, #tpu.memory_space<vmem>>, vector<1x2x32xbf16>
    %191 = vector.shape_cast %190 : vector<1x2x32xbf16> to vector<2x32xbf16>
    %192 = vector.shape_cast %189 : vector<2x32xbf16> to vector<1x2x32xbf16>
    tpu.vector_store %arg5[%c4_57, %c0_58, %c0_59], %192 {strides = array<i32>} : memref<8x2x32xbf16, #tpu.memory_space<vmem>>, vector<1x2x32xbf16>,
    %c5 = arith.constant 5 : index
    %c0_60 = arith.constant 0 : index
    %c0_61 = arith.constant 0 : index
    %193 = vector.load %arg1[%c5, %c0_60, %c0_61] : memref<8x2x64xbf16, #tpu.memory_space<vmem>>, vector<1x2x64xbf16>
    %194 = vector.shape_cast %193 : vector<1x2x64xbf16> to vector<2x64xbf16>
    %cst_62 = arith.constant dense<0.000000e+00> : vector<2x128xf32>
    %195 = tpu.matmul %194, %3, %cst_62 {dimension_numbers = #tpu.dot_dimension_numbers<[1], [0], [0], [1], [0, 0, 1, 1], [], []>} : vector<2x64xbf16>, vector<64x128xbf16>, vector<2x128xf32> -> vector<2x128xf32>
    %196 = arith.truncf %188 : vector<2x32xf32> to vector<2x32xbf16>
    %cst_63 = arith.constant dense<0.000000e+00> : vector<2x128xf32>
    %197 = tpu.matmul %196, %4, %cst_63 {dimension_numbers = #tpu.dot_dimension_numbers<[1], [0], [0], [1], [0, 0, 1, 1], [], []>} : vector<2x32xbf16>, vector<32x128xbf16>, vector<2x128xf32> -> vector<2x128xf32>
    %198 = arith.addf %195, %197 : vector<2x128xf32>
    %199 = vector.broadcast %5 : vector<1x128xf32> to vector<2x128xf32>
    %200 = arith.addf %198, %199 : vector<2x128xf32>
    %201 = vector.extract_strided_slice %200 {offsets = [0, 0], sizes = [2, 32], strides = [1, 1]} : vector<2x128xf32> to vector<2x32xf32>
    %202 = arith.negf %201 : vector<2x32xf32>
    %203 = math.exp %202 : vector<2x32xf32>
    %cst_64 = arith.constant 1.000000e+00 : f32
    %204 = vector.broadcast %cst_64 : f32 to vector<2x32xf32>
    %205 = arith.addf %204, %203 : vector<2x32xf32>
    %206 = arith.divf %204, %205 : vector<2x32xf32>
    %207 = vector.extract_strided_slice %200 {offsets = [0, 32], sizes = [2, 32], strides = [1, 1]} : vector<2x128xf32> to vector<2x32xf32>
    %208 = arith.negf %207 : vector<2x32xf32>
    %209 = math.exp %208 : vector<2x32xf32>
    %cst_65 = arith.constant 1.000000e+00 : f32
    %210 = vector.broadcast %cst_65 : f32 to vector<2x32xf32>
    %211 = arith.addf %210, %209 : vector<2x32xf32>
    %212 = arith.divf %210, %211 : vector<2x32xf32>
    %213 = vector.extract_strided_slice %200 {offsets = [0, 64], sizes = [2, 32], strides = [1, 1]} : vector<2x128xf32> to vector<2x32xf32>
    %214 = math.tanh %213 : vector<2x32xf32>
    %215 = vector.extract_strided_slice %200 {offsets = [0, 96], sizes = [2, 32], strides = [1, 1]} : vector<2x128xf32> to vector<2x32xf32>
    %216 = arith.negf %215 : vector<2x32xf32>
    %217 = math.exp %216 : vector<2x32xf32>
    %cst_66 = arith.constant 1.000000e+00 : f32
    %218 = vector.broadcast %cst_66 : f32 to vector<2x32xf32>
    %219 = arith.addf %218, %217 : vector<2x32xf32>
    %220 = arith.divf %218, %219 : vector<2x32xf32>
    %221 = arith.mulf %212, %186 : vector<2x32xf32>
    %222 = arith.mulf %206, %214 : vector<2x32xf32>
    %223 = arith.addf %221, %222 : vector<2x32xf32>
    %224 = math.tanh %223 : vector<2x32xf32>
    %225 = arith.mulf %220, %224 : vector<2x32xf32>
    %226 = arith.truncf %225 : vector<2x32xf32> to vector<2x32xbf16>
    %c5_67 = arith.constant 5 : index
    %c0_68 = arith.constant 0 : index
    %c0_69 = arith.constant 0 : index
    %227 = vector.load %arg5[%c5_67, %c0_68, %c0_69] : memref<8x2x32xbf16, #tpu.memory_space<vmem>>, vector<1x2x32xbf16>
    %228 = vector.shape_cast %227 : vector<1x2x32xbf16> to vector<2x32xbf16>
    %229 = vector.shape_cast %226 : vector<2x32xbf16> to vector<1x2x32xbf16>
    tpu.vector_store %arg5[%c5_67, %c0_68, %c0_69], %229 {strides = array<i32>} : memref<8x2x32xbf16, #tpu.memory_space<vmem>>, vector<1x2x32xbf16>,
    %c6 = arith.constant 6 : index
    %c0_70 = arith.constant 0 : index
    %c0_71 = arith.constant 0 : index
    %230 = vector.load %arg1[%c6, %c0_70, %c0_71] : memref<8x2x64xbf16, #tpu.memory_space<vmem>>, vector<1x2x64xbf16>
    %231 = vector.shape_cast %230 : vector<1x2x64xbf16> to vector<2x64xbf16>
    %cst_72 = arith.constant dense<0.000000e+00> : vector<2x128xf32>
    %232 = tpu.matmul %231, %3, %cst_72 {dimension_numbers = #tpu.dot_dimension_numbers<[1], [0], [0], [1], [0, 0, 1, 1], [], []>} : vector<2x64xbf16>, vector<64x128xbf16>, vector<2x128xf32> -> vector<2x128xf32>
    %233 = arith.truncf %225 : vector<2x32xf32> to vector<2x32xbf16>
    %cst_73 = arith.constant dense<0.000000e+00> : vector<2x128xf32>
    %234 = tpu.matmul %233, %4, %cst_73 {dimension_numbers = #tpu.dot_dimension_numbers<[1], [0], [0], [1], [0, 0, 1, 1], [], []>} : vector<2x32xbf16>, vector<32x128xbf16>, vector<2x128xf32> -> vector<2x128xf32>
    %235 = arith.addf %232, %234 : vector<2x128xf32>
    %236 = vector.broadcast %5 : vector<1x128xf32> to vector<2x128xf32>
    %237 = arith.addf %235, %236 : vector<2x128xf32>
    %238 = vector.extract_strided_slice %237 {offsets = [0, 0], sizes = [2, 32], strides = [1, 1]} : vector<2x128xf32> to vector<2x32xf32>
    %239 = arith.negf %238 : vector<2x32xf32>
    %240 = math.exp %239 : vector<2x32xf32>
    %cst_74 = arith.constant 1.000000e+00 : f32
    %241 = vector.broadcast %cst_74 : f32 to vector<2x32xf32>
    %242 = arith.addf %241, %240 : vector<2x32xf32>
    %243 = arith.divf %241, %242 : vector<2x32xf32>
    %244 = vector.extract_strided_slice %237 {offsets = [0, 32], sizes = [2, 32], strides = [1, 1]} : vector<2x128xf32> to vector<2x32xf32>
    %245 = arith.negf %244 : vector<2x32xf32>
    %246 = math.exp %245 : vector<2x32xf32>
    %cst_75 = arith.constant 1.000000e+00 : f32
    %247 = vector.broadcast %cst_75 : f32 to vector<2x32xf32>
    %248 = arith.addf %247, %246 : vector<2x32xf32>
    %249 = arith.divf %247, %248 : vector<2x32xf32>
    %250 = vector.extract_strided_slice %237 {offsets = [0, 64], sizes = [2, 32], strides = [1, 1]} : vector<2x128xf32> to vector<2x32xf32>
    %251 = math.tanh %250 : vector<2x32xf32>
    %252 = vector.extract_strided_slice %237 {offsets = [0, 96], sizes = [2, 32], strides = [1, 1]} : vector<2x128xf32> to vector<2x32xf32>
    %253 = arith.negf %252 : vector<2x32xf32>
    %254 = math.exp %253 : vector<2x32xf32>
    %cst_76 = arith.constant 1.000000e+00 : f32
    %255 = vector.broadcast %cst_76 : f32 to vector<2x32xf32>
    %256 = arith.addf %255, %254 : vector<2x32xf32>
    %257 = arith.divf %255, %256 : vector<2x32xf32>
    %258 = arith.mulf %249, %223 : vector<2x32xf32>
    %259 = arith.mulf %243, %251 : vector<2x32xf32>
    %260 = arith.addf %258, %259 : vector<2x32xf32>
    %261 = math.tanh %260 : vector<2x32xf32>
    %262 = arith.mulf %257, %261 : vector<2x32xf32>
    %263 = arith.truncf %262 : vector<2x32xf32> to vector<2x32xbf16>
    %c6_77 = arith.constant 6 : index
    %c0_78 = arith.constant 0 : index
    %c0_79 = arith.constant 0 : index
    %264 = vector.load %arg5[%c6_77, %c0_78, %c0_79] : memref<8x2x32xbf16, #tpu.memory_space<vmem>>, vector<1x2x32xbf16>
    %265 = vector.shape_cast %264 : vector<1x2x32xbf16> to vector<2x32xbf16>
    %266 = vector.shape_cast %263 : vector<2x32xbf16> to vector<1x2x32xbf16>
    tpu.vector_store %arg5[%c6_77, %c0_78, %c0_79], %266 {strides = array<i32>} : memref<8x2x32xbf16, #tpu.memory_space<vmem>>, vector<1x2x32xbf16>,
    %c7 = arith.constant 7 : index
    %c0_80 = arith.constant 0 : index
    %c0_81 = arith.constant 0 : index
    %267 = vector.load %arg1[%c7, %c0_80, %c0_81] : memref<8x2x64xbf16, #tpu.memory_space<vmem>>, vector<1x2x64xbf16>
    %268 = vector.shape_cast %267 : vector<1x2x64xbf16> to vector<2x64xbf16>
    %cst_82 = arith.constant dense<0.000000e+00> : vector<2x128xf32>
    %269 = tpu.matmul %268, %3, %cst_82 {dimension_numbers = #tpu.dot_dimension_numbers<[1], [0], [0], [1], [0, 0, 1, 1], [], []>} : vector<2x64xbf16>, vector<64x128xbf16>, vector<2x128xf32> -> vector<2x128xf32>
    %270 = arith.truncf %262 : vector<2x32xf32> to vector<2x32xbf16>
    %cst_83 = arith.constant dense<0.000000e+00> : vector<2x128xf32>
    %271 = tpu.matmul %270, %4, %cst_83 {dimension_numbers = #tpu.dot_dimension_numbers<[1], [0], [0], [1], [0, 0, 1, 1], [], []>} : vector<2x32xbf16>, vector<32x128xbf16>, vector<2x128xf32> -> vector<2x128xf32>
    %272 = arith.addf %269, %271 : vector<2x128xf32>
    %273 = vector.broadcast %5 : vector<1x128xf32> to vector<2x128xf32>
    %274 = arith.addf %272, %273 : vector<2x128xf32>
    %275 = vector.extract_strided_slice %274 {offsets = [0, 0], sizes = [2, 32], strides = [1, 1]} : vector<2x128xf32> to vector<2x32xf32>
    %276 = arith.negf %275 : vector<2x32xf32>
    %277 = math.exp %276 : vector<2x32xf32>
    %cst_84 = arith.constant 1.000000e+00 : f32
    %278 = vector.broadcast %cst_84 : f32 to vector<2x32xf32>
    %279 = arith.addf %278, %277 : vector<2x32xf32>
    %280 = arith.divf %278, %279 : vector<2x32xf32>
    %281 = vector.extract_strided_slice %274 {offsets = [0, 32], sizes = [2, 32], strides = [1, 1]} : vector<2x128xf32> to vector<2x32xf32>
    %282 = arith.negf %281 : vector<2x32xf32>
    %283 = math.exp %282 : vector<2x32xf32>
    %cst_85 = arith.constant 1.000000e+00 : f32
    %284 = vector.broadcast %cst_85 : f32 to vector<2x32xf32>
    %285 = arith.addf %284, %283 : vector<2x32xf32>
    %286 = arith.divf %284, %285 : vector<2x32xf32>
    %287 = vector.extract_strided_slice %274 {offsets = [0, 64], sizes = [2, 32], strides = [1, 1]} : vector<2x128xf32> to vector<2x32xf32>
    %288 = math.tanh %287 : vector<2x32xf32>
    %289 = vector.extract_strided_slice %274 {offsets = [0, 96], sizes = [2, 32], strides = [1, 1]} : vector<2x128xf32> to vector<2x32xf32>
    %290 = arith.negf %289 : vector<2x32xf32>
    %291 = math.exp %290 : vector<2x32xf32>
    %cst_86 = arith.constant 1.000000e+00 : f32
    %292 = vector.broadcast %cst_86 : f32 to vector<2x32xf32>
    %293 = arith.addf %292, %291 : vector<2x32xf32>
    %294 = arith.divf %292, %293 : vector<2x32xf32>
    %295 = arith.mulf %286, %260 : vector<2x32xf32>
    %296 = arith.mulf %280, %288 : vector<2x32xf32>
    %297 = arith.addf %295, %296 : vector<2x32xf32>
    %298 = math.tanh %297 : vector<2x32xf32>
    %299 = arith.mulf %294, %298 : vector<2x32xf32>
    %300 = arith.truncf %299 : vector<2x32xf32> to vector<2x32xbf16>
    %c7_87 = arith.constant 7 : index
    %c0_88 = arith.constant 0 : index
    %c0_89 = arith.constant 0 : index
    %301 = vector.load %arg5[%c7_87, %c0_88, %c0_89] : memref<8x2x32xbf16, #tpu.memory_space<vmem>>, vector<1x2x32xbf16>
    %302 = vector.shape_cast %301 : vector<1x2x32xbf16> to vector<2x32xbf16>
    %303 = vector.shape_cast %300 : vector<2x32xbf16> to vector<1x2x32xbf16>
    tpu.vector_store %arg5[%c7_87, %c0_88, %c0_89], %303 {strides = array<i32>} : memref<8x2x32xbf16, #tpu.memory_space<vmem>>, vector<1x2x32xbf16>,
    %c0_90 = arith.constant 0 : index
    %c0_91 = arith.constant 0 : index
    %304 = vector.load %arg6[%c0_90, %c0_91] : memref<2x32xf32, #tpu.memory_space<vmem>>, vector<2x32xf32>
    tpu.vector_store %arg6[%c0_90, %c0_91], %299 {strides = array<i32>} : memref<2x32xf32, #tpu.memory_space<vmem>>, vector<2x32xf32>,
    %c0_92 = arith.constant 0 : index
    %c0_93 = arith.constant 0 : index
    %305 = vector.load %arg7[%c0_92, %c0_93] : memref<2x32xf32, #tpu.memory_space<vmem>>, vector<2x32xf32>
    tpu.vector_store %arg7[%c0_92, %c0_93], %297 {strides = array<i32>} : memref<2x32xf32, #tpu.memory_space<vmem>>, vector<2x32xf32>,
    return
  }
  func.func @transform_0(%arg0: i32) -> (i32, i32, i32) {
    %c0_i32 = arith.constant 0 : i32
    %c0_i32_0 = arith.constant 0 : i32
    %c0_i32_1 = arith.constant 0 : i32
    return %arg0, %c0_i32, %c0_i32_0 : i32, i32, i32
  }
  func.func @transform_1(%arg0: i32) -> (i32, i32) {
    %c0_i32 = arith.constant 0 : i32
    %c0_i32_0 = arith.constant 0 : i32
    %c0_i32_1 = arith.constant 0 : i32
    return %c0_i32, %c0_i32_0 : i32, i32
  }
  func.func @transform_2(%arg0: i32) -> (i32, i32) {
    %c0_i32 = arith.constant 0 : i32
    %c0_i32_0 = arith.constant 0 : i32
    %c0_i32_1 = arith.constant 0 : i32
    return %c0_i32, %c0_i32_0 : i32, i32
  }
  func.func @transform_3(%arg0: i32) -> (i32, i32) {
    %c0_i32 = arith.constant 0 : i32
    %c0_i32_0 = arith.constant 0 : i32
    %c0_i32_1 = arith.constant 0 : i32
    return %c0_i32, %c0_i32_0 : i32, i32
  }
  func.func @transform_4(%arg0: i32) -> (i32, i32, i32) {
    %c0_i32 = arith.constant 0 : i32
    %c0_i32_0 = arith.constant 0 : i32
    %c0_i32_1 = arith.constant 0 : i32
    return %arg0, %c0_i32, %c0_i32_0 : i32, i32, i32
  }
}

module attributes {stable_mosaic.version = 11 : i64} {
  func.func @_bilstm_block_kernel(%arg0: i32, %arg1: i32, %arg2: memref<8x2x32xbf16, #tpu.memory_space<vmem>>, %arg3: memref<1x32x128xbf16, #tpu.memory_space<vmem>>, %arg4: memref<1x32x128xbf16, #tpu.memory_space<vmem>>, %arg5: memref<1x1x128xf32, #tpu.memory_space<vmem>>, %arg6: memref<2x1xi32, #tpu.memory_space<vmem>>, %arg7: memref<1x8x2x32xbf16, #tpu.memory_space<vmem>>, %arg8: memref<2x32xf32, #tpu.memory_space<vmem>>, %arg9: memref<2x32xf32, #tpu.memory_space<vmem>>) attributes {dimension_semantics = [#tpu.dimension_semantics<parallel>, #tpu.dimension_semantics<arbitrary>], iteration_bounds = array<i64: 2, 1>, scalar_prefetch = 0 : i64, scratch_operands = 2 : i64, tpu.core_type = #tpu.core_type<tc>, window_params = [{transform_indices = @transform_0, window_bounds = array<i64: 8, 2, 32>}, {pipeline_mode = #tpu.pipeline_mode<synchronous>, transform_indices = @transform_1, window_bounds = array<i64: 1, 32, 128>}, {pipeline_mode = #tpu.pipeline_mode<synchronous>, transform_indices = @transform_2, window_bounds = array<i64: 1, 32, 128>}, {pipeline_mode = #tpu.pipeline_mode<synchronous>, transform_indices = @transform_3, window_bounds = array<i64: 1, 1, 128>}, {pipeline_mode = #tpu.pipeline_mode<synchronous>, transform_indices = @transform_4, window_bounds = array<i64: 2, 1>}, {transform_indices = @transform_5, window_bounds = array<i64: 1, 8, 2, 32>}]} {
    %c0_i32 = arith.constant 0 : i32
    %0 = arith.cmpi eq, %arg1, %c0_i32 : i32
    %1 = arith.extui %0 : i1 to i32
    %c0_i32_0 = arith.constant 0 : i32
    %2 = arith.cmpi ne, %1, %c0_i32_0 : i32
    scf.if %2 {
      %cst_113 = arith.constant 0.000000e+00 : f32
      %451 = vector.broadcast %cst_113 : f32 to vector<2x32xf32>
      %c0_114 = arith.constant 0 : index
      %c0_115 = arith.constant 0 : index
      %452 = vector.load %arg8[%c0_114, %c0_115] : memref<2x32xf32, #tpu.memory_space<vmem>>, vector<2x32xf32>
      tpu.vector_store %arg8[%c0_114, %c0_115], %451 {strides = array<i32>} : memref<2x32xf32, #tpu.memory_space<vmem>>, vector<2x32xf32>,
      %cst_116 = arith.constant 0.000000e+00 : f32
      %453 = vector.broadcast %cst_116 : f32 to vector<2x32xf32>
      %c0_117 = arith.constant 0 : index
      %c0_118 = arith.constant 0 : index
      %454 = vector.load %arg9[%c0_117, %c0_118] : memref<2x32xf32, #tpu.memory_space<vmem>>, vector<2x32xf32>
      tpu.vector_store %arg9[%c0_117, %c0_118], %453 {strides = array<i32>} : memref<2x32xf32, #tpu.memory_space<vmem>>, vector<2x32xf32>,
    } else {
    }
    %c0 = arith.constant 0 : index
    %c0_1 = arith.constant 0 : index
    %c0_2 = arith.constant 0 : index
    %3 = vector.load %arg3[%c0, %c0_1, %c0_2] : memref<1x32x128xbf16, #tpu.memory_space<vmem>>, vector<1x32x128xbf16>
    %4 = vector.shape_cast %3 : vector<1x32x128xbf16> to vector<32x128xbf16>
    %c0_3 = arith.constant 0 : index
    %c0_4 = arith.constant 0 : index
    %c0_5 = arith.constant 0 : index
    %5 = vector.load %arg4[%c0_3, %c0_4, %c0_5] : memref<1x32x128xbf16, #tpu.memory_space<vmem>>, vector<1x32x128xbf16>
    %6 = vector.shape_cast %5 : vector<1x32x128xbf16> to vector<32x128xbf16>
    %c0_6 = arith.constant 0 : index
    %c0_7 = arith.constant 0 : index
    %c0_8 = arith.constant 0 : index
    %7 = vector.load %arg5[%c0_6, %c0_7, %c0_8] : memref<1x1x128xf32, #tpu.memory_space<vmem>>, vector<1x1x128xf32>
    %8 = vector.shape_cast %7 : vector<1x1x128xf32> to vector<1x128xf32>
    %c0_9 = arith.constant 0 : index
    %c0_10 = arith.constant 0 : index
    %9 = vector.load %arg6[%c0_9, %c0_10] : memref<2x1xi32, #tpu.memory_space<vmem>>, vector<2x1xi32>
    %c2_i32 = arith.constant 2 : i32
    %10 = arith.muli %c2_i32, %arg1 : i32
    %c0_i32_11 = arith.constant 0 : i32
    %11 = arith.subi %c0_i32_11, %10 : i32
    %12 = arith.muli %arg0, %11 : i32
    %13 = arith.addi %arg1, %12 : i32
    %c8_i32 = arith.constant 8 : i32
    %14 = arith.muli %13, %c8_i32 : i32
    %c0_12 = arith.constant 0 : index
    %c0_13 = arith.constant 0 : index
    %15 = vector.load %arg8[%c0_12, %c0_13] : memref<2x32xf32, #tpu.memory_space<vmem>>, vector<2x32xf32>
    %c0_14 = arith.constant 0 : index
    %c0_15 = arith.constant 0 : index
    %16 = vector.load %arg9[%c0_14, %c0_15] : memref<2x32xf32, #tpu.memory_space<vmem>>, vector<2x32xf32>
    %c7_i32 = arith.constant 7 : i32
    %17 = arith.muli %arg0, %c7_i32 : i32
    %c0_i32_16 = arith.constant 0 : i32
    %18 = arith.addi %c0_i32_16, %17 : i32
    %19 = arith.index_cast %18 : i32 to index
    %c0_17 = arith.constant 0 : index
    %c0_18 = arith.constant 0 : index
    %20 = vector.load %arg2[%19, %c0_17, %c0_18] : memref<8x2x32xbf16, #tpu.memory_space<vmem>>, vector<1x2x32xbf16>
    %21 = vector.shape_cast %20 : vector<1x2x32xbf16> to vector<2x32xbf16>
    %cst = arith.constant dense<0.000000e+00> : vector<2x128xf32>
    %22 = tpu.matmul %21, %4, %cst {dimension_numbers = #tpu.dot_dimension_numbers<[1], [0], [0], [1], [0, 0, 1, 1], [], []>} : vector<2x32xbf16>, vector<32x128xbf16>, vector<2x128xf32> -> vector<2x128xf32>
    %23 = arith.truncf %15 : vector<2x32xf32> to vector<2x32xbf16>
    %cst_19 = arith.constant dense<0.000000e+00> : vector<2x128xf32>
    %24 = tpu.matmul %23, %6, %cst_19 {dimension_numbers = #tpu.dot_dimension_numbers<[1], [0], [0], [1], [0, 0, 1, 1], [], []>} : vector<2x32xbf16>, vector<32x128xbf16>, vector<2x128xf32> -> vector<2x128xf32>
    %25 = arith.addf %22, %24 : vector<2x128xf32>
    %26 = vector.broadcast %8 : vector<1x128xf32> to vector<2x128xf32>
    %27 = arith.addf %25, %26 : vector<2x128xf32>
    %28 = vector.extract_strided_slice %27 {offsets = [0, 0], sizes = [2, 32], strides = [1, 1]} : vector<2x128xf32> to vector<2x32xf32>
    %29 = arith.negf %28 : vector<2x32xf32>
    %30 = math.exp %29 : vector<2x32xf32>
    %cst_20 = arith.constant 1.000000e+00 : f32
    %31 = vector.broadcast %cst_20 : f32 to vector<2x32xf32>
    %32 = arith.addf %31, %30 : vector<2x32xf32>
    %33 = arith.divf %31, %32 : vector<2x32xf32>
    %34 = vector.extract_strided_slice %27 {offsets = [0, 32], sizes = [2, 32], strides = [1, 1]} : vector<2x128xf32> to vector<2x32xf32>
    %35 = arith.negf %34 : vector<2x32xf32>
    %36 = math.exp %35 : vector<2x32xf32>
    %cst_21 = arith.constant 1.000000e+00 : f32
    %37 = vector.broadcast %cst_21 : f32 to vector<2x32xf32>
    %38 = arith.addf %37, %36 : vector<2x32xf32>
    %39 = arith.divf %37, %38 : vector<2x32xf32>
    %40 = vector.extract_strided_slice %27 {offsets = [0, 64], sizes = [2, 32], strides = [1, 1]} : vector<2x128xf32> to vector<2x32xf32>
    %41 = math.tanh %40 : vector<2x32xf32>
    %42 = vector.extract_strided_slice %27 {offsets = [0, 96], sizes = [2, 32], strides = [1, 1]} : vector<2x128xf32> to vector<2x32xf32>
    %43 = arith.negf %42 : vector<2x32xf32>
    %44 = math.exp %43 : vector<2x32xf32>
    %cst_22 = arith.constant 1.000000e+00 : f32
    %45 = vector.broadcast %cst_22 : f32 to vector<2x32xf32>
    %46 = arith.addf %45, %44 : vector<2x32xf32>
    %47 = arith.divf %45, %46 : vector<2x32xf32>
    %48 = arith.mulf %39, %16 : vector<2x32xf32>
    %49 = arith.mulf %33, %41 : vector<2x32xf32>
    %50 = arith.addf %48, %49 : vector<2x32xf32>
    %51 = math.tanh %50 : vector<2x32xf32>
    %52 = arith.mulf %47, %51 : vector<2x32xf32>
    %53 = arith.addi %14, %18 : i32
    %54 = vector.broadcast %53 : i32 to vector<2x1xi32>
    %55 = arith.cmpi sgt, %9, %54 : vector<2x1xi32>
    %56 = vector.shape_cast %55 : vector<2x1xi1> to vector<2x1xi1>
    %57 = vector.broadcast %56 : vector<2x1xi1> to vector<2x32xi1>
    %58 = arith.select %57, %52, %15 : vector<2x32xi1>, vector<2x32xf32>
    %59 = vector.shape_cast %55 : vector<2x1xi1> to vector<2x1xi1>
    %60 = vector.broadcast %59 : vector<2x1xi1> to vector<2x32xi1>
    %61 = arith.select %60, %50, %16 : vector<2x32xi1>, vector<2x32xf32>
    %cst_23 = arith.constant 0.000000e+00 : f32
    %62 = vector.shape_cast %55 : vector<2x1xi1> to vector<2x1xi1>
    %63 = vector.broadcast %62 : vector<2x1xi1> to vector<2x32xi1>
    %64 = vector.broadcast %cst_23 : f32 to vector<2x32xf32>
    %65 = arith.select %63, %52, %64 : vector<2x32xi1>, vector<2x32xf32>
    %66 = arith.truncf %65 : vector<2x32xf32> to vector<2x32xbf16>
    %c0_24 = arith.constant 0 : index
    %67 = arith.index_cast %18 : i32 to index
    %c0_25 = arith.constant 0 : index
    %c0_26 = arith.constant 0 : index
    %68 = vector.load %arg7[%c0_24, %67, %c0_25, %c0_26] : memref<1x8x2x32xbf16, #tpu.memory_space<vmem>>, vector<1x1x2x32xbf16>
    %69 = vector.shape_cast %68 : vector<1x1x2x32xbf16> to vector<2x32xbf16>
    %70 = vector.shape_cast %66 : vector<2x32xbf16> to vector<1x1x2x32xbf16>
    tpu.vector_store %arg7[%c0_24, %67, %c0_25, %c0_26], %70 {strides = array<i32>} : memref<1x8x2x32xbf16, #tpu.memory_space<vmem>>, vector<1x1x2x32xbf16>,
    %c5_i32 = arith.constant 5 : i32
    %71 = arith.muli %arg0, %c5_i32 : i32
    %c1_i32 = arith.constant 1 : i32
    %72 = arith.addi %c1_i32, %71 : i32
    %73 = arith.index_cast %72 : i32 to index
    %c0_27 = arith.constant 0 : index
    %c0_28 = arith.constant 0 : index
    %74 = vector.load %arg2[%73, %c0_27, %c0_28] : memref<8x2x32xbf16, #tpu.memory_space<vmem>>, vector<1x2x32xbf16>
    %75 = vector.shape_cast %74 : vector<1x2x32xbf16> to vector<2x32xbf16>
    %cst_29 = arith.constant dense<0.000000e+00> : vector<2x128xf32>
    %76 = tpu.matmul %75, %4, %cst_29 {dimension_numbers = #tpu.dot_dimension_numbers<[1], [0], [0], [1], [0, 0, 1, 1], [], []>} : vector<2x32xbf16>, vector<32x128xbf16>, vector<2x128xf32> -> vector<2x128xf32>
    %77 = arith.truncf %58 : vector<2x32xf32> to vector<2x32xbf16>
    %cst_30 = arith.constant dense<0.000000e+00> : vector<2x128xf32>
    %78 = tpu.matmul %77, %6, %cst_30 {dimension_numbers = #tpu.dot_dimension_numbers<[1], [0], [0], [1], [0, 0, 1, 1], [], []>} : vector<2x32xbf16>, vector<32x128xbf16>, vector<2x128xf32> -> vector<2x128xf32>
    %79 = arith.addf %76, %78 : vector<2x128xf32>
    %80 = vector.broadcast %8 : vector<1x128xf32> to vector<2x128xf32>
    %81 = arith.addf %79, %80 : vector<2x128xf32>
    %82 = vector.extract_strided_slice %81 {offsets = [0, 0], sizes = [2, 32], strides = [1, 1]} : vector<2x128xf32> to vector<2x32xf32>
    %83 = arith.negf %82 : vector<2x32xf32>
    %84 = math.exp %83 : vector<2x32xf32>
    %cst_31 = arith.constant 1.000000e+00 : f32
    %85 = vector.broadcast %cst_31 : f32 to vector<2x32xf32>
    %86 = arith.addf %85, %84 : vector<2x32xf32>
    %87 = arith.divf %85, %86 : vector<2x32xf32>
    %88 = vector.extract_strided_slice %81 {offsets = [0, 32], sizes = [2, 32], strides = [1, 1]} : vector<2x128xf32> to vector<2x32xf32>
    %89 = arith.negf %88 : vector<2x32xf32>
    %90 = math.exp %89 : vector<2x32xf32>
    %cst_32 = arith.constant 1.000000e+00 : f32
    %91 = vector.broadcast %cst_32 : f32 to vector<2x32xf32>
    %92 = arith.addf %91, %90 : vector<2x32xf32>
    %93 = arith.divf %91, %92 : vector<2x32xf32>
    %94 = vector.extract_strided_slice %81 {offsets = [0, 64], sizes = [2, 32], strides = [1, 1]} : vector<2x128xf32> to vector<2x32xf32>
    %95 = math.tanh %94 : vector<2x32xf32>
    %96 = vector.extract_strided_slice %81 {offsets = [0, 96], sizes = [2, 32], strides = [1, 1]} : vector<2x128xf32> to vector<2x32xf32>
    %97 = arith.negf %96 : vector<2x32xf32>
    %98 = math.exp %97 : vector<2x32xf32>
    %cst_33 = arith.constant 1.000000e+00 : f32
    %99 = vector.broadcast %cst_33 : f32 to vector<2x32xf32>
    %100 = arith.addf %99, %98 : vector<2x32xf32>
    %101 = arith.divf %99, %100 : vector<2x32xf32>
    %102 = arith.mulf %93, %61 : vector<2x32xf32>
    %103 = arith.mulf %87, %95 : vector<2x32xf32>
    %104 = arith.addf %102, %103 : vector<2x32xf32>
    %105 = math.tanh %104 : vector<2x32xf32>
    %106 = arith.mulf %101, %105 : vector<2x32xf32>
    %107 = arith.addi %14, %72 : i32
    %108 = vector.broadcast %107 : i32 to vector<2x1xi32>
    %109 = arith.cmpi sgt, %9, %108 : vector<2x1xi32>
    %110 = vector.shape_cast %109 : vector<2x1xi1> to vector<2x1xi1>
    %111 = vector.broadcast %110 : vector<2x1xi1> to vector<2x32xi1>
    %112 = arith.select %111, %106, %58 : vector<2x32xi1>, vector<2x32xf32>
    %113 = vector.shape_cast %109 : vector<2x1xi1> to vector<2x1xi1>
    %114 = vector.broadcast %113 : vector<2x1xi1> to vector<2x32xi1>
    %115 = arith.select %114, %104, %61 : vector<2x32xi1>, vector<2x32xf32>
    %cst_34 = arith.constant 0.000000e+00 : f32
    %116 = vector.shape_cast %109 : vector<2x1xi1> to vector<2x1xi1>
    %117 = vector.broadcast %116 : vector<2x1xi1> to vector<2x32xi1>
    %118 = vector.broadcast %cst_34 : f32 to vector<2x32xf32>
    %119 = arith.select %117, %106, %118 : vector<2x32xi1>, vector<2x32xf32>
    %120 = arith.truncf %119 : vector<2x32xf32> to vector<2x32xbf16>
    %c0_35 = arith.constant 0 : index
    %121 = arith.index_cast %72 : i32 to index
    %c0_36 = arith.constant 0 : index
    %c0_37 = arith.constant 0 : index
    %122 = vector.load %arg7[%c0_35, %121, %c0_36, %c0_37] : memref<1x8x2x32xbf16, #tpu.memory_space<vmem>>, vector<1x1x2x32xbf16>
    %123 = vector.shape_cast %122 : vector<1x1x2x32xbf16> to vector<2x32xbf16>
    %124 = vector.shape_cast %120 : vector<2x32xbf16> to vector<1x1x2x32xbf16>
    tpu.vector_store %arg7[%c0_35, %121, %c0_36, %c0_37], %124 {strides = array<i32>} : memref<1x8x2x32xbf16, #tpu.memory_space<vmem>>, vector<1x1x2x32xbf16>,
    %c3_i32 = arith.constant 3 : i32
    %125 = arith.muli %arg0, %c3_i32 : i32
    %c2_i32_38 = arith.constant 2 : i32
    %126 = arith.addi %c2_i32_38, %125 : i32
    %127 = arith.index_cast %126 : i32 to index
    %c0_39 = arith.constant 0 : index
    %c0_40 = arith.constant 0 : index
    %128 = vector.load %arg2[%127, %c0_39, %c0_40] : memref<8x2x32xbf16, #tpu.memory_space<vmem>>, vector<1x2x32xbf16>
    %129 = vector.shape_cast %128 : vector<1x2x32xbf16> to vector<2x32xbf16>
    %cst_41 = arith.constant dense<0.000000e+00> : vector<2x128xf32>
    %130 = tpu.matmul %129, %4, %cst_41 {dimension_numbers = #tpu.dot_dimension_numbers<[1], [0], [0], [1], [0, 0, 1, 1], [], []>} : vector<2x32xbf16>, vector<32x128xbf16>, vector<2x128xf32> -> vector<2x128xf32>
    %131 = arith.truncf %112 : vector<2x32xf32> to vector<2x32xbf16>
    %cst_42 = arith.constant dense<0.000000e+00> : vector<2x128xf32>
    %132 = tpu.matmul %131, %6, %cst_42 {dimension_numbers = #tpu.dot_dimension_numbers<[1], [0], [0], [1], [0, 0, 1, 1], [], []>} : vector<2x32xbf16>, vector<32x128xbf16>, vector<2x128xf32> -> vector<2x128xf32>
    %133 = arith.addf %130, %132 : vector<2x128xf32>
    %134 = vector.broadcast %8 : vector<1x128xf32> to vector<2x128xf32>
    %135 = arith.addf %133, %134 : vector<2x128xf32>
    %136 = vector.extract_strided_slice %135 {offsets = [0, 0], sizes = [2, 32], strides = [1, 1]} : vector<2x128xf32> to vector<2x32xf32>
    %137 = arith.negf %136 : vector<2x32xf32>
    %138 = math.exp %137 : vector<2x32xf32>
    %cst_43 = arith.constant 1.000000e+00 : f32
    %139 = vector.broadcast %cst_43 : f32 to vector<2x32xf32>
    %140 = arith.addf %139, %138 : vector<2x32xf32>
    %141 = arith.divf %139, %140 : vector<2x32xf32>
    %142 = vector.extract_strided_slice %135 {offsets = [0, 32], sizes = [2, 32], strides = [1, 1]} : vector<2x128xf32> to vector<2x32xf32>
    %143 = arith.negf %142 : vector<2x32xf32>
    %144 = math.exp %143 : vector<2x32xf32>
    %cst_44 = arith.constant 1.000000e+00 : f32
    %145 = vector.broadcast %cst_44 : f32 to vector<2x32xf32>
    %146 = arith.addf %145, %144 : vector<2x32xf32>
    %147 = arith.divf %145, %146 : vector<2x32xf32>
    %148 = vector.extract_strided_slice %135 {offsets = [0, 64], sizes = [2, 32], strides = [1, 1]} : vector<2x128xf32> to vector<2x32xf32>
    %149 = math.tanh %148 : vector<2x32xf32>
    %150 = vector.extract_strided_slice %135 {offsets = [0, 96], sizes = [2, 32], strides = [1, 1]} : vector<2x128xf32> to vector<2x32xf32>
    %151 = arith.negf %150 : vector<2x32xf32>
    %152 = math.exp %151 : vector<2x32xf32>
    %cst_45 = arith.constant 1.000000e+00 : f32
    %153 = vector.broadcast %cst_45 : f32 to vector<2x32xf32>
    %154 = arith.addf %153, %152 : vector<2x32xf32>
    %155 = arith.divf %153, %154 : vector<2x32xf32>
    %156 = arith.mulf %147, %115 : vector<2x32xf32>
    %157 = arith.mulf %141, %149 : vector<2x32xf32>
    %158 = arith.addf %156, %157 : vector<2x32xf32>
    %159 = math.tanh %158 : vector<2x32xf32>
    %160 = arith.mulf %155, %159 : vector<2x32xf32>
    %161 = arith.addi %14, %126 : i32
    %162 = vector.broadcast %161 : i32 to vector<2x1xi32>
    %163 = arith.cmpi sgt, %9, %162 : vector<2x1xi32>
    %164 = vector.shape_cast %163 : vector<2x1xi1> to vector<2x1xi1>
    %165 = vector.broadcast %164 : vector<2x1xi1> to vector<2x32xi1>
    %166 = arith.select %165, %160, %112 : vector<2x32xi1>, vector<2x32xf32>
    %167 = vector.shape_cast %163 : vector<2x1xi1> to vector<2x1xi1>
    %168 = vector.broadcast %167 : vector<2x1xi1> to vector<2x32xi1>
    %169 = arith.select %168, %158, %115 : vector<2x32xi1>, vector<2x32xf32>
    %cst_46 = arith.constant 0.000000e+00 : f32
    %170 = vector.shape_cast %163 : vector<2x1xi1> to vector<2x1xi1>
    %171 = vector.broadcast %170 : vector<2x1xi1> to vector<2x32xi1>
    %172 = vector.broadcast %cst_46 : f32 to vector<2x32xf32>
    %173 = arith.select %171, %160, %172 : vector<2x32xi1>, vector<2x32xf32>
    %174 = arith.truncf %173 : vector<2x32xf32> to vector<2x32xbf16>
    %c0_47 = arith.constant 0 : index
    %175 = arith.index_cast %126 : i32 to index
    %c0_48 = arith.constant 0 : index
    %c0_49 = arith.constant 0 : index
    %176 = vector.load %arg7[%c0_47, %175, %c0_48, %c0_49] : memref<1x8x2x32xbf16, #tpu.memory_space<vmem>>, vector<1x1x2x32xbf16>
    %177 = vector.shape_cast %176 : vector<1x1x2x32xbf16> to vector<2x32xbf16>
    %178 = vector.shape_cast %174 : vector<2x32xbf16> to vector<1x1x2x32xbf16>
    tpu.vector_store %arg7[%c0_47, %175, %c0_48, %c0_49], %178 {strides = array<i32>} : memref<1x8x2x32xbf16, #tpu.memory_space<vmem>>, vector<1x1x2x32xbf16>,
    %c1_i32_50 = arith.constant 1 : i32
    %179 = arith.muli %arg0, %c1_i32_50 : i32
    %c3_i32_51 = arith.constant 3 : i32
    %180 = arith.addi %c3_i32_51, %179 : i32
    %181 = arith.index_cast %180 : i32 to index
    %c0_52 = arith.constant 0 : index
    %c0_53 = arith.constant 0 : index
    %182 = vector.load %arg2[%181, %c0_52, %c0_53] : memref<8x2x32xbf16, #tpu.memory_space<vmem>>, vector<1x2x32xbf16>
    %183 = vector.shape_cast %182 : vector<1x2x32xbf16> to vector<2x32xbf16>
    %cst_54 = arith.constant dense<0.000000e+00> : vector<2x128xf32>
    %184 = tpu.matmul %183, %4, %cst_54 {dimension_numbers = #tpu.dot_dimension_numbers<[1], [0], [0], [1], [0, 0, 1, 1], [], []>} : vector<2x32xbf16>, vector<32x128xbf16>, vector<2x128xf32> -> vector<2x128xf32>
    %185 = arith.truncf %166 : vector<2x32xf32> to vector<2x32xbf16>
    %cst_55 = arith.constant dense<0.000000e+00> : vector<2x128xf32>
    %186 = tpu.matmul %185, %6, %cst_55 {dimension_numbers = #tpu.dot_dimension_numbers<[1], [0], [0], [1], [0, 0, 1, 1], [], []>} : vector<2x32xbf16>, vector<32x128xbf16>, vector<2x128xf32> -> vector<2x128xf32>
    %187 = arith.addf %184, %186 : vector<2x128xf32>
    %188 = vector.broadcast %8 : vector<1x128xf32> to vector<2x128xf32>
    %189 = arith.addf %187, %188 : vector<2x128xf32>
    %190 = vector.extract_strided_slice %189 {offsets = [0, 0], sizes = [2, 32], strides = [1, 1]} : vector<2x128xf32> to vector<2x32xf32>
    %191 = arith.negf %190 : vector<2x32xf32>
    %192 = math.exp %191 : vector<2x32xf32>
    %cst_56 = arith.constant 1.000000e+00 : f32
    %193 = vector.broadcast %cst_56 : f32 to vector<2x32xf32>
    %194 = arith.addf %193, %192 : vector<2x32xf32>
    %195 = arith.divf %193, %194 : vector<2x32xf32>
    %196 = vector.extract_strided_slice %189 {offsets = [0, 32], sizes = [2, 32], strides = [1, 1]} : vector<2x128xf32> to vector<2x32xf32>
    %197 = arith.negf %196 : vector<2x32xf32>
    %198 = math.exp %197 : vector<2x32xf32>
    %cst_57 = arith.constant 1.000000e+00 : f32
    %199 = vector.broadcast %cst_57 : f32 to vector<2x32xf32>
    %200 = arith.addf %199, %198 : vector<2x32xf32>
    %201 = arith.divf %199, %200 : vector<2x32xf32>
    %202 = vector.extract_strided_slice %189 {offsets = [0, 64], sizes = [2, 32], strides = [1, 1]} : vector<2x128xf32> to vector<2x32xf32>
    %203 = math.tanh %202 : vector<2x32xf32>
    %204 = vector.extract_strided_slice %189 {offsets = [0, 96], sizes = [2, 32], strides = [1, 1]} : vector<2x128xf32> to vector<2x32xf32>
    %205 = arith.negf %204 : vector<2x32xf32>
    %206 = math.exp %205 : vector<2x32xf32>
    %cst_58 = arith.constant 1.000000e+00 : f32
    %207 = vector.broadcast %cst_58 : f32 to vector<2x32xf32>
    %208 = arith.addf %207, %206 : vector<2x32xf32>
    %209 = arith.divf %207, %208 : vector<2x32xf32>
    %210 = arith.mulf %201, %169 : vector<2x32xf32>
    %211 = arith.mulf %195, %203 : vector<2x32xf32>
    %212 = arith.addf %210, %211 : vector<2x32xf32>
    %213 = math.tanh %212 : vector<2x32xf32>
    %214 = arith.mulf %209, %213 : vector<2x32xf32>
    %215 = arith.addi %14, %180 : i32
    %216 = vector.broadcast %215 : i32 to vector<2x1xi32>
    %217 = arith.cmpi sgt, %9, %216 : vector<2x1xi32>
    %218 = vector.shape_cast %217 : vector<2x1xi1> to vector<2x1xi1>
    %219 = vector.broadcast %218 : vector<2x1xi1> to vector<2x32xi1>
    %220 = arith.select %219, %214, %166 : vector<2x32xi1>, vector<2x32xf32>
    %221 = vector.shape_cast %217 : vector<2x1xi1> to vector<2x1xi1>
    %222 = vector.broadcast %221 : vector<2x1xi1> to vector<2x32xi1>
    %223 = arith.select %222, %212, %169 : vector<2x32xi1>, vector<2x32xf32>
    %cst_59 = arith.constant 0.000000e+00 : f32
    %224 = vector.shape_cast %217 : vector<2x1xi1> to vector<2x1xi1>
    %225 = vector.broadcast %224 : vector<2x1xi1> to vector<2x32xi1>
    %226 = vector.broadcast %cst_59 : f32 to vector<2x32xf32>
    %227 = arith.select %225, %214, %226 : vector<2x32xi1>, vector<2x32xf32>
    %228 = arith.truncf %227 : vector<2x32xf32> to vector<2x32xbf16>
    %c0_60 = arith.constant 0 : index
    %229 = arith.index_cast %180 : i32 to index
    %c0_61 = arith.constant 0 : index
    %c0_62 = arith.constant 0 : index
    %230 = vector.load %arg7[%c0_60, %229, %c0_61, %c0_62] : memref<1x8x2x32xbf16, #tpu.memory_space<vmem>>, vector<1x1x2x32xbf16>
    %231 = vector.shape_cast %230 : vector<1x1x2x32xbf16> to vector<2x32xbf16>
    %232 = vector.shape_cast %228 : vector<2x32xbf16> to vector<1x1x2x32xbf16>
    tpu.vector_store %arg7[%c0_60, %229, %c0_61, %c0_62], %232 {strides = array<i32>} : memref<1x8x2x32xbf16, #tpu.memory_space<vmem>>, vector<1x1x2x32xbf16>,
    %c-1_i32 = arith.constant -1 : i32
    %233 = arith.muli %arg0, %c-1_i32 : i32
    %c4_i32 = arith.constant 4 : i32
    %234 = arith.addi %c4_i32, %233 : i32
    %235 = arith.index_cast %234 : i32 to index
    %c0_63 = arith.constant 0 : index
    %c0_64 = arith.constant 0 : index
    %236 = vector.load %arg2[%235, %c0_63, %c0_64] : memref<8x2x32xbf16, #tpu.memory_space<vmem>>, vector<1x2x32xbf16>
    %237 = vector.shape_cast %236 : vector<1x2x32xbf16> to vector<2x32xbf16>
    %cst_65 = arith.constant dense<0.000000e+00> : vector<2x128xf32>
    %238 = tpu.matmul %237, %4, %cst_65 {dimension_numbers = #tpu.dot_dimension_numbers<[1], [0], [0], [1], [0, 0, 1, 1], [], []>} : vector<2x32xbf16>, vector<32x128xbf16>, vector<2x128xf32> -> vector<2x128xf32>
    %239 = arith.truncf %220 : vector<2x32xf32> to vector<2x32xbf16>
    %cst_66 = arith.constant dense<0.000000e+00> : vector<2x128xf32>
    %240 = tpu.matmul %239, %6, %cst_66 {dimension_numbers = #tpu.dot_dimension_numbers<[1], [0], [0], [1], [0, 0, 1, 1], [], []>} : vector<2x32xbf16>, vector<32x128xbf16>, vector<2x128xf32> -> vector<2x128xf32>
    %241 = arith.addf %238, %240 : vector<2x128xf32>
    %242 = vector.broadcast %8 : vector<1x128xf32> to vector<2x128xf32>
    %243 = arith.addf %241, %242 : vector<2x128xf32>
    %244 = vector.extract_strided_slice %243 {offsets = [0, 0], sizes = [2, 32], strides = [1, 1]} : vector<2x128xf32> to vector<2x32xf32>
    %245 = arith.negf %244 : vector<2x32xf32>
    %246 = math.exp %245 : vector<2x32xf32>
    %cst_67 = arith.constant 1.000000e+00 : f32
    %247 = vector.broadcast %cst_67 : f32 to vector<2x32xf32>
    %248 = arith.addf %247, %246 : vector<2x32xf32>
    %249 = arith.divf %247, %248 : vector<2x32xf32>
    %250 = vector.extract_strided_slice %243 {offsets = [0, 32], sizes = [2, 32], strides = [1, 1]} : vector<2x128xf32> to vector<2x32xf32>
    %251 = arith.negf %250 : vector<2x32xf32>
    %252 = math.exp %251 : vector<2x32xf32>
    %cst_68 = arith.constant 1.000000e+00 : f32
    %253 = vector.broadcast %cst_68 : f32 to vector<2x32xf32>
    %254 = arith.addf %253, %252 : vector<2x32xf32>
    %255 = arith.divf %253, %254 : vector<2x32xf32>
    %256 = vector.extract_strided_slice %243 {offsets = [0, 64], sizes = [2, 32], strides = [1, 1]} : vector<2x128xf32> to vector<2x32xf32>
    %257 = math.tanh %256 : vector<2x32xf32>
    %258 = vector.extract_strided_slice %243 {offsets = [0, 96], sizes = [2, 32], strides = [1, 1]} : vector<2x128xf32> to vector<2x32xf32>
    %259 = arith.negf %258 : vector<2x32xf32>
    %260 = math.exp %259 : vector<2x32xf32>
    %cst_69 = arith.constant 1.000000e+00 : f32
    %261 = vector.broadcast %cst_69 : f32 to vector<2x32xf32>
    %262 = arith.addf %261, %260 : vector<2x32xf32>
    %263 = arith.divf %261, %262 : vector<2x32xf32>
    %264 = arith.mulf %255, %223 : vector<2x32xf32>
    %265 = arith.mulf %249, %257 : vector<2x32xf32>
    %266 = arith.addf %264, %265 : vector<2x32xf32>
    %267 = math.tanh %266 : vector<2x32xf32>
    %268 = arith.mulf %263, %267 : vector<2x32xf32>
    %269 = arith.addi %14, %234 : i32
    %270 = vector.broadcast %269 : i32 to vector<2x1xi32>
    %271 = arith.cmpi sgt, %9, %270 : vector<2x1xi32>
    %272 = vector.shape_cast %271 : vector<2x1xi1> to vector<2x1xi1>
    %273 = vector.broadcast %272 : vector<2x1xi1> to vector<2x32xi1>
    %274 = arith.select %273, %268, %220 : vector<2x32xi1>, vector<2x32xf32>
    %275 = vector.shape_cast %271 : vector<2x1xi1> to vector<2x1xi1>
    %276 = vector.broadcast %275 : vector<2x1xi1> to vector<2x32xi1>
    %277 = arith.select %276, %266, %223 : vector<2x32xi1>, vector<2x32xf32>
    %cst_70 = arith.constant 0.000000e+00 : f32
    %278 = vector.shape_cast %271 : vector<2x1xi1> to vector<2x1xi1>
    %279 = vector.broadcast %278 : vector<2x1xi1> to vector<2x32xi1>
    %280 = vector.broadcast %cst_70 : f32 to vector<2x32xf32>
    %281 = arith.select %279, %268, %280 : vector<2x32xi1>, vector<2x32xf32>
    %282 = arith.truncf %281 : vector<2x32xf32> to vector<2x32xbf16>
    %c0_71 = arith.constant 0 : index
    %283 = arith.index_cast %234 : i32 to index
    %c0_72 = arith.constant 0 : index
    %c0_73 = arith.constant 0 : index
    %284 = vector.load %arg7[%c0_71, %283, %c0_72, %c0_73] : memref<1x8x2x32xbf16, #tpu.memory_space<vmem>>, vector<1x1x2x32xbf16>
    %285 = vector.shape_cast %284 : vector<1x1x2x32xbf16> to vector<2x32xbf16>
    %286 = vector.shape_cast %282 : vector<2x32xbf16> to vector<1x1x2x32xbf16>
    tpu.vector_store %arg7[%c0_71, %283, %c0_72, %c0_73], %286 {strides = array<i32>} : memref<1x8x2x32xbf16, #tpu.memory_space<vmem>>, vector<1x1x2x32xbf16>,
    %c-3_i32 = arith.constant -3 : i32
    %287 = arith.muli %arg0, %c-3_i32 : i32
    %c5_i32_74 = arith.constant 5 : i32
    %288 = arith.addi %c5_i32_74, %287 : i32
    %289 = arith.index_cast %288 : i32 to index
    %c0_75 = arith.constant 0 : index
    %c0_76 = arith.constant 0 : index
    %290 = vector.load %arg2[%289, %c0_75, %c0_76] : memref<8x2x32xbf16, #tpu.memory_space<vmem>>, vector<1x2x32xbf16>
    %291 = vector.shape_cast %290 : vector<1x2x32xbf16> to vector<2x32xbf16>
    %cst_77 = arith.constant dense<0.000000e+00> : vector<2x128xf32>
    %292 = tpu.matmul %291, %4, %cst_77 {dimension_numbers = #tpu.dot_dimension_numbers<[1], [0], [0], [1], [0, 0, 1, 1], [], []>} : vector<2x32xbf16>, vector<32x128xbf16>, vector<2x128xf32> -> vector<2x128xf32>
    %293 = arith.truncf %274 : vector<2x32xf32> to vector<2x32xbf16>
    %cst_78 = arith.constant dense<0.000000e+00> : vector<2x128xf32>
    %294 = tpu.matmul %293, %6, %cst_78 {dimension_numbers = #tpu.dot_dimension_numbers<[1], [0], [0], [1], [0, 0, 1, 1], [], []>} : vector<2x32xbf16>, vector<32x128xbf16>, vector<2x128xf32> -> vector<2x128xf32>
    %295 = arith.addf %292, %294 : vector<2x128xf32>
    %296 = vector.broadcast %8 : vector<1x128xf32> to vector<2x128xf32>
    %297 = arith.addf %295, %296 : vector<2x128xf32>
    %298 = vector.extract_strided_slice %297 {offsets = [0, 0], sizes = [2, 32], strides = [1, 1]} : vector<2x128xf32> to vector<2x32xf32>
    %299 = arith.negf %298 : vector<2x32xf32>
    %300 = math.exp %299 : vector<2x32xf32>
    %cst_79 = arith.constant 1.000000e+00 : f32
    %301 = vector.broadcast %cst_79 : f32 to vector<2x32xf32>
    %302 = arith.addf %301, %300 : vector<2x32xf32>
    %303 = arith.divf %301, %302 : vector<2x32xf32>
    %304 = vector.extract_strided_slice %297 {offsets = [0, 32], sizes = [2, 32], strides = [1, 1]} : vector<2x128xf32> to vector<2x32xf32>
    %305 = arith.negf %304 : vector<2x32xf32>
    %306 = math.exp %305 : vector<2x32xf32>
    %cst_80 = arith.constant 1.000000e+00 : f32
    %307 = vector.broadcast %cst_80 : f32 to vector<2x32xf32>
    %308 = arith.addf %307, %306 : vector<2x32xf32>
    %309 = arith.divf %307, %308 : vector<2x32xf32>
    %310 = vector.extract_strided_slice %297 {offsets = [0, 64], sizes = [2, 32], strides = [1, 1]} : vector<2x128xf32> to vector<2x32xf32>
    %311 = math.tanh %310 : vector<2x32xf32>
    %312 = vector.extract_strided_slice %297 {offsets = [0, 96], sizes = [2, 32], strides = [1, 1]} : vector<2x128xf32> to vector<2x32xf32>
    %313 = arith.negf %312 : vector<2x32xf32>
    %314 = math.exp %313 : vector<2x32xf32>
    %cst_81 = arith.constant 1.000000e+00 : f32
    %315 = vector.broadcast %cst_81 : f32 to vector<2x32xf32>
    %316 = arith.addf %315, %314 : vector<2x32xf32>
    %317 = arith.divf %315, %316 : vector<2x32xf32>
    %318 = arith.mulf %309, %277 : vector<2x32xf32>
    %319 = arith.mulf %303, %311 : vector<2x32xf32>
    %320 = arith.addf %318, %319 : vector<2x32xf32>
    %321 = math.tanh %320 : vector<2x32xf32>
    %322 = arith.mulf %317, %321 : vector<2x32xf32>
    %323 = arith.addi %14, %288 : i32
    %324 = vector.broadcast %323 : i32 to vector<2x1xi32>
    %325 = arith.cmpi sgt, %9, %324 : vector<2x1xi32>
    %326 = vector.shape_cast %325 : vector<2x1xi1> to vector<2x1xi1>
    %327 = vector.broadcast %326 : vector<2x1xi1> to vector<2x32xi1>
    %328 = arith.select %327, %322, %274 : vector<2x32xi1>, vector<2x32xf32>
    %329 = vector.shape_cast %325 : vector<2x1xi1> to vector<2x1xi1>
    %330 = vector.broadcast %329 : vector<2x1xi1> to vector<2x32xi1>
    %331 = arith.select %330, %320, %277 : vector<2x32xi1>, vector<2x32xf32>
    %cst_82 = arith.constant 0.000000e+00 : f32
    %332 = vector.shape_cast %325 : vector<2x1xi1> to vector<2x1xi1>
    %333 = vector.broadcast %332 : vector<2x1xi1> to vector<2x32xi1>
    %334 = vector.broadcast %cst_82 : f32 to vector<2x32xf32>
    %335 = arith.select %333, %322, %334 : vector<2x32xi1>, vector<2x32xf32>
    %336 = arith.truncf %335 : vector<2x32xf32> to vector<2x32xbf16>
    %c0_83 = arith.constant 0 : index
    %337 = arith.index_cast %288 : i32 to index
    %c0_84 = arith.constant 0 : index
    %c0_85 = arith.constant 0 : index
    %338 = vector.load %arg7[%c0_83, %337, %c0_84, %c0_85] : memref<1x8x2x32xbf16, #tpu.memory_space<vmem>>, vector<1x1x2x32xbf16>
    %339 = vector.shape_cast %338 : vector<1x1x2x32xbf16> to vector<2x32xbf16>
    %340 = vector.shape_cast %336 : vector<2x32xbf16> to vector<1x1x2x32xbf16>
    tpu.vector_store %arg7[%c0_83, %337, %c0_84, %c0_85], %340 {strides = array<i32>} : memref<1x8x2x32xbf16, #tpu.memory_space<vmem>>, vector<1x1x2x32xbf16>,
    %c-5_i32 = arith.constant -5 : i32
    %341 = arith.muli %arg0, %c-5_i32 : i32
    %c6_i32 = arith.constant 6 : i32
    %342 = arith.addi %c6_i32, %341 : i32
    %343 = arith.index_cast %342 : i32 to index
    %c0_86 = arith.constant 0 : index
    %c0_87 = arith.constant 0 : index
    %344 = vector.load %arg2[%343, %c0_86, %c0_87] : memref<8x2x32xbf16, #tpu.memory_space<vmem>>, vector<1x2x32xbf16>
    %345 = vector.shape_cast %344 : vector<1x2x32xbf16> to vector<2x32xbf16>
    %cst_88 = arith.constant dense<0.000000e+00> : vector<2x128xf32>
    %346 = tpu.matmul %345, %4, %cst_88 {dimension_numbers = #tpu.dot_dimension_numbers<[1], [0], [0], [1], [0, 0, 1, 1], [], []>} : vector<2x32xbf16>, vector<32x128xbf16>, vector<2x128xf32> -> vector<2x128xf32>
    %347 = arith.truncf %328 : vector<2x32xf32> to vector<2x32xbf16>
    %cst_89 = arith.constant dense<0.000000e+00> : vector<2x128xf32>
    %348 = tpu.matmul %347, %6, %cst_89 {dimension_numbers = #tpu.dot_dimension_numbers<[1], [0], [0], [1], [0, 0, 1, 1], [], []>} : vector<2x32xbf16>, vector<32x128xbf16>, vector<2x128xf32> -> vector<2x128xf32>
    %349 = arith.addf %346, %348 : vector<2x128xf32>
    %350 = vector.broadcast %8 : vector<1x128xf32> to vector<2x128xf32>
    %351 = arith.addf %349, %350 : vector<2x128xf32>
    %352 = vector.extract_strided_slice %351 {offsets = [0, 0], sizes = [2, 32], strides = [1, 1]} : vector<2x128xf32> to vector<2x32xf32>
    %353 = arith.negf %352 : vector<2x32xf32>
    %354 = math.exp %353 : vector<2x32xf32>
    %cst_90 = arith.constant 1.000000e+00 : f32
    %355 = vector.broadcast %cst_90 : f32 to vector<2x32xf32>
    %356 = arith.addf %355, %354 : vector<2x32xf32>
    %357 = arith.divf %355, %356 : vector<2x32xf32>
    %358 = vector.extract_strided_slice %351 {offsets = [0, 32], sizes = [2, 32], strides = [1, 1]} : vector<2x128xf32> to vector<2x32xf32>
    %359 = arith.negf %358 : vector<2x32xf32>
    %360 = math.exp %359 : vector<2x32xf32>
    %cst_91 = arith.constant 1.000000e+00 : f32
    %361 = vector.broadcast %cst_91 : f32 to vector<2x32xf32>
    %362 = arith.addf %361, %360 : vector<2x32xf32>
    %363 = arith.divf %361, %362 : vector<2x32xf32>
    %364 = vector.extract_strided_slice %351 {offsets = [0, 64], sizes = [2, 32], strides = [1, 1]} : vector<2x128xf32> to vector<2x32xf32>
    %365 = math.tanh %364 : vector<2x32xf32>
    %366 = vector.extract_strided_slice %351 {offsets = [0, 96], sizes = [2, 32], strides = [1, 1]} : vector<2x128xf32> to vector<2x32xf32>
    %367 = arith.negf %366 : vector<2x32xf32>
    %368 = math.exp %367 : vector<2x32xf32>
    %cst_92 = arith.constant 1.000000e+00 : f32
    %369 = vector.broadcast %cst_92 : f32 to vector<2x32xf32>
    %370 = arith.addf %369, %368 : vector<2x32xf32>
    %371 = arith.divf %369, %370 : vector<2x32xf32>
    %372 = arith.mulf %363, %331 : vector<2x32xf32>
    %373 = arith.mulf %357, %365 : vector<2x32xf32>
    %374 = arith.addf %372, %373 : vector<2x32xf32>
    %375 = math.tanh %374 : vector<2x32xf32>
    %376 = arith.mulf %371, %375 : vector<2x32xf32>
    %377 = arith.addi %14, %342 : i32
    %378 = vector.broadcast %377 : i32 to vector<2x1xi32>
    %379 = arith.cmpi sgt, %9, %378 : vector<2x1xi32>
    %380 = vector.shape_cast %379 : vector<2x1xi1> to vector<2x1xi1>
    %381 = vector.broadcast %380 : vector<2x1xi1> to vector<2x32xi1>
    %382 = arith.select %381, %376, %328 : vector<2x32xi1>, vector<2x32xf32>
    %383 = vector.shape_cast %379 : vector<2x1xi1> to vector<2x1xi1>
    %384 = vector.broadcast %383 : vector<2x1xi1> to vector<2x32xi1>
    %385 = arith.select %384, %374, %331 : vector<2x32xi1>, vector<2x32xf32>
    %cst_93 = arith.constant 0.000000e+00 : f32
    %386 = vector.shape_cast %379 : vector<2x1xi1> to vector<2x1xi1>
    %387 = vector.broadcast %386 : vector<2x1xi1> to vector<2x32xi1>
    %388 = vector.broadcast %cst_93 : f32 to vector<2x32xf32>
    %389 = arith.select %387, %376, %388 : vector<2x32xi1>, vector<2x32xf32>
    %390 = arith.truncf %389 : vector<2x32xf32> to vector<2x32xbf16>
    %c0_94 = arith.constant 0 : index
    %391 = arith.index_cast %342 : i32 to index
    %c0_95 = arith.constant 0 : index
    %c0_96 = arith.constant 0 : index
    %392 = vector.load %arg7[%c0_94, %391, %c0_95, %c0_96] : memref<1x8x2x32xbf16, #tpu.memory_space<vmem>>, vector<1x1x2x32xbf16>
    %393 = vector.shape_cast %392 : vector<1x1x2x32xbf16> to vector<2x32xbf16>
    %394 = vector.shape_cast %390 : vector<2x32xbf16> to vector<1x1x2x32xbf16>
    tpu.vector_store %arg7[%c0_94, %391, %c0_95, %c0_96], %394 {strides = array<i32>} : memref<1x8x2x32xbf16, #tpu.memory_space<vmem>>, vector<1x1x2x32xbf16>,
    %c-7_i32 = arith.constant -7 : i32
    %395 = arith.muli %arg0, %c-7_i32 : i32
    %c7_i32_97 = arith.constant 7 : i32
    %396 = arith.addi %c7_i32_97, %395 : i32
    %397 = arith.index_cast %396 : i32 to index
    %c0_98 = arith.constant 0 : index
    %c0_99 = arith.constant 0 : index
    %398 = vector.load %arg2[%397, %c0_98, %c0_99] : memref<8x2x32xbf16, #tpu.memory_space<vmem>>, vector<1x2x32xbf16>
    %399 = vector.shape_cast %398 : vector<1x2x32xbf16> to vector<2x32xbf16>
    %cst_100 = arith.constant dense<0.000000e+00> : vector<2x128xf32>
    %400 = tpu.matmul %399, %4, %cst_100 {dimension_numbers = #tpu.dot_dimension_numbers<[1], [0], [0], [1], [0, 0, 1, 1], [], []>} : vector<2x32xbf16>, vector<32x128xbf16>, vector<2x128xf32> -> vector<2x128xf32>
    %401 = arith.truncf %382 : vector<2x32xf32> to vector<2x32xbf16>
    %cst_101 = arith.constant dense<0.000000e+00> : vector<2x128xf32>
    %402 = tpu.matmul %401, %6, %cst_101 {dimension_numbers = #tpu.dot_dimension_numbers<[1], [0], [0], [1], [0, 0, 1, 1], [], []>} : vector<2x32xbf16>, vector<32x128xbf16>, vector<2x128xf32> -> vector<2x128xf32>
    %403 = arith.addf %400, %402 : vector<2x128xf32>
    %404 = vector.broadcast %8 : vector<1x128xf32> to vector<2x128xf32>
    %405 = arith.addf %403, %404 : vector<2x128xf32>
    %406 = vector.extract_strided_slice %405 {offsets = [0, 0], sizes = [2, 32], strides = [1, 1]} : vector<2x128xf32> to vector<2x32xf32>
    %407 = arith.negf %406 : vector<2x32xf32>
    %408 = math.exp %407 : vector<2x32xf32>
    %cst_102 = arith.constant 1.000000e+00 : f32
    %409 = vector.broadcast %cst_102 : f32 to vector<2x32xf32>
    %410 = arith.addf %409, %408 : vector<2x32xf32>
    %411 = arith.divf %409, %410 : vector<2x32xf32>
    %412 = vector.extract_strided_slice %405 {offsets = [0, 32], sizes = [2, 32], strides = [1, 1]} : vector<2x128xf32> to vector<2x32xf32>
    %413 = arith.negf %412 : vector<2x32xf32>
    %414 = math.exp %413 : vector<2x32xf32>
    %cst_103 = arith.constant 1.000000e+00 : f32
    %415 = vector.broadcast %cst_103 : f32 to vector<2x32xf32>
    %416 = arith.addf %415, %414 : vector<2x32xf32>
    %417 = arith.divf %415, %416 : vector<2x32xf32>
    %418 = vector.extract_strided_slice %405 {offsets = [0, 64], sizes = [2, 32], strides = [1, 1]} : vector<2x128xf32> to vector<2x32xf32>
    %419 = math.tanh %418 : vector<2x32xf32>
    %420 = vector.extract_strided_slice %405 {offsets = [0, 96], sizes = [2, 32], strides = [1, 1]} : vector<2x128xf32> to vector<2x32xf32>
    %421 = arith.negf %420 : vector<2x32xf32>
    %422 = math.exp %421 : vector<2x32xf32>
    %cst_104 = arith.constant 1.000000e+00 : f32
    %423 = vector.broadcast %cst_104 : f32 to vector<2x32xf32>
    %424 = arith.addf %423, %422 : vector<2x32xf32>
    %425 = arith.divf %423, %424 : vector<2x32xf32>
    %426 = arith.mulf %417, %385 : vector<2x32xf32>
    %427 = arith.mulf %411, %419 : vector<2x32xf32>
    %428 = arith.addf %426, %427 : vector<2x32xf32>
    %429 = math.tanh %428 : vector<2x32xf32>
    %430 = arith.mulf %425, %429 : vector<2x32xf32>
    %431 = arith.addi %14, %396 : i32
    %432 = vector.broadcast %431 : i32 to vector<2x1xi32>
    %433 = arith.cmpi sgt, %9, %432 : vector<2x1xi32>
    %434 = vector.shape_cast %433 : vector<2x1xi1> to vector<2x1xi1>
    %435 = vector.broadcast %434 : vector<2x1xi1> to vector<2x32xi1>
    %436 = arith.select %435, %430, %382 : vector<2x32xi1>, vector<2x32xf32>
    %437 = vector.shape_cast %433 : vector<2x1xi1> to vector<2x1xi1>
    %438 = vector.broadcast %437 : vector<2x1xi1> to vector<2x32xi1>
    %439 = arith.select %438, %428, %385 : vector<2x32xi1>, vector<2x32xf32>
    %cst_105 = arith.constant 0.000000e+00 : f32
    %440 = vector.shape_cast %433 : vector<2x1xi1> to vector<2x1xi1>
    %441 = vector.broadcast %440 : vector<2x1xi1> to vector<2x32xi1>
    %442 = vector.broadcast %cst_105 : f32 to vector<2x32xf32>
    %443 = arith.select %441, %430, %442 : vector<2x32xi1>, vector<2x32xf32>
    %444 = arith.truncf %443 : vector<2x32xf32> to vector<2x32xbf16>
    %c0_106 = arith.constant 0 : index
    %445 = arith.index_cast %396 : i32 to index
    %c0_107 = arith.constant 0 : index
    %c0_108 = arith.constant 0 : index
    %446 = vector.load %arg7[%c0_106, %445, %c0_107, %c0_108] : memref<1x8x2x32xbf16, #tpu.memory_space<vmem>>, vector<1x1x2x32xbf16>
    %447 = vector.shape_cast %446 : vector<1x1x2x32xbf16> to vector<2x32xbf16>
    %448 = vector.shape_cast %444 : vector<2x32xbf16> to vector<1x1x2x32xbf16>
    tpu.vector_store %arg7[%c0_106, %445, %c0_107, %c0_108], %448 {strides = array<i32>} : memref<1x8x2x32xbf16, #tpu.memory_space<vmem>>, vector<1x1x2x32xbf16>,
    %c0_109 = arith.constant 0 : index
    %c0_110 = arith.constant 0 : index
    %449 = vector.load %arg8[%c0_109, %c0_110] : memref<2x32xf32, #tpu.memory_space<vmem>>, vector<2x32xf32>
    tpu.vector_store %arg8[%c0_109, %c0_110], %436 {strides = array<i32>} : memref<2x32xf32, #tpu.memory_space<vmem>>, vector<2x32xf32>,
    %c0_111 = arith.constant 0 : index
    %c0_112 = arith.constant 0 : index
    %450 = vector.load %arg9[%c0_111, %c0_112] : memref<2x32xf32, #tpu.memory_space<vmem>>, vector<2x32xf32>
    tpu.vector_store %arg9[%c0_111, %c0_112], %439 {strides = array<i32>} : memref<2x32xf32, #tpu.memory_space<vmem>>, vector<2x32xf32>,
    return
  }
  func.func @transform_0(%arg0: i32, %arg1: i32) -> (i32, i32, i32) {
    %c2_i32 = arith.constant 2 : i32
    %0 = arith.muli %c2_i32, %arg1 : i32
    %c0_i32 = arith.constant 0 : i32
    %1 = arith.subi %c0_i32, %0 : i32
    %2 = arith.muli %arg0, %1 : i32
    %3 = arith.addi %arg1, %2 : i32
    %c0_i32_0 = arith.constant 0 : i32
    %c0_i32_1 = arith.constant 0 : i32
    %c0_i32_2 = arith.constant 0 : i32
    return %3, %c0_i32_0, %c0_i32_1 : i32, i32, i32
  }
  func.func @transform_1(%arg0: i32, %arg1: i32) -> (i32, i32, i32) {
    %c0_i32 = arith.constant 0 : i32
    %c0_i32_0 = arith.constant 0 : i32
    %c0_i32_1 = arith.constant 0 : i32
    return %arg0, %c0_i32, %c0_i32_0 : i32, i32, i32
  }
  func.func @transform_2(%arg0: i32, %arg1: i32) -> (i32, i32, i32) {
    %c0_i32 = arith.constant 0 : i32
    %c0_i32_0 = arith.constant 0 : i32
    %c0_i32_1 = arith.constant 0 : i32
    return %arg0, %c0_i32, %c0_i32_0 : i32, i32, i32
  }
  func.func @transform_3(%arg0: i32, %arg1: i32) -> (i32, i32, i32) {
    %c0_i32 = arith.constant 0 : i32
    %c0_i32_0 = arith.constant 0 : i32
    %c0_i32_1 = arith.constant 0 : i32
    return %arg0, %c0_i32, %c0_i32_0 : i32, i32, i32
  }
  func.func @transform_4(%arg0: i32, %arg1: i32) -> (i32, i32) {
    %c0_i32 = arith.constant 0 : i32
    %c0_i32_0 = arith.constant 0 : i32
    %c0_i32_1 = arith.constant 0 : i32
    return %c0_i32, %c0_i32_0 : i32, i32
  }
  func.func @transform_5(%arg0: i32, %arg1: i32) -> (i32, i32, i32, i32) {
    %c2_i32 = arith.constant 2 : i32
    %0 = arith.muli %c2_i32, %arg1 : i32
    %c0_i32 = arith.constant 0 : i32
    %1 = arith.subi %c0_i32, %0 : i32
    %2 = arith.muli %arg0, %1 : i32
    %3 = arith.addi %arg1, %2 : i32
    %c0_i32_0 = arith.constant 0 : i32
    %c0_i32_1 = arith.constant 0 : i32
    %c0_i32_2 = arith.constant 0 : i32
    return %arg0, %3, %c0_i32_0, %c0_i32_1 : i32, i32, i32, i32
  }
}

module attributes {stable_mosaic.version = 11 : i64} {
  func.func @_lstm_block_kernel(%arg0: i32, %arg1: memref<8x2x32xbf16, #tpu.memory_space<vmem>>, %arg2: memref<32x128xbf16, #tpu.memory_space<vmem>>, %arg3: memref<32x128xbf16, #tpu.memory_space<vmem>>, %arg4: memref<1x128xf32, #tpu.memory_space<vmem>>, %arg5: memref<8x2x32xbf16, #tpu.memory_space<vmem>>, %arg6: memref<8x2x32xbf16, #tpu.memory_space<vmem>>, %arg7: memref<2x32xf32, #tpu.memory_space<vmem>>, %arg8: memref<2x32xf32, #tpu.memory_space<vmem>>) attributes {dimension_semantics = [#tpu.dimension_semantics<arbitrary>], iteration_bounds = array<i64: 1>, scalar_prefetch = 0 : i64, scratch_operands = 2 : i64, tpu.core_type = #tpu.core_type<tc>, window_params = [{transform_indices = @transform_0, window_bounds = array<i64: 8, 2, 32>}, {pipeline_mode = #tpu.pipeline_mode<synchronous>, transform_indices = @transform_1, window_bounds = array<i64: 32, 128>}, {pipeline_mode = #tpu.pipeline_mode<synchronous>, transform_indices = @transform_2, window_bounds = array<i64: 32, 128>}, {pipeline_mode = #tpu.pipeline_mode<synchronous>, transform_indices = @transform_3, window_bounds = array<i64: 1, 128>}, {transform_indices = @transform_4, window_bounds = array<i64: 8, 2, 32>}, {transform_indices = @transform_5, window_bounds = array<i64: 8, 2, 32>}]} {
    %c0_i32 = arith.constant 0 : i32
    %0 = arith.cmpi eq, %arg0, %c0_i32 : i32
    %1 = arith.extui %0 : i1 to i32
    %c0_i32_0 = arith.constant 0 : i32
    %2 = arith.cmpi ne, %1, %c0_i32_0 : i32
    scf.if %2 {
      %cst_118 = arith.constant 0.000000e+00 : f32
      %338 = vector.broadcast %cst_118 : f32 to vector<2x32xf32>
      %c0_119 = arith.constant 0 : index
      %c0_120 = arith.constant 0 : index
      %339 = vector.load %arg7[%c0_119, %c0_120] : memref<2x32xf32, #tpu.memory_space<vmem>>, vector<2x32xf32>
      tpu.vector_store %arg7[%c0_119, %c0_120], %338 {strides = array<i32>} : memref<2x32xf32, #tpu.memory_space<vmem>>, vector<2x32xf32>,
      %cst_121 = arith.constant 0.000000e+00 : f32
      %340 = vector.broadcast %cst_121 : f32 to vector<2x32xf32>
      %c0_122 = arith.constant 0 : index
      %c0_123 = arith.constant 0 : index
      %341 = vector.load %arg8[%c0_122, %c0_123] : memref<2x32xf32, #tpu.memory_space<vmem>>, vector<2x32xf32>
      tpu.vector_store %arg8[%c0_122, %c0_123], %340 {strides = array<i32>} : memref<2x32xf32, #tpu.memory_space<vmem>>, vector<2x32xf32>,
    } else {
    }
    %c0 = arith.constant 0 : index
    %c0_1 = arith.constant 0 : index
    %3 = vector.load %arg2[%c0, %c0_1] : memref<32x128xbf16, #tpu.memory_space<vmem>>, vector<32x128xbf16>
    %c0_2 = arith.constant 0 : index
    %c0_3 = arith.constant 0 : index
    %4 = vector.load %arg3[%c0_2, %c0_3] : memref<32x128xbf16, #tpu.memory_space<vmem>>, vector<32x128xbf16>
    %c0_4 = arith.constant 0 : index
    %c0_5 = arith.constant 0 : index
    %5 = vector.load %arg4[%c0_4, %c0_5] : memref<1x128xf32, #tpu.memory_space<vmem>>, vector<1x128xf32>
    %c0_6 = arith.constant 0 : index
    %c0_7 = arith.constant 0 : index
    %6 = vector.load %arg7[%c0_6, %c0_7] : memref<2x32xf32, #tpu.memory_space<vmem>>, vector<2x32xf32>
    %c0_8 = arith.constant 0 : index
    %c0_9 = arith.constant 0 : index
    %7 = vector.load %arg8[%c0_8, %c0_9] : memref<2x32xf32, #tpu.memory_space<vmem>>, vector<2x32xf32>
    %c0_10 = arith.constant 0 : index
    %c0_11 = arith.constant 0 : index
    %c0_12 = arith.constant 0 : index
    %8 = vector.load %arg1[%c0_10, %c0_11, %c0_12] : memref<8x2x32xbf16, #tpu.memory_space<vmem>>, vector<1x2x32xbf16>
    %9 = vector.shape_cast %8 : vector<1x2x32xbf16> to vector<2x32xbf16>
    %cst = arith.constant dense<0.000000e+00> : vector<2x128xf32>
    %10 = tpu.matmul %9, %3, %cst {dimension_numbers = #tpu.dot_dimension_numbers<[1], [0], [0], [1], [0, 0, 1, 1], [], []>} : vector<2x32xbf16>, vector<32x128xbf16>, vector<2x128xf32> -> vector<2x128xf32>
    %11 = arith.truncf %6 : vector<2x32xf32> to vector<2x32xbf16>
    %cst_13 = arith.constant dense<0.000000e+00> : vector<2x128xf32>
    %12 = tpu.matmul %11, %4, %cst_13 {dimension_numbers = #tpu.dot_dimension_numbers<[1], [0], [0], [1], [0, 0, 1, 1], [], []>} : vector<2x32xbf16>, vector<32x128xbf16>, vector<2x128xf32> -> vector<2x128xf32>
    %13 = arith.addf %10, %12 : vector<2x128xf32>
    %14 = vector.broadcast %5 : vector<1x128xf32> to vector<2x128xf32>
    %15 = arith.addf %13, %14 : vector<2x128xf32>
    %16 = vector.extract_strided_slice %15 {offsets = [0, 0], sizes = [2, 32], strides = [1, 1]} : vector<2x128xf32> to vector<2x32xf32>
    %17 = arith.negf %16 : vector<2x32xf32>
    %18 = math.exp %17 : vector<2x32xf32>
    %cst_14 = arith.constant 1.000000e+00 : f32
    %19 = vector.broadcast %cst_14 : f32 to vector<2x32xf32>
    %20 = arith.addf %19, %18 : vector<2x32xf32>
    %21 = arith.divf %19, %20 : vector<2x32xf32>
    %22 = vector.extract_strided_slice %15 {offsets = [0, 32], sizes = [2, 32], strides = [1, 1]} : vector<2x128xf32> to vector<2x32xf32>
    %23 = arith.negf %22 : vector<2x32xf32>
    %24 = math.exp %23 : vector<2x32xf32>
    %cst_15 = arith.constant 1.000000e+00 : f32
    %25 = vector.broadcast %cst_15 : f32 to vector<2x32xf32>
    %26 = arith.addf %25, %24 : vector<2x32xf32>
    %27 = arith.divf %25, %26 : vector<2x32xf32>
    %28 = vector.extract_strided_slice %15 {offsets = [0, 64], sizes = [2, 32], strides = [1, 1]} : vector<2x128xf32> to vector<2x32xf32>
    %29 = math.tanh %28 : vector<2x32xf32>
    %30 = vector.extract_strided_slice %15 {offsets = [0, 96], sizes = [2, 32], strides = [1, 1]} : vector<2x128xf32> to vector<2x32xf32>
    %31 = arith.negf %30 : vector<2x32xf32>
    %32 = math.exp %31 : vector<2x32xf32>
    %cst_16 = arith.constant 1.000000e+00 : f32
    %33 = vector.broadcast %cst_16 : f32 to vector<2x32xf32>
    %34 = arith.addf %33, %32 : vector<2x32xf32>
    %35 = arith.divf %33, %34 : vector<2x32xf32>
    %36 = arith.mulf %27, %7 : vector<2x32xf32>
    %37 = arith.mulf %21, %29 : vector<2x32xf32>
    %38 = arith.addf %36, %37 : vector<2x32xf32>
    %39 = math.tanh %38 : vector<2x32xf32>
    %40 = arith.mulf %35, %39 : vector<2x32xf32>
    %c0_17 = arith.constant 0 : index
    %c0_18 = arith.constant 0 : index
    %c0_19 = arith.constant 0 : index
    %41 = vector.load %arg5[%c0_17, %c0_18, %c0_19] : memref<8x2x32xbf16, #tpu.memory_space<vmem>>, vector<1x2x32xbf16>
    %42 = vector.shape_cast %41 : vector<1x2x32xbf16> to vector<2x32xbf16>
    %43 = arith.extf %42 : vector<2x32xbf16> to vector<2x32xf32>
    %44 = arith.addf %40, %43 : vector<2x32xf32>
    %45 = arith.truncf %44 : vector<2x32xf32> to vector<2x32xbf16>
    %c0_20 = arith.constant 0 : index
    %c0_21 = arith.constant 0 : index
    %c0_22 = arith.constant 0 : index
    %46 = vector.load %arg6[%c0_20, %c0_21, %c0_22] : memref<8x2x32xbf16, #tpu.memory_space<vmem>>, vector<1x2x32xbf16>
    %47 = vector.shape_cast %46 : vector<1x2x32xbf16> to vector<2x32xbf16>
    %48 = vector.shape_cast %45 : vector<2x32xbf16> to vector<1x2x32xbf16>
    tpu.vector_store %arg6[%c0_20, %c0_21, %c0_22], %48 {strides = array<i32>} : memref<8x2x32xbf16, #tpu.memory_space<vmem>>, vector<1x2x32xbf16>,
    %c1 = arith.constant 1 : index
    %c0_23 = arith.constant 0 : index
    %c0_24 = arith.constant 0 : index
    %49 = vector.load %arg1[%c1, %c0_23, %c0_24] : memref<8x2x32xbf16, #tpu.memory_space<vmem>>, vector<1x2x32xbf16>
    %50 = vector.shape_cast %49 : vector<1x2x32xbf16> to vector<2x32xbf16>
    %cst_25 = arith.constant dense<0.000000e+00> : vector<2x128xf32>
    %51 = tpu.matmul %50, %3, %cst_25 {dimension_numbers = #tpu.dot_dimension_numbers<[1], [0], [0], [1], [0, 0, 1, 1], [], []>} : vector<2x32xbf16>, vector<32x128xbf16>, vector<2x128xf32> -> vector<2x128xf32>
    %52 = arith.truncf %40 : vector<2x32xf32> to vector<2x32xbf16>
    %cst_26 = arith.constant dense<0.000000e+00> : vector<2x128xf32>
    %53 = tpu.matmul %52, %4, %cst_26 {dimension_numbers = #tpu.dot_dimension_numbers<[1], [0], [0], [1], [0, 0, 1, 1], [], []>} : vector<2x32xbf16>, vector<32x128xbf16>, vector<2x128xf32> -> vector<2x128xf32>
    %54 = arith.addf %51, %53 : vector<2x128xf32>
    %55 = vector.broadcast %5 : vector<1x128xf32> to vector<2x128xf32>
    %56 = arith.addf %54, %55 : vector<2x128xf32>
    %57 = vector.extract_strided_slice %56 {offsets = [0, 0], sizes = [2, 32], strides = [1, 1]} : vector<2x128xf32> to vector<2x32xf32>
    %58 = arith.negf %57 : vector<2x32xf32>
    %59 = math.exp %58 : vector<2x32xf32>
    %cst_27 = arith.constant 1.000000e+00 : f32
    %60 = vector.broadcast %cst_27 : f32 to vector<2x32xf32>
    %61 = arith.addf %60, %59 : vector<2x32xf32>
    %62 = arith.divf %60, %61 : vector<2x32xf32>
    %63 = vector.extract_strided_slice %56 {offsets = [0, 32], sizes = [2, 32], strides = [1, 1]} : vector<2x128xf32> to vector<2x32xf32>
    %64 = arith.negf %63 : vector<2x32xf32>
    %65 = math.exp %64 : vector<2x32xf32>
    %cst_28 = arith.constant 1.000000e+00 : f32
    %66 = vector.broadcast %cst_28 : f32 to vector<2x32xf32>
    %67 = arith.addf %66, %65 : vector<2x32xf32>
    %68 = arith.divf %66, %67 : vector<2x32xf32>
    %69 = vector.extract_strided_slice %56 {offsets = [0, 64], sizes = [2, 32], strides = [1, 1]} : vector<2x128xf32> to vector<2x32xf32>
    %70 = math.tanh %69 : vector<2x32xf32>
    %71 = vector.extract_strided_slice %56 {offsets = [0, 96], sizes = [2, 32], strides = [1, 1]} : vector<2x128xf32> to vector<2x32xf32>
    %72 = arith.negf %71 : vector<2x32xf32>
    %73 = math.exp %72 : vector<2x32xf32>
    %cst_29 = arith.constant 1.000000e+00 : f32
    %74 = vector.broadcast %cst_29 : f32 to vector<2x32xf32>
    %75 = arith.addf %74, %73 : vector<2x32xf32>
    %76 = arith.divf %74, %75 : vector<2x32xf32>
    %77 = arith.mulf %68, %38 : vector<2x32xf32>
    %78 = arith.mulf %62, %70 : vector<2x32xf32>
    %79 = arith.addf %77, %78 : vector<2x32xf32>
    %80 = math.tanh %79 : vector<2x32xf32>
    %81 = arith.mulf %76, %80 : vector<2x32xf32>
    %c1_30 = arith.constant 1 : index
    %c0_31 = arith.constant 0 : index
    %c0_32 = arith.constant 0 : index
    %82 = vector.load %arg5[%c1_30, %c0_31, %c0_32] : memref<8x2x32xbf16, #tpu.memory_space<vmem>>, vector<1x2x32xbf16>
    %83 = vector.shape_cast %82 : vector<1x2x32xbf16> to vector<2x32xbf16>
    %84 = arith.extf %83 : vector<2x32xbf16> to vector<2x32xf32>
    %85 = arith.addf %81, %84 : vector<2x32xf32>
    %86 = arith.truncf %85 : vector<2x32xf32> to vector<2x32xbf16>
    %c1_33 = arith.constant 1 : index
    %c0_34 = arith.constant 0 : index
    %c0_35 = arith.constant 0 : index
    %87 = vector.load %arg6[%c1_33, %c0_34, %c0_35] : memref<8x2x32xbf16, #tpu.memory_space<vmem>>, vector<1x2x32xbf16>
    %88 = vector.shape_cast %87 : vector<1x2x32xbf16> to vector<2x32xbf16>
    %89 = vector.shape_cast %86 : vector<2x32xbf16> to vector<1x2x32xbf16>
    tpu.vector_store %arg6[%c1_33, %c0_34, %c0_35], %89 {strides = array<i32>} : memref<8x2x32xbf16, #tpu.memory_space<vmem>>, vector<1x2x32xbf16>,
    %c2 = arith.constant 2 : index
    %c0_36 = arith.constant 0 : index
    %c0_37 = arith.constant 0 : index
    %90 = vector.load %arg1[%c2, %c0_36, %c0_37] : memref<8x2x32xbf16, #tpu.memory_space<vmem>>, vector<1x2x32xbf16>
    %91 = vector.shape_cast %90 : vector<1x2x32xbf16> to vector<2x32xbf16>
    %cst_38 = arith.constant dense<0.000000e+00> : vector<2x128xf32>
    %92 = tpu.matmul %91, %3, %cst_38 {dimension_numbers = #tpu.dot_dimension_numbers<[1], [0], [0], [1], [0, 0, 1, 1], [], []>} : vector<2x32xbf16>, vector<32x128xbf16>, vector<2x128xf32> -> vector<2x128xf32>
    %93 = arith.truncf %81 : vector<2x32xf32> to vector<2x32xbf16>
    %cst_39 = arith.constant dense<0.000000e+00> : vector<2x128xf32>
    %94 = tpu.matmul %93, %4, %cst_39 {dimension_numbers = #tpu.dot_dimension_numbers<[1], [0], [0], [1], [0, 0, 1, 1], [], []>} : vector<2x32xbf16>, vector<32x128xbf16>, vector<2x128xf32> -> vector<2x128xf32>
    %95 = arith.addf %92, %94 : vector<2x128xf32>
    %96 = vector.broadcast %5 : vector<1x128xf32> to vector<2x128xf32>
    %97 = arith.addf %95, %96 : vector<2x128xf32>
    %98 = vector.extract_strided_slice %97 {offsets = [0, 0], sizes = [2, 32], strides = [1, 1]} : vector<2x128xf32> to vector<2x32xf32>
    %99 = arith.negf %98 : vector<2x32xf32>
    %100 = math.exp %99 : vector<2x32xf32>
    %cst_40 = arith.constant 1.000000e+00 : f32
    %101 = vector.broadcast %cst_40 : f32 to vector<2x32xf32>
    %102 = arith.addf %101, %100 : vector<2x32xf32>
    %103 = arith.divf %101, %102 : vector<2x32xf32>
    %104 = vector.extract_strided_slice %97 {offsets = [0, 32], sizes = [2, 32], strides = [1, 1]} : vector<2x128xf32> to vector<2x32xf32>
    %105 = arith.negf %104 : vector<2x32xf32>
    %106 = math.exp %105 : vector<2x32xf32>
    %cst_41 = arith.constant 1.000000e+00 : f32
    %107 = vector.broadcast %cst_41 : f32 to vector<2x32xf32>
    %108 = arith.addf %107, %106 : vector<2x32xf32>
    %109 = arith.divf %107, %108 : vector<2x32xf32>
    %110 = vector.extract_strided_slice %97 {offsets = [0, 64], sizes = [2, 32], strides = [1, 1]} : vector<2x128xf32> to vector<2x32xf32>
    %111 = math.tanh %110 : vector<2x32xf32>
    %112 = vector.extract_strided_slice %97 {offsets = [0, 96], sizes = [2, 32], strides = [1, 1]} : vector<2x128xf32> to vector<2x32xf32>
    %113 = arith.negf %112 : vector<2x32xf32>
    %114 = math.exp %113 : vector<2x32xf32>
    %cst_42 = arith.constant 1.000000e+00 : f32
    %115 = vector.broadcast %cst_42 : f32 to vector<2x32xf32>
    %116 = arith.addf %115, %114 : vector<2x32xf32>
    %117 = arith.divf %115, %116 : vector<2x32xf32>
    %118 = arith.mulf %109, %79 : vector<2x32xf32>
    %119 = arith.mulf %103, %111 : vector<2x32xf32>
    %120 = arith.addf %118, %119 : vector<2x32xf32>
    %121 = math.tanh %120 : vector<2x32xf32>
    %122 = arith.mulf %117, %121 : vector<2x32xf32>
    %c2_43 = arith.constant 2 : index
    %c0_44 = arith.constant 0 : index
    %c0_45 = arith.constant 0 : index
    %123 = vector.load %arg5[%c2_43, %c0_44, %c0_45] : memref<8x2x32xbf16, #tpu.memory_space<vmem>>, vector<1x2x32xbf16>
    %124 = vector.shape_cast %123 : vector<1x2x32xbf16> to vector<2x32xbf16>
    %125 = arith.extf %124 : vector<2x32xbf16> to vector<2x32xf32>
    %126 = arith.addf %122, %125 : vector<2x32xf32>
    %127 = arith.truncf %126 : vector<2x32xf32> to vector<2x32xbf16>
    %c2_46 = arith.constant 2 : index
    %c0_47 = arith.constant 0 : index
    %c0_48 = arith.constant 0 : index
    %128 = vector.load %arg6[%c2_46, %c0_47, %c0_48] : memref<8x2x32xbf16, #tpu.memory_space<vmem>>, vector<1x2x32xbf16>
    %129 = vector.shape_cast %128 : vector<1x2x32xbf16> to vector<2x32xbf16>
    %130 = vector.shape_cast %127 : vector<2x32xbf16> to vector<1x2x32xbf16>
    tpu.vector_store %arg6[%c2_46, %c0_47, %c0_48], %130 {strides = array<i32>} : memref<8x2x32xbf16, #tpu.memory_space<vmem>>, vector<1x2x32xbf16>,
    %c3 = arith.constant 3 : index
    %c0_49 = arith.constant 0 : index
    %c0_50 = arith.constant 0 : index
    %131 = vector.load %arg1[%c3, %c0_49, %c0_50] : memref<8x2x32xbf16, #tpu.memory_space<vmem>>, vector<1x2x32xbf16>
    %132 = vector.shape_cast %131 : vector<1x2x32xbf16> to vector<2x32xbf16>
    %cst_51 = arith.constant dense<0.000000e+00> : vector<2x128xf32>
    %133 = tpu.matmul %132, %3, %cst_51 {dimension_numbers = #tpu.dot_dimension_numbers<[1], [0], [0], [1], [0, 0, 1, 1], [], []>} : vector<2x32xbf16>, vector<32x128xbf16>, vector<2x128xf32> -> vector<2x128xf32>
    %134 = arith.truncf %122 : vector<2x32xf32> to vector<2x32xbf16>
    %cst_52 = arith.constant dense<0.000000e+00> : vector<2x128xf32>
    %135 = tpu.matmul %134, %4, %cst_52 {dimension_numbers = #tpu.dot_dimension_numbers<[1], [0], [0], [1], [0, 0, 1, 1], [], []>} : vector<2x32xbf16>, vector<32x128xbf16>, vector<2x128xf32> -> vector<2x128xf32>
    %136 = arith.addf %133, %135 : vector<2x128xf32>
    %137 = vector.broadcast %5 : vector<1x128xf32> to vector<2x128xf32>
    %138 = arith.addf %136, %137 : vector<2x128xf32>
    %139 = vector.extract_strided_slice %138 {offsets = [0, 0], sizes = [2, 32], strides = [1, 1]} : vector<2x128xf32> to vector<2x32xf32>
    %140 = arith.negf %139 : vector<2x32xf32>
    %141 = math.exp %140 : vector<2x32xf32>
    %cst_53 = arith.constant 1.000000e+00 : f32
    %142 = vector.broadcast %cst_53 : f32 to vector<2x32xf32>
    %143 = arith.addf %142, %141 : vector<2x32xf32>
    %144 = arith.divf %142, %143 : vector<2x32xf32>
    %145 = vector.extract_strided_slice %138 {offsets = [0, 32], sizes = [2, 32], strides = [1, 1]} : vector<2x128xf32> to vector<2x32xf32>
    %146 = arith.negf %145 : vector<2x32xf32>
    %147 = math.exp %146 : vector<2x32xf32>
    %cst_54 = arith.constant 1.000000e+00 : f32
    %148 = vector.broadcast %cst_54 : f32 to vector<2x32xf32>
    %149 = arith.addf %148, %147 : vector<2x32xf32>
    %150 = arith.divf %148, %149 : vector<2x32xf32>
    %151 = vector.extract_strided_slice %138 {offsets = [0, 64], sizes = [2, 32], strides = [1, 1]} : vector<2x128xf32> to vector<2x32xf32>
    %152 = math.tanh %151 : vector<2x32xf32>
    %153 = vector.extract_strided_slice %138 {offsets = [0, 96], sizes = [2, 32], strides = [1, 1]} : vector<2x128xf32> to vector<2x32xf32>
    %154 = arith.negf %153 : vector<2x32xf32>
    %155 = math.exp %154 : vector<2x32xf32>
    %cst_55 = arith.constant 1.000000e+00 : f32
    %156 = vector.broadcast %cst_55 : f32 to vector<2x32xf32>
    %157 = arith.addf %156, %155 : vector<2x32xf32>
    %158 = arith.divf %156, %157 : vector<2x32xf32>
    %159 = arith.mulf %150, %120 : vector<2x32xf32>
    %160 = arith.mulf %144, %152 : vector<2x32xf32>
    %161 = arith.addf %159, %160 : vector<2x32xf32>
    %162 = math.tanh %161 : vector<2x32xf32>
    %163 = arith.mulf %158, %162 : vector<2x32xf32>
    %c3_56 = arith.constant 3 : index
    %c0_57 = arith.constant 0 : index
    %c0_58 = arith.constant 0 : index
    %164 = vector.load %arg5[%c3_56, %c0_57, %c0_58] : memref<8x2x32xbf16, #tpu.memory_space<vmem>>, vector<1x2x32xbf16>
    %165 = vector.shape_cast %164 : vector<1x2x32xbf16> to vector<2x32xbf16>
    %166 = arith.extf %165 : vector<2x32xbf16> to vector<2x32xf32>
    %167 = arith.addf %163, %166 : vector<2x32xf32>
    %168 = arith.truncf %167 : vector<2x32xf32> to vector<2x32xbf16>
    %c3_59 = arith.constant 3 : index
    %c0_60 = arith.constant 0 : index
    %c0_61 = arith.constant 0 : index
    %169 = vector.load %arg6[%c3_59, %c0_60, %c0_61] : memref<8x2x32xbf16, #tpu.memory_space<vmem>>, vector<1x2x32xbf16>
    %170 = vector.shape_cast %169 : vector<1x2x32xbf16> to vector<2x32xbf16>
    %171 = vector.shape_cast %168 : vector<2x32xbf16> to vector<1x2x32xbf16>
    tpu.vector_store %arg6[%c3_59, %c0_60, %c0_61], %171 {strides = array<i32>} : memref<8x2x32xbf16, #tpu.memory_space<vmem>>, vector<1x2x32xbf16>,
    %c4 = arith.constant 4 : index
    %c0_62 = arith.constant 0 : index
    %c0_63 = arith.constant 0 : index
    %172 = vector.load %arg1[%c4, %c0_62, %c0_63] : memref<8x2x32xbf16, #tpu.memory_space<vmem>>, vector<1x2x32xbf16>
    %173 = vector.shape_cast %172 : vector<1x2x32xbf16> to vector<2x32xbf16>
    %cst_64 = arith.constant dense<0.000000e+00> : vector<2x128xf32>
    %174 = tpu.matmul %173, %3, %cst_64 {dimension_numbers = #tpu.dot_dimension_numbers<[1], [0], [0], [1], [0, 0, 1, 1], [], []>} : vector<2x32xbf16>, vector<32x128xbf16>, vector<2x128xf32> -> vector<2x128xf32>
    %175 = arith.truncf %163 : vector<2x32xf32> to vector<2x32xbf16>
    %cst_65 = arith.constant dense<0.000000e+00> : vector<2x128xf32>
    %176 = tpu.matmul %175, %4, %cst_65 {dimension_numbers = #tpu.dot_dimension_numbers<[1], [0], [0], [1], [0, 0, 1, 1], [], []>} : vector<2x32xbf16>, vector<32x128xbf16>, vector<2x128xf32> -> vector<2x128xf32>
    %177 = arith.addf %174, %176 : vector<2x128xf32>
    %178 = vector.broadcast %5 : vector<1x128xf32> to vector<2x128xf32>
    %179 = arith.addf %177, %178 : vector<2x128xf32>
    %180 = vector.extract_strided_slice %179 {offsets = [0, 0], sizes = [2, 32], strides = [1, 1]} : vector<2x128xf32> to vector<2x32xf32>
    %181 = arith.negf %180 : vector<2x32xf32>
    %182 = math.exp %181 : vector<2x32xf32>
    %cst_66 = arith.constant 1.000000e+00 : f32
    %183 = vector.broadcast %cst_66 : f32 to vector<2x32xf32>
    %184 = arith.addf %183, %182 : vector<2x32xf32>
    %185 = arith.divf %183, %184 : vector<2x32xf32>
    %186 = vector.extract_strided_slice %179 {offsets = [0, 32], sizes = [2, 32], strides = [1, 1]} : vector<2x128xf32> to vector<2x32xf32>
    %187 = arith.negf %186 : vector<2x32xf32>
    %188 = math.exp %187 : vector<2x32xf32>
    %cst_67 = arith.constant 1.000000e+00 : f32
    %189 = vector.broadcast %cst_67 : f32 to vector<2x32xf32>
    %190 = arith.addf %189, %188 : vector<2x32xf32>
    %191 = arith.divf %189, %190 : vector<2x32xf32>
    %192 = vector.extract_strided_slice %179 {offsets = [0, 64], sizes = [2, 32], strides = [1, 1]} : vector<2x128xf32> to vector<2x32xf32>
    %193 = math.tanh %192 : vector<2x32xf32>
    %194 = vector.extract_strided_slice %179 {offsets = [0, 96], sizes = [2, 32], strides = [1, 1]} : vector<2x128xf32> to vector<2x32xf32>
    %195 = arith.negf %194 : vector<2x32xf32>
    %196 = math.exp %195 : vector<2x32xf32>
    %cst_68 = arith.constant 1.000000e+00 : f32
    %197 = vector.broadcast %cst_68 : f32 to vector<2x32xf32>
    %198 = arith.addf %197, %196 : vector<2x32xf32>
    %199 = arith.divf %197, %198 : vector<2x32xf32>
    %200 = arith.mulf %191, %161 : vector<2x32xf32>
    %201 = arith.mulf %185, %193 : vector<2x32xf32>
    %202 = arith.addf %200, %201 : vector<2x32xf32>
    %203 = math.tanh %202 : vector<2x32xf32>
    %204 = arith.mulf %199, %203 : vector<2x32xf32>
    %c4_69 = arith.constant 4 : index
    %c0_70 = arith.constant 0 : index
    %c0_71 = arith.constant 0 : index
    %205 = vector.load %arg5[%c4_69, %c0_70, %c0_71] : memref<8x2x32xbf16, #tpu.memory_space<vmem>>, vector<1x2x32xbf16>
    %206 = vector.shape_cast %205 : vector<1x2x32xbf16> to vector<2x32xbf16>
    %207 = arith.extf %206 : vector<2x32xbf16> to vector<2x32xf32>
    %208 = arith.addf %204, %207 : vector<2x32xf32>
    %209 = arith.truncf %208 : vector<2x32xf32> to vector<2x32xbf16>
    %c4_72 = arith.constant 4 : index
    %c0_73 = arith.constant 0 : index
    %c0_74 = arith.constant 0 : index
    %210 = vector.load %arg6[%c4_72, %c0_73, %c0_74] : memref<8x2x32xbf16, #tpu.memory_space<vmem>>, vector<1x2x32xbf16>
    %211 = vector.shape_cast %210 : vector<1x2x32xbf16> to vector<2x32xbf16>
    %212 = vector.shape_cast %209 : vector<2x32xbf16> to vector<1x2x32xbf16>
    tpu.vector_store %arg6[%c4_72, %c0_73, %c0_74], %212 {strides = array<i32>} : memref<8x2x32xbf16, #tpu.memory_space<vmem>>, vector<1x2x32xbf16>,
    %c5 = arith.constant 5 : index
    %c0_75 = arith.constant 0 : index
    %c0_76 = arith.constant 0 : index
    %213 = vector.load %arg1[%c5, %c0_75, %c0_76] : memref<8x2x32xbf16, #tpu.memory_space<vmem>>, vector<1x2x32xbf16>
    %214 = vector.shape_cast %213 : vector<1x2x32xbf16> to vector<2x32xbf16>
    %cst_77 = arith.constant dense<0.000000e+00> : vector<2x128xf32>
    %215 = tpu.matmul %214, %3, %cst_77 {dimension_numbers = #tpu.dot_dimension_numbers<[1], [0], [0], [1], [0, 0, 1, 1], [], []>} : vector<2x32xbf16>, vector<32x128xbf16>, vector<2x128xf32> -> vector<2x128xf32>
    %216 = arith.truncf %204 : vector<2x32xf32> to vector<2x32xbf16>
    %cst_78 = arith.constant dense<0.000000e+00> : vector<2x128xf32>
    %217 = tpu.matmul %216, %4, %cst_78 {dimension_numbers = #tpu.dot_dimension_numbers<[1], [0], [0], [1], [0, 0, 1, 1], [], []>} : vector<2x32xbf16>, vector<32x128xbf16>, vector<2x128xf32> -> vector<2x128xf32>
    %218 = arith.addf %215, %217 : vector<2x128xf32>
    %219 = vector.broadcast %5 : vector<1x128xf32> to vector<2x128xf32>
    %220 = arith.addf %218, %219 : vector<2x128xf32>
    %221 = vector.extract_strided_slice %220 {offsets = [0, 0], sizes = [2, 32], strides = [1, 1]} : vector<2x128xf32> to vector<2x32xf32>
    %222 = arith.negf %221 : vector<2x32xf32>
    %223 = math.exp %222 : vector<2x32xf32>
    %cst_79 = arith.constant 1.000000e+00 : f32
    %224 = vector.broadcast %cst_79 : f32 to vector<2x32xf32>
    %225 = arith.addf %224, %223 : vector<2x32xf32>
    %226 = arith.divf %224, %225 : vector<2x32xf32>
    %227 = vector.extract_strided_slice %220 {offsets = [0, 32], sizes = [2, 32], strides = [1, 1]} : vector<2x128xf32> to vector<2x32xf32>
    %228 = arith.negf %227 : vector<2x32xf32>
    %229 = math.exp %228 : vector<2x32xf32>
    %cst_80 = arith.constant 1.000000e+00 : f32
    %230 = vector.broadcast %cst_80 : f32 to vector<2x32xf32>
    %231 = arith.addf %230, %229 : vector<2x32xf32>
    %232 = arith.divf %230, %231 : vector<2x32xf32>
    %233 = vector.extract_strided_slice %220 {offsets = [0, 64], sizes = [2, 32], strides = [1, 1]} : vector<2x128xf32> to vector<2x32xf32>
    %234 = math.tanh %233 : vector<2x32xf32>
    %235 = vector.extract_strided_slice %220 {offsets = [0, 96], sizes = [2, 32], strides = [1, 1]} : vector<2x128xf32> to vector<2x32xf32>
    %236 = arith.negf %235 : vector<2x32xf32>
    %237 = math.exp %236 : vector<2x32xf32>
    %cst_81 = arith.constant 1.000000e+00 : f32
    %238 = vector.broadcast %cst_81 : f32 to vector<2x32xf32>
    %239 = arith.addf %238, %237 : vector<2x32xf32>
    %240 = arith.divf %238, %239 : vector<2x32xf32>
    %241 = arith.mulf %232, %202 : vector<2x32xf32>
    %242 = arith.mulf %226, %234 : vector<2x32xf32>
    %243 = arith.addf %241, %242 : vector<2x32xf32>
    %244 = math.tanh %243 : vector<2x32xf32>
    %245 = arith.mulf %240, %244 : vector<2x32xf32>
    %c5_82 = arith.constant 5 : index
    %c0_83 = arith.constant 0 : index
    %c0_84 = arith.constant 0 : index
    %246 = vector.load %arg5[%c5_82, %c0_83, %c0_84] : memref<8x2x32xbf16, #tpu.memory_space<vmem>>, vector<1x2x32xbf16>
    %247 = vector.shape_cast %246 : vector<1x2x32xbf16> to vector<2x32xbf16>
    %248 = arith.extf %247 : vector<2x32xbf16> to vector<2x32xf32>
    %249 = arith.addf %245, %248 : vector<2x32xf32>
    %250 = arith.truncf %249 : vector<2x32xf32> to vector<2x32xbf16>
    %c5_85 = arith.constant 5 : index
    %c0_86 = arith.constant 0 : index
    %c0_87 = arith.constant 0 : index
    %251 = vector.load %arg6[%c5_85, %c0_86, %c0_87] : memref<8x2x32xbf16, #tpu.memory_space<vmem>>, vector<1x2x32xbf16>
    %252 = vector.shape_cast %251 : vector<1x2x32xbf16> to vector<2x32xbf16>
    %253 = vector.shape_cast %250 : vector<2x32xbf16> to vector<1x2x32xbf16>
    tpu.vector_store %arg6[%c5_85, %c0_86, %c0_87], %253 {strides = array<i32>} : memref<8x2x32xbf16, #tpu.memory_space<vmem>>, vector<1x2x32xbf16>,
    %c6 = arith.constant 6 : index
    %c0_88 = arith.constant 0 : index
    %c0_89 = arith.constant 0 : index
    %254 = vector.load %arg1[%c6, %c0_88, %c0_89] : memref<8x2x32xbf16, #tpu.memory_space<vmem>>, vector<1x2x32xbf16>
    %255 = vector.shape_cast %254 : vector<1x2x32xbf16> to vector<2x32xbf16>
    %cst_90 = arith.constant dense<0.000000e+00> : vector<2x128xf32>
    %256 = tpu.matmul %255, %3, %cst_90 {dimension_numbers = #tpu.dot_dimension_numbers<[1], [0], [0], [1], [0, 0, 1, 1], [], []>} : vector<2x32xbf16>, vector<32x128xbf16>, vector<2x128xf32> -> vector<2x128xf32>
    %257 = arith.truncf %245 : vector<2x32xf32> to vector<2x32xbf16>
    %cst_91 = arith.constant dense<0.000000e+00> : vector<2x128xf32>
    %258 = tpu.matmul %257, %4, %cst_91 {dimension_numbers = #tpu.dot_dimension_numbers<[1], [0], [0], [1], [0, 0, 1, 1], [], []>} : vector<2x32xbf16>, vector<32x128xbf16>, vector<2x128xf32> -> vector<2x128xf32>
    %259 = arith.addf %256, %258 : vector<2x128xf32>
    %260 = vector.broadcast %5 : vector<1x128xf32> to vector<2x128xf32>
    %261 = arith.addf %259, %260 : vector<2x128xf32>
    %262 = vector.extract_strided_slice %261 {offsets = [0, 0], sizes = [2, 32], strides = [1, 1]} : vector<2x128xf32> to vector<2x32xf32>
    %263 = arith.negf %262 : vector<2x32xf32>
    %264 = math.exp %263 : vector<2x32xf32>
    %cst_92 = arith.constant 1.000000e+00 : f32
    %265 = vector.broadcast %cst_92 : f32 to vector<2x32xf32>
    %266 = arith.addf %265, %264 : vector<2x32xf32>
    %267 = arith.divf %265, %266 : vector<2x32xf32>
    %268 = vector.extract_strided_slice %261 {offsets = [0, 32], sizes = [2, 32], strides = [1, 1]} : vector<2x128xf32> to vector<2x32xf32>
    %269 = arith.negf %268 : vector<2x32xf32>
    %270 = math.exp %269 : vector<2x32xf32>
    %cst_93 = arith.constant 1.000000e+00 : f32
    %271 = vector.broadcast %cst_93 : f32 to vector<2x32xf32>
    %272 = arith.addf %271, %270 : vector<2x32xf32>
    %273 = arith.divf %271, %272 : vector<2x32xf32>
    %274 = vector.extract_strided_slice %261 {offsets = [0, 64], sizes = [2, 32], strides = [1, 1]} : vector<2x128xf32> to vector<2x32xf32>
    %275 = math.tanh %274 : vector<2x32xf32>
    %276 = vector.extract_strided_slice %261 {offsets = [0, 96], sizes = [2, 32], strides = [1, 1]} : vector<2x128xf32> to vector<2x32xf32>
    %277 = arith.negf %276 : vector<2x32xf32>
    %278 = math.exp %277 : vector<2x32xf32>
    %cst_94 = arith.constant 1.000000e+00 : f32
    %279 = vector.broadcast %cst_94 : f32 to vector<2x32xf32>
    %280 = arith.addf %279, %278 : vector<2x32xf32>
    %281 = arith.divf %279, %280 : vector<2x32xf32>
    %282 = arith.mulf %273, %243 : vector<2x32xf32>
    %283 = arith.mulf %267, %275 : vector<2x32xf32>
    %284 = arith.addf %282, %283 : vector<2x32xf32>
    %285 = math.tanh %284 : vector<2x32xf32>
    %286 = arith.mulf %281, %285 : vector<2x32xf32>
    %c6_95 = arith.constant 6 : index
    %c0_96 = arith.constant 0 : index
    %c0_97 = arith.constant 0 : index
    %287 = vector.load %arg5[%c6_95, %c0_96, %c0_97] : memref<8x2x32xbf16, #tpu.memory_space<vmem>>, vector<1x2x32xbf16>
    %288 = vector.shape_cast %287 : vector<1x2x32xbf16> to vector<2x32xbf16>
    %289 = arith.extf %288 : vector<2x32xbf16> to vector<2x32xf32>
    %290 = arith.addf %286, %289 : vector<2x32xf32>
    %291 = arith.truncf %290 : vector<2x32xf32> to vector<2x32xbf16>
    %c6_98 = arith.constant 6 : index
    %c0_99 = arith.constant 0 : index
    %c0_100 = arith.constant 0 : index
    %292 = vector.load %arg6[%c6_98, %c0_99, %c0_100] : memref<8x2x32xbf16, #tpu.memory_space<vmem>>, vector<1x2x32xbf16>
    %293 = vector.shape_cast %292 : vector<1x2x32xbf16> to vector<2x32xbf16>
    %294 = vector.shape_cast %291 : vector<2x32xbf16> to vector<1x2x32xbf16>
    tpu.vector_store %arg6[%c6_98, %c0_99, %c0_100], %294 {strides = array<i32>} : memref<8x2x32xbf16, #tpu.memory_space<vmem>>, vector<1x2x32xbf16>,
    %c7 = arith.constant 7 : index
    %c0_101 = arith.constant 0 : index
    %c0_102 = arith.constant 0 : index
    %295 = vector.load %arg1[%c7, %c0_101, %c0_102] : memref<8x2x32xbf16, #tpu.memory_space<vmem>>, vector<1x2x32xbf16>
    %296 = vector.shape_cast %295 : vector<1x2x32xbf16> to vector<2x32xbf16>
    %cst_103 = arith.constant dense<0.000000e+00> : vector<2x128xf32>
    %297 = tpu.matmul %296, %3, %cst_103 {dimension_numbers = #tpu.dot_dimension_numbers<[1], [0], [0], [1], [0, 0, 1, 1], [], []>} : vector<2x32xbf16>, vector<32x128xbf16>, vector<2x128xf32> -> vector<2x128xf32>
    %298 = arith.truncf %286 : vector<2x32xf32> to vector<2x32xbf16>
    %cst_104 = arith.constant dense<0.000000e+00> : vector<2x128xf32>
    %299 = tpu.matmul %298, %4, %cst_104 {dimension_numbers = #tpu.dot_dimension_numbers<[1], [0], [0], [1], [0, 0, 1, 1], [], []>} : vector<2x32xbf16>, vector<32x128xbf16>, vector<2x128xf32> -> vector<2x128xf32>
    %300 = arith.addf %297, %299 : vector<2x128xf32>
    %301 = vector.broadcast %5 : vector<1x128xf32> to vector<2x128xf32>
    %302 = arith.addf %300, %301 : vector<2x128xf32>
    %303 = vector.extract_strided_slice %302 {offsets = [0, 0], sizes = [2, 32], strides = [1, 1]} : vector<2x128xf32> to vector<2x32xf32>
    %304 = arith.negf %303 : vector<2x32xf32>
    %305 = math.exp %304 : vector<2x32xf32>
    %cst_105 = arith.constant 1.000000e+00 : f32
    %306 = vector.broadcast %cst_105 : f32 to vector<2x32xf32>
    %307 = arith.addf %306, %305 : vector<2x32xf32>
    %308 = arith.divf %306, %307 : vector<2x32xf32>
    %309 = vector.extract_strided_slice %302 {offsets = [0, 32], sizes = [2, 32], strides = [1, 1]} : vector<2x128xf32> to vector<2x32xf32>
    %310 = arith.negf %309 : vector<2x32xf32>
    %311 = math.exp %310 : vector<2x32xf32>
    %cst_106 = arith.constant 1.000000e+00 : f32
    %312 = vector.broadcast %cst_106 : f32 to vector<2x32xf32>
    %313 = arith.addf %312, %311 : vector<2x32xf32>
    %314 = arith.divf %312, %313 : vector<2x32xf32>
    %315 = vector.extract_strided_slice %302 {offsets = [0, 64], sizes = [2, 32], strides = [1, 1]} : vector<2x128xf32> to vector<2x32xf32>
    %316 = math.tanh %315 : vector<2x32xf32>
    %317 = vector.extract_strided_slice %302 {offsets = [0, 96], sizes = [2, 32], strides = [1, 1]} : vector<2x128xf32> to vector<2x32xf32>
    %318 = arith.negf %317 : vector<2x32xf32>
    %319 = math.exp %318 : vector<2x32xf32>
    %cst_107 = arith.constant 1.000000e+00 : f32
    %320 = vector.broadcast %cst_107 : f32 to vector<2x32xf32>
    %321 = arith.addf %320, %319 : vector<2x32xf32>
    %322 = arith.divf %320, %321 : vector<2x32xf32>
    %323 = arith.mulf %314, %284 : vector<2x32xf32>
    %324 = arith.mulf %308, %316 : vector<2x32xf32>
    %325 = arith.addf %323, %324 : vector<2x32xf32>
    %326 = math.tanh %325 : vector<2x32xf32>
    %327 = arith.mulf %322, %326 : vector<2x32xf32>
    %c7_108 = arith.constant 7 : index
    %c0_109 = arith.constant 0 : index
    %c0_110 = arith.constant 0 : index
    %328 = vector.load %arg5[%c7_108, %c0_109, %c0_110] : memref<8x2x32xbf16, #tpu.memory_space<vmem>>, vector<1x2x32xbf16>
    %329 = vector.shape_cast %328 : vector<1x2x32xbf16> to vector<2x32xbf16>
    %330 = arith.extf %329 : vector<2x32xbf16> to vector<2x32xf32>
    %331 = arith.addf %327, %330 : vector<2x32xf32>
    %332 = arith.truncf %331 : vector<2x32xf32> to vector<2x32xbf16>
    %c7_111 = arith.constant 7 : index
    %c0_112 = arith.constant 0 : index
    %c0_113 = arith.constant 0 : index
    %333 = vector.load %arg6[%c7_111, %c0_112, %c0_113] : memref<8x2x32xbf16, #tpu.memory_space<vmem>>, vector<1x2x32xbf16>
    %334 = vector.shape_cast %333 : vector<1x2x32xbf16> to vector<2x32xbf16>
    %335 = vector.shape_cast %332 : vector<2x32xbf16> to vector<1x2x32xbf16>
    tpu.vector_store %arg6[%c7_111, %c0_112, %c0_113], %335 {strides = array<i32>} : memref<8x2x32xbf16, #tpu.memory_space<vmem>>, vector<1x2x32xbf16>,
    %c0_114 = arith.constant 0 : index
    %c0_115 = arith.constant 0 : index
    %336 = vector.load %arg7[%c0_114, %c0_115] : memref<2x32xf32, #tpu.memory_space<vmem>>, vector<2x32xf32>
    tpu.vector_store %arg7[%c0_114, %c0_115], %327 {strides = array<i32>} : memref<2x32xf32, #tpu.memory_space<vmem>>, vector<2x32xf32>,
    %c0_116 = arith.constant 0 : index
    %c0_117 = arith.constant 0 : index
    %337 = vector.load %arg8[%c0_116, %c0_117] : memref<2x32xf32, #tpu.memory_space<vmem>>, vector<2x32xf32>
    tpu.vector_store %arg8[%c0_116, %c0_117], %325 {strides = array<i32>} : memref<2x32xf32, #tpu.memory_space<vmem>>, vector<2x32xf32>,
    return
  }
  func.func @transform_0(%arg0: i32) -> (i32, i32, i32) {
    %c0_i32 = arith.constant 0 : i32
    %c0_i32_0 = arith.constant 0 : i32
    %c0_i32_1 = arith.constant 0 : i32
    return %arg0, %c0_i32, %c0_i32_0 : i32, i32, i32
  }
  func.func @transform_1(%arg0: i32) -> (i32, i32) {
    %c0_i32 = arith.constant 0 : i32
    %c0_i32_0 = arith.constant 0 : i32
    %c0_i32_1 = arith.constant 0 : i32
    return %c0_i32, %c0_i32_0 : i32, i32
  }
  func.func @transform_2(%arg0: i32) -> (i32, i32) {
    %c0_i32 = arith.constant 0 : i32
    %c0_i32_0 = arith.constant 0 : i32
    %c0_i32_1 = arith.constant 0 : i32
    return %c0_i32, %c0_i32_0 : i32, i32
  }
  func.func @transform_3(%arg0: i32) -> (i32, i32) {
    %c0_i32 = arith.constant 0 : i32
    %c0_i32_0 = arith.constant 0 : i32
    %c0_i32_1 = arith.constant 0 : i32
    return %c0_i32, %c0_i32_0 : i32, i32
  }
  func.func @transform_4(%arg0: i32) -> (i32, i32, i32) {
    %c0_i32 = arith.constant 0 : i32
    %c0_i32_0 = arith.constant 0 : i32
    %c0_i32_1 = arith.constant 0 : i32
    return %arg0, %c0_i32, %c0_i32_0 : i32, i32, i32
  }
  func.func @transform_5(%arg0: i32) -> (i32, i32, i32) {
    %c0_i32 = arith.constant 0 : i32
    %c0_i32_0 = arith.constant 0 : i32
    %c0_i32_1 = arith.constant 0 : i32
    return %arg0, %c0_i32, %c0_i32_0 : i32, i32, i32
  }
}

module attributes {stable_mosaic.version = 11 : i64} {
  func.func @_lstm_block_kernel(%arg0: i32, %arg1: memref<8x2x32xbf16, #tpu.memory_space<vmem>>, %arg2: memref<32x128xbf16, #tpu.memory_space<vmem>>, %arg3: memref<32x128xbf16, #tpu.memory_space<vmem>>, %arg4: memref<1x128xf32, #tpu.memory_space<vmem>>, %arg5: memref<8x2x32xbf16, #tpu.memory_space<vmem>>, %arg6: memref<8x2x32xbf16, #tpu.memory_space<vmem>>, %arg7: memref<2x32xf32, #tpu.memory_space<vmem>>, %arg8: memref<2x32xf32, #tpu.memory_space<vmem>>) attributes {dimension_semantics = [#tpu.dimension_semantics<arbitrary>], iteration_bounds = array<i64: 1>, scalar_prefetch = 0 : i64, scratch_operands = 2 : i64, tpu.core_type = #tpu.core_type<tc>, window_params = [{transform_indices = @transform_0, window_bounds = array<i64: 8, 2, 32>}, {pipeline_mode = #tpu.pipeline_mode<synchronous>, transform_indices = @transform_1, window_bounds = array<i64: 32, 128>}, {pipeline_mode = #tpu.pipeline_mode<synchronous>, transform_indices = @transform_2, window_bounds = array<i64: 32, 128>}, {pipeline_mode = #tpu.pipeline_mode<synchronous>, transform_indices = @transform_3, window_bounds = array<i64: 1, 128>}, {transform_indices = @transform_4, window_bounds = array<i64: 8, 2, 32>}, {transform_indices = @transform_5, window_bounds = array<i64: 8, 2, 32>}]} {
    %c0_i32 = arith.constant 0 : i32
    %0 = arith.cmpi eq, %arg0, %c0_i32 : i32
    %1 = arith.extui %0 : i1 to i32
    %c0_i32_0 = arith.constant 0 : i32
    %2 = arith.cmpi ne, %1, %c0_i32_0 : i32
    scf.if %2 {
      %cst_118 = arith.constant 0.000000e+00 : f32
      %338 = vector.broadcast %cst_118 : f32 to vector<2x32xf32>
      %c0_119 = arith.constant 0 : index
      %c0_120 = arith.constant 0 : index
      %339 = vector.load %arg7[%c0_119, %c0_120] : memref<2x32xf32, #tpu.memory_space<vmem>>, vector<2x32xf32>
      tpu.vector_store %arg7[%c0_119, %c0_120], %338 {strides = array<i32>} : memref<2x32xf32, #tpu.memory_space<vmem>>, vector<2x32xf32>,
      %cst_121 = arith.constant 0.000000e+00 : f32
      %340 = vector.broadcast %cst_121 : f32 to vector<2x32xf32>
      %c0_122 = arith.constant 0 : index
      %c0_123 = arith.constant 0 : index
      %341 = vector.load %arg8[%c0_122, %c0_123] : memref<2x32xf32, #tpu.memory_space<vmem>>, vector<2x32xf32>
      tpu.vector_store %arg8[%c0_122, %c0_123], %340 {strides = array<i32>} : memref<2x32xf32, #tpu.memory_space<vmem>>, vector<2x32xf32>,
    } else {
    }
    %c0 = arith.constant 0 : index
    %c0_1 = arith.constant 0 : index
    %3 = vector.load %arg2[%c0, %c0_1] : memref<32x128xbf16, #tpu.memory_space<vmem>>, vector<32x128xbf16>
    %c0_2 = arith.constant 0 : index
    %c0_3 = arith.constant 0 : index
    %4 = vector.load %arg3[%c0_2, %c0_3] : memref<32x128xbf16, #tpu.memory_space<vmem>>, vector<32x128xbf16>
    %c0_4 = arith.constant 0 : index
    %c0_5 = arith.constant 0 : index
    %5 = vector.load %arg4[%c0_4, %c0_5] : memref<1x128xf32, #tpu.memory_space<vmem>>, vector<1x128xf32>
    %c0_6 = arith.constant 0 : index
    %c0_7 = arith.constant 0 : index
    %6 = vector.load %arg7[%c0_6, %c0_7] : memref<2x32xf32, #tpu.memory_space<vmem>>, vector<2x32xf32>
    %c0_8 = arith.constant 0 : index
    %c0_9 = arith.constant 0 : index
    %7 = vector.load %arg8[%c0_8, %c0_9] : memref<2x32xf32, #tpu.memory_space<vmem>>, vector<2x32xf32>
    %c0_10 = arith.constant 0 : index
    %c0_11 = arith.constant 0 : index
    %c0_12 = arith.constant 0 : index
    %8 = vector.load %arg1[%c0_10, %c0_11, %c0_12] : memref<8x2x32xbf16, #tpu.memory_space<vmem>>, vector<1x2x32xbf16>
    %9 = vector.shape_cast %8 : vector<1x2x32xbf16> to vector<2x32xbf16>
    %cst = arith.constant dense<0.000000e+00> : vector<2x128xf32>
    %10 = tpu.matmul %9, %3, %cst {dimension_numbers = #tpu.dot_dimension_numbers<[1], [0], [0], [1], [0, 0, 1, 1], [], []>} : vector<2x32xbf16>, vector<32x128xbf16>, vector<2x128xf32> -> vector<2x128xf32>
    %11 = arith.truncf %6 : vector<2x32xf32> to vector<2x32xbf16>
    %cst_13 = arith.constant dense<0.000000e+00> : vector<2x128xf32>
    %12 = tpu.matmul %11, %4, %cst_13 {dimension_numbers = #tpu.dot_dimension_numbers<[1], [0], [0], [1], [0, 0, 1, 1], [], []>} : vector<2x32xbf16>, vector<32x128xbf16>, vector<2x128xf32> -> vector<2x128xf32>
    %13 = arith.addf %10, %12 : vector<2x128xf32>
    %14 = vector.broadcast %5 : vector<1x128xf32> to vector<2x128xf32>
    %15 = arith.addf %13, %14 : vector<2x128xf32>
    %16 = vector.extract_strided_slice %15 {offsets = [0, 0], sizes = [2, 32], strides = [1, 1]} : vector<2x128xf32> to vector<2x32xf32>
    %17 = arith.negf %16 : vector<2x32xf32>
    %18 = math.exp %17 : vector<2x32xf32>
    %cst_14 = arith.constant 1.000000e+00 : f32
    %19 = vector.broadcast %cst_14 : f32 to vector<2x32xf32>
    %20 = arith.addf %19, %18 : vector<2x32xf32>
    %21 = arith.divf %19, %20 : vector<2x32xf32>
    %22 = vector.extract_strided_slice %15 {offsets = [0, 32], sizes = [2, 32], strides = [1, 1]} : vector<2x128xf32> to vector<2x32xf32>
    %23 = arith.negf %22 : vector<2x32xf32>
    %24 = math.exp %23 : vector<2x32xf32>
    %cst_15 = arith.constant 1.000000e+00 : f32
    %25 = vector.broadcast %cst_15 : f32 to vector<2x32xf32>
    %26 = arith.addf %25, %24 : vector<2x32xf32>
    %27 = arith.divf %25, %26 : vector<2x32xf32>
    %28 = vector.extract_strided_slice %15 {offsets = [0, 64], sizes = [2, 32], strides = [1, 1]} : vector<2x128xf32> to vector<2x32xf32>
    %29 = math.tanh %28 : vector<2x32xf32>
    %30 = vector.extract_strided_slice %15 {offsets = [0, 96], sizes = [2, 32], strides = [1, 1]} : vector<2x128xf32> to vector<2x32xf32>
    %31 = arith.negf %30 : vector<2x32xf32>
    %32 = math.exp %31 : vector<2x32xf32>
    %cst_16 = arith.constant 1.000000e+00 : f32
    %33 = vector.broadcast %cst_16 : f32 to vector<2x32xf32>
    %34 = arith.addf %33, %32 : vector<2x32xf32>
    %35 = arith.divf %33, %34 : vector<2x32xf32>
    %36 = arith.mulf %27, %7 : vector<2x32xf32>
    %37 = arith.mulf %21, %29 : vector<2x32xf32>
    %38 = arith.addf %36, %37 : vector<2x32xf32>
    %39 = math.tanh %38 : vector<2x32xf32>
    %40 = arith.mulf %35, %39 : vector<2x32xf32>
    %c0_17 = arith.constant 0 : index
    %c0_18 = arith.constant 0 : index
    %c0_19 = arith.constant 0 : index
    %41 = vector.load %arg5[%c0_17, %c0_18, %c0_19] : memref<8x2x32xbf16, #tpu.memory_space<vmem>>, vector<1x2x32xbf16>
    %42 = vector.shape_cast %41 : vector<1x2x32xbf16> to vector<2x32xbf16>
    %43 = arith.extf %42 : vector<2x32xbf16> to vector<2x32xf32>
    %44 = arith.addf %40, %43 : vector<2x32xf32>
    %45 = arith.truncf %44 : vector<2x32xf32> to vector<2x32xbf16>
    %c0_20 = arith.constant 0 : index
    %c0_21 = arith.constant 0 : index
    %c0_22 = arith.constant 0 : index
    %46 = vector.load %arg6[%c0_20, %c0_21, %c0_22] : memref<8x2x32xbf16, #tpu.memory_space<vmem>>, vector<1x2x32xbf16>
    %47 = vector.shape_cast %46 : vector<1x2x32xbf16> to vector<2x32xbf16>
    %48 = vector.shape_cast %45 : vector<2x32xbf16> to vector<1x2x32xbf16>
    tpu.vector_store %arg6[%c0_20, %c0_21, %c0_22], %48 {strides = array<i32>} : memref<8x2x32xbf16, #tpu.memory_space<vmem>>, vector<1x2x32xbf16>,
    %c1 = arith.constant 1 : index
    %c0_23 = arith.constant 0 : index
    %c0_24 = arith.constant 0 : index
    %49 = vector.load %arg1[%c1, %c0_23, %c0_24] : memref<8x2x32xbf16, #tpu.memory_space<vmem>>, vector<1x2x32xbf16>
    %50 = vector.shape_cast %49 : vector<1x2x32xbf16> to vector<2x32xbf16>
    %cst_25 = arith.constant dense<0.000000e+00> : vector<2x128xf32>
    %51 = tpu.matmul %50, %3, %cst_25 {dimension_numbers = #tpu.dot_dimension_numbers<[1], [0], [0], [1], [0, 0, 1, 1], [], []>} : vector<2x32xbf16>, vector<32x128xbf16>, vector<2x128xf32> -> vector<2x128xf32>
    %52 = arith.truncf %40 : vector<2x32xf32> to vector<2x32xbf16>
    %cst_26 = arith.constant dense<0.000000e+00> : vector<2x128xf32>
    %53 = tpu.matmul %52, %4, %cst_26 {dimension_numbers = #tpu.dot_dimension_numbers<[1], [0], [0], [1], [0, 0, 1, 1], [], []>} : vector<2x32xbf16>, vector<32x128xbf16>, vector<2x128xf32> -> vector<2x128xf32>
    %54 = arith.addf %51, %53 : vector<2x128xf32>
    %55 = vector.broadcast %5 : vector<1x128xf32> to vector<2x128xf32>
    %56 = arith.addf %54, %55 : vector<2x128xf32>
    %57 = vector.extract_strided_slice %56 {offsets = [0, 0], sizes = [2, 32], strides = [1, 1]} : vector<2x128xf32> to vector<2x32xf32>
    %58 = arith.negf %57 : vector<2x32xf32>
    %59 = math.exp %58 : vector<2x32xf32>
    %cst_27 = arith.constant 1.000000e+00 : f32
    %60 = vector.broadcast %cst_27 : f32 to vector<2x32xf32>
    %61 = arith.addf %60, %59 : vector<2x32xf32>
    %62 = arith.divf %60, %61 : vector<2x32xf32>
    %63 = vector.extract_strided_slice %56 {offsets = [0, 32], sizes = [2, 32], strides = [1, 1]} : vector<2x128xf32> to vector<2x32xf32>
    %64 = arith.negf %63 : vector<2x32xf32>
    %65 = math.exp %64 : vector<2x32xf32>
    %cst_28 = arith.constant 1.000000e+00 : f32
    %66 = vector.broadcast %cst_28 : f32 to vector<2x32xf32>
    %67 = arith.addf %66, %65 : vector<2x32xf32>
    %68 = arith.divf %66, %67 : vector<2x32xf32>
    %69 = vector.extract_strided_slice %56 {offsets = [0, 64], sizes = [2, 32], strides = [1, 1]} : vector<2x128xf32> to vector<2x32xf32>
    %70 = math.tanh %69 : vector<2x32xf32>
    %71 = vector.extract_strided_slice %56 {offsets = [0, 96], sizes = [2, 32], strides = [1, 1]} : vector<2x128xf32> to vector<2x32xf32>
    %72 = arith.negf %71 : vector<2x32xf32>
    %73 = math.exp %72 : vector<2x32xf32>
    %cst_29 = arith.constant 1.000000e+00 : f32
    %74 = vector.broadcast %cst_29 : f32 to vector<2x32xf32>
    %75 = arith.addf %74, %73 : vector<2x32xf32>
    %76 = arith.divf %74, %75 : vector<2x32xf32>
    %77 = arith.mulf %68, %38 : vector<2x32xf32>
    %78 = arith.mulf %62, %70 : vector<2x32xf32>
    %79 = arith.addf %77, %78 : vector<2x32xf32>
    %80 = math.tanh %79 : vector<2x32xf32>
    %81 = arith.mulf %76, %80 : vector<2x32xf32>
    %c1_30 = arith.constant 1 : index
    %c0_31 = arith.constant 0 : index
    %c0_32 = arith.constant 0 : index
    %82 = vector.load %arg5[%c1_30, %c0_31, %c0_32] : memref<8x2x32xbf16, #tpu.memory_space<vmem>>, vector<1x2x32xbf16>
    %83 = vector.shape_cast %82 : vector<1x2x32xbf16> to vector<2x32xbf16>
    %84 = arith.extf %83 : vector<2x32xbf16> to vector<2x32xf32>
    %85 = arith.addf %81, %84 : vector<2x32xf32>
    %86 = arith.truncf %85 : vector<2x32xf32> to vector<2x32xbf16>
    %c1_33 = arith.constant 1 : index
    %c0_34 = arith.constant 0 : index
    %c0_35 = arith.constant 0 : index
    %87 = vector.load %arg6[%c1_33, %c0_34, %c0_35] : memref<8x2x32xbf16, #tpu.memory_space<vmem>>, vector<1x2x32xbf16>
    %88 = vector.shape_cast %87 : vector<1x2x32xbf16> to vector<2x32xbf16>
    %89 = vector.shape_cast %86 : vector<2x32xbf16> to vector<1x2x32xbf16>
    tpu.vector_store %arg6[%c1_33, %c0_34, %c0_35], %89 {strides = array<i32>} : memref<8x2x32xbf16, #tpu.memory_space<vmem>>, vector<1x2x32xbf16>,
    %c2 = arith.constant 2 : index
    %c0_36 = arith.constant 0 : index
    %c0_37 = arith.constant 0 : index
    %90 = vector.load %arg1[%c2, %c0_36, %c0_37] : memref<8x2x32xbf16, #tpu.memory_space<vmem>>, vector<1x2x32xbf16>
    %91 = vector.shape_cast %90 : vector<1x2x32xbf16> to vector<2x32xbf16>
    %cst_38 = arith.constant dense<0.000000e+00> : vector<2x128xf32>
    %92 = tpu.matmul %91, %3, %cst_38 {dimension_numbers = #tpu.dot_dimension_numbers<[1], [0], [0], [1], [0, 0, 1, 1], [], []>} : vector<2x32xbf16>, vector<32x128xbf16>, vector<2x128xf32> -> vector<2x128xf32>
    %93 = arith.truncf %81 : vector<2x32xf32> to vector<2x32xbf16>
    %cst_39 = arith.constant dense<0.000000e+00> : vector<2x128xf32>
    %94 = tpu.matmul %93, %4, %cst_39 {dimension_numbers = #tpu.dot_dimension_numbers<[1], [0], [0], [1], [0, 0, 1, 1], [], []>} : vector<2x32xbf16>, vector<32x128xbf16>, vector<2x128xf32> -> vector<2x128xf32>
    %95 = arith.addf %92, %94 : vector<2x128xf32>
    %96 = vector.broadcast %5 : vector<1x128xf32> to vector<2x128xf32>
    %97 = arith.addf %95, %96 : vector<2x128xf32>
    %98 = vector.extract_strided_slice %97 {offsets = [0, 0], sizes = [2, 32], strides = [1, 1]} : vector<2x128xf32> to vector<2x32xf32>
    %99 = arith.negf %98 : vector<2x32xf32>
    %100 = math.exp %99 : vector<2x32xf32>
    %cst_40 = arith.constant 1.000000e+00 : f32
    %101 = vector.broadcast %cst_40 : f32 to vector<2x32xf32>
    %102 = arith.addf %101, %100 : vector<2x32xf32>
    %103 = arith.divf %101, %102 : vector<2x32xf32>
    %104 = vector.extract_strided_slice %97 {offsets = [0, 32], sizes = [2, 32], strides = [1, 1]} : vector<2x128xf32> to vector<2x32xf32>
    %105 = arith.negf %104 : vector<2x32xf32>
    %106 = math.exp %105 : vector<2x32xf32>
    %cst_41 = arith.constant 1.000000e+00 : f32
    %107 = vector.broadcast %cst_41 : f32 to vector<2x32xf32>
    %108 = arith.addf %107, %106 : vector<2x32xf32>
    %109 = arith.divf %107, %108 : vector<2x32xf32>
    %110 = vector.extract_strided_slice %97 {offsets = [0, 64], sizes = [2, 32], strides = [1, 1]} : vector<2x128xf32> to vector<2x32xf32>
    %111 = math.tanh %110 : vector<2x32xf32>
    %112 = vector.extract_strided_slice %97 {offsets = [0, 96], sizes = [2, 32], strides = [1, 1]} : vector<2x128xf32> to vector<2x32xf32>
    %113 = arith.negf %112 : vector<2x32xf32>
    %114 = math.exp %113 : vector<2x32xf32>
    %cst_42 = arith.constant 1.000000e+00 : f32
    %115 = vector.broadcast %cst_42 : f32 to vector<2x32xf32>
    %116 = arith.addf %115, %114 : vector<2x32xf32>
    %117 = arith.divf %115, %116 : vector<2x32xf32>
    %118 = arith.mulf %109, %79 : vector<2x32xf32>
    %119 = arith.mulf %103, %111 : vector<2x32xf32>
    %120 = arith.addf %118, %119 : vector<2x32xf32>
    %121 = math.tanh %120 : vector<2x32xf32>
    %122 = arith.mulf %117, %121 : vector<2x32xf32>
    %c2_43 = arith.constant 2 : index
    %c0_44 = arith.constant 0 : index
    %c0_45 = arith.constant 0 : index
    %123 = vector.load %arg5[%c2_43, %c0_44, %c0_45] : memref<8x2x32xbf16, #tpu.memory_space<vmem>>, vector<1x2x32xbf16>
    %124 = vector.shape_cast %123 : vector<1x2x32xbf16> to vector<2x32xbf16>
    %125 = arith.extf %124 : vector<2x32xbf16> to vector<2x32xf32>
    %126 = arith.addf %122, %125 : vector<2x32xf32>
    %127 = arith.truncf %126 : vector<2x32xf32> to vector<2x32xbf16>
    %c2_46 = arith.constant 2 : index
    %c0_47 = arith.constant 0 : index
    %c0_48 = arith.constant 0 : index
    %128 = vector.load %arg6[%c2_46, %c0_47, %c0_48] : memref<8x2x32xbf16, #tpu.memory_space<vmem>>, vector<1x2x32xbf16>
    %129 = vector.shape_cast %128 : vector<1x2x32xbf16> to vector<2x32xbf16>
    %130 = vector.shape_cast %127 : vector<2x32xbf16> to vector<1x2x32xbf16>
    tpu.vector_store %arg6[%c2_46, %c0_47, %c0_48], %130 {strides = array<i32>} : memref<8x2x32xbf16, #tpu.memory_space<vmem>>, vector<1x2x32xbf16>,
    %c3 = arith.constant 3 : index
    %c0_49 = arith.constant 0 : index
    %c0_50 = arith.constant 0 : index
    %131 = vector.load %arg1[%c3, %c0_49, %c0_50] : memref<8x2x32xbf16, #tpu.memory_space<vmem>>, vector<1x2x32xbf16>
    %132 = vector.shape_cast %131 : vector<1x2x32xbf16> to vector<2x32xbf16>
    %cst_51 = arith.constant dense<0.000000e+00> : vector<2x128xf32>
    %133 = tpu.matmul %132, %3, %cst_51 {dimension_numbers = #tpu.dot_dimension_numbers<[1], [0], [0], [1], [0, 0, 1, 1], [], []>} : vector<2x32xbf16>, vector<32x128xbf16>, vector<2x128xf32> -> vector<2x128xf32>
    %134 = arith.truncf %122 : vector<2x32xf32> to vector<2x32xbf16>
    %cst_52 = arith.constant dense<0.000000e+00> : vector<2x128xf32>
    %135 = tpu.matmul %134, %4, %cst_52 {dimension_numbers = #tpu.dot_dimension_numbers<[1], [0], [0], [1], [0, 0, 1, 1], [], []>} : vector<2x32xbf16>, vector<32x128xbf16>, vector<2x128xf32> -> vector<2x128xf32>
    %136 = arith.addf %133, %135 : vector<2x128xf32>
    %137 = vector.broadcast %5 : vector<1x128xf32> to vector<2x128xf32>
    %138 = arith.addf %136, %137 : vector<2x128xf32>
    %139 = vector.extract_strided_slice %138 {offsets = [0, 0], sizes = [2, 32], strides = [1, 1]} : vector<2x128xf32> to vector<2x32xf32>
    %140 = arith.negf %139 : vector<2x32xf32>
    %141 = math.exp %140 : vector<2x32xf32>
    %cst_53 = arith.constant 1.000000e+00 : f32
    %142 = vector.broadcast %cst_53 : f32 to vector<2x32xf32>
    %143 = arith.addf %142, %141 : vector<2x32xf32>
    %144 = arith.divf %142, %143 : vector<2x32xf32>
    %145 = vector.extract_strided_slice %138 {offsets = [0, 32], sizes = [2, 32], strides = [1, 1]} : vector<2x128xf32> to vector<2x32xf32>
    %146 = arith.negf %145 : vector<2x32xf32>
    %147 = math.exp %146 : vector<2x32xf32>
    %cst_54 = arith.constant 1.000000e+00 : f32
    %148 = vector.broadcast %cst_54 : f32 to vector<2x32xf32>
    %149 = arith.addf %148, %147 : vector<2x32xf32>
    %150 = arith.divf %148, %149 : vector<2x32xf32>
    %151 = vector.extract_strided_slice %138 {offsets = [0, 64], sizes = [2, 32], strides = [1, 1]} : vector<2x128xf32> to vector<2x32xf32>
    %152 = math.tanh %151 : vector<2x32xf32>
    %153 = vector.extract_strided_slice %138 {offsets = [0, 96], sizes = [2, 32], strides = [1, 1]} : vector<2x128xf32> to vector<2x32xf32>
    %154 = arith.negf %153 : vector<2x32xf32>
    %155 = math.exp %154 : vector<2x32xf32>
    %cst_55 = arith.constant 1.000000e+00 : f32
    %156 = vector.broadcast %cst_55 : f32 to vector<2x32xf32>
    %157 = arith.addf %156, %155 : vector<2x32xf32>
    %158 = arith.divf %156, %157 : vector<2x32xf32>
    %159 = arith.mulf %150, %120 : vector<2x32xf32>
    %160 = arith.mulf %144, %152 : vector<2x32xf32>
    %161 = arith.addf %159, %160 : vector<2x32xf32>
    %162 = math.tanh %161 : vector<2x32xf32>
    %163 = arith.mulf %158, %162 : vector<2x32xf32>
    %c3_56 = arith.constant 3 : index
    %c0_57 = arith.constant 0 : index
    %c0_58 = arith.constant 0 : index
    %164 = vector.load %arg5[%c3_56, %c0_57, %c0_58] : memref<8x2x32xbf16, #tpu.memory_space<vmem>>, vector<1x2x32xbf16>
    %165 = vector.shape_cast %164 : vector<1x2x32xbf16> to vector<2x32xbf16>
    %166 = arith.extf %165 : vector<2x32xbf16> to vector<2x32xf32>
    %167 = arith.addf %163, %166 : vector<2x32xf32>
    %168 = arith.truncf %167 : vector<2x32xf32> to vector<2x32xbf16>
    %c3_59 = arith.constant 3 : index
    %c0_60 = arith.constant 0 : index
    %c0_61 = arith.constant 0 : index
    %169 = vector.load %arg6[%c3_59, %c0_60, %c0_61] : memref<8x2x32xbf16, #tpu.memory_space<vmem>>, vector<1x2x32xbf16>
    %170 = vector.shape_cast %169 : vector<1x2x32xbf16> to vector<2x32xbf16>
    %171 = vector.shape_cast %168 : vector<2x32xbf16> to vector<1x2x32xbf16>
    tpu.vector_store %arg6[%c3_59, %c0_60, %c0_61], %171 {strides = array<i32>} : memref<8x2x32xbf16, #tpu.memory_space<vmem>>, vector<1x2x32xbf16>,
    %c4 = arith.constant 4 : index
    %c0_62 = arith.constant 0 : index
    %c0_63 = arith.constant 0 : index
    %172 = vector.load %arg1[%c4, %c0_62, %c0_63] : memref<8x2x32xbf16, #tpu.memory_space<vmem>>, vector<1x2x32xbf16>
    %173 = vector.shape_cast %172 : vector<1x2x32xbf16> to vector<2x32xbf16>
    %cst_64 = arith.constant dense<0.000000e+00> : vector<2x128xf32>
    %174 = tpu.matmul %173, %3, %cst_64 {dimension_numbers = #tpu.dot_dimension_numbers<[1], [0], [0], [1], [0, 0, 1, 1], [], []>} : vector<2x32xbf16>, vector<32x128xbf16>, vector<2x128xf32> -> vector<2x128xf32>
    %175 = arith.truncf %163 : vector<2x32xf32> to vector<2x32xbf16>
    %cst_65 = arith.constant dense<0.000000e+00> : vector<2x128xf32>
    %176 = tpu.matmul %175, %4, %cst_65 {dimension_numbers = #tpu.dot_dimension_numbers<[1], [0], [0], [1], [0, 0, 1, 1], [], []>} : vector<2x32xbf16>, vector<32x128xbf16>, vector<2x128xf32> -> vector<2x128xf32>
    %177 = arith.addf %174, %176 : vector<2x128xf32>
    %178 = vector.broadcast %5 : vector<1x128xf32> to vector<2x128xf32>
    %179 = arith.addf %177, %178 : vector<2x128xf32>
    %180 = vector.extract_strided_slice %179 {offsets = [0, 0], sizes = [2, 32], strides = [1, 1]} : vector<2x128xf32> to vector<2x32xf32>
    %181 = arith.negf %180 : vector<2x32xf32>
    %182 = math.exp %181 : vector<2x32xf32>
    %cst_66 = arith.constant 1.000000e+00 : f32
    %183 = vector.broadcast %cst_66 : f32 to vector<2x32xf32>
    %184 = arith.addf %183, %182 : vector<2x32xf32>
    %185 = arith.divf %183, %184 : vector<2x32xf32>
    %186 = vector.extract_strided_slice %179 {offsets = [0, 32], sizes = [2, 32], strides = [1, 1]} : vector<2x128xf32> to vector<2x32xf32>
    %187 = arith.negf %186 : vector<2x32xf32>
    %188 = math.exp %187 : vector<2x32xf32>
    %cst_67 = arith.constant 1.000000e+00 : f32
    %189 = vector.broadcast %cst_67 : f32 to vector<2x32xf32>
    %190 = arith.addf %189, %188 : vector<2x32xf32>
    %191 = arith.divf %189, %190 : vector<2x32xf32>
    %192 = vector.extract_strided_slice %179 {offsets = [0, 64], sizes = [2, 32], strides = [1, 1]} : vector<2x128xf32> to vector<2x32xf32>
    %193 = math.tanh %192 : vector<2x32xf32>
    %194 = vector.extract_strided_slice %179 {offsets = [0, 96], sizes = [2, 32], strides = [1, 1]} : vector<2x128xf32> to vector<2x32xf32>
    %195 = arith.negf %194 : vector<2x32xf32>
    %196 = math.exp %195 : vector<2x32xf32>
    %cst_68 = arith.constant 1.000000e+00 : f32
    %197 = vector.broadcast %cst_68 : f32 to vector<2x32xf32>
    %198 = arith.addf %197, %196 : vector<2x32xf32>
    %199 = arith.divf %197, %198 : vector<2x32xf32>
    %200 = arith.mulf %191, %161 : vector<2x32xf32>
    %201 = arith.mulf %185, %193 : vector<2x32xf32>
    %202 = arith.addf %200, %201 : vector<2x32xf32>
    %203 = math.tanh %202 : vector<2x32xf32>
    %204 = arith.mulf %199, %203 : vector<2x32xf32>
    %c4_69 = arith.constant 4 : index
    %c0_70 = arith.constant 0 : index
    %c0_71 = arith.constant 0 : index
    %205 = vector.load %arg5[%c4_69, %c0_70, %c0_71] : memref<8x2x32xbf16, #tpu.memory_space<vmem>>, vector<1x2x32xbf16>
    %206 = vector.shape_cast %205 : vector<1x2x32xbf16> to vector<2x32xbf16>
    %207 = arith.extf %206 : vector<2x32xbf16> to vector<2x32xf32>
    %208 = arith.addf %204, %207 : vector<2x32xf32>
    %209 = arith.truncf %208 : vector<2x32xf32> to vector<2x32xbf16>
    %c4_72 = arith.constant 4 : index
    %c0_73 = arith.constant 0 : index
    %c0_74 = arith.constant 0 : index
    %210 = vector.load %arg6[%c4_72, %c0_73, %c0_74] : memref<8x2x32xbf16, #tpu.memory_space<vmem>>, vector<1x2x32xbf16>
    %211 = vector.shape_cast %210 : vector<1x2x32xbf16> to vector<2x32xbf16>
    %212 = vector.shape_cast %209 : vector<2x32xbf16> to vector<1x2x32xbf16>
    tpu.vector_store %arg6[%c4_72, %c0_73, %c0_74], %212 {strides = array<i32>} : memref<8x2x32xbf16, #tpu.memory_space<vmem>>, vector<1x2x32xbf16>,
    %c5 = arith.constant 5 : index
    %c0_75 = arith.constant 0 : index
    %c0_76 = arith.constant 0 : index
    %213 = vector.load %arg1[%c5, %c0_75, %c0_76] : memref<8x2x32xbf16, #tpu.memory_space<vmem>>, vector<1x2x32xbf16>
    %214 = vector.shape_cast %213 : vector<1x2x32xbf16> to vector<2x32xbf16>
    %cst_77 = arith.constant dense<0.000000e+00> : vector<2x128xf32>
    %215 = tpu.matmul %214, %3, %cst_77 {dimension_numbers = #tpu.dot_dimension_numbers<[1], [0], [0], [1], [0, 0, 1, 1], [], []>} : vector<2x32xbf16>, vector<32x128xbf16>, vector<2x128xf32> -> vector<2x128xf32>
    %216 = arith.truncf %204 : vector<2x32xf32> to vector<2x32xbf16>
    %cst_78 = arith.constant dense<0.000000e+00> : vector<2x128xf32>
    %217 = tpu.matmul %216, %4, %cst_78 {dimension_numbers = #tpu.dot_dimension_numbers<[1], [0], [0], [1], [0, 0, 1, 1], [], []>} : vector<2x32xbf16>, vector<32x128xbf16>, vector<2x128xf32> -> vector<2x128xf32>
    %218 = arith.addf %215, %217 : vector<2x128xf32>
    %219 = vector.broadcast %5 : vector<1x128xf32> to vector<2x128xf32>
    %220 = arith.addf %218, %219 : vector<2x128xf32>
    %221 = vector.extract_strided_slice %220 {offsets = [0, 0], sizes = [2, 32], strides = [1, 1]} : vector<2x128xf32> to vector<2x32xf32>
    %222 = arith.negf %221 : vector<2x32xf32>
    %223 = math.exp %222 : vector<2x32xf32>
    %cst_79 = arith.constant 1.000000e+00 : f32
    %224 = vector.broadcast %cst_79 : f32 to vector<2x32xf32>
    %225 = arith.addf %224, %223 : vector<2x32xf32>
    %226 = arith.divf %224, %225 : vector<2x32xf32>
    %227 = vector.extract_strided_slice %220 {offsets = [0, 32], sizes = [2, 32], strides = [1, 1]} : vector<2x128xf32> to vector<2x32xf32>
    %228 = arith.negf %227 : vector<2x32xf32>
    %229 = math.exp %228 : vector<2x32xf32>
    %cst_80 = arith.constant 1.000000e+00 : f32
    %230 = vector.broadcast %cst_80 : f32 to vector<2x32xf32>
    %231 = arith.addf %230, %229 : vector<2x32xf32>
    %232 = arith.divf %230, %231 : vector<2x32xf32>
    %233 = vector.extract_strided_slice %220 {offsets = [0, 64], sizes = [2, 32], strides = [1, 1]} : vector<2x128xf32> to vector<2x32xf32>
    %234 = math.tanh %233 : vector<2x32xf32>
    %235 = vector.extract_strided_slice %220 {offsets = [0, 96], sizes = [2, 32], strides = [1, 1]} : vector<2x128xf32> to vector<2x32xf32>
    %236 = arith.negf %235 : vector<2x32xf32>
    %237 = math.exp %236 : vector<2x32xf32>
    %cst_81 = arith.constant 1.000000e+00 : f32
    %238 = vector.broadcast %cst_81 : f32 to vector<2x32xf32>
    %239 = arith.addf %238, %237 : vector<2x32xf32>
    %240 = arith.divf %238, %239 : vector<2x32xf32>
    %241 = arith.mulf %232, %202 : vector<2x32xf32>
    %242 = arith.mulf %226, %234 : vector<2x32xf32>
    %243 = arith.addf %241, %242 : vector<2x32xf32>
    %244 = math.tanh %243 : vector<2x32xf32>
    %245 = arith.mulf %240, %244 : vector<2x32xf32>
    %c5_82 = arith.constant 5 : index
    %c0_83 = arith.constant 0 : index
    %c0_84 = arith.constant 0 : index
    %246 = vector.load %arg5[%c5_82, %c0_83, %c0_84] : memref<8x2x32xbf16, #tpu.memory_space<vmem>>, vector<1x2x32xbf16>
    %247 = vector.shape_cast %246 : vector<1x2x32xbf16> to vector<2x32xbf16>
    %248 = arith.extf %247 : vector<2x32xbf16> to vector<2x32xf32>
    %249 = arith.addf %245, %248 : vector<2x32xf32>
    %250 = arith.truncf %249 : vector<2x32xf32> to vector<2x32xbf16>
    %c5_85 = arith.constant 5 : index
    %c0_86 = arith.constant 0 : index
    %c0_87 = arith.constant 0 : index
    %251 = vector.load %arg6[%c5_85, %c0_86, %c0_87] : memref<8x2x32xbf16, #tpu.memory_space<vmem>>, vector<1x2x32xbf16>
    %252 = vector.shape_cast %251 : vector<1x2x32xbf16> to vector<2x32xbf16>
    %253 = vector.shape_cast %250 : vector<2x32xbf16> to vector<1x2x32xbf16>
    tpu.vector_store %arg6[%c5_85, %c0_86, %c0_87], %253 {strides = array<i32>} : memref<8x2x32xbf16, #tpu.memory_space<vmem>>, vector<1x2x32xbf16>,
    %c6 = arith.constant 6 : index
    %c0_88 = arith.constant 0 : index
    %c0_89 = arith.constant 0 : index
    %254 = vector.load %arg1[%c6, %c0_88, %c0_89] : memref<8x2x32xbf16, #tpu.memory_space<vmem>>, vector<1x2x32xbf16>
    %255 = vector.shape_cast %254 : vector<1x2x32xbf16> to vector<2x32xbf16>
    %cst_90 = arith.constant dense<0.000000e+00> : vector<2x128xf32>
    %256 = tpu.matmul %255, %3, %cst_90 {dimension_numbers = #tpu.dot_dimension_numbers<[1], [0], [0], [1], [0, 0, 1, 1], [], []>} : vector<2x32xbf16>, vector<32x128xbf16>, vector<2x128xf32> -> vector<2x128xf32>
    %257 = arith.truncf %245 : vector<2x32xf32> to vector<2x32xbf16>
    %cst_91 = arith.constant dense<0.000000e+00> : vector<2x128xf32>
    %258 = tpu.matmul %257, %4, %cst_91 {dimension_numbers = #tpu.dot_dimension_numbers<[1], [0], [0], [1], [0, 0, 1, 1], [], []>} : vector<2x32xbf16>, vector<32x128xbf16>, vector<2x128xf32> -> vector<2x128xf32>
    %259 = arith.addf %256, %258 : vector<2x128xf32>
    %260 = vector.broadcast %5 : vector<1x128xf32> to vector<2x128xf32>
    %261 = arith.addf %259, %260 : vector<2x128xf32>
    %262 = vector.extract_strided_slice %261 {offsets = [0, 0], sizes = [2, 32], strides = [1, 1]} : vector<2x128xf32> to vector<2x32xf32>
    %263 = arith.negf %262 : vector<2x32xf32>
    %264 = math.exp %263 : vector<2x32xf32>
    %cst_92 = arith.constant 1.000000e+00 : f32
    %265 = vector.broadcast %cst_92 : f32 to vector<2x32xf32>
    %266 = arith.addf %265, %264 : vector<2x32xf32>
    %267 = arith.divf %265, %266 : vector<2x32xf32>
    %268 = vector.extract_strided_slice %261 {offsets = [0, 32], sizes = [2, 32], strides = [1, 1]} : vector<2x128xf32> to vector<2x32xf32>
    %269 = arith.negf %268 : vector<2x32xf32>
    %270 = math.exp %269 : vector<2x32xf32>
    %cst_93 = arith.constant 1.000000e+00 : f32
    %271 = vector.broadcast %cst_93 : f32 to vector<2x32xf32>
    %272 = arith.addf %271, %270 : vector<2x32xf32>
    %273 = arith.divf %271, %272 : vector<2x32xf32>
    %274 = vector.extract_strided_slice %261 {offsets = [0, 64], sizes = [2, 32], strides = [1, 1]} : vector<2x128xf32> to vector<2x32xf32>
    %275 = math.tanh %274 : vector<2x32xf32>
    %276 = vector.extract_strided_slice %261 {offsets = [0, 96], sizes = [2, 32], strides = [1, 1]} : vector<2x128xf32> to vector<2x32xf32>
    %277 = arith.negf %276 : vector<2x32xf32>
    %278 = math.exp %277 : vector<2x32xf32>
    %cst_94 = arith.constant 1.000000e+00 : f32
    %279 = vector.broadcast %cst_94 : f32 to vector<2x32xf32>
    %280 = arith.addf %279, %278 : vector<2x32xf32>
    %281 = arith.divf %279, %280 : vector<2x32xf32>
    %282 = arith.mulf %273, %243 : vector<2x32xf32>
    %283 = arith.mulf %267, %275 : vector<2x32xf32>
    %284 = arith.addf %282, %283 : vector<2x32xf32>
    %285 = math.tanh %284 : vector<2x32xf32>
    %286 = arith.mulf %281, %285 : vector<2x32xf32>
    %c6_95 = arith.constant 6 : index
    %c0_96 = arith.constant 0 : index
    %c0_97 = arith.constant 0 : index
    %287 = vector.load %arg5[%c6_95, %c0_96, %c0_97] : memref<8x2x32xbf16, #tpu.memory_space<vmem>>, vector<1x2x32xbf16>
    %288 = vector.shape_cast %287 : vector<1x2x32xbf16> to vector<2x32xbf16>
    %289 = arith.extf %288 : vector<2x32xbf16> to vector<2x32xf32>
    %290 = arith.addf %286, %289 : vector<2x32xf32>
    %291 = arith.truncf %290 : vector<2x32xf32> to vector<2x32xbf16>
    %c6_98 = arith.constant 6 : index
    %c0_99 = arith.constant 0 : index
    %c0_100 = arith.constant 0 : index
    %292 = vector.load %arg6[%c6_98, %c0_99, %c0_100] : memref<8x2x32xbf16, #tpu.memory_space<vmem>>, vector<1x2x32xbf16>
    %293 = vector.shape_cast %292 : vector<1x2x32xbf16> to vector<2x32xbf16>
    %294 = vector.shape_cast %291 : vector<2x32xbf16> to vector<1x2x32xbf16>
    tpu.vector_store %arg6[%c6_98, %c0_99, %c0_100], %294 {strides = array<i32>} : memref<8x2x32xbf16, #tpu.memory_space<vmem>>, vector<1x2x32xbf16>,
    %c7 = arith.constant 7 : index
    %c0_101 = arith.constant 0 : index
    %c0_102 = arith.constant 0 : index
    %295 = vector.load %arg1[%c7, %c0_101, %c0_102] : memref<8x2x32xbf16, #tpu.memory_space<vmem>>, vector<1x2x32xbf16>
    %296 = vector.shape_cast %295 : vector<1x2x32xbf16> to vector<2x32xbf16>
    %cst_103 = arith.constant dense<0.000000e+00> : vector<2x128xf32>
    %297 = tpu.matmul %296, %3, %cst_103 {dimension_numbers = #tpu.dot_dimension_numbers<[1], [0], [0], [1], [0, 0, 1, 1], [], []>} : vector<2x32xbf16>, vector<32x128xbf16>, vector<2x128xf32> -> vector<2x128xf32>
    %298 = arith.truncf %286 : vector<2x32xf32> to vector<2x32xbf16>
    %cst_104 = arith.constant dense<0.000000e+00> : vector<2x128xf32>
    %299 = tpu.matmul %298, %4, %cst_104 {dimension_numbers = #tpu.dot_dimension_numbers<[1], [0], [0], [1], [0, 0, 1, 1], [], []>} : vector<2x32xbf16>, vector<32x128xbf16>, vector<2x128xf32> -> vector<2x128xf32>
    %300 = arith.addf %297, %299 : vector<2x128xf32>
    %301 = vector.broadcast %5 : vector<1x128xf32> to vector<2x128xf32>
    %302 = arith.addf %300, %301 : vector<2x128xf32>
    %303 = vector.extract_strided_slice %302 {offsets = [0, 0], sizes = [2, 32], strides = [1, 1]} : vector<2x128xf32> to vector<2x32xf32>
    %304 = arith.negf %303 : vector<2x32xf32>
    %305 = math.exp %304 : vector<2x32xf32>
    %cst_105 = arith.constant 1.000000e+00 : f32
    %306 = vector.broadcast %cst_105 : f32 to vector<2x32xf32>
    %307 = arith.addf %306, %305 : vector<2x32xf32>
    %308 = arith.divf %306, %307 : vector<2x32xf32>
    %309 = vector.extract_strided_slice %302 {offsets = [0, 32], sizes = [2, 32], strides = [1, 1]} : vector<2x128xf32> to vector<2x32xf32>
    %310 = arith.negf %309 : vector<2x32xf32>
    %311 = math.exp %310 : vector<2x32xf32>
    %cst_106 = arith.constant 1.000000e+00 : f32
    %312 = vector.broadcast %cst_106 : f32 to vector<2x32xf32>
    %313 = arith.addf %312, %311 : vector<2x32xf32>
    %314 = arith.divf %312, %313 : vector<2x32xf32>
    %315 = vector.extract_strided_slice %302 {offsets = [0, 64], sizes = [2, 32], strides = [1, 1]} : vector<2x128xf32> to vector<2x32xf32>
    %316 = math.tanh %315 : vector<2x32xf32>
    %317 = vector.extract_strided_slice %302 {offsets = [0, 96], sizes = [2, 32], strides = [1, 1]} : vector<2x128xf32> to vector<2x32xf32>
    %318 = arith.negf %317 : vector<2x32xf32>
    %319 = math.exp %318 : vector<2x32xf32>
    %cst_107 = arith.constant 1.000000e+00 : f32
    %320 = vector.broadcast %cst_107 : f32 to vector<2x32xf32>
    %321 = arith.addf %320, %319 : vector<2x32xf32>
    %322 = arith.divf %320, %321 : vector<2x32xf32>
    %323 = arith.mulf %314, %284 : vector<2x32xf32>
    %324 = arith.mulf %308, %316 : vector<2x32xf32>
    %325 = arith.addf %323, %324 : vector<2x32xf32>
    %326 = math.tanh %325 : vector<2x32xf32>
    %327 = arith.mulf %322, %326 : vector<2x32xf32>
    %c7_108 = arith.constant 7 : index
    %c0_109 = arith.constant 0 : index
    %c0_110 = arith.constant 0 : index
    %328 = vector.load %arg5[%c7_108, %c0_109, %c0_110] : memref<8x2x32xbf16, #tpu.memory_space<vmem>>, vector<1x2x32xbf16>
    %329 = vector.shape_cast %328 : vector<1x2x32xbf16> to vector<2x32xbf16>
    %330 = arith.extf %329 : vector<2x32xbf16> to vector<2x32xf32>
    %331 = arith.addf %327, %330 : vector<2x32xf32>
    %332 = arith.truncf %331 : vector<2x32xf32> to vector<2x32xbf16>
    %c7_111 = arith.constant 7 : index
    %c0_112 = arith.constant 0 : index
    %c0_113 = arith.constant 0 : index
    %333 = vector.load %arg6[%c7_111, %c0_112, %c0_113] : memref<8x2x32xbf16, #tpu.memory_space<vmem>>, vector<1x2x32xbf16>
    %334 = vector.shape_cast %333 : vector<1x2x32xbf16> to vector<2x32xbf16>
    %335 = vector.shape_cast %332 : vector<2x32xbf16> to vector<1x2x32xbf16>
    tpu.vector_store %arg6[%c7_111, %c0_112, %c0_113], %335 {strides = array<i32>} : memref<8x2x32xbf16, #tpu.memory_space<vmem>>, vector<1x2x32xbf16>,
    %c0_114 = arith.constant 0 : index
    %c0_115 = arith.constant 0 : index
    %336 = vector.load %arg7[%c0_114, %c0_115] : memref<2x32xf32, #tpu.memory_space<vmem>>, vector<2x32xf32>
    tpu.vector_store %arg7[%c0_114, %c0_115], %327 {strides = array<i32>} : memref<2x32xf32, #tpu.memory_space<vmem>>, vector<2x32xf32>,
    %c0_116 = arith.constant 0 : index
    %c0_117 = arith.constant 0 : index
    %337 = vector.load %arg8[%c0_116, %c0_117] : memref<2x32xf32, #tpu.memory_space<vmem>>, vector<2x32xf32>
    tpu.vector_store %arg8[%c0_116, %c0_117], %325 {strides = array<i32>} : memref<2x32xf32, #tpu.memory_space<vmem>>, vector<2x32xf32>,
    return
  }
  func.func @transform_0(%arg0: i32) -> (i32, i32, i32) {
    %c0_i32 = arith.constant 0 : i32
    %c0_i32_0 = arith.constant 0 : i32
    %c0_i32_1 = arith.constant 0 : i32
    return %arg0, %c0_i32, %c0_i32_0 : i32, i32, i32
  }
  func.func @transform_1(%arg0: i32) -> (i32, i32) {
    %c0_i32 = arith.constant 0 : i32
    %c0_i32_0 = arith.constant 0 : i32
    %c0_i32_1 = arith.constant 0 : i32
    return %c0_i32, %c0_i32_0 : i32, i32
  }
  func.func @transform_2(%arg0: i32) -> (i32, i32) {
    %c0_i32 = arith.constant 0 : i32
    %c0_i32_0 = arith.constant 0 : i32
    %c0_i32_1 = arith.constant 0 : i32
    return %c0_i32, %c0_i32_0 : i32, i32
  }
  func.func @transform_3(%arg0: i32) -> (i32, i32) {
    %c0_i32 = arith.constant 0 : i32
    %c0_i32_0 = arith.constant 0 : i32
    %c0_i32_1 = arith.constant 0 : i32
    return %c0_i32, %c0_i32_0 : i32, i32
  }
  func.func @transform_4(%arg0: i32) -> (i32, i32, i32) {
    %c0_i32 = arith.constant 0 : i32
    %c0_i32_0 = arith.constant 0 : i32
    %c0_i32_1 = arith.constant 0 : i32
    return %arg0, %c0_i32, %c0_i32_0 : i32, i32, i32
  }
  func.func @transform_5(%arg0: i32) -> (i32, i32, i32) {
    %c0_i32 = arith.constant 0 : i32
    %c0_i32_0 = arith.constant 0 : i32
    %c0_i32_1 = arith.constant 0 : i32
    return %arg0, %c0_i32, %c0_i32_0 : i32, i32, i32
  }
}

</mosaic_0001>

<llo_original>
// kernel: _encoder_forward_impl.5
$region0: #{_encoder_forward_impl.5}
  #allocation0 [shape = 'u32[]', space=smem, size = 0x4, offset = 0x4, fixed_abs, tag = 'smem constant byte address 0x4 - core index']
  #allocation1 [shape = 'u32[72,128]{1,0:T(1,128)}', space=vmem, size = 0x9000, scoped, tag = 'internal scratch']
  #allocation2 [shape = 'f32[2,32]{1,0:T(2,128)}', space=vmem, size = 0x400, scoped, tag = 'scratch operand']
  #allocation3 [shape = 'f32[2,32]{1,0:T(2,128)}', space=vmem, size = 0x400, scoped, tag = 'scratch operand']
  %s0 = inlined_call_operand.vmem [shape: bf16[8,2,64], index: 0, kind: input, shape index: {}]
  %s1 = inlined_call_operand.vmem [shape: bf16[64,128], index: 1, kind: input, shape index: {}]
  %s2 = inlined_call_operand.vmem [shape: bf16[32,128], index: 2, kind: input, shape index: {}]
  %s3 = inlined_call_operand.vmem [shape: f32[1,128], index: 3, kind: input, shape index: {}]
  %s4 = inlined_call_operand.vmem [shape: bf16[8,2,32], index: 4, kind: output, shape index: {}]
  %s5 = sld [smem:[#allocation0]]
  $region30: #{_encoder_forward_impl.5} parent=0
    _
  %s7 = ssub.s32 1, %s5
  %s8 = scalar_select 0, %s7, %s5
  // Predicated region
  $region2: #{_encoder_forward_impl.5} parent=0 // pred_check
    _
  $region3: #{_encoder_forward_impl.5} parent=0 // pred_check_branch
    %10 = sbr.rel (0) target = $region5
  $region4: #{_encoder_forward_impl.5} parent=0 // pred_region
    _
  $region5: #{_encoder_forward_impl.5} parent=0 // pred_fallthru
    _
  // Predicated region
  $region6: #{_encoder_forward_impl.5} parent=0 // pred_check
    _
  $region7: #{_encoder_forward_impl.5} parent=0 // pred_check_branch
    %12 = sbr.rel (0) target = $region9
  $region8: #{_encoder_forward_impl.5} parent=0 // pred_region
    _
  $region9: #{_encoder_forward_impl.5} parent=0 // pred_fallthru
    _
  // Predicated region
  $region10: #{_encoder_forward_impl.5} parent=0 // pred_check
    _
  $region11: #{_encoder_forward_impl.5} parent=0 // pred_check_branch
    %14 = sbr.rel (0) target = $region13
  $region12: #{_encoder_forward_impl.5} parent=0 // pred_region
    _
  $region13: #{_encoder_forward_impl.5} parent=0 // pred_fallthru
    _
  // Predicated region
  $region14: #{_encoder_forward_impl.5} parent=0 // pred_check
    _
  $region15: #{_encoder_forward_impl.5} parent=0 // pred_check_branch
    %16 = sbr.rel (0) target = $region17
  $region16: #{_encoder_forward_impl.5} parent=0 // pred_region
    _
  $region17: #{_encoder_forward_impl.5} parent=0 // pred_fallthru
    _
  %p18 = scmp.eq.s32.totalorder 0, 0
  // Predicated region
  $region18: #{_encoder_forward_impl.5} parent=0 // pred_check
    %p19 = pneg %p18
  $region19: #{_encoder_forward_impl.5} parent=0 // pred_check_branch
    %21 = sbr.rel (%p19) target = $region21
  $region20: #{_encoder_forward_impl.5} parent=0 // pred_region
    %vm22 = vcmask 254976
    %23 = vst.msk [vmem:[#allocation2] sm:$0x3] %vm22, 0.0
    %24 = vst.msk [vmem:[#allocation3] sm:$0x3] %vm22, 0.0
  $region21: #{_encoder_forward_impl.5} parent=0 // pred_fallthru
    _
  %v25 = vld [vmem:[%s1] sm:$0xf]
  %v26 = vld [vmem:[%s1 + $0x4] sm:$0xf]
  %v27 = vld [vmem:[%s1 + $0x8] sm:$0xf]
  %v28 = vld [vmem:[%s1 + $0xc] sm:$0xf]
  %v29 = vld [vmem:[%s1 + $0x10] sm:$0xf]
  %v30 = vld [vmem:[%s1 + $0x14] sm:$0xf]
  %v31 = vld [vmem:[%s1 + $0x18] sm:$0xf]
  %v32 = vld [vmem:[%s1 + $0x1c] sm:$0xf]
  %v33 = vld [vmem:[%s2] sm:$0xf]
  %v34 = vld [vmem:[%s2 + $0x4] sm:$0xf]
  %v35 = vld [vmem:[%s2 + $0x8] sm:$0xf]
  %v36 = vld [vmem:[%s2 + $0xc] sm:$0xf]
  %v37 = vld [vmem:[%s3] sm:$0x1]
  %v38 = vld [vmem:[#allocation2] sm:$0x3]
  %v39 = vld [vmem:[#allocation3] sm:$0x3]
  %v40 = vld [vmem:[%s0] sm:$0x1]
  %v41 = vpack.c.bf16 %v38, %v38
  %v46 = vunpack.c.l.b16 %v33
  %v47 = vunpack.c.l.b16 %v34
  %v48 = vunpack.c.l.b16 %v35
  %v49 = vunpack.c.l.b16 %v36
  %v50 = vpack.c.b16 %v47, %v46
  %v51 = vpack.c.b16 %v49, %v48
  %vm54 = vcmask 261120
  %v56 = vsel %vm54, %v41, 0
  %58 = vmatpush.bf16.msra.mxu0 0
  %59 = vmatpush.bf16.msra.mxu0 0
  %60 = vmatpush.bf16.msra.mxu0 0
  %61 = vmatpush.bf16.msra.mxu0 0
  %62 = vmatpush.bf16.msra.mxu0 0
  %63 = vmatpush.bf16.msra.mxu0 0
  %64 = vmatpush.bf16.msra.mxu0 %v51
  %65 = vmatpush.bf16.msra.mxu0 %v50
  %66 = vmatmul.bf16.gmra.mxu0 %v56
  %v67 = vpop.f32.mrf.mxu0
  %v68 = vadd.f32 0.0, %v67
  %v69 = vpop.f32.mrf.mxu0
  %70 = vdwg.mxu0
  %v79 = vunpack.c.l.b16 %v25
  %v80 = vunpack.c.l.b16 %v26
  %v81 = vunpack.c.l.b16 %v27
  %v82 = vunpack.c.l.b16 %v28
  %v83 = vunpack.c.l.b16 %v29
  %v84 = vunpack.c.l.b16 %v30
  %v85 = vunpack.c.l.b16 %v31
  %v86 = vunpack.c.l.b16 %v32
  %v87 = vpack.c.b16 %v80, %v79
  %v88 = vpack.c.b16 %v82, %v81
  %v89 = vpack.c.b16 %v84, %v83
  %v90 = vpack.c.b16 %v86, %v85
  %vm95 = vcmask 523264
  %v97 = vsel %vm95, %v40, 0
  %99 = vmatpush.bf16.msra.mxu0 0
  %100 = vmatpush.bf16.msra.mxu0 0
  %101 = vmatpush.bf16.msra.mxu0 0
  %102 = vmatpush.bf16.msra.mxu0 0
  %103 = vmatpush.bf16.msra.mxu0 %v90
  %104 = vmatpush.bf16.msra.mxu0 %v89
  %105 = vmatpush.bf16.msra.mxu0 %v88
  %106 = vmatpush.bf16.msra.mxu0 %v87
  %107 = vmatmul.bf16.gmra.mxu0 %v97
  %v108 = vpop.f32.mrf.mxu0
  %v109 = vadd.f32 %v68, %v108
  %v110 = vpop.f32.mrf.mxu0
  %111 = vdwg.mxu0
  %v113 = vperm.slane %v37, 0
  %v115 = vadd.f32 %v109, %v113
  %v116 = vxor.u32 %v115, 2147483648
  %v117 = vmul.f32 %v116, 1.442695
  %v118 = vpow.pop %v117
  %v119 = vadd.f32 %v118, 1.0
  %v120 = vrcp.pop %v119
  %v121 = vmul.f32 %v119, %v120
  %v122 = vsub.f32 1.0, %v121
  %v123 = vmul.f32 %v120, %v122
  %v124 = vadd.f32 %v120, %v123
  %vm125 = vweird.f32 %v119
  %vm126 = vweird.f32 %v120
  %vm127 = vmor %vm125, %vm126
  %v128 = vsel %vm127, %v120, %v124
  %v129 = vand.u32 2147483647, %v119
  %vm130 = vcmp.eq.f32.partialorder %v129, 8.507059e+37
  %v131 = vand.u32 %v119, 2147483648
  %v132 = vor.u32 1.1754944e-38, %v131
  %v133 = vsel %vm130, %v132, %v128
  %v134 = vmul.f32 1.0, %v133
  %v135 = vtanh.pop %v115
  %137 = vrot.lane.b32.xlu0 %v39, 32
  %v138 = vpop.permute.xlu0 %137
  %v140 = vmul.f32 %v134, %v138
  %142 = vrot.lane.b32.xlu0 %v135, 64
  %v143 = vpop.permute.xlu0 %142
  %v145 = vmul.f32 %v134, %v143
  %147 = vrot.lane.b32.xlu0 %v145, 32
  %v148 = vpop.permute.xlu0 %147
  %v150 = vadd.f32 %v140, %v148
  %v151 = vtanh.pop %v150
  %153 = vrot.lane.b32.xlu0 %v151, 64
  %v154 = vpop.permute.xlu0 %153
  %v156 = vmul.f32 %v134, %v154
  %v157 = vpack.c.bf16 %v156, %v156
  %v159 = vrot.slane %v157, 3
  %vm160 = vcmask 1040384
  %v163 = vsel %vm160, %v157, %v159
  %165 = vrot.lane.b32.xlu0 %v163, 32
  %v166 = vpop.permute.xlu0 %165
  %vm168 = vcmask 253952
  %169 = vst.msk [vmem:[%s4] sm:$0x1] %vm168, %v166
  %s170 = scalar_lea.vmem %s0, 1
  %v171 = vld [vmem:[%s170] sm:$0x1]
  %v172 = vunpack.c.l.b16 %v157
  %v173 = vpack.c.b16 %v172, %v172
  %174 = vrot.lane.b32.xlu0 %v173, 32
  %v175 = vpop.permute.xlu0 %174
  %v177 = vsel %vm54, %v175, 0
  %179 = vmatpush.bf16.msra.mxu0 0
  %180 = vmatpush.bf16.msra.mxu0 0
  %181 = vmatpush.bf16.msra.mxu0 0
  %182 = vmatpush.bf16.msra.mxu0 0
  %183 = vmatpush.bf16.msra.mxu0 0
  %184 = vmatpush.bf16.msra.mxu0 0
  %185 = vmatpush.bf16.msra.mxu0 %v51
  %186 = vmatpush.bf16.msra.mxu0 %v50
  %187 = vmatmul.bf16.gmra.mxu0 %v177
  %v188 = vpop.f32.mrf.mxu0
  %v189 = vadd.f32 0.0, %v188
  %v190 = vpop.f32.mrf.mxu0
  %191 = vdwg.mxu0
  %v193 = vsel %vm95, %v171, 0
  %195 = vmatpush.bf16.msra.mxu0 0
  %196 = vmatpush.bf16.msra.mxu0 0
  %197 = vmatpush.bf16.msra.mxu0 0
  %198 = vmatpush.bf16.msra.mxu0 0
  %199 = vmatpush.bf16.msra.mxu0 %v90
  %200 = vmatpush.bf16.msra.mxu0 %v89
  %201 = vmatpush.bf16.msra.mxu0 %v88
  %202 = vmatpush.bf16.msra.mxu0 %v87
  %203 = vmatmul.bf16.gmra.mxu0 %v193
  %v204 = vpop.f32.mrf.mxu0
  %v205 = vadd.f32 %v189, %v204
  %v206 = vpop.f32.mrf.mxu0
  %207 = vdwg.mxu0
  %v208 = vadd.f32 %v205, %v113
  %v209 = vxor.u32 %v208, 2147483648
  %v210 = vmul.f32 %v209, 1.442695
  %v211 = vpow.pop %v210
  %v212 = vadd.f32 %v211, 1.0
  %v213 = vrcp.pop %v212
  %v214 = vmul.f32 %v212, %v213
  %v215 = vsub.f32 1.0, %v214
  %v216 = vmul.f32 %v213, %v215
  %v217 = vadd.f32 %v213, %v216
  %vm218 = vweird.f32 %v212
  %vm219 = vweird.f32 %v213
  %vm220 = vmor %vm218, %vm219
  %v221 = vsel %vm220, %v213, %v217
  %v222 = vand.u32 2147483647, %v212
  %vm223 = vcmp.eq.f32.partialorder %v222, 8.507059e+37
  %v224 = vand.u32 %v212, 2147483648
  %v225 = vor.u32 1.1754944e-38, %v224
  %v226 = vsel %vm223, %v225, %v221
  %v227 = vmul.f32 1.0, %v226
  %v228 = vtanh.pop %v208
  %v229 = vmul.f32 %v227, %v150
  %231 = vrot.lane.b32.xlu0 %v228, 64
  %v232 = vpop.permute.xlu0 %231
  %v234 = vmul.f32 %v227, %v232
  %236 = vrot.lane.b32.xlu0 %v234, 32
  %v237 = vpop.permute.xlu0 %236
  %v239 = vadd.f32 %v229, %v237
  %v240 = vtanh.pop %v239
  %242 = vrot.lane.b32.xlu0 %v240, 64
  %v243 = vpop.permute.xlu0 %242
  %v245 = vmul.f32 %v227, %v243
  %v246 = vpack.c.bf16 %v245, %v245
  %v248 = vrot.slane %v246, 3
  %v251 = vsel %vm160, %v246, %v248
  %253 = vrot.lane.b32.xlu0 %v251, 32
  %v254 = vpop.permute.xlu0 %253
  %s256 = scalar_lea.vmem %s4, 1
  %257 = vst.msk [vmem:[%s256] sm:$0x1] %vm168, %v254
  %s258 = scalar_lea.vmem %s0, 2
  %v259 = vld [vmem:[%s258] sm:$0x1]
  %v260 = vunpack.c.l.b16 %v246
  %v261 = vpack.c.b16 %v260, %v260
  %262 = vrot.lane.b32.xlu0 %v261, 32
  %v263 = vpop.permute.xlu0 %262
  %v265 = vsel %vm54, %v263, 0
  %267 = vmatpush.bf16.msra.mxu0 0
  %268 = vmatpush.bf16.msra.mxu0 0
  %269 = vmatpush.bf16.msra.mxu0 0
  %270 = vmatpush.bf16.msra.mxu0 0
  %271 = vmatpush.bf16.msra.mxu0 0
  %272 = vmatpush.bf16.msra.mxu0 0
  %273 = vmatpush.bf16.msra.mxu0 %v51
  %274 = vmatpush.bf16.msra.mxu0 %v50
  %275 = vmatmul.bf16.gmra.mxu0 %v265
  %v276 = vpop.f32.mrf.mxu0
  %v277 = vadd.f32 0.0, %v276
  %v278 = vpop.f32.mrf.mxu0
  %279 = vdwg.mxu0
  %v281 = vsel %vm95, %v259, 0
  %283 = vmatpush.bf16.msra.mxu0 0
  %284 = vmatpush.bf16.msra.mxu0 0
  %285 = vmatpush.bf16.msra.mxu0 0
  %286 = vmatpush.bf16.msra.mxu0 0
  %287 = vmatpush.bf16.msra.mxu0 %v90
  %288 = vmatpush.bf16.msra.mxu0 %v89
  %289 = vmatpush.bf16.msra.mxu0 %v88
  %290 = vmatpush.bf16.msra.mxu0 %v87
  %291 = vmatmul.bf16.gmra.mxu0 %v281
  %v292 = vpop.f32.mrf.mxu0
  %v293 = vadd.f32 %v277, %v292
  %v294 = vpop.f32.mrf.mxu0
  %295 = vdwg.mxu0
  %v296 = vadd.f32 %v293, %v113
  %v297 = vxor.u32 %v296, 2147483648
  %v298 = vmul.f32 %v297, 1.442695
  %v299 = vpow.pop %v298
  %v300 = vadd.f32 %v299, 1.0
  %v301 = vrcp.pop %v300
  %v302 = vmul.f32 %v300, %v301
  %v303 = vsub.f32 1.0, %v302
  %v304 = vmul.f32 %v301, %v303
  %v305 = vadd.f32 %v301, %v304
  %vm306 = vweird.f32 %v300
  %vm307 = vweird.f32 %v301
  %vm308 = vmor %vm306, %vm307
  %v309 = vsel %vm308, %v301, %v305
  %v310 = vand.u32 2147483647, %v300
  %vm311 = vcmp.eq.f32.partialorder %v310, 8.507059e+37
  %v312 = vand.u32 %v300, 2147483648
  %v313 = vor.u32 1.1754944e-38, %v312
  %v314 = vsel %vm311, %v313, %v309
  %v315 = vmul.f32 1.0, %v314
  %v316 = vtanh.pop %v296
  %v317 = vmul.f32 %v315, %v239
  %319 = vrot.lane.b32.xlu0 %v316, 64
  %v320 = vpop.permute.xlu0 %319
  %v322 = vmul.f32 %v315, %v320
  %324 = vrot.lane.b32.xlu0 %v322, 32
  %v325 = vpop.permute.xlu0 %324
  %v327 = vadd.f32 %v317, %v325
  %v328 = vtanh.pop %v327
  %330 = vrot.lane.b32.xlu0 %v328, 64
  %v331 = vpop.permute.xlu0 %330
  %v333 = vmul.f32 %v315, %v331
  %v334 = vpack.c.bf16 %v333, %v333
  %v336 = vrot.slane %v334, 3
  %v339 = vsel %vm160, %v334, %v336
  %341 = vrot.lane.b32.xlu0 %v339, 32
  %v342 = vpop.permute.xlu0 %341
  %s344 = scalar_lea.vmem %s4, 2
  %345 = vst.msk [vmem:[%s344] sm:$0x1] %vm168, %v342
  %s346 = scalar_lea.vmem %s0, 3
  %v347 = vld [vmem:[%s346] sm:$0x1]
  %v348 = vunpack.c.l.b16 %v334
  %v349 = vpack.c.b16 %v348, %v348
  %350 = vrot.lane.b32.xlu0 %v349, 32
  %v351 = vpop.permute.xlu0 %350
  %v353 = vsel %vm54, %v351, 0
  %355 = vmatpush.bf16.msra.mxu0 0
  %356 = vmatpush.bf16.msra.mxu0 0
  %357 = vmatpush.bf16.msra.mxu0 0
  %358 = vmatpush.bf16.msra.mxu0 0
  %359 = vmatpush.bf16.msra.mxu0 0
  %360 = vmatpush.bf16.msra.mxu0 0
  %361 = vmatpush.bf16.msra.mxu0 %v51
  %362 = vmatpush.bf16.msra.mxu0 %v50
  %363 = vmatmul.bf16.gmra.mxu0 %v353
  %v364 = vpop.f32.mrf.mxu0
  %v365 = vadd.f32 0.0, %v364
  %v366 = vpop.f32.mrf.mxu0
  %367 = vdwg.mxu0
  %v369 = vsel %vm95, %v347, 0
  %371 = vmatpush.bf16.msra.mxu0 0
  %372 = vmatpush.bf16.msra.mxu0 0
  %373 = vmatpush.bf16.msra.mxu0 0
  %374 = vmatpush.bf16.msra.mxu0 0
  %375 = vmatpush.bf16.msra.mxu0 %v90
  %376 = vmatpush.bf16.msra.mxu0 %v89
  %377 = vmatpush.bf16.msra.mxu0 %v88
  %378 = vmatpush.bf16.msra.mxu0 %v87
  %379 = vmatmul.bf16.gmra.mxu0 %v369
  %v380 = vpop.f32.mrf.mxu0
  %v381 = vadd.f32 %v365, %v380
  %v382 = vpop.f32.mrf.mxu0
  %383 = vdwg.mxu0
  %v384 = vadd.f32 %v381, %v113
  %v385 = vxor.u32 %v384, 2147483648
  %v386 = vmul.f32 %v385, 1.442695
  %v387 = vpow.pop %v386
  %v388 = vadd.f32 %v387, 1.0
  %v389 = vrcp.pop %v388
  %v390 = vmul.f32 %v388, %v389
  %v391 = vsub.f32 1.0, %v390
  %v392 = vmul.f32 %v389, %v391
  %v393 = vadd.f32 %v389, %v392
  %vm394 = vweird.f32 %v388
  %vm395 = vweird.f32 %v389
  %vm396 = vmor %vm394, %vm395
  %v397 = vsel %vm396, %v389, %v393
  %v398 = vand.u32 2147483647, %v388
  %vm399 = vcmp.eq.f32.partialorder %v398, 8.507059e+37
  %v400 = vand.u32 %v388, 2147483648
  %v401 = vor.u32 1.1754944e-38, %v400
  %v402 = vsel %vm399, %v401, %v397
  %v403 = vmul.f32 1.0, %v402
  %v404 = vtanh.pop %v384
  %v405 = vmul.f32 %v403, %v327
  %407 = vrot.lane.b32.xlu0 %v404, 64
  %v408 = vpop.permute.xlu0 %407
  %v410 = vmul.f32 %v403, %v408
  %412 = vrot.lane.b32.xlu0 %v410, 32
  %v413 = vpop.permute.xlu0 %412
  %v415 = vadd.f32 %v405, %v413
  %v416 = vtanh.pop %v415
  %418 = vrot.lane.b32.xlu0 %v416, 64
  %v419 = vpop.permute.xlu0 %418
  %v421 = vmul.f32 %v403, %v419
  %v422 = vpack.c.bf16 %v421, %v421
  %v424 = vrot.slane %v422, 3
  %v427 = vsel %vm160, %v422, %v424
  %429 = vrot.lane.b32.xlu0 %v427, 32
  %v430 = vpop.permute.xlu0 %429
  %s432 = scalar_lea.vmem %s4, 3
  %433 = vst.msk [vmem:[%s432] sm:$0x1] %vm168, %v430
  %s434 = scalar_lea.vmem %s0, 4
  %v435 = vld [vmem:[%s434] sm:$0x1]
  %v436 = vunpack.c.l.b16 %v422
  %v437 = vpack.c.b16 %v436, %v436
  %438 = vrot.lane.b32.xlu0 %v437, 32
  %v439 = vpop.permute.xlu0 %438
  %v441 = vsel %vm54, %v439, 0
  %443 = vmatpush.bf16.msra.mxu0 0
  %444 = vmatpush.bf16.msra.mxu0 0
  %445 = vmatpush.bf16.msra.mxu0 0
  %446 = vmatpush.bf16.msra.mxu0 0
  %447 = vmatpush.bf16.msra.mxu0 0
  %448 = vmatpush.bf16.msra.mxu0 0
  %449 = vmatpush.bf16.msra.mxu0 %v51
  %450 = vmatpush.bf16.msra.mxu0 %v50
  %451 = vmatmul.bf16.gmra.mxu0 %v441
  %v452 = vpop.f32.mrf.mxu0
  %v453 = vadd.f32 0.0, %v452
  %v454 = vpop.f32.mrf.mxu0
  %455 = vdwg.mxu0
  %v457 = vsel %vm95, %v435, 0
  %459 = vmatpush.bf16.msra.mxu0 0
  %460 = vmatpush.bf16.msra.mxu0 0
  %461 = vmatpush.bf16.msra.mxu0 0
  %462 = vmatpush.bf16.msra.mxu0 0
  %463 = vmatpush.bf16.msra.mxu0 %v90
  %464 = vmatpush.bf16.msra.mxu0 %v89
  %465 = vmatpush.bf16.msra.mxu0 %v88
  %466 = vmatpush.bf16.msra.mxu0 %v87
  %467 = vmatmul.bf16.gmra.mxu0 %v457
  %v468 = vpop.f32.mrf.mxu0
  %v469 = vadd.f32 %v453, %v468
  %v470 = vpop.f32.mrf.mxu0
  %471 = vdwg.mxu0
  %v472 = vadd.f32 %v469, %v113
  %v473 = vxor.u32 %v472, 2147483648
  %v474 = vmul.f32 %v473, 1.442695
  %v475 = vpow.pop %v474
  %v476 = vadd.f32 %v475, 1.0
  %v477 = vrcp.pop %v476
  %v478 = vmul.f32 %v476, %v477
  %v479 = vsub.f32 1.0, %v478
  %v480 = vmul.f32 %v477, %v479
  %v481 = vadd.f32 %v477, %v480
  %vm482 = vweird.f32 %v476
  %vm483 = vweird.f32 %v477
  %vm484 = vmor %vm482, %vm483
  %v485 = vsel %vm484, %v477, %v481
  %v486 = vand.u32 2147483647, %v476
  %vm487 = vcmp.eq.f32.partialorder %v486, 8.507059e+37
  %v488 = vand.u32 %v476, 2147483648
  %v489 = vor.u32 1.1754944e-38, %v488
  %v490 = vsel %vm487, %v489, %v485
  %v491 = vmul.f32 1.0, %v490
  %v492 = vtanh.pop %v472
  %v493 = vmul.f32 %v491, %v415
  %495 = vrot.lane.b32.xlu0 %v492, 64
  %v496 = vpop.permute.xlu0 %495
  %v498 = vmul.f32 %v491, %v496
  %500 = vrot.lane.b32.xlu0 %v498, 32
  %v501 = vpop.permute.xlu0 %500
  %v503 = vadd.f32 %v493, %v501
  %v504 = vtanh.pop %v503
  %506 = vrot.lane.b32.xlu0 %v504, 64
  %v507 = vpop.permute.xlu0 %506
  %v509 = vmul.f32 %v491, %v507
  %v510 = vpack.c.bf16 %v509, %v509
  %v512 = vrot.slane %v510, 3
  %v515 = vsel %vm160, %v510, %v512
  %517 = vrot.lane.b32.xlu0 %v515, 32
  %v518 = vpop.permute.xlu0 %517
  %s520 = scalar_lea.vmem %s4, 4
  %521 = vst.msk [vmem:[%s520] sm:$0x1] %vm168, %v518
  %s522 = scalar_lea.vmem %s0, 5
  %v523 = vld [vmem:[%s522] sm:$0x1]
  %v524 = vunpack.c.l.b16 %v510
  %v525 = vpack.c.b16 %v524, %v524
  %526 = vrot.lane.b32.xlu0 %v525, 32
  %v527 = vpop.permute.xlu0 %526
  %v529 = vsel %vm54, %v527, 0
  %531 = vmatpush.bf16.msra.mxu0 0
  %532 = vmatpush.bf16.msra.mxu0 0
  %533 = vmatpush.bf16.msra.mxu0 0
  %534 = vmatpush.bf16.msra.mxu0 0
  %535 = vmatpush.bf16.msra.mxu0 0
  %536 = vmatpush.bf16.msra.mxu0 0
  %537 = vmatpush.bf16.msra.mxu0 %v51
  %538 = vmatpush.bf16.msra.mxu0 %v50
  %539 = vmatmul.bf16.gmra.mxu0 %v529
  %v540 = vpop.f32.mrf.mxu0
  %v541 = vadd.f32 0.0, %v540
  %v542 = vpop.f32.mrf.mxu0
  %543 = vdwg.mxu0
  %v545 = vsel %vm95, %v523, 0
  %547 = vmatpush.bf16.msra.mxu0 0
  %548 = vmatpush.bf16.msra.mxu0 0
  %549 = vmatpush.bf16.msra.mxu0 0
  %550 = vmatpush.bf16.msra.mxu0 0
  %551 = vmatpush.bf16.msra.mxu0 %v90
  %552 = vmatpush.bf16.msra.mxu0 %v89
  %553 = vmatpush.bf16.msra.mxu0 %v88
  %554 = vmatpush.bf16.msra.mxu0 %v87
  %555 = vmatmul.bf16.gmra.mxu0 %v545
  %v556 = vpop.f32.mrf.mxu0
  %v557 = vadd.f32 %v541, %v556
  %v558 = vpop.f32.mrf.mxu0
  %559 = vdwg.mxu0
  %v560 = vadd.f32 %v557, %v113
  %v561 = vxor.u32 %v560, 2147483648
  %v562 = vmul.f32 %v561, 1.442695
  %v563 = vpow.pop %v562
  %v564 = vadd.f32 %v563, 1.0
  %v565 = vrcp.pop %v564
  %v566 = vmul.f32 %v564, %v565
  %v567 = vsub.f32 1.0, %v566
  %v568 = vmul.f32 %v565, %v567
  %v569 = vadd.f32 %v565, %v568
  %vm570 = vweird.f32 %v564
  %vm571 = vweird.f32 %v565
  %vm572 = vmor %vm570, %vm571
  %v573 = vsel %vm572, %v565, %v569
  %v574 = vand.u32 2147483647, %v564
  %vm575 = vcmp.eq.f32.partialorder %v574, 8.507059e+37
  %v576 = vand.u32 %v564, 2147483648
  %v577 = vor.u32 1.1754944e-38, %v576
  %v578 = vsel %vm575, %v577, %v573
  %v579 = vmul.f32 1.0, %v578
  %v580 = vtanh.pop %v560
  %v581 = vmul.f32 %v579, %v503
  %583 = vrot.lane.b32.xlu0 %v580, 64
  %v584 = vpop.permute.xlu0 %583
  %v586 = vmul.f32 %v579, %v584
  %588 = vrot.lane.b32.xlu0 %v586, 32
  %v589 = vpop.permute.xlu0 %588
  %v591 = vadd.f32 %v581, %v589
  %v592 = vtanh.pop %v591
  %594 = vrot.lane.b32.xlu0 %v592, 64
  %v595 = vpop.permute.xlu0 %594
  %v597 = vmul.f32 %v579, %v595
  %v598 = vpack.c.bf16 %v597, %v597
  %v600 = vrot.slane %v598, 3
  %v603 = vsel %vm160, %v598, %v600
  %605 = vrot.lane.b32.xlu0 %v603, 32
  %v606 = vpop.permute.xlu0 %605
  %s608 = scalar_lea.vmem %s4, 5
  %609 = vst.msk [vmem:[%s608] sm:$0x1] %vm168, %v606
  %s610 = scalar_lea.vmem %s0, 6
  %v611 = vld [vmem:[%s610] sm:$0x1]
  %v612 = vunpack.c.l.b16 %v598
  %v613 = vpack.c.b16 %v612, %v612
  %614 = vrot.lane.b32.xlu0 %v613, 32
  %v615 = vpop.permute.xlu0 %614
  %v617 = vsel %vm54, %v615, 0
  %619 = vmatpush.bf16.msra.mxu0 0
  %620 = vmatpush.bf16.msra.mxu0 0
  %621 = vmatpush.bf16.msra.mxu0 0
  %622 = vmatpush.bf16.msra.mxu0 0
  %623 = vmatpush.bf16.msra.mxu0 0
  %624 = vmatpush.bf16.msra.mxu0 0
  %625 = vmatpush.bf16.msra.mxu0 %v51
  %626 = vmatpush.bf16.msra.mxu0 %v50
  %627 = vmatmul.bf16.gmra.mxu0 %v617
  %v628 = vpop.f32.mrf.mxu0
  %v629 = vadd.f32 0.0, %v628
  %v630 = vpop.f32.mrf.mxu0
  %631 = vdwg.mxu0
  %v633 = vsel %vm95, %v611, 0
  %635 = vmatpush.bf16.msra.mxu0 0
  %636 = vmatpush.bf16.msra.mxu0 0
  %637 = vmatpush.bf16.msra.mxu0 0
  %638 = vmatpush.bf16.msra.mxu0 0
  %639 = vmatpush.bf16.msra.mxu0 %v90
  %640 = vmatpush.bf16.msra.mxu0 %v89
  %641 = vmatpush.bf16.msra.mxu0 %v88
  %642 = vmatpush.bf16.msra.mxu0 %v87
  %643 = vmatmul.bf16.gmra.mxu0 %v633
  %v644 = vpop.f32.mrf.mxu0
  %v645 = vadd.f32 %v629, %v644
  %v646 = vpop.f32.mrf.mxu0
  %647 = vdwg.mxu0
  %v648 = vadd.f32 %v645, %v113
  %v649 = vxor.u32 %v648, 2147483648
  %v650 = vmul.f32 %v649, 1.442695
  %v651 = vpow.pop %v650
  %v652 = vadd.f32 %v651, 1.0
  %v653 = vrcp.pop %v652
  %v654 = vmul.f32 %v652, %v653
  %v655 = vsub.f32 1.0, %v654
  %v656 = vmul.f32 %v653, %v655
  %v657 = vadd.f32 %v653, %v656
  %vm658 = vweird.f32 %v652
  %vm659 = vweird.f32 %v653
  %vm660 = vmor %vm658, %vm659
  %v661 = vsel %vm660, %v653, %v657
  %v662 = vand.u32 2147483647, %v652
  %vm663 = vcmp.eq.f32.partialorder %v662, 8.507059e+37
  %v664 = vand.u32 %v652, 2147483648
  %v665 = vor.u32 1.1754944e-38, %v664
  %v666 = vsel %vm663, %v665, %v661
  %v667 = vmul.f32 1.0, %v666
  %v668 = vtanh.pop %v648
  %v669 = vmul.f32 %v667, %v591
  %671 = vrot.lane.b32.xlu0 %v668, 64
  %v672 = vpop.permute.xlu0 %671
  %v674 = vmul.f32 %v667, %v672
  %676 = vrot.lane.b32.xlu0 %v674, 32
  %v677 = vpop.permute.xlu0 %676
  %v679 = vadd.f32 %v669, %v677
  %v680 = vtanh.pop %v679
  %682 = vrot.lane.b32.xlu0 %v680, 64
  %v683 = vpop.permute.xlu0 %682
  %v685 = vmul.f32 %v667, %v683
  %v686 = vpack.c.bf16 %v685, %v685
  %v688 = vrot.slane %v686, 3
  %v691 = vsel %vm160, %v686, %v688
  %693 = vrot.lane.b32.xlu0 %v691, 32
  %v694 = vpop.permute.xlu0 %693
  %s696 = scalar_lea.vmem %s4, 6
  %697 = vst.msk [vmem:[%s696] sm:$0x1] %vm168, %v694
  %s698 = scalar_lea.vmem %s0, 7
  %v699 = vld [vmem:[%s698] sm:$0x1]
  %v700 = vunpack.c.l.b16 %v686
  %v701 = vpack.c.b16 %v700, %v700
  %702 = vrot.lane.b32.xlu0 %v701, 32
  %v703 = vpop.permute.xlu0 %702
  %v705 = vsel %vm54, %v703, 0
  %707 = vmatpush.bf16.msra.mxu0 0
  %708 = vmatpush.bf16.msra.mxu0 0
  %709 = vmatpush.bf16.msra.mxu0 0
  %710 = vmatpush.bf16.msra.mxu0 0
  %711 = vmatpush.bf16.msra.mxu0 0
  %712 = vmatpush.bf16.msra.mxu0 0
  %713 = vmatpush.bf16.msra.mxu0 %v51
  %714 = vmatpush.bf16.msra.mxu0 %v50
  %715 = vmatmul.bf16.gmra.mxu0 %v705
  %v716 = vpop.f32.mrf.mxu0
  %v717 = vadd.f32 0.0, %v716
  %v718 = vpop.f32.mrf.mxu0
  %719 = vdwg.mxu0
  %v721 = vsel %vm95, %v699, 0
  %723 = vmatpush.bf16.msra.mxu0 0
  %724 = vmatpush.bf16.msra.mxu0 0
  %725 = vmatpush.bf16.msra.mxu0 0
  %726 = vmatpush.bf16.msra.mxu0 0
  %727 = vmatpush.bf16.msra.mxu0 %v90
  %728 = vmatpush.bf16.msra.mxu0 %v89
  %729 = vmatpush.bf16.msra.mxu0 %v88
  %730 = vmatpush.bf16.msra.mxu0 %v87
  %731 = vmatmul.bf16.gmra.mxu0 %v721
  %v732 = vpop.f32.mrf.mxu0
  %v733 = vadd.f32 %v717, %v732
  %v734 = vpop.f32.mrf.mxu0
  %735 = vdwg.mxu0
  %v736 = vadd.f32 %v733, %v113
  %v737 = vxor.u32 %v736, 2147483648
  %v738 = vmul.f32 %v737, 1.442695
  %v739 = vpow.pop %v738
  %v740 = vadd.f32 %v739, 1.0
  %v741 = vrcp.pop %v740
  %v742 = vmul.f32 %v740, %v741
  %v743 = vsub.f32 1.0, %v742
  %v744 = vmul.f32 %v741, %v743
  %v745 = vadd.f32 %v741, %v744
  %vm746 = vweird.f32 %v740
  %vm747 = vweird.f32 %v741
  %vm748 = vmor %vm746, %vm747
  %v749 = vsel %vm748, %v741, %v745
  %v750 = vand.u32 2147483647, %v740
  %vm751 = vcmp.eq.f32.partialorder %v750, 8.507059e+37
  %v752 = vand.u32 %v740, 2147483648
  %v753 = vor.u32 1.1754944e-38, %v752
  %v754 = vsel %vm751, %v753, %v749
  %v755 = vmul.f32 1.0, %v754
  %v756 = vtanh.pop %v736
  %v757 = vmul.f32 %v755, %v679
  %759 = vrot.lane.b32.xlu0 %v756, 64
  %v760 = vpop.permute.xlu0 %759
  %v762 = vmul.f32 %v755, %v760
  %764 = vrot.lane.b32.xlu0 %v762, 32
  %v765 = vpop.permute.xlu0 %764
  %v767 = vadd.f32 %v757, %v765
  %v768 = vtanh.pop %v767
  %770 = vrot.lane.b32.xlu0 %v768, 64
  %v771 = vpop.permute.xlu0 %770
  %v773 = vmul.f32 %v755, %v771
  %v774 = vpack.c.bf16 %v773, %v773
  %v776 = vrot.slane %v774, 3
  %v779 = vsel %vm160, %v774, %v776
  %781 = vrot.lane.b32.xlu0 %v779, 32
  %v782 = vpop.permute.xlu0 %781
  %s784 = scalar_lea.vmem %s4, 7
  %785 = vst.msk [vmem:[%s784] sm:$0x1] %vm168, %v782
  %787 = vrot.lane.b32.xlu0 %v773, 32
  %v788 = vpop.permute.xlu0 %787
  %vm790 = vcmask 254976
  %791 = vst.msk [vmem:[#allocation2] sm:$0x3] %vm790, %v788
  %793 = vrot.lane.b32.xlu0 %v767, 96
  %v794 = vpop.permute.xlu0 %793
  %796 = vst.msk [vmem:[#allocation3] sm:$0x3] %vm790, %v794
  // Predicated region
  $region22: #{_encoder_forward_impl.5} parent=0 // pred_check
    _
  $region23: #{_encoder_forward_impl.5} parent=0 // pred_check_branch
    %798 = sbr.rel (0) target = $region25
  $region24: #{_encoder_forward_impl.5} parent=0 // pred_region
    _
  $region25: #{_encoder_forward_impl.5} parent=0 // pred_fallthru
    _
  // Predicated region
  $region26: #{_encoder_forward_impl.5} parent=0 // pred_check
    _
  $region27: #{_encoder_forward_impl.5} parent=0 // pred_check_branch
    %800 = sbr.rel (0) target = $region29
  $region28: #{_encoder_forward_impl.5} parent=0 // pred_region
    _
  $region29: #{_encoder_forward_impl.5} parent=0 // pred_fallthru
    _

// kernel: _encoder_forward_impl.7
$region0: #{_encoder_forward_impl.7}
  #allocation0 [shape = 'u32[]', space=smem, size = 0x4, offset = 0x4, fixed_abs, tag = 'smem constant byte address 0x4 - core index']
  #allocation1 [shape = 'u32[72,128]{1,0:T(1,128)}', space=vmem, size = 0x9000, scoped, tag = 'internal scratch']
  #allocation2 [shape = 'f32[2,32]{1,0:T(2,128)}', space=vmem, size = 0x400, scoped, tag = 'scratch operand']
  #allocation3 [shape = 'f32[2,32]{1,0:T(2,128)}', space=vmem, size = 0x400, scoped, tag = 'scratch operand']
  %s0 = inlined_call_operand.vmem [shape: bf16[8,2,32], index: 0, kind: input, shape index: {}, may-alias: {0,4}]
  %s1 = inlined_call_operand.vmem [shape: bf16[32,128], index: 1, kind: input, shape index: {}]
  %s2 = inlined_call_operand.vmem [shape: bf16[32,128], index: 2, kind: input, shape index: {}]
  %s3 = inlined_call_operand.vmem [shape: f32[1,128], index: 3, kind: input, shape index: {}]
  %s4 = inlined_call_operand.vmem [shape: bf16[8,2,32], index: 4, kind: input, shape index: {}, may-alias: {0,4}]
  %s5 = inlined_call_operand.hbm [shape: bf16[8,2,32], index: 5, kind: output, shape index: {}]
  %s6 = sld [smem:[#allocation0]]
  $region34: #{_encoder_forward_impl.7} parent=0
    _
  %s8 = ssub.s32 1, %s6
  %s9 = scalar_select 0, %s8, %s6
  $region1: #{_encoder_forward_impl.7} parent=0
    #allocation4 [shape = 'u8[4096]{0}', space=vmem, size = 0x1000, scoped, tag = 'output window, operand 0, single buffered']
    #allocation5 [shape = 's32[1]{0}', space=sflag, size = 0x4, scoped, tag = 'scoped memory for _encoder_forward_impl.7']
    %10 = vsyncpa [#allocation5], 0
    // Predicated region
    $region2: #{_encoder_forward_impl.7} parent=1 // pred_check
      _
    $region3: #{_encoder_forward_impl.7} parent=1 // pred_check_branch
      %12 = sbr.rel (0) target = $region5
    $region4: #{_encoder_forward_impl.7} parent=1 // pred_region
      _
    $region5: #{_encoder_forward_impl.7} parent=1 // pred_fallthru
      _
    // Predicated region
    $region6: #{_encoder_forward_impl.7} parent=1 // pred_check
      _
    $region7: #{_encoder_forward_impl.7} parent=1 // pred_check_branch
      %14 = sbr.rel (0) target = $region9
    $region8: #{_encoder_forward_impl.7} parent=1 // pred_region
      _
    $region9: #{_encoder_forward_impl.7} parent=1 // pred_fallthru
      _
    // Predicated region
    $region10: #{_encoder_forward_impl.7} parent=1 // pred_check
      _
    $region11: #{_encoder_forward_impl.7} parent=1 // pred_check_branch
      %16 = sbr.rel (0) target = $region13
    $region12: #{_encoder_forward_impl.7} parent=1 // pred_region
      _
    $region13: #{_encoder_forward_impl.7} parent=1 // pred_fallthru
      _
    // Predicated region
    $region14: #{_encoder_forward_impl.7} parent=1 // pred_check
      _
    $region15: #{_encoder_forward_impl.7} parent=1 // pred_check_branch
      %18 = sbr.rel (0) target = $region17
    $region16: #{_encoder_forward_impl.7} parent=1 // pred_region
      _
    $region17: #{_encoder_forward_impl.7} parent=1 // pred_fallthru
      _
    // Predicated region
    $region18: #{_encoder_forward_impl.7} parent=1 // pred_check
      _
    $region19: #{_encoder_forward_impl.7} parent=1 // pred_check_branch
      %20 = sbr.rel (0) target = $region21
    $region20: #{_encoder_forward_impl.7} parent=1 // pred_region
      _
    $region21: #{_encoder_forward_impl.7} parent=1 // pred_fallthru
      _
    %p22 = scmp.eq.s32.totalorder 0, 0
    // Predicated region
    $region22: #{_encoder_forward_impl.7} parent=1 // pred_check
      %p23 = pneg %p22
    $region23: #{_encoder_forward_impl.7} parent=1 // pred_check_branch
      %25 = sbr.rel (%p23) target = $region25
    $region24: #{_encoder_forward_impl.7} parent=1 // pred_region
      %vm26 = vcmask 254976
      %27 = vst.msk [vmem:[#allocation2] sm:$0x3] %vm26, 0.0
      %28 = vst.msk [vmem:[#allocation3] sm:$0x3] %vm26, 0.0
    $region25: #{_encoder_forward_impl.7} parent=1 // pred_fallthru
      _
    %v29 = vld [vmem:[%s1] sm:$0xf]
    %v30 = vld [vmem:[%s1 + $0x4] sm:$0xf]
    %v31 = vld [vmem:[%s1 + $0x8] sm:$0xf]
    %v32 = vld [vmem:[%s1 + $0xc] sm:$0xf]
    %v33 = vld [vmem:[%s2] sm:$0xf]
    %v34 = vld [vmem:[%s2 + $0x4] sm:$0xf]
    %v35 = vld [vmem:[%s2 + $0x8] sm:$0xf]
    %v36 = vld [vmem:[%s2 + $0xc] sm:$0xf]
    %v37 = vld [vmem:[%s3] sm:$0x1]
    %v38 = vld [vmem:[#allocation2] sm:$0x3]
    %v39 = vld [vmem:[#allocation3] sm:$0x3]
    %v40 = vld [vmem:[%s0] sm:$0x1]
    %v41 = vpack.c.bf16 %v38, %v38
    %v46 = vunpack.c.l.b16 %v33
    %v47 = vunpack.c.l.b16 %v34
    %v48 = vunpack.c.l.b16 %v35
    %v49 = vunpack.c.l.b16 %v36
    %v50 = vpack.c.b16 %v47, %v46
    %v51 = vpack.c.b16 %v49, %v48
    %vm54 = vcmask 261120
    %v56 = vsel %vm54, %v41, 0
    %58 = vmatpush.bf16.msra.mxu0 0
    %59 = vmatpush.bf16.msra.mxu0 0
    %60 = vmatpush.bf16.msra.mxu0 0
    %61 = vmatpush.bf16.msra.mxu0 0
    %62 = vmatpush.bf16.msra.mxu0 0
    %63 = vmatpush.bf16.msra.mxu0 0
    %64 = vmatpush.bf16.msra.mxu0 %v51
    %65 = vmatpush.bf16.msra.mxu0 %v50
    %66 = vmatmul.bf16.gmra.mxu0 %v56
    %v67 = vpop.f32.mrf.mxu0
    %v68 = vadd.f32 0.0, %v67
    %v69 = vpop.f32.mrf.mxu0
    %70 = vdwg.mxu0
    %v75 = vunpack.c.l.b16 %v29
    %v76 = vunpack.c.l.b16 %v30
    %v77 = vunpack.c.l.b16 %v31
    %v78 = vunpack.c.l.b16 %v32
    %v79 = vpack.c.b16 %v76, %v75
    %v80 = vpack.c.b16 %v78, %v77
    %v84 = vsel %vm54, %v40, 0
    %86 = vmatpush.bf16.msra.mxu0 0
    %87 = vmatpush.bf16.msra.mxu0 0
    %88 = vmatpush.bf16.msra.mxu0 0
    %89 = vmatpush.bf16.msra.mxu0 0
    %90 = vmatpush.bf16.msra.mxu0 0
    %91 = vmatpush.bf16.msra.mxu0 0
    %92 = vmatpush.bf16.msra.mxu0 %v80
    %93 = vmatpush.bf16.msra.mxu0 %v79
    %94 = vmatmul.bf16.gmra.mxu0 %v84
    %v95 = vpop.f32.mrf.mxu0
    %v96 = vadd.f32 %v68, %v95
    %v97 = vpop.f32.mrf.mxu0
    %98 = vdwg.mxu0
    %v100 = vperm.slane %v37, 0
    %v102 = vadd.f32 %v96, %v100
    %v103 = vxor.u32 %v102, 2147483648
    %v104 = vmul.f32 %v103, 1.442695
    %v105 = vpow.pop %v104
    %v106 = vadd.f32 %v105, 1.0
    %v107 = vrcp.pop %v106
    %v108 = vmul.f32 %v106, %v107
    %v109 = vsub.f32 1.0, %v108
    %v110 = vmul.f32 %v107, %v109
    %v111 = vadd.f32 %v107, %v110
    %vm112 = vweird.f32 %v106
    %vm113 = vweird.f32 %v107
    %vm114 = vmor %vm112, %vm113
    %v115 = vsel %vm114, %v107, %v111
    %v116 = vand.u32 2147483647, %v106
    %vm117 = vcmp.eq.f32.partialorder %v116, 8.507059e+37
    %v118 = vand.u32 %v106, 2147483648
    %v119 = vor.u32 1.1754944e-38, %v118
    %v120 = vsel %vm117, %v119, %v115
    %v121 = vmul.f32 1.0, %v120
    %v122 = vtanh.pop %v102
    %124 = vrot.lane.b32.xlu0 %v39, 32
    %v125 = vpop.permute.xlu0 %124
    %v127 = vmul.f32 %v121, %v125
    %129 = vrot.lane.b32.xlu0 %v122, 64
    %v130 = vpop.permute.xlu0 %129
    %v132 = vmul.f32 %v121, %v130
    %134 = vrot.lane.b32.xlu0 %v132, 32
    %v135 = vpop.permute.xlu0 %134
    %v137 = vadd.f32 %v127, %v135
    %v138 = vtanh.pop %v137
    %140 = vrot.lane.b32.xlu0 %v138, 64
    %v141 = vpop.permute.xlu0 %140
    %v143 = vmul.f32 %v121, %v141
    %v144 = vld [vmem:[%s4] sm:$0x1]
    %v145 = vunpack.c.l.bf16 %v144
    %147 = vst [vmem:[#allocation1] ss:$4 sm:$0xff] %v145
    %v148 = vld.sshfl [vmem:[#allocation1] sm:$0xff pattern:$0x73625140]
    %149 = vrot.lane.b32.xlu0 %v148, 96
    %v150 = vpop.permute.xlu0 %149
    %v152 = vadd.f32 %v143, %v150
    %v153 = vpack.c.bf16 %v152, %v152
    %v155 = vrot.slane %v153, 3
    %vm156 = vcmask 1040384
    %v159 = vsel %vm156, %v153, %v155
    %161 = vrot.lane.b32.xlu0 %v159, 32
    %v162 = vpop.permute.xlu0 %161
    %vm164 = vcmask 253952
    %165 = vst.msk [vmem:[#allocation4] sm:$0x1] %vm164, %v162
    %s166 = scalar_lea.vmem %s0, 1
    %v167 = vld [vmem:[%s166] sm:$0x1]
    %v168 = vpack.c.bf16 %v143, %v143
    %170 = vrot.lane.b32.xlu0 %v168, 32
    %v171 = vpop.permute.xlu0 %170
    %v173 = vsel %vm54, %v171, 0
    %175 = vmatpush.bf16.msra.mxu0 0
    %176 = vmatpush.bf16.msra.mxu0 0
    %177 = vmatpush.bf16.msra.mxu0 0
    %178 = vmatpush.bf16.msra.mxu0 0
    %179 = vmatpush.bf16.msra.mxu0 0
    %180 = vmatpush.bf16.msra.mxu0 0
    %181 = vmatpush.bf16.msra.mxu0 %v51
    %182 = vmatpush.bf16.msra.mxu0 %v50
    %183 = vmatmul.bf16.gmra.mxu0 %v173
    %v184 = vpop.f32.mrf.mxu0
    %v185 = vadd.f32 0.0, %v184
    %v186 = vpop.f32.mrf.mxu0
    %187 = vdwg.mxu0
    %v189 = vsel %vm54, %v167, 0
    %191 = vmatpush.bf16.msra.mxu0 0
    %192 = vmatpush.bf16.msra.mxu0 0
    %193 = vmatpush.bf16.msra.mxu0 0
    %194 = vmatpush.bf16.msra.mxu0 0
    %195 = vmatpush.bf16.msra.mxu0 0
    %196 = vmatpush.bf16.msra.mxu0 0
    %197 = vmatpush.bf16.msra.mxu0 %v80
    %198 = vmatpush.bf16.msra.mxu0 %v79
    %199 = vmatmul.bf16.gmra.mxu0 %v189
    %v200 = vpop.f32.mrf.mxu0
    %v201 = vadd.f32 %v185, %v200
    %v202 = vpop.f32.mrf.mxu0
    %203 = vdwg.mxu0
    %v204 = vadd.f32 %v201, %v100
    %v205 = vxor.u32 %v204, 2147483648
    %v206 = vmul.f32 %v205, 1.442695
    %v207 = vpow.pop %v206
    %v208 = vadd.f32 %v207, 1.0
    %v209 = vrcp.pop %v208
    %v210 = vmul.f32 %v208, %v209
    %v211 = vsub.f32 1.0, %v210
    %v212 = vmul.f32 %v209, %v211
    %v213 = vadd.f32 %v209, %v212
    %vm214 = vweird.f32 %v208
    %vm215 = vweird.f32 %v209
    %vm216 = vmor %vm214, %vm215
    %v217 = vsel %vm216, %v209, %v213
    %v218 = vand.u32 2147483647, %v208
    %vm219 = vcmp.eq.f32.partialorder %v218, 8.507059e+37
    %v220 = vand.u32 %v208, 2147483648
    %v221 = vor.u32 1.1754944e-38, %v220
    %v222 = vsel %vm219, %v221, %v217
    %v223 = vmul.f32 1.0, %v222
    %v224 = vtanh.pop %v204
    %v225 = vmul.f32 %v223, %v137
    %227 = vrot.lane.b32.xlu0 %v224, 64
    %v228 = vpop.permute.xlu0 %227
    %v230 = vmul.f32 %v223, %v228
    %232 = vrot.lane.b32.xlu0 %v230, 32
    %v233 = vpop.permute.xlu0 %232
    %v235 = vadd.f32 %v225, %v233
    %v236 = vtanh.pop %v235
    %238 = vrot.lane.b32.xlu0 %v236, 64
    %v239 = vpop.permute.xlu0 %238
    %v241 = vmul.f32 %v223, %v239
    %s242 = scalar_lea.vmem %s4, 1
    %v243 = vld [vmem:[%s242] sm:$0x1]
    %v244 = vunpack.c.l.bf16 %v243
    %246 = vst [vmem:[#allocation1] ss:$4 sm:$0xff] %v244
    %v247 = vld.sshfl [vmem:[#allocation1] sm:$0xff pattern:$0x73625140]
    %248 = vrot.lane.b32.xlu0 %v247, 96
    %v249 = vpop.permute.xlu0 %248
    %v251 = vadd.f32 %v241, %v249
    %v252 = vpack.c.bf16 %v251, %v251
    %v254 = vrot.slane %v252, 3
    %v257 = vsel %vm156, %v252, %v254
    %259 = vrot.lane.b32.xlu0 %v257, 32
    %v260 = vpop.permute.xlu0 %259
    %s262 = scalar_lea.vmem [#allocation4], 1
    %263 = vst.msk [vmem:[%s262] sm:$0x1] %vm164, %v260
    %s264 = scalar_lea.vmem %s0, 2
    %v265 = vld [vmem:[%s264] sm:$0x1]
    %v266 = vpack.c.bf16 %v241, %v241
    %268 = vrot.lane.b32.xlu0 %v266, 32
    %v269 = vpop.permute.xlu0 %268
    %v271 = vsel %vm54, %v269, 0
    %273 = vmatpush.bf16.msra.mxu0 0
    %274 = vmatpush.bf16.msra.mxu0 0
    %275 = vmatpush.bf16.msra.mxu0 0
    %276 = vmatpush.bf16.msra.mxu0 0
    %277 = vmatpush.bf16.msra.mxu0 0
    %278 = vmatpush.bf16.msra.mxu0 0
    %279 = vmatpush.bf16.msra.mxu0 %v51
    %280 = vmatpush.bf16.msra.mxu0 %v50
    %281 = vmatmul.bf16.gmra.mxu0 %v271
    %v282 = vpop.f32.mrf.mxu0
    %v283 = vadd.f32 0.0, %v282
    %v284 = vpop.f32.mrf.mxu0
    %285 = vdwg.mxu0
    %v287 = vsel %vm54, %v265, 0
    %289 = vmatpush.bf16.msra.mxu0 0
    %290 = vmatpush.bf16.msra.mxu0 0
    %291 = vmatpush.bf16.msra.mxu0 0
    %292 = vmatpush.bf16.msra.mxu0 0
    %293 = vmatpush.bf16.msra.mxu0 0
    %294 = vmatpush.bf16.msra.mxu0 0
    %295 = vmatpush.bf16.msra.mxu0 %v80
    %296 = vmatpush.bf16.msra.mxu0 %v79
    %297 = vmatmul.bf16.gmra.mxu0 %v287
    %v298 = vpop.f32.mrf.mxu0
    %v299 = vadd.f32 %v283, %v298
    %v300 = vpop.f32.mrf.mxu0
    %301 = vdwg.mxu0
    %v302 = vadd.f32 %v299, %v100
    %v303 = vxor.u32 %v302, 2147483648
    %v304 = vmul.f32 %v303, 1.442695
    %v305 = vpow.pop %v304
    %v306 = vadd.f32 %v305, 1.0
    %v307 = vrcp.pop %v306
    %v308 = vmul.f32 %v306, %v307
    %v309 = vsub.f32 1.0, %v308
    %v310 = vmul.f32 %v307, %v309
    %v311 = vadd.f32 %v307, %v310
    %vm312 = vweird.f32 %v306
    %vm313 = vweird.f32 %v307
    %vm314 = vmor %vm312, %vm313
    %v315 = vsel %vm314, %v307, %v311
    %v316 = vand.u32 2147483647, %v306
    %vm317 = vcmp.eq.f32.partialorder %v316, 8.507059e+37
    %v318 = vand.u32 %v306, 2147483648
    %v319 = vor.u32 1.1754944e-38, %v318
    %v320 = vsel %vm317, %v319, %v315
    %v321 = vmul.f32 1.0, %v320
    %v322 = vtanh.pop %v302
    %v323 = vmul.f32 %v321, %v235
    %325 = vrot.lane.b32.xlu0 %v322, 64
    %v326 = vpop.permute.xlu0 %325
    %v328 = vmul.f32 %v321, %v326
    %330 = vrot.lane.b32.xlu0 %v328, 32
    %v331 = vpop.permute.xlu0 %330
    %v333 = vadd.f32 %v323, %v331
    %v334 = vtanh.pop %v333
    %336 = vrot.lane.b32.xlu0 %v334, 64
    %v337 = vpop.permute.xlu0 %336
    %v339 = vmul.f32 %v321, %v337
    %s340 = scalar_lea.vmem %s4, 2
    %v341 = vld [vmem:[%s340] sm:$0x1]
    %v342 = vunpack.c.l.bf16 %v341
    %344 = vst [vmem:[#allocation1] ss:$4 sm:$0xff] %v342
    %v345 = vld.sshfl [vmem:[#allocation1] sm:$0xff pattern:$0x73625140]
    %346 = vrot.lane.b32.xlu0 %v345, 96
    %v347 = vpop.permute.xlu0 %346
    %v349 = vadd.f32 %v339, %v347
    %v350 = vpack.c.bf16 %v349, %v349
    %v352 = vrot.slane %v350, 3
    %v355 = vsel %vm156, %v350, %v352
    %357 = vrot.lane.b32.xlu0 %v355, 32
    %v358 = vpop.permute.xlu0 %357
    %s360 = scalar_lea.vmem [#allocation4], 2
    %361 = vst.msk [vmem:[%s360] sm:$0x1] %vm164, %v358
    %s362 = scalar_lea.vmem %s0, 3
    %v363 = vld [vmem:[%s362] sm:$0x1]
    %v364 = vpack.c.bf16 %v339, %v339
    %366 = vrot.lane.b32.xlu0 %v364, 32
    %v367 = vpop.permute.xlu0 %366
    %v369 = vsel %vm54, %v367, 0
    %371 = vmatpush.bf16.msra.mxu0 0
    %372 = vmatpush.bf16.msra.mxu0 0
    %373 = vmatpush.bf16.msra.mxu0 0
    %374 = vmatpush.bf16.msra.mxu0 0
    %375 = vmatpush.bf16.msra.mxu0 0
    %376 = vmatpush.bf16.msra.mxu0 0
    %377 = vmatpush.bf16.msra.mxu0 %v51
    %378 = vmatpush.bf16.msra.mxu0 %v50
    %379 = vmatmul.bf16.gmra.mxu0 %v369
    %v380 = vpop.f32.mrf.mxu0
    %v381 = vadd.f32 0.0, %v380
    %v382 = vpop.f32.mrf.mxu0
    %383 = vdwg.mxu0
    %v385 = vsel %vm54, %v363, 0
    %387 = vmatpush.bf16.msra.mxu0 0
    %388 = vmatpush.bf16.msra.mxu0 0
    %389 = vmatpush.bf16.msra.mxu0 0
    %390 = vmatpush.bf16.msra.mxu0 0
    %391 = vmatpush.bf16.msra.mxu0 0
    %392 = vmatpush.bf16.msra.mxu0 0
    %393 = vmatpush.bf16.msra.mxu0 %v80
    %394 = vmatpush.bf16.msra.mxu0 %v79
    %395 = vmatmul.bf16.gmra.mxu0 %v385
    %v396 = vpop.f32.mrf.mxu0
    %v397 = vadd.f32 %v381, %v396
    %v398 = vpop.f32.mrf.mxu0
    %399 = vdwg.mxu0
    %v400 = vadd.f32 %v397, %v100
    %v401 = vxor.u32 %v400, 2147483648
    %v402 = vmul.f32 %v401, 1.442695
    %v403 = vpow.pop %v402
    %v404 = vadd.f32 %v403, 1.0
    %v405 = vrcp.pop %v404
    %v406 = vmul.f32 %v404, %v405
    %v407 = vsub.f32 1.0, %v406
    %v408 = vmul.f32 %v405, %v407
    %v409 = vadd.f32 %v405, %v408
    %vm410 = vweird.f32 %v404
    %vm411 = vweird.f32 %v405
    %vm412 = vmor %vm410, %vm411
    %v413 = vsel %vm412, %v405, %v409
    %v414 = vand.u32 2147483647, %v404
    %vm415 = vcmp.eq.f32.partialorder %v414, 8.507059e+37
    %v416 = vand.u32 %v404, 2147483648
    %v417 = vor.u32 1.1754944e-38, %v416
    %v418 = vsel %vm415, %v417, %v413
    %v419 = vmul.f32 1.0, %v418
    %v420 = vtanh.pop %v400
    %v421 = vmul.f32 %v419, %v333
    %423 = vrot.lane.b32.xlu0 %v420, 64
    %v424 = vpop.permute.xlu0 %423
    %v426 = vmul.f32 %v419, %v424
    %428 = vrot.lane.b32.xlu0 %v426, 32
    %v429 = vpop.permute.xlu0 %428
    %v431 = vadd.f32 %v421, %v429
    %v432 = vtanh.pop %v431
    %434 = vrot.lane.b32.xlu0 %v432, 64
    %v435 = vpop.permute.xlu0 %434
    %v437 = vmul.f32 %v419, %v435
    %s438 = scalar_lea.vmem %s4, 3
    %v439 = vld [vmem:[%s438] sm:$0x1]
    %v440 = vunpack.c.l.bf16 %v439
    %442 = vst [vmem:[#allocation1] ss:$4 sm:$0xff] %v440
    %v443 = vld.sshfl [vmem:[#allocation1] sm:$0xff pattern:$0x73625140]
    %444 = vrot.lane.b32.xlu0 %v443, 96
    %v445 = vpop.permute.xlu0 %444
    %v447 = vadd.f32 %v437, %v445
    %v448 = vpack.c.bf16 %v447, %v447
    %v450 = vrot.slane %v448, 3
    %v453 = vsel %vm156, %v448, %v450
    %455 = vrot.lane.b32.xlu0 %v453, 32
    %v456 = vpop.permute.xlu0 %455
    %s458 = scalar_lea.vmem [#allocation4], 3
    %459 = vst.msk [vmem:[%s458] sm:$0x1] %vm164, %v456
    %s460 = scalar_lea.vmem %s0, 4
    %v461 = vld [vmem:[%s460] sm:$0x1]
    %v462 = vpack.c.bf16 %v437, %v437
    %464 = vrot.lane.b32.xlu0 %v462, 32
    %v465 = vpop.permute.xlu0 %464
    %v467 = vsel %vm54, %v465, 0
    %469 = vmatpush.bf16.msra.mxu0 0
    %470 = vmatpush.bf16.msra.mxu0 0
    %471 = vmatpush.bf16.msra.mxu0 0
    %472 = vmatpush.bf16.msra.mxu0 0
    %473 = vmatpush.bf16.msra.mxu0 0
    %474 = vmatpush.bf16.msra.mxu0 0
    %475 = vmatpush.bf16.msra.mxu0 %v51
    %476 = vmatpush.bf16.msra.mxu0 %v50
    %477 = vmatmul.bf16.gmra.mxu0 %v467
    %v478 = vpop.f32.mrf.mxu0
    %v479 = vadd.f32 0.0, %v478
    %v480 = vpop.f32.mrf.mxu0
    %481 = vdwg.mxu0
    %v483 = vsel %vm54, %v461, 0
    %485 = vmatpush.bf16.msra.mxu0 0
    %486 = vmatpush.bf16.msra.mxu0 0
    %487 = vmatpush.bf16.msra.mxu0 0
    %488 = vmatpush.bf16.msra.mxu0 0
    %489 = vmatpush.bf16.msra.mxu0 0
    %490 = vmatpush.bf16.msra.mxu0 0
    %491 = vmatpush.bf16.msra.mxu0 %v80
    %492 = vmatpush.bf16.msra.mxu0 %v79
    %493 = vmatmul.bf16.gmra.mxu0 %v483
    %v494 = vpop.f32.mrf.mxu0
    %v495 = vadd.f32 %v479, %v494
    %v496 = vpop.f32.mrf.mxu0
    %497 = vdwg.mxu0
    %v498 = vadd.f32 %v495, %v100
    %v499 = vxor.u32 %v498, 2147483648
    %v500 = vmul.f32 %v499, 1.442695
    %v501 = vpow.pop %v500
    %v502 = vadd.f32 %v501, 1.0
    %v503 = vrcp.pop %v502
    %v504 = vmul.f32 %v502, %v503
    %v505 = vsub.f32 1.0, %v504
    %v506 = vmul.f32 %v503, %v505
    %v507 = vadd.f32 %v503, %v506
    %vm508 = vweird.f32 %v502
    %vm509 = vweird.f32 %v503
    %vm510 = vmor %vm508, %vm509
    %v511 = vsel %vm510, %v503, %v507
    %v512 = vand.u32 2147483647, %v502
    %vm513 = vcmp.eq.f32.partialorder %v512, 8.507059e+37
    %v514 = vand.u32 %v502, 2147483648
    %v515 = vor.u32 1.1754944e-38, %v514
    %v516 = vsel %vm513, %v515, %v511
    %v517 = vmul.f32 1.0, %v516
    %v518 = vtanh.pop %v498
    %v519 = vmul.f32 %v517, %v431
    %521 = vrot.lane.b32.xlu0 %v518, 64
    %v522 = vpop.permute.xlu0 %521
    %v524 = vmul.f32 %v517, %v522
    %526 = vrot.lane.b32.xlu0 %v524, 32
    %v527 = vpop.permute.xlu0 %526
    %v529 = vadd.f32 %v519, %v527
    %v530 = vtanh.pop %v529
    %532 = vrot.lane.b32.xlu0 %v530, 64
    %v533 = vpop.permute.xlu0 %532
    %v535 = vmul.f32 %v517, %v533
    %s536 = scalar_lea.vmem %s4, 4
    %v537 = vld [vmem:[%s536] sm:$0x1]
    %v538 = vunpack.c.l.bf16 %v537
    %540 = vst [vmem:[#allocation1] ss:$4 sm:$0xff] %v538
    %v541 = vld.sshfl [vmem:[#allocation1] sm:$0xff pattern:$0x73625140]
    %542 = vrot.lane.b32.xlu0 %v541, 96
    %v543 = vpop.permute.xlu0 %542
    %v545 = vadd.f32 %v535, %v543
    %v546 = vpack.c.bf16 %v545, %v545
    %v548 = vrot.slane %v546, 3
    %v551 = vsel %vm156, %v546, %v548
    %553 = vrot.lane.b32.xlu0 %v551, 32
    %v554 = vpop.permute.xlu0 %553
    %s556 = scalar_lea.vmem [#allocation4], 4
    %557 = vst.msk [vmem:[%s556] sm:$0x1] %vm164, %v554
    %s558 = scalar_lea.vmem %s0, 5
    %v559 = vld [vmem:[%s558] sm:$0x1]
    %v560 = vpack.c.bf16 %v535, %v535
    %562 = vrot.lane.b32.xlu0 %v560, 32
    %v563 = vpop.permute.xlu0 %562
    %v565 = vsel %vm54, %v563, 0
    %567 = vmatpush.bf16.msra.mxu0 0
    %568 = vmatpush.bf16.msra.mxu0 0
    %569 = vmatpush.bf16.msra.mxu0 0
    %570 = vmatpush.bf16.msra.mxu0 0
    %571 = vmatpush.bf16.msra.mxu0 0
    %572 = vmatpush.bf16.msra.mxu0 0
    %573 = vmatpush.bf16.msra.mxu0 %v51
    %574 = vmatpush.bf16.msra.mxu0 %v50
    %575 = vmatmul.bf16.gmra.mxu0 %v565
    %v576 = vpop.f32.mrf.mxu0
    %v577 = vadd.f32 0.0, %v576
    %v578 = vpop.f32.mrf.mxu0
    %579 = vdwg.mxu0
    %v581 = vsel %vm54, %v559, 0
    %583 = vmatpush.bf16.msra.mxu0 0
    %584 = vmatpush.bf16.msra.mxu0 0
    %585 = vmatpush.bf16.msra.mxu0 0
    %586 = vmatpush.bf16.msra.mxu0 0
    %587 = vmatpush.bf16.msra.mxu0 0
    %588 = vmatpush.bf16.msra.mxu0 0
    %589 = vmatpush.bf16.msra.mxu0 %v80
    %590 = vmatpush.bf16.msra.mxu0 %v79
    %591 = vmatmul.bf16.gmra.mxu0 %v581
    %v592 = vpop.f32.mrf.mxu0
    %v593 = vadd.f32 %v577, %v592
    %v594 = vpop.f32.mrf.mxu0
    %595 = vdwg.mxu0
    %v596 = vadd.f32 %v593, %v100
    %v597 = vxor.u32 %v596, 2147483648
    %v598 = vmul.f32 %v597, 1.442695
    %v599 = vpow.pop %v598
    %v600 = vadd.f32 %v599, 1.0
    %v601 = vrcp.pop %v600
    %v602 = vmul.f32 %v600, %v601
    %v603 = vsub.f32 1.0, %v602
    %v604 = vmul.f32 %v601, %v603
    %v605 = vadd.f32 %v601, %v604
    %vm606 = vweird.f32 %v600
    %vm607 = vweird.f32 %v601
    %vm608 = vmor %vm606, %vm607
    %v609 = vsel %vm608, %v601, %v605
    %v610 = vand.u32 2147483647, %v600
    %vm611 = vcmp.eq.f32.partialorder %v610, 8.507059e+37
    %v612 = vand.u32 %v600, 2147483648
    %v613 = vor.u32 1.1754944e-38, %v612
    %v614 = vsel %vm611, %v613, %v609
    %v615 = vmul.f32 1.0, %v614
    %v616 = vtanh.pop %v596
    %v617 = vmul.f32 %v615, %v529
    %619 = vrot.lane.b32.xlu0 %v616, 64
    %v620 = vpop.permute.xlu0 %619
    %v622 = vmul.f32 %v615, %v620
    %624 = vrot.lane.b32.xlu0 %v622, 32
    %v625 = vpop.permute.xlu0 %624
    %v627 = vadd.f32 %v617, %v625
    %v628 = vtanh.pop %v627
    %630 = vrot.lane.b32.xlu0 %v628, 64
    %v631 = vpop.permute.xlu0 %630
    %v633 = vmul.f32 %v615, %v631
    %s634 = scalar_lea.vmem %s4, 5
    %v635 = vld [vmem:[%s634] sm:$0x1]
    %v636 = vunpack.c.l.bf16 %v635
    %638 = vst [vmem:[#allocation1] ss:$4 sm:$0xff] %v636
    %v639 = vld.sshfl [vmem:[#allocation1] sm:$0xff pattern:$0x73625140]
    %640 = vrot.lane.b32.xlu0 %v639, 96
    %v641 = vpop.permute.xlu0 %640
    %v643 = vadd.f32 %v633, %v641
    %v644 = vpack.c.bf16 %v643, %v643
    %v646 = vrot.slane %v644, 3
    %v649 = vsel %vm156, %v644, %v646
    %651 = vrot.lane.b32.xlu0 %v649, 32
    %v652 = vpop.permute.xlu0 %651
    %s654 = scalar_lea.vmem [#allocation4], 5
    %655 = vst.msk [vmem:[%s654] sm:$0x1] %vm164, %v652
    %s656 = scalar_lea.vmem %s0, 6
    %v657 = vld [vmem:[%s656] sm:$0x1]
    %v658 = vpack.c.bf16 %v633, %v633
    %660 = vrot.lane.b32.xlu0 %v658, 32
    %v661 = vpop.permute.xlu0 %660
    %v663 = vsel %vm54, %v661, 0
    %665 = vmatpush.bf16.msra.mxu0 0
    %666 = vmatpush.bf16.msra.mxu0 0
    %667 = vmatpush.bf16.msra.mxu0 0
    %668 = vmatpush.bf16.msra.mxu0 0
    %669 = vmatpush.bf16.msra.mxu0 0
    %670 = vmatpush.bf16.msra.mxu0 0
    %671 = vmatpush.bf16.msra.mxu0 %v51
    %672 = vmatpush.bf16.msra.mxu0 %v50
    %673 = vmatmul.bf16.gmra.mxu0 %v663
    %v674 = vpop.f32.mrf.mxu0
    %v675 = vadd.f32 0.0, %v674
    %v676 = vpop.f32.mrf.mxu0
    %677 = vdwg.mxu0
    %v679 = vsel %vm54, %v657, 0
    %681 = vmatpush.bf16.msra.mxu0 0
    %682 = vmatpush.bf16.msra.mxu0 0
    %683 = vmatpush.bf16.msra.mxu0 0
    %684 = vmatpush.bf16.msra.mxu0 0
    %685 = vmatpush.bf16.msra.mxu0 0
    %686 = vmatpush.bf16.msra.mxu0 0
    %687 = vmatpush.bf16.msra.mxu0 %v80
    %688 = vmatpush.bf16.msra.mxu0 %v79
    %689 = vmatmul.bf16.gmra.mxu0 %v679
    %v690 = vpop.f32.mrf.mxu0
    %v691 = vadd.f32 %v675, %v690
    %v692 = vpop.f32.mrf.mxu0
    %693 = vdwg.mxu0
    %v694 = vadd.f32 %v691, %v100
    %v695 = vxor.u32 %v694, 2147483648
    %v696 = vmul.f32 %v695, 1.442695
    %v697 = vpow.pop %v696
    %v698 = vadd.f32 %v697, 1.0
    %v699 = vrcp.pop %v698
    %v700 = vmul.f32 %v698, %v699
    %v701 = vsub.f32 1.0, %v700
    %v702 = vmul.f32 %v699, %v701
    %v703 = vadd.f32 %v699, %v702
    %vm704 = vweird.f32 %v698
    %vm705 = vweird.f32 %v699
    %vm706 = vmor %vm704, %vm705
    %v707 = vsel %vm706, %v699, %v703
    %v708 = vand.u32 2147483647, %v698
    %vm709 = vcmp.eq.f32.partialorder %v708, 8.507059e+37
    %v710 = vand.u32 %v698, 2147483648
    %v711 = vor.u32 1.1754944e-38, %v710
    %v712 = vsel %vm709, %v711, %v707
    %v713 = vmul.f32 1.0, %v712
    %v714 = vtanh.pop %v694
    %v715 = vmul.f32 %v713, %v627
    %717 = vrot.lane.b32.xlu0 %v714, 64
    %v718 = vpop.permute.xlu0 %717
    %v720 = vmul.f32 %v713, %v718
    %722 = vrot.lane.b32.xlu0 %v720, 32
    %v723 = vpop.permute.xlu0 %722
    %v725 = vadd.f32 %v715, %v723
    %v726 = vtanh.pop %v725
    %728 = vrot.lane.b32.xlu0 %v726, 64
    %v729 = vpop.permute.xlu0 %728
    %v731 = vmul.f32 %v713, %v729
    %s732 = scalar_lea.vmem %s4, 6
    %v733 = vld [vmem:[%s732] sm:$0x1]
    %v734 = vunpack.c.l.bf16 %v733
    %736 = vst [vmem:[#allocation1] ss:$4 sm:$0xff] %v734
    %v737 = vld.sshfl [vmem:[#allocation1] sm:$0xff pattern:$0x73625140]
    %738 = vrot.lane.b32.xlu0 %v737, 96
    %v739 = vpop.permute.xlu0 %738
    %v741 = vadd.f32 %v731, %v739
    %v742 = vpack.c.bf16 %v741, %v741
    %v744 = vrot.slane %v742, 3
    %v747 = vsel %vm156, %v742, %v744
    %749 = vrot.lane.b32.xlu0 %v747, 32
    %v750 = vpop.permute.xlu0 %749
    %s752 = scalar_lea.vmem [#allocation4], 6
    %753 = vst.msk [vmem:[%s752] sm:$0x1] %vm164, %v750
    %s754 = scalar_lea.vmem %s0, 7
    %v755 = vld [vmem:[%s754] sm:$0x1]
    %v756 = vpack.c.bf16 %v731, %v731
    %758 = vrot.lane.b32.xlu0 %v756, 32
    %v759 = vpop.permute.xlu0 %758
    %v761 = vsel %vm54, %v759, 0
    %763 = vmatpush.bf16.msra.mxu0 0
    %764 = vmatpush.bf16.msra.mxu0 0
    %765 = vmatpush.bf16.msra.mxu0 0
    %766 = vmatpush.bf16.msra.mxu0 0
    %767 = vmatpush.bf16.msra.mxu0 0
    %768 = vmatpush.bf16.msra.mxu0 0
    %769 = vmatpush.bf16.msra.mxu0 %v51
    %770 = vmatpush.bf16.msra.mxu0 %v50
    %771 = vmatmul.bf16.gmra.mxu0 %v761
    %v772 = vpop.f32.mrf.mxu0
    %v773 = vadd.f32 0.0, %v772
    %v774 = vpop.f32.mrf.mxu0
    %775 = vdwg.mxu0
    %v777 = vsel %vm54, %v755, 0
    %779 = vmatpush.bf16.msra.mxu0 0
    %780 = vmatpush.bf16.msra.mxu0 0
    %781 = vmatpush.bf16.msra.mxu0 0
    %782 = vmatpush.bf16.msra.mxu0 0
    %783 = vmatpush.bf16.msra.mxu0 0
    %784 = vmatpush.bf16.msra.mxu0 0
    %785 = vmatpush.bf16.msra.mxu0 %v80
    %786 = vmatpush.bf16.msra.mxu0 %v79
    %787 = vmatmul.bf16.gmra.mxu0 %v777
    %v788 = vpop.f32.mrf.mxu0
    %v789 = vadd.f32 %v773, %v788
    %v790 = vpop.f32.mrf.mxu0
    %791 = vdwg.mxu0
    %v792 = vadd.f32 %v789, %v100
    %v793 = vxor.u32 %v792, 2147483648
    %v794 = vmul.f32 %v793, 1.442695
    %v795 = vpow.pop %v794
    %v796 = vadd.f32 %v795, 1.0
    %v797 = vrcp.pop %v796
    %v798 = vmul.f32 %v796, %v797
    %v799 = vsub.f32 1.0, %v798
    %v800 = vmul.f32 %v797, %v799
    %v801 = vadd.f32 %v797, %v800
    %vm802 = vweird.f32 %v796
    %vm803 = vweird.f32 %v797
    %vm804 = vmor %vm802, %vm803
    %v805 = vsel %vm804, %v797, %v801
    %v806 = vand.u32 2147483647, %v796
    %vm807 = vcmp.eq.f32.partialorder %v806, 8.507059e+37
    %v808 = vand.u32 %v796, 2147483648
    %v809 = vor.u32 1.1754944e-38, %v808
    %v810 = vsel %vm807, %v809, %v805
    %v811 = vmul.f32 1.0, %v810
    %v812 = vtanh.pop %v792
    %v813 = vmul.f32 %v811, %v725
    %815 = vrot.lane.b32.xlu0 %v812, 64
    %v816 = vpop.permute.xlu0 %815
    %v818 = vmul.f32 %v811, %v816
    %820 = vrot.lane.b32.xlu0 %v818, 32
    %v821 = vpop.permute.xlu0 %820
    %v823 = vadd.f32 %v813, %v821
    %v824 = vtanh.pop %v823
    %826 = vrot.lane.b32.xlu0 %v824, 64
    %v827 = vpop.permute.xlu0 %826
    %v829 = vmul.f32 %v811, %v827
    %s830 = scalar_lea.vmem %s4, 7
    %v831 = vld [vmem:[%s830] sm:$0x1]
    %v832 = vunpack.c.l.bf16 %v831
    %834 = vst [vmem:[#allocation1] ss:$4 sm:$0xff] %v832
    %v835 = vld.sshfl [vmem:[#allocation1] sm:$0xff pattern:$0x73625140]
    %836 = vrot.lane.b32.xlu0 %v835, 96
    %v837 = vpop.permute.xlu0 %836
    %v839 = vadd.f32 %v829, %v837
    %v840 = vpack.c.bf16 %v839, %v839
    %v842 = vrot.slane %v840, 3
    %v845 = vsel %vm156, %v840, %v842
    %847 = vrot.lane.b32.xlu0 %v845, 32
    %v848 = vpop.permute.xlu0 %847
    %s850 = scalar_lea.vmem [#allocation4], 7
    %851 = vst.msk [vmem:[%s850] sm:$0x1] %vm164, %v848
    %853 = vrot.lane.b32.xlu0 %v829, 32
    %v854 = vpop.permute.xlu0 %853
    %vm856 = vcmask 254976
    %857 = vst.msk [vmem:[#allocation2] sm:$0x3] %vm856, %v854
    %859 = vrot.lane.b32.xlu0 %v823, 96
    %v860 = vpop.permute.xlu0 %859
    %862 = vst.msk [vmem:[#allocation3] sm:$0x3] %vm856, %v860
    // Predicated region
    $region26: #{_encoder_forward_impl.7} parent=1 // pred_check
      _
    $region27: #{_encoder_forward_impl.7} parent=1 // pred_check_branch
      %864 = sbr.rel (0) target = $region29
    $region28: #{_encoder_forward_impl.7} parent=1 // pred_region
      %866 = vsyncadd [#allocation5], 0
      %s867 = sshll.u32 [#allocation4], 4
      %s868 = int_to_ptr.vmem [resolvable:$true] %s867
      %s869 = sshll.u32 %s5, 4
      %s870 = int_to_ptr.hbm [resolvable:$true] %s869
      %875 = dma.vmem_to_hbm [thread:$0]  %s868, 128, %s870, [#allocation5], 16, 16, 1
    $region29: #{_encoder_forward_impl.7} parent=1 // pred_fallthru
      _
    // Predicated region
    $region30: #{_encoder_forward_impl.7} parent=1 // pred_check
      _
    $region31: #{_encoder_forward_impl.7} parent=1 // pred_check_branch
      %877 = sbr.rel (0) target = $region33
    $region32: #{_encoder_forward_impl.7} parent=1 // pred_region
      %879 = dma.done [#allocation5], 128
    $region33: #{_encoder_forward_impl.7} parent=1 // pred_fallthru
      _
    %880 = vsyncpa [#allocation5], 1

// kernel: _encoder_forward_impl.6
$region0: #{_encoder_forward_impl.6}
  #allocation0 [shape = 'u32[]', space=smem, size = 0x4, offset = 0x4, fixed_abs, tag = 'smem constant byte address 0x4 - core index']
  #allocation1 [shape = 'u32[72,128]{1,0:T(1,128)}', space=vmem, size = 0x9000, scoped, tag = 'internal scratch']
  #allocation2 [shape = 'f32[2,32]{1,0:T(2,128)}', space=vmem, size = 0x400, scoped, tag = 'scratch operand']
  #allocation3 [shape = 'f32[2,32]{1,0:T(2,128)}', space=vmem, size = 0x400, scoped, tag = 'scratch operand']
  %s0 = inlined_call_operand.vmem [shape: bf16[8,2,32], index: 0, kind: input, shape index: {}, may-alias: {0,4}]
  %s1 = inlined_call_operand.vmem [shape: bf16[32,128], index: 1, kind: input, shape index: {}]
  %s2 = inlined_call_operand.vmem [shape: bf16[32,128], index: 2, kind: input, shape index: {}]
  %s3 = inlined_call_operand.vmem [shape: f32[1,128], index: 3, kind: input, shape index: {}]
  %s4 = inlined_call_operand.vmem [shape: bf16[8,2,32], index: 4, kind: input, shape index: {}, may-alias: {0,4}]
  %s5 = inlined_call_operand.vmem [shape: bf16[8,2,32], index: 5, kind: output, shape index: {}]
  %s6 = sld [smem:[#allocation0]]
  $region34: #{_encoder_forward_impl.6} parent=0
    _
  %s8 = ssub.s32 1, %s6
  %s9 = scalar_select 0, %s8, %s6
  // Predicated region
  $region2: #{_encoder_forward_impl.6} parent=0 // pred_check
    _
  $region3: #{_encoder_forward_impl.6} parent=0 // pred_check_branch
    %11 = sbr.rel (0) target = $region5
  $region4: #{_encoder_forward_impl.6} parent=0 // pred_region
    _
  $region5: #{_encoder_forward_impl.6} parent=0 // pred_fallthru
    _
  // Predicated region
  $region6: #{_encoder_forward_impl.6} parent=0 // pred_check
    _
  $region7: #{_encoder_forward_impl.6} parent=0 // pred_check_branch
    %13 = sbr.rel (0) target = $region9
  $region8: #{_encoder_forward_impl.6} parent=0 // pred_region
    _
  $region9: #{_encoder_forward_impl.6} parent=0 // pred_fallthru
    _
  // Predicated region
  $region10: #{_encoder_forward_impl.6} parent=0 // pred_check
    _
  $region11: #{_encoder_forward_impl.6} parent=0 // pred_check_branch
    %15 = sbr.rel (0) target = $region13
  $region12: #{_encoder_forward_impl.6} parent=0 // pred_region
    _
  $region13: #{_encoder_forward_impl.6} parent=0 // pred_fallthru
    _
  // Predicated region
  $region14: #{_encoder_forward_impl.6} parent=0 // pred_check
    _
  $region15: #{_encoder_forward_impl.6} parent=0 // pred_check_branch
    %17 = sbr.rel (0) target = $region17
  $region16: #{_encoder_forward_impl.6} parent=0 // pred_region
    _
  $region17: #{_encoder_forward_impl.6} parent=0 // pred_fallthru
    _
  // Predicated region
  $region18: #{_encoder_forward_impl.6} parent=0 // pred_check
    _
  $region19: #{_encoder_forward_impl.6} parent=0 // pred_check_branch
    %19 = sbr.rel (0) target = $region21
  $region20: #{_encoder_forward_impl.6} parent=0 // pred_region
    _
  $region21: #{_encoder_forward_impl.6} parent=0 // pred_fallthru
    _
  %p21 = scmp.eq.s32.totalorder 0, 0
  // Predicated region
  $region22: #{_encoder_forward_impl.6} parent=0 // pred_check
    %p22 = pneg %p21
  $region23: #{_encoder_forward_impl.6} parent=0 // pred_check_branch
    %24 = sbr.rel (%p22) target = $region25
  $region24: #{_encoder_forward_impl.6} parent=0 // pred_region
    %vm25 = vcmask 254976
    %26 = vst.msk [vmem:[#allocation2] sm:$0x3] %vm25, 0.0
    %27 = vst.msk [vmem:[#allocation3] sm:$0x3] %vm25, 0.0
  $region25: #{_encoder_forward_impl.6} parent=0 // pred_fallthru
    _
  %v28 = vld [vmem:[%s1] sm:$0xf]
  %v29 = vld [vmem:[%s1 + $0x4] sm:$0xf]
  %v30 = vld [vmem:[%s1 + $0x8] sm:$0xf]
  %v31 = vld [vmem:[%s1 + $0xc] sm:$0xf]
  %v32 = vld [vmem:[%s2] sm:$0xf]
  %v33 = vld [vmem:[%s2 + $0x4] sm:$0xf]
  %v34 = vld [vmem:[%s2 + $0x8] sm:$0xf]
  %v35 = vld [vmem:[%s2 + $0xc] sm:$0xf]
  %v36 = vld [vmem:[%s3] sm:$0x1]
  %v37 = vld [vmem:[#allocation2] sm:$0x3]
  %v38 = vld [vmem:[#allocation3] sm:$0x3]
  %v39 = vld [vmem:[%s0] sm:$0x1]
  %v40 = vpack.c.bf16 %v37, %v37
  %v45 = vunpack.c.l.b16 %v32
  %v46 = vunpack.c.l.b16 %v33
  %v47 = vunpack.c.l.b16 %v34
  %v48 = vunpack.c.l.b16 %v35
  %v49 = vpack.c.b16 %v46, %v45
  %v50 = vpack.c.b16 %v48, %v47
  %vm53 = vcmask 261120
  %v55 = vsel %vm53, %v40, 0
  %57 = vmatpush.bf16.msra.mxu0 0
  %58 = vmatpush.bf16.msra.mxu0 0
  %59 = vmatpush.bf16.msra.mxu0 0
  %60 = vmatpush.bf16.msra.mxu0 0
  %61 = vmatpush.bf16.msra.mxu0 0
  %62 = vmatpush.bf16.msra.mxu0 0
  %63 = vmatpush.bf16.msra.mxu0 %v50
  %64 = vmatpush.bf16.msra.mxu0 %v49
  %65 = vmatmul.bf16.gmra.mxu0 %v55
  %v66 = vpop.f32.mrf.mxu0
  %v67 = vadd.f32 0.0, %v66
  %v68 = vpop.f32.mrf.mxu0
  %69 = vdwg.mxu0
  %v74 = vunpack.c.l.b16 %v28
  %v75 = vunpack.c.l.b16 %v29
  %v76 = vunpack.c.l.b16 %v30
  %v77 = vunpack.c.l.b16 %v31
  %v78 = vpack.c.b16 %v75, %v74
  %v79 = vpack.c.b16 %v77, %v76
  %v83 = vsel %vm53, %v39, 0
  %85 = vmatpush.bf16.msra.mxu0 0
  %86 = vmatpush.bf16.msra.mxu0 0
  %87 = vmatpush.bf16.msra.mxu0 0
  %88 = vmatpush.bf16.msra.mxu0 0
  %89 = vmatpush.bf16.msra.mxu0 0
  %90 = vmatpush.bf16.msra.mxu0 0
  %91 = vmatpush.bf16.msra.mxu0 %v79
  %92 = vmatpush.bf16.msra.mxu0 %v78
  %93 = vmatmul.bf16.gmra.mxu0 %v83
  %v94 = vpop.f32.mrf.mxu0
  %v95 = vadd.f32 %v67, %v94
  %v96 = vpop.f32.mrf.mxu0
  %97 = vdwg.mxu0
  %v99 = vperm.slane %v36, 0
  %v101 = vadd.f32 %v95, %v99
  %v102 = vxor.u32 %v101, 2147483648
  %v103 = vmul.f32 %v102, 1.442695
  %v104 = vpow.pop %v103
  %v105 = vadd.f32 %v104, 1.0
  %v106 = vrcp.pop %v105
  %v107 = vmul.f32 %v105, %v106
  %v108 = vsub.f32 1.0, %v107
  %v109 = vmul.f32 %v106, %v108
  %v110 = vadd.f32 %v106, %v109
  %vm111 = vweird.f32 %v105
  %vm112 = vweird.f32 %v106
  %vm113 = vmor %vm111, %vm112
  %v114 = vsel %vm113, %v106, %v110
  %v115 = vand.u32 2147483647, %v105
  %vm116 = vcmp.eq.f32.partialorder %v115, 8.507059e+37
  %v117 = vand.u32 %v105, 2147483648
  %v118 = vor.u32 1.1754944e-38, %v117
  %v119 = vsel %vm116, %v118, %v114
  %v120 = vmul.f32 1.0, %v119
  %v121 = vtanh.pop %v101
  %123 = vrot.lane.b32.xlu0 %v38, 32
  %v124 = vpop.permute.xlu0 %123
  %v126 = vmul.f32 %v120, %v124
  %128 = vrot.lane.b32.xlu0 %v121, 64
  %v129 = vpop.permute.xlu0 %128
  %v131 = vmul.f32 %v120, %v129
  %133 = vrot.lane.b32.xlu0 %v131, 32
  %v134 = vpop.permute.xlu0 %133
  %v136 = vadd.f32 %v126, %v134
  %v137 = vtanh.pop %v136
  %139 = vrot.lane.b32.xlu0 %v137, 64
  %v140 = vpop.permute.xlu0 %139
  %v142 = vmul.f32 %v120, %v140
  %v143 = vld [vmem:[%s4] sm:$0x1]
  %v144 = vunpack.c.l.bf16 %v143
  %146 = vst [vmem:[#allocation1] ss:$4 sm:$0xff] %v144
  %v147 = vld.sshfl [vmem:[#allocation1] sm:$0xff pattern:$0x73625140]
  %148 = vrot.lane.b32.xlu0 %v147, 96
  %v149 = vpop.permute.xlu0 %148
  %v151 = vadd.f32 %v142, %v149
  %v152 = vpack.c.bf16 %v151, %v151
  %v154 = vrot.slane %v152, 3
  %vm155 = vcmask 1040384
  %v158 = vsel %vm155, %v152, %v154
  %160 = vrot.lane.b32.xlu0 %v158, 32
  %v161 = vpop.permute.xlu0 %160
  %vm163 = vcmask 253952
  %164 = vst.msk [vmem:[%s5] sm:$0x1] %vm163, %v161
  %s165 = scalar_lea.vmem %s0, 1
  %v166 = vld [vmem:[%s165] sm:$0x1]
  %v167 = vpack.c.bf16 %v142, %v142
  %169 = vrot.lane.b32.xlu0 %v167, 32
  %v170 = vpop.permute.xlu0 %169
  %v172 = vsel %vm53, %v170, 0
  %174 = vmatpush.bf16.msra.mxu0 0
  %175 = vmatpush.bf16.msra.mxu0 0
  %176 = vmatpush.bf16.msra.mxu0 0
  %177 = vmatpush.bf16.msra.mxu0 0
  %178 = vmatpush.bf16.msra.mxu0 0
  %179 = vmatpush.bf16.msra.mxu0 0
  %180 = vmatpush.bf16.msra.mxu0 %v50
  %181 = vmatpush.bf16.msra.mxu0 %v49
  %182 = vmatmul.bf16.gmra.mxu0 %v172
  %v183 = vpop.f32.mrf.mxu0
  %v184 = vadd.f32 0.0, %v183
  %v185 = vpop.f32.mrf.mxu0
  %186 = vdwg.mxu0
  %v188 = vsel %vm53, %v166, 0
  %190 = vmatpush.bf16.msra.mxu0 0
  %191 = vmatpush.bf16.msra.mxu0 0
  %192 = vmatpush.bf16.msra.mxu0 0
  %193 = vmatpush.bf16.msra.mxu0 0
  %194 = vmatpush.bf16.msra.mxu0 0
  %195 = vmatpush.bf16.msra.mxu0 0
  %196 = vmatpush.bf16.msra.mxu0 %v79
  %197 = vmatpush.bf16.msra.mxu0 %v78
  %198 = vmatmul.bf16.gmra.mxu0 %v188
  %v199 = vpop.f32.mrf.mxu0
  %v200 = vadd.f32 %v184, %v199
  %v201 = vpop.f32.mrf.mxu0
  %202 = vdwg.mxu0
  %v203 = vadd.f32 %v200, %v99
  %v204 = vxor.u32 %v203, 2147483648
  %v205 = vmul.f32 %v204, 1.442695
  %v206 = vpow.pop %v205
  %v207 = vadd.f32 %v206, 1.0
  %v208 = vrcp.pop %v207
  %v209 = vmul.f32 %v207, %v208
  %v210 = vsub.f32 1.0, %v209
  %v211 = vmul.f32 %v208, %v210
  %v212 = vadd.f32 %v208, %v211
  %vm213 = vweird.f32 %v207
  %vm214 = vweird.f32 %v208
  %vm215 = vmor %vm213, %vm214
  %v216 = vsel %vm215, %v208, %v212
  %v217 = vand.u32 2147483647, %v207
  %vm218 = vcmp.eq.f32.partialorder %v217, 8.507059e+37
  %v219 = vand.u32 %v207, 2147483648
  %v220 = vor.u32 1.1754944e-38, %v219
  %v221 = vsel %vm218, %v220, %v216
  %v222 = vmul.f32 1.0, %v221
  %v223 = vtanh.pop %v203
  %v224 = vmul.f32 %v222, %v136
  %226 = vrot.lane.b32.xlu0 %v223, 64
  %v227 = vpop.permute.xlu0 %226
  %v229 = vmul.f32 %v222, %v227
  %231 = vrot.lane.b32.xlu0 %v229, 32
  %v232 = vpop.permute.xlu0 %231
  %v234 = vadd.f32 %v224, %v232
  %v235 = vtanh.pop %v234
  %237 = vrot.lane.b32.xlu0 %v235, 64
  %v238 = vpop.permute.xlu0 %237
  %v240 = vmul.f32 %v222, %v238
  %s241 = scalar_lea.vmem %s4, 1
  %v242 = vld [vmem:[%s241] sm:$0x1]
  %v243 = vunpack.c.l.bf16 %v242
  %245 = vst [vmem:[#allocation1] ss:$4 sm:$0xff] %v243
  %v246 = vld.sshfl [vmem:[#allocation1] sm:$0xff pattern:$0x73625140]
  %247 = vrot.lane.b32.xlu0 %v246, 96
  %v248 = vpop.permute.xlu0 %247
  %v250 = vadd.f32 %v240, %v248
  %v251 = vpack.c.bf16 %v250, %v250
  %v253 = vrot.slane %v251, 3
  %v256 = vsel %vm155, %v251, %v253
  %258 = vrot.lane.b32.xlu0 %v256, 32
  %v259 = vpop.permute.xlu0 %258
  %s261 = scalar_lea.vmem %s5, 1
  %262 = vst.msk [vmem:[%s261] sm:$0x1] %vm163, %v259
  %s263 = scalar_lea.vmem %s0, 2
  %v264 = vld [vmem:[%s263] sm:$0x1]
  %v265 = vpack.c.bf16 %v240, %v240
  %267 = vrot.lane.b32.xlu0 %v265, 32
  %v268 = vpop.permute.xlu0 %267
  %v270 = vsel %vm53, %v268, 0
  %272 = vmatpush.bf16.msra.mxu0 0
  %273 = vmatpush.bf16.msra.mxu0 0
  %274 = vmatpush.bf16.msra.mxu0 0
  %275 = vmatpush.bf16.msra.mxu0 0
  %276 = vmatpush.bf16.msra.mxu0 0
  %277 = vmatpush.bf16.msra.mxu0 0
  %278 = vmatpush.bf16.msra.mxu0 %v50
  %279 = vmatpush.bf16.msra.mxu0 %v49
  %280 = vmatmul.bf16.gmra.mxu0 %v270
  %v281 = vpop.f32.mrf.mxu0
  %v282 = vadd.f32 0.0, %v281
  %v283 = vpop.f32.mrf.mxu0
  %284 = vdwg.mxu0
  %v286 = vsel %vm53, %v264, 0
  %288 = vmatpush.bf16.msra.mxu0 0
  %289 = vmatpush.bf16.msra.mxu0 0
  %290 = vmatpush.bf16.msra.mxu0 0
  %291 = vmatpush.bf16.msra.mxu0 0
  %292 = vmatpush.bf16.msra.mxu0 0
  %293 = vmatpush.bf16.msra.mxu0 0
  %294 = vmatpush.bf16.msra.mxu0 %v79
  %295 = vmatpush.bf16.msra.mxu0 %v78
  %296 = vmatmul.bf16.gmra.mxu0 %v286
  %v297 = vpop.f32.mrf.mxu0
  %v298 = vadd.f32 %v282, %v297
  %v299 = vpop.f32.mrf.mxu0
  %300 = vdwg.mxu0
  %v301 = vadd.f32 %v298, %v99
  %v302 = vxor.u32 %v301, 2147483648
  %v303 = vmul.f32 %v302, 1.442695
  %v304 = vpow.pop %v303
  %v305 = vadd.f32 %v304, 1.0
  %v306 = vrcp.pop %v305
  %v307 = vmul.f32 %v305, %v306
  %v308 = vsub.f32 1.0, %v307
  %v309 = vmul.f32 %v306, %v308
  %v310 = vadd.f32 %v306, %v309
  %vm311 = vweird.f32 %v305
  %vm312 = vweird.f32 %v306
  %vm313 = vmor %vm311, %vm312
  %v314 = vsel %vm313, %v306, %v310
  %v315 = vand.u32 2147483647, %v305
  %vm316 = vcmp.eq.f32.partialorder %v315, 8.507059e+37
  %v317 = vand.u32 %v305, 2147483648
  %v318 = vor.u32 1.1754944e-38, %v317
  %v319 = vsel %vm316, %v318, %v314
  %v320 = vmul.f32 1.0, %v319
  %v321 = vtanh.pop %v301
  %v322 = vmul.f32 %v320, %v234
  %324 = vrot.lane.b32.xlu0 %v321, 64
  %v325 = vpop.permute.xlu0 %324
  %v327 = vmul.f32 %v320, %v325
  %329 = vrot.lane.b32.xlu0 %v327, 32
  %v330 = vpop.permute.xlu0 %329
  %v332 = vadd.f32 %v322, %v330
  %v333 = vtanh.pop %v332
  %335 = vrot.lane.b32.xlu0 %v333, 64
  %v336 = vpop.permute.xlu0 %335
  %v338 = vmul.f32 %v320, %v336
  %s339 = scalar_lea.vmem %s4, 2
  %v340 = vld [vmem:[%s339] sm:$0x1]
  %v341 = vunpack.c.l.bf16 %v340
  %343 = vst [vmem:[#allocation1] ss:$4 sm:$0xff] %v341
  %v344 = vld.sshfl [vmem:[#allocation1] sm:$0xff pattern:$0x73625140]
  %345 = vrot.lane.b32.xlu0 %v344, 96
  %v346 = vpop.permute.xlu0 %345
  %v348 = vadd.f32 %v338, %v346
  %v349 = vpack.c.bf16 %v348, %v348
  %v351 = vrot.slane %v349, 3
  %v354 = vsel %vm155, %v349, %v351
  %356 = vrot.lane.b32.xlu0 %v354, 32
  %v357 = vpop.permute.xlu0 %356
  %s359 = scalar_lea.vmem %s5, 2
  %360 = vst.msk [vmem:[%s359] sm:$0x1] %vm163, %v357
  %s361 = scalar_lea.vmem %s0, 3
  %v362 = vld [vmem:[%s361] sm:$0x1]
  %v363 = vpack.c.bf16 %v338, %v338
  %365 = vrot.lane.b32.xlu0 %v363, 32
  %v366 = vpop.permute.xlu0 %365
  %v368 = vsel %vm53, %v366, 0
  %370 = vmatpush.bf16.msra.mxu0 0
  %371 = vmatpush.bf16.msra.mxu0 0
  %372 = vmatpush.bf16.msra.mxu0 0
  %373 = vmatpush.bf16.msra.mxu0 0
  %374 = vmatpush.bf16.msra.mxu0 0
  %375 = vmatpush.bf16.msra.mxu0 0
  %376 = vmatpush.bf16.msra.mxu0 %v50
  %377 = vmatpush.bf16.msra.mxu0 %v49
  %378 = vmatmul.bf16.gmra.mxu0 %v368
  %v379 = vpop.f32.mrf.mxu0
  %v380 = vadd.f32 0.0, %v379
  %v381 = vpop.f32.mrf.mxu0
  %382 = vdwg.mxu0
  %v384 = vsel %vm53, %v362, 0
  %386 = vmatpush.bf16.msra.mxu0 0
  %387 = vmatpush.bf16.msra.mxu0 0
  %388 = vmatpush.bf16.msra.mxu0 0
  %389 = vmatpush.bf16.msra.mxu0 0
  %390 = vmatpush.bf16.msra.mxu0 0
  %391 = vmatpush.bf16.msra.mxu0 0
  %392 = vmatpush.bf16.msra.mxu0 %v79
  %393 = vmatpush.bf16.msra.mxu0 %v78
  %394 = vmatmul.bf16.gmra.mxu0 %v384
  %v395 = vpop.f32.mrf.mxu0
  %v396 = vadd.f32 %v380, %v395
  %v397 = vpop.f32.mrf.mxu0
  %398 = vdwg.mxu0
  %v399 = vadd.f32 %v396, %v99
  %v400 = vxor.u32 %v399, 2147483648
  %v401 = vmul.f32 %v400, 1.442695
  %v402 = vpow.pop %v401
  %v403 = vadd.f32 %v402, 1.0
  %v404 = vrcp.pop %v403
  %v405 = vmul.f32 %v403, %v404
  %v406 = vsub.f32 1.0, %v405
  %v407 = vmul.f32 %v404, %v406
  %v408 = vadd.f32 %v404, %v407
  %vm409 = vweird.f32 %v403
  %vm410 = vweird.f32 %v404
  %vm411 = vmor %vm409, %vm410
  %v412 = vsel %vm411, %v404, %v408
  %v413 = vand.u32 2147483647, %v403
  %vm414 = vcmp.eq.f32.partialorder %v413, 8.507059e+37
  %v415 = vand.u32 %v403, 2147483648
  %v416 = vor.u32 1.1754944e-38, %v415
  %v417 = vsel %vm414, %v416, %v412
  %v418 = vmul.f32 1.0, %v417
  %v419 = vtanh.pop %v399
  %v420 = vmul.f32 %v418, %v332
  %422 = vrot.lane.b32.xlu0 %v419, 64
  %v423 = vpop.permute.xlu0 %422
  %v425 = vmul.f32 %v418, %v423
  %427 = vrot.lane.b32.xlu0 %v425, 32
  %v428 = vpop.permute.xlu0 %427
  %v430 = vadd.f32 %v420, %v428
  %v431 = vtanh.pop %v430
  %433 = vrot.lane.b32.xlu0 %v431, 64
  %v434 = vpop.permute.xlu0 %433
  %v436 = vmul.f32 %v418, %v434
  %s437 = scalar_lea.vmem %s4, 3
  %v438 = vld [vmem:[%s437] sm:$0x1]
  %v439 = vunpack.c.l.bf16 %v438
  %441 = vst [vmem:[#allocation1] ss:$4 sm:$0xff] %v439
  %v442 = vld.sshfl [vmem:[#allocation1] sm:$0xff pattern:$0x73625140]
  %443 = vrot.lane.b32.xlu0 %v442, 96
  %v444 = vpop.permute.xlu0 %443
  %v446 = vadd.f32 %v436, %v444
  %v447 = vpack.c.bf16 %v446, %v446
  %v449 = vrot.slane %v447, 3
  %v452 = vsel %vm155, %v447, %v449
  %454 = vrot.lane.b32.xlu0 %v452, 32
  %v455 = vpop.permute.xlu0 %454
  %s457 = scalar_lea.vmem %s5, 3
  %458 = vst.msk [vmem:[%s457] sm:$0x1] %vm163, %v455
  %s459 = scalar_lea.vmem %s0, 4
  %v460 = vld [vmem:[%s459] sm:$0x1]
  %v461 = vpack.c.bf16 %v436, %v436
  %463 = vrot.lane.b32.xlu0 %v461, 32
  %v464 = vpop.permute.xlu0 %463
  %v466 = vsel %vm53, %v464, 0
  %468 = vmatpush.bf16.msra.mxu0 0
  %469 = vmatpush.bf16.msra.mxu0 0
  %470 = vmatpush.bf16.msra.mxu0 0
  %471 = vmatpush.bf16.msra.mxu0 0
  %472 = vmatpush.bf16.msra.mxu0 0
  %473 = vmatpush.bf16.msra.mxu0 0
  %474 = vmatpush.bf16.msra.mxu0 %v50
  %475 = vmatpush.bf16.msra.mxu0 %v49
  %476 = vmatmul.bf16.gmra.mxu0 %v466
  %v477 = vpop.f32.mrf.mxu0
  %v478 = vadd.f32 0.0, %v477
  %v479 = vpop.f32.mrf.mxu0
  %480 = vdwg.mxu0
  %v482 = vsel %vm53, %v460, 0
  %484 = vmatpush.bf16.msra.mxu0 0
  %485 = vmatpush.bf16.msra.mxu0 0
  %486 = vmatpush.bf16.msra.mxu0 0
  %487 = vmatpush.bf16.msra.mxu0 0
  %488 = vmatpush.bf16.msra.mxu0 0
  %489 = vmatpush.bf16.msra.mxu0 0
  %490 = vmatpush.bf16.msra.mxu0 %v79
  %491 = vmatpush.bf16.msra.mxu0 %v78
  %492 = vmatmul.bf16.gmra.mxu0 %v482
  %v493 = vpop.f32.mrf.mxu0
  %v494 = vadd.f32 %v478, %v493
  %v495 = vpop.f32.mrf.mxu0
  %496 = vdwg.mxu0
  %v497 = vadd.f32 %v494, %v99
  %v498 = vxor.u32 %v497, 2147483648
  %v499 = vmul.f32 %v498, 1.442695
  %v500 = vpow.pop %v499
  %v501 = vadd.f32 %v500, 1.0
  %v502 = vrcp.pop %v501
  %v503 = vmul.f32 %v501, %v502
  %v504 = vsub.f32 1.0, %v503
  %v505 = vmul.f32 %v502, %v504
  %v506 = vadd.f32 %v502, %v505
  %vm507 = vweird.f32 %v501
  %vm508 = vweird.f32 %v502
  %vm509 = vmor %vm507, %vm508
  %v510 = vsel %vm509, %v502, %v506
  %v511 = vand.u32 2147483647, %v501
  %vm512 = vcmp.eq.f32.partialorder %v511, 8.507059e+37
  %v513 = vand.u32 %v501, 2147483648
  %v514 = vor.u32 1.1754944e-38, %v513
  %v515 = vsel %vm512, %v514, %v510
  %v516 = vmul.f32 1.0, %v515
  %v517 = vtanh.pop %v497
  %v518 = vmul.f32 %v516, %v430
  %520 = vrot.lane.b32.xlu0 %v517, 64
  %v521 = vpop.permute.xlu0 %520
  %v523 = vmul.f32 %v516, %v521
  %525 = vrot.lane.b32.xlu0 %v523, 32
  %v526 = vpop.permute.xlu0 %525
  %v528 = vadd.f32 %v518, %v526
  %v529 = vtanh.pop %v528
  %531 = vrot.lane.b32.xlu0 %v529, 64
  %v532 = vpop.permute.xlu0 %531
  %v534 = vmul.f32 %v516, %v532
  %s535 = scalar_lea.vmem %s4, 4
  %v536 = vld [vmem:[%s535] sm:$0x1]
  %v537 = vunpack.c.l.bf16 %v536
  %539 = vst [vmem:[#allocation1] ss:$4 sm:$0xff] %v537
  %v540 = vld.sshfl [vmem:[#allocation1] sm:$0xff pattern:$0x73625140]
  %541 = vrot.lane.b32.xlu0 %v540, 96
  %v542 = vpop.permute.xlu0 %541
  %v544 = vadd.f32 %v534, %v542
  %v545 = vpack.c.bf16 %v544, %v544
  %v547 = vrot.slane %v545, 3
  %v550 = vsel %vm155, %v545, %v547
  %552 = vrot.lane.b32.xlu0 %v550, 32
  %v553 = vpop.permute.xlu0 %552
  %s555 = scalar_lea.vmem %s5, 4
  %556 = vst.msk [vmem:[%s555] sm:$0x1] %vm163, %v553
  %s557 = scalar_lea.vmem %s0, 5
  %v558 = vld [vmem:[%s557] sm:$0x1]
  %v559 = vpack.c.bf16 %v534, %v534
  %561 = vrot.lane.b32.xlu0 %v559, 32
  %v562 = vpop.permute.xlu0 %561
  %v564 = vsel %vm53, %v562, 0
  %566 = vmatpush.bf16.msra.mxu0 0
  %567 = vmatpush.bf16.msra.mxu0 0
  %568 = vmatpush.bf16.msra.mxu0 0
  %569 = vmatpush.bf16.msra.mxu0 0
  %570 = vmatpush.bf16.msra.mxu0 0
  %571 = vmatpush.bf16.msra.mxu0 0
  %572 = vmatpush.bf16.msra.mxu0 %v50
  %573 = vmatpush.bf16.msra.mxu0 %v49
  %574 = vmatmul.bf16.gmra.mxu0 %v564
  %v575 = vpop.f32.mrf.mxu0
  %v576 = vadd.f32 0.0, %v575
  %v577 = vpop.f32.mrf.mxu0
  %578 = vdwg.mxu0
  %v580 = vsel %vm53, %v558, 0
  %582 = vmatpush.bf16.msra.mxu0 0
  %583 = vmatpush.bf16.msra.mxu0 0
  %584 = vmatpush.bf16.msra.mxu0 0
  %585 = vmatpush.bf16.msra.mxu0 0
  %586 = vmatpush.bf16.msra.mxu0 0
  %587 = vmatpush.bf16.msra.mxu0 0
  %588 = vmatpush.bf16.msra.mxu0 %v79
  %589 = vmatpush.bf16.msra.mxu0 %v78
  %590 = vmatmul.bf16.gmra.mxu0 %v580
  %v591 = vpop.f32.mrf.mxu0
  %v592 = vadd.f32 %v576, %v591
  %v593 = vpop.f32.mrf.mxu0
  %594 = vdwg.mxu0
  %v595 = vadd.f32 %v592, %v99
  %v596 = vxor.u32 %v595, 2147483648
  %v597 = vmul.f32 %v596, 1.442695
  %v598 = vpow.pop %v597
  %v599 = vadd.f32 %v598, 1.0
  %v600 = vrcp.pop %v599
  %v601 = vmul.f32 %v599, %v600
  %v602 = vsub.f32 1.0, %v601
  %v603 = vmul.f32 %v600, %v602
  %v604 = vadd.f32 %v600, %v603
  %vm605 = vweird.f32 %v599
  %vm606 = vweird.f32 %v600
  %vm607 = vmor %vm605, %vm606
  %v608 = vsel %vm607, %v600, %v604
  %v609 = vand.u32 2147483647, %v599
  %vm610 = vcmp.eq.f32.partialorder %v609, 8.507059e+37
  %v611 = vand.u32 %v599, 2147483648
  %v612 = vor.u32 1.1754944e-38, %v611
  %v613 = vsel %vm610, %v612, %v608
  %v614 = vmul.f32 1.0, %v613
  %v615 = vtanh.pop %v595
  %v616 = vmul.f32 %v614, %v528
  %618 = vrot.lane.b32.xlu0 %v615, 64
  %v619 = vpop.permute.xlu0 %618
  %v621 = vmul.f32 %v614, %v619
  %623 = vrot.lane.b32.xlu0 %v621, 32
  %v624 = vpop.permute.xlu0 %623
  %v626 = vadd.f32 %v616, %v624
  %v627 = vtanh.pop %v626
  %629 = vrot.lane.b32.xlu0 %v627, 64
  %v630 = vpop.permute.xlu0 %629
  %v632 = vmul.f32 %v614, %v630
  %s633 = scalar_lea.vmem %s4, 5
  %v634 = vld [vmem:[%s633] sm:$0x1]
  %v635 = vunpack.c.l.bf16 %v634
  %637 = vst [vmem:[#allocation1] ss:$4 sm:$0xff] %v635
  %v638 = vld.sshfl [vmem:[#allocation1] sm:$0xff pattern:$0x73625140]
  %639 = vrot.lane.b32.xlu0 %v638, 96
  %v640 = vpop.permute.xlu0 %639
  %v642 = vadd.f32 %v632, %v640
  %v643 = vpack.c.bf16 %v642, %v642
  %v645 = vrot.slane %v643, 3
  %v648 = vsel %vm155, %v643, %v645
  %650 = vrot.lane.b32.xlu0 %v648, 32
  %v651 = vpop.permute.xlu0 %650
  %s653 = scalar_lea.vmem %s5, 5
  %654 = vst.msk [vmem:[%s653] sm:$0x1] %vm163, %v651
  %s655 = scalar_lea.vmem %s0, 6
  %v656 = vld [vmem:[%s655] sm:$0x1]
  %v657 = vpack.c.bf16 %v632, %v632
  %659 = vrot.lane.b32.xlu0 %v657, 32
  %v660 = vpop.permute.xlu0 %659
  %v662 = vsel %vm53, %v660, 0
  %664 = vmatpush.bf16.msra.mxu0 0
  %665 = vmatpush.bf16.msra.mxu0 0
  %666 = vmatpush.bf16.msra.mxu0 0
  %667 = vmatpush.bf16.msra.mxu0 0
  %668 = vmatpush.bf16.msra.mxu0 0
  %669 = vmatpush.bf16.msra.mxu0 0
  %670 = vmatpush.bf16.msra.mxu0 %v50
  %671 = vmatpush.bf16.msra.mxu0 %v49
  %672 = vmatmul.bf16.gmra.mxu0 %v662
  %v673 = vpop.f32.mrf.mxu0
  %v674 = vadd.f32 0.0, %v673
  %v675 = vpop.f32.mrf.mxu0
  %676 = vdwg.mxu0
  %v678 = vsel %vm53, %v656, 0
  %680 = vmatpush.bf16.msra.mxu0 0
  %681 = vmatpush.bf16.msra.mxu0 0
  %682 = vmatpush.bf16.msra.mxu0 0
  %683 = vmatpush.bf16.msra.mxu0 0
  %684 = vmatpush.bf16.msra.mxu0 0
  %685 = vmatpush.bf16.msra.mxu0 0
  %686 = vmatpush.bf16.msra.mxu0 %v79
  %687 = vmatpush.bf16.msra.mxu0 %v78
  %688 = vmatmul.bf16.gmra.mxu0 %v678
  %v689 = vpop.f32.mrf.mxu0
  %v690 = vadd.f32 %v674, %v689
  %v691 = vpop.f32.mrf.mxu0
  %692 = vdwg.mxu0
  %v693 = vadd.f32 %v690, %v99
  %v694 = vxor.u32 %v693, 2147483648
  %v695 = vmul.f32 %v694, 1.442695
  %v696 = vpow.pop %v695
  %v697 = vadd.f32 %v696, 1.0
  %v698 = vrcp.pop %v697
  %v699 = vmul.f32 %v697, %v698
  %v700 = vsub.f32 1.0, %v699
  %v701 = vmul.f32 %v698, %v700
  %v702 = vadd.f32 %v698, %v701
  %vm703 = vweird.f32 %v697
  %vm704 = vweird.f32 %v698
  %vm705 = vmor %vm703, %vm704
  %v706 = vsel %vm705, %v698, %v702
  %v707 = vand.u32 2147483647, %v697
  %vm708 = vcmp.eq.f32.partialorder %v707, 8.507059e+37
  %v709 = vand.u32 %v697, 2147483648
  %v710 = vor.u32 1.1754944e-38, %v709
  %v711 = vsel %vm708, %v710, %v706
  %v712 = vmul.f32 1.0, %v711
  %v713 = vtanh.pop %v693
  %v714 = vmul.f32 %v712, %v626
  %716 = vrot.lane.b32.xlu0 %v713, 64
  %v717 = vpop.permute.xlu0 %716
  %v719 = vmul.f32 %v712, %v717
  %721 = vrot.lane.b32.xlu0 %v719, 32
  %v722 = vpop.permute.xlu0 %721
  %v724 = vadd.f32 %v714, %v722
  %v725 = vtanh.pop %v724
  %727 = vrot.lane.b32.xlu0 %v725, 64
  %v728 = vpop.permute.xlu0 %727
  %v730 = vmul.f32 %v712, %v728
  %s731 = scalar_lea.vmem %s4, 6
  %v732 = vld [vmem:[%s731] sm:$0x1]
  %v733 = vunpack.c.l.bf16 %v732
  %735 = vst [vmem:[#allocation1] ss:$4 sm:$0xff] %v733
  %v736 = vld.sshfl [vmem:[#allocation1] sm:$0xff pattern:$0x73625140]
  %737 = vrot.lane.b32.xlu0 %v736, 96
  %v738 = vpop.permute.xlu0 %737
  %v740 = vadd.f32 %v730, %v738
  %v741 = vpack.c.bf16 %v740, %v740
  %v743 = vrot.slane %v741, 3
  %v746 = vsel %vm155, %v741, %v743
  %748 = vrot.lane.b32.xlu0 %v746, 32
  %v749 = vpop.permute.xlu0 %748
  %s751 = scalar_lea.vmem %s5, 6
  %752 = vst.msk [vmem:[%s751] sm:$0x1] %vm163, %v749
  %s753 = scalar_lea.vmem %s0, 7
  %v754 = vld [vmem:[%s753] sm:$0x1]
  %v755 = vpack.c.bf16 %v730, %v730
  %757 = vrot.lane.b32.xlu0 %v755, 32
  %v758 = vpop.permute.xlu0 %757
  %v760 = vsel %vm53, %v758, 0
  %762 = vmatpush.bf16.msra.mxu0 0
  %763 = vmatpush.bf16.msra.mxu0 0
  %764 = vmatpush.bf16.msra.mxu0 0
  %765 = vmatpush.bf16.msra.mxu0 0
  %766 = vmatpush.bf16.msra.mxu0 0
  %767 = vmatpush.bf16.msra.mxu0 0
  %768 = vmatpush.bf16.msra.mxu0 %v50
  %769 = vmatpush.bf16.msra.mxu0 %v49
  %770 = vmatmul.bf16.gmra.mxu0 %v760
  %v771 = vpop.f32.mrf.mxu0
  %v772 = vadd.f32 0.0, %v771
  %v773 = vpop.f32.mrf.mxu0
  %774 = vdwg.mxu0
  %v776 = vsel %vm53, %v754, 0
  %778 = vmatpush.bf16.msra.mxu0 0
  %779 = vmatpush.bf16.msra.mxu0 0
  %780 = vmatpush.bf16.msra.mxu0 0
  %781 = vmatpush.bf16.msra.mxu0 0
  %782 = vmatpush.bf16.msra.mxu0 0
  %783 = vmatpush.bf16.msra.mxu0 0
  %784 = vmatpush.bf16.msra.mxu0 %v79
  %785 = vmatpush.bf16.msra.mxu0 %v78
  %786 = vmatmul.bf16.gmra.mxu0 %v776
  %v787 = vpop.f32.mrf.mxu0
  %v788 = vadd.f32 %v772, %v787
  %v789 = vpop.f32.mrf.mxu0
  %790 = vdwg.mxu0
  %v791 = vadd.f32 %v788, %v99
  %v792 = vxor.u32 %v791, 2147483648
  %v793 = vmul.f32 %v792, 1.442695
  %v794 = vpow.pop %v793
  %v795 = vadd.f32 %v794, 1.0
  %v796 = vrcp.pop %v795
  %v797 = vmul.f32 %v795, %v796
  %v798 = vsub.f32 1.0, %v797
  %v799 = vmul.f32 %v796, %v798
  %v800 = vadd.f32 %v796, %v799
  %vm801 = vweird.f32 %v795
  %vm802 = vweird.f32 %v796
  %vm803 = vmor %vm801, %vm802
  %v804 = vsel %vm803, %v796, %v800
  %v805 = vand.u32 2147483647, %v795
  %vm806 = vcmp.eq.f32.partialorder %v805, 8.507059e+37
  %v807 = vand.u32 %v795, 2147483648
  %v808 = vor.u32 1.1754944e-38, %v807
  %v809 = vsel %vm806, %v808, %v804
  %v810 = vmul.f32 1.0, %v809
  %v811 = vtanh.pop %v791
  %v812 = vmul.f32 %v810, %v724
  %814 = vrot.lane.b32.xlu0 %v811, 64
  %v815 = vpop.permute.xlu0 %814
  %v817 = vmul.f32 %v810, %v815
  %819 = vrot.lane.b32.xlu0 %v817, 32
  %v820 = vpop.permute.xlu0 %819
  %v822 = vadd.f32 %v812, %v820
  %v823 = vtanh.pop %v822
  %825 = vrot.lane.b32.xlu0 %v823, 64
  %v826 = vpop.permute.xlu0 %825
  %v828 = vmul.f32 %v810, %v826
  %s829 = scalar_lea.vmem %s4, 7
  %v830 = vld [vmem:[%s829] sm:$0x1]
  %v831 = vunpack.c.l.bf16 %v830
  %833 = vst [vmem:[#allocation1] ss:$4 sm:$0xff] %v831
  %v834 = vld.sshfl [vmem:[#allocation1] sm:$0xff pattern:$0x73625140]
  %835 = vrot.lane.b32.xlu0 %v834, 96
  %v836 = vpop.permute.xlu0 %835
  %v838 = vadd.f32 %v828, %v836
  %v839 = vpack.c.bf16 %v838, %v838
  %v841 = vrot.slane %v839, 3
  %v844 = vsel %vm155, %v839, %v841
  %846 = vrot.lane.b32.xlu0 %v844, 32
  %v847 = vpop.permute.xlu0 %846
  %s849 = scalar_lea.vmem %s5, 7
  %850 = vst.msk [vmem:[%s849] sm:$0x1] %vm163, %v847
  %852 = vrot.lane.b32.xlu0 %v828, 32
  %v853 = vpop.permute.xlu0 %852
  %vm855 = vcmask 254976
  %856 = vst.msk [vmem:[#allocation2] sm:$0x3] %vm855, %v853
  %858 = vrot.lane.b32.xlu0 %v822, 96
  %v859 = vpop.permute.xlu0 %858
  %861 = vst.msk [vmem:[#allocation3] sm:$0x3] %vm855, %v859
  // Predicated region
  $region26: #{_encoder_forward_impl.6} parent=0 // pred_check
    _
  $region27: #{_encoder_forward_impl.6} parent=0 // pred_check_branch
    %863 = sbr.rel (0) target = $region29
  $region28: #{_encoder_forward_impl.6} parent=0 // pred_region
    _
  $region29: #{_encoder_forward_impl.6} parent=0 // pred_fallthru
    _
  // Predicated region
  $region30: #{_encoder_forward_impl.6} parent=0 // pred_check
    _
  $region31: #{_encoder_forward_impl.6} parent=0 // pred_check_branch
    %865 = sbr.rel (0) target = $region33
  $region32: #{_encoder_forward_impl.6} parent=0 // pred_region
    _
  $region33: #{_encoder_forward_impl.6} parent=0 // pred_fallthru
    _

// kernel: _encoder_forward_impl.4
$region0: #{_encoder_forward_impl.4}
  #allocation0 [shape = 'u32[]', space=smem, size = 0x4, offset = 0x4, fixed_abs, tag = 'smem constant byte address 0x4 - core index']
  #allocation1 [shape = 'u32[72,128]{1,0:T(1,128)}', space=vmem, size = 0x9000, scoped, tag = 'internal scratch']
  #allocation2 [shape = 'f32[2,32]{1,0:T(2,128)}', space=vmem, size = 0x400, scoped, tag = 'scratch operand']
  #allocation3 [shape = 'f32[2,32]{1,0:T(2,128)}', space=vmem, size = 0x400, scoped, tag = 'scratch operand']
  %s0 = inlined_call_operand.vmem [shape: bf16[8,2,32], index: 0, kind: input, shape index: {}]
  %s1 = inlined_call_operand.vmem [shape: bf16[2,32,128], index: 1, kind: input, shape index: {}]
  %s2 = inlined_call_operand.vmem [shape: bf16[2,32,128], index: 2, kind: input, shape index: {}]
  %s3 = inlined_call_operand.vmem [shape: f32[2,1,128], index: 3, kind: input, shape index: {}]
  %s4 = inlined_call_operand.vmem [shape: s32[2,1], index: 4, kind: input, shape index: {}]
  %s5 = inlined_call_operand.vmem [shape: bf16[2,8,2,32], index: 5, kind: output, shape index: {}]
  %s6 = sld [smem:[#allocation0]]
  $region57: #{_encoder_forward_impl.4} parent=0
    _
  %s8 = ssub.s32 1, %s6
  %s9 = scalar_select 0, %s8, %s6
  loop: start=0, step=1, limit=4
  $region2: #{_encoder_forward_impl.4} parent=0 // loop_pre_header
    _
  $region3: #{_encoder_forward_impl.4} parent=0 // loop_header
    %s11 = sphi 0, %s15
    %p12 = scmp.ge.s32.totalorder %s11, 4
    %s18 = sphi 0, %s30
    %s19 = sphi 0, %s26
    %s20 = sphi 0, %s18
    %s21 = sphi 0, %s19
    %s22 = sphi 0, %s20
    %s23 = sphi 0, %s21
    %s41 = sphi 0, %s43
    %s44 = sphi 0, %s41
    %s45 = sphi 0, %s44
    %s61 = sphi 0, %s45
    %s67 = sphi 0, %s69
    %s70 = sphi 0, %s67
    %s71 = sphi 0, %s70
    %s87 = sphi 0, %s71
    %s93 = sphi 0, %s95
    %s96 = sphi 0, %s93
    %s97 = sphi 0, %s96
    %s113 = sphi 0, %s97
    %s119 = sphi 0, %s121
    %s122 = sphi 0, %s119
    %s123 = sphi 0, %s122
    %s139 = sphi 0, %s123
    %s143 = sphi 0, %s143
    %s145 = sphi 0, %s143
    %s146 = sphi 0, %s145
    %s160 = sphi 0, %s146
    %s176 = sphi 0, %s178
    %s179 = sphi 0, %s176
    %s180 = sphi 0, %s179
    %s196 = sphi 0, %s180
  $region4: #{_encoder_forward_impl.4} parent=0 // loop_header_branch
    %14 = sbr.rel (%p12) target = $region8
  $region5: #{_encoder_forward_impl.4} parent=0 // loop_body
    %s16 = ssub.s32 %s11, 1
    %s17 = ssub.s32 %s11, 2
    %s24 = sadd.s32 1, %s19
    %p25 = scmp.ge.s32.totalorder %s24, 1
    %s26 = scalar_select %p25, 0, %s24
    %s27 = sadd.s32 1, %s18
    %s28 = scalar_select %p25, %s27, %s18
    %p29 = scmp.ge.s32.totalorder %s28, 2
    %s30 = scalar_select %p29, 0, %s28
    %s31 = smul.u32 %s19, 2
    %s32 = ssub.s32 0, %s31
    %s33 = smul.u32 %s18, %s32
    %s34 = sadd.s32 %s19, %s33
    %s35 = smul.u32 %s26, 2
    %s36 = ssub.s32 0, %s35
    %s37 = smul.u32 %s30, %s36
    %s38 = sadd.s32 %s26, %s37
    %s39 = ssub.s32 %s34, %s38
    %p40 = scmp.eq.s32.totalorder %s39, 0
    %s42 = sadd.s32 %s41, 1
    %s43 = scalar_select %p40, %s41, %s42
    %p46 = pneg %p40
    %p47 = scmp.eq.s32.totalorder %s11, 1
    %p48 = por %p46, %p47
    %p49 = scmp.ne.s32.totalorder %s41, %s44
    %p50 = scmp.eq.s32.totalorder %s11, 0
    %p51 = por %p49, %p50
    %p52 = scmp.ne.s32.totalorder %s41, %s44
    %p53 = scmp.eq.s32.totalorder %s16, 1
    %p54 = por %p52, %p53
    %p55 = scmp.ne.s32.totalorder %s44, %s45
    %p56 = scmp.eq.s32.totalorder %s16, 0
    %p57 = por %p55, %p56
    %p58 = scmp.ne.s32.totalorder %s44, %s45
    %p59 = scmp.eq.s32.totalorder %s17, 1
    %p60 = por %p58, %p59
    %p62 = scmp.ne.s32.totalorder %s45, %s61
    %p63 = scmp.eq.s32.totalorder %s17, 0
    %p64 = por %p62, %p63
    %s65 = ssub.s32 %s18, %s30
    %p66 = scmp.eq.s32.totalorder %s65, 0
    %s68 = sadd.s32 %s67, 1
    %s69 = scalar_select %p66, %s67, %s68
    %p72 = pneg %p66
    %p73 = scmp.eq.s32.totalorder %s11, 1
    %p74 = por %p72, %p73
    %p75 = scmp.ne.s32.totalorder %s67, %s70
    %p76 = scmp.eq.s32.totalorder %s11, 0
    %p77 = por %p75, %p76
    %p78 = scmp.ne.s32.totalorder %s67, %s70
    %p79 = scmp.eq.s32.totalorder %s16, 1
    %p80 = por %p78, %p79
    %p81 = scmp.ne.s32.totalorder %s70, %s71
    %p82 = scmp.eq.s32.totalorder %s16, 0
    %p83 = por %p81, %p82
    %p84 = scmp.ne.s32.totalorder %s70, %s71
    %p85 = scmp.eq.s32.totalorder %s17, 1
    %p86 = por %p84, %p85
    %p88 = scmp.ne.s32.totalorder %s71, %s87
    %p89 = scmp.eq.s32.totalorder %s17, 0
    %p90 = por %p88, %p89
    %s91 = ssub.s32 %s18, %s30
    %p92 = scmp.eq.s32.totalorder %s91, 0
    %s94 = sadd.s32 %s93, 1
    %s95 = scalar_select %p92, %s93, %s94
    %p98 = pneg %p92
    %p99 = scmp.eq.s32.totalorder %s11, 1
    %p100 = por %p98, %p99
    %p101 = scmp.ne.s32.totalorder %s93, %s96
    %p102 = scmp.eq.s32.totalorder %s11, 0
    %p103 = por %p101, %p102
    %p104 = scmp.ne.s32.totalorder %s93, %s96
    %p105 = scmp.eq.s32.totalorder %s16, 1
    %p106 = por %p104, %p105
    %p107 = scmp.ne.s32.totalorder %s96, %s97
    %p108 = scmp.eq.s32.totalorder %s16, 0
    %p109 = por %p107, %p108
    %p110 = scmp.ne.s32.totalorder %s96, %s97
    %p111 = scmp.eq.s32.totalorder %s17, 1
    %p112 = por %p110, %p111
    %p114 = scmp.ne.s32.totalorder %s97, %s113
    %p115 = scmp.eq.s32.totalorder %s17, 0
    %p116 = por %p114, %p115
    %s117 = ssub.s32 %s18, %s30
    %p118 = scmp.eq.s32.totalorder %s117, 0
    %s120 = sadd.s32 %s119, 1
    %s121 = scalar_select %p118, %s119, %s120
    %p124 = pneg %p118
    %p125 = scmp.eq.s32.totalorder %s11, 1
    %p126 = por %p124, %p125
    %p127 = scmp.ne.s32.totalorder %s119, %s122
    %p128 = scmp.eq.s32.totalorder %s11, 0
    %p129 = por %p127, %p128
    %p130 = scmp.ne.s32.totalorder %s119, %s122
    %p131 = scmp.eq.s32.totalorder %s16, 1
    %p132 = por %p130, %p131
    %p133 = scmp.ne.s32.totalorder %s122, %s123
    %p134 = scmp.eq.s32.totalorder %s16, 0
    %p135 = por %p133, %p134
    %p136 = scmp.ne.s32.totalorder %s122, %s123
    %p137 = scmp.eq.s32.totalorder %s17, 1
    %p138 = por %p136, %p137
    %p140 = scmp.ne.s32.totalorder %s123, %s139
    %p141 = scmp.eq.s32.totalorder %s17, 0
    %p142 = por %p140, %p141
    %s144 = sadd.s32 %s143, 1
    %p147 = scmp.eq.s32.totalorder %s11, 1
    %p148 = scmp.ne.s32.totalorder %s143, %s145
    %p149 = scmp.eq.s32.totalorder %s11, 0
    %p150 = por %p148, %p149
    %p151 = scmp.ne.s32.totalorder %s143, %s145
    %p152 = scmp.eq.s32.totalorder %s16, 1
    %p153 = por %p151, %p152
    %p154 = scmp.ne.s32.totalorder %s145, %s146
    %p155 = scmp.eq.s32.totalorder %s16, 0
    %p156 = por %p154, %p155
    %p157 = scmp.ne.s32.totalorder %s145, %s146
    %p158 = scmp.eq.s32.totalorder %s17, 1
    %p159 = por %p157, %p158
    %p161 = scmp.ne.s32.totalorder %s146, %s160
    %p162 = scmp.eq.s32.totalorder %s17, 0
    %p163 = por %p161, %p162
    %s164 = smul.u32 %s19, 2
    %s165 = ssub.s32 0, %s164
    %s166 = smul.u32 %s18, %s165
    %s167 = sadd.s32 %s19, %s166
    %s168 = smul.u32 %s26, 2
    %s169 = ssub.s32 0, %s168
    %s170 = smul.u32 %s30, %s169
    %s171 = sadd.s32 %s26, %s170
    %s172 = ssub.s32 %s18, %s30
    %s173 = ssub.s32 %s167, %s171
    %s174 = sor.u32 %s172, %s173
    %p175 = scmp.eq.s32.totalorder %s174, 0
    %s177 = sadd.s32 %s176, 1
    %s178 = scalar_select %p175, %s176, %s177
    %p181 = pneg %p175
    %p182 = scmp.eq.s32.totalorder %s11, 1
    %p183 = por %p181, %p182
    %p184 = scmp.ne.s32.totalorder %s176, %s179
    %p185 = scmp.eq.s32.totalorder %s11, 0
    %p186 = por %p184, %p185
    %p187 = scmp.ne.s32.totalorder %s176, %s179
    %p188 = scmp.eq.s32.totalorder %s16, 1
    %p189 = por %p187, %p188
    %p190 = scmp.ne.s32.totalorder %s179, %s180
    %p191 = scmp.eq.s32.totalorder %s16, 0
    %p192 = por %p190, %p191
    %p193 = scmp.ne.s32.totalorder %s179, %s180
    %p194 = scmp.eq.s32.totalorder %s17, 1
    %p195 = por %p193, %p194
    %p197 = scmp.ne.s32.totalorder %s180, %s196
    %p198 = scmp.eq.s32.totalorder %s17, 0
    %p199 = por %p197, %p198
    %p200 = scmp.le.s32.totalorder 1, %s11
    %p201 = scmp.lt.s32.totalorder %s11, 3
    %p202 = pnand %p200, %p201
    %p203 = pneg %p202
    // Predicated region
    $region9: #{_encoder_forward_impl.4} parent=5 // pred_check
      _
    $region10: #{_encoder_forward_impl.4} parent=5 // pred_check_branch
      %205 = sbr.rel (%p202) target = $region12
    $region11: #{_encoder_forward_impl.4} parent=5 // pred_region
      %s206 = ssub.s32 %s11, 1
      // Predicated region
      $region13: #{_encoder_forward_impl.4} parent=11 // pred_check
        %p207 = pneg %p83
      $region14: #{_encoder_forward_impl.4} parent=11 // pred_check_branch
        %209 = sbr.rel (%p207) target = $region16
      $region15: #{_encoder_forward_impl.4} parent=11 // pred_region
        %p210 = scmp.lt.s32.totalorder %s20, 1
        %s211 = scalar_select %p210, %s20, 1
        %s212 = smul.addr %s211, 4
        %s213 = smul.addr %s212, 4
        %s214 = scalar_lea.vmem %s1, %s213
      $region16: #{_encoder_forward_impl.4} parent=11 // pred_fallthru
        _
      // Predicated region
      $region17: #{_encoder_forward_impl.4} parent=11 // pred_check
        %p215 = pneg %p109
      $region18: #{_encoder_forward_impl.4} parent=11 // pred_check_branch
        %217 = sbr.rel (%p215) target = $region20
      $region19: #{_encoder_forward_impl.4} parent=11 // pred_region
        %p218 = scmp.lt.s32.totalorder %s20, 1
        %s219 = scalar_select %p218, %s20, 1
        %s220 = smul.addr %s219, 4
        %s221 = smul.addr %s220, 4
        %s222 = scalar_lea.vmem %s2, %s221
      $region20: #{_encoder_forward_impl.4} parent=11 // pred_fallthru
        _
      // Predicated region
      $region21: #{_encoder_forward_impl.4} parent=11 // pred_check
        %p223 = pneg %p135
      $region22: #{_encoder_forward_impl.4} parent=11 // pred_check_branch
        %225 = sbr.rel (%p223) target = $region24
      $region23: #{_encoder_forward_impl.4} parent=11 // pred_region
        %p226 = scmp.lt.s32.totalorder %s20, 1
        %s227 = scalar_select %p226, %s20, 1
        %s228 = scalar_lea.vmem %s3, %s227
      $region24: #{_encoder_forward_impl.4} parent=11 // pred_fallthru
        _
      // Predicated region
      $region25: #{_encoder_forward_impl.4} parent=11 // pred_check
        %p229 = pneg %p156
      $region26: #{_encoder_forward_impl.4} parent=11 // pred_check_branch
        %231 = sbr.rel (%p229) target = $region28
      $region27: #{_encoder_forward_impl.4} parent=11 // pred_region
        _
      $region28: #{_encoder_forward_impl.4} parent=11 // pred_fallthru
        _
    $region12: #{_encoder_forward_impl.4} parent=5 // pred_fallthru
      _
    %p232 = scmp.lt.s32.totalorder %s11, 2
    // Predicated region
    $region29: #{_encoder_forward_impl.4} parent=5 // pred_check
      %p233 = pneg %p232
    $region30: #{_encoder_forward_impl.4} parent=5 // pred_check_branch
      %235 = sbr.rel (%p233) target = $region32
    $region31: #{_encoder_forward_impl.4} parent=5 // pred_region
      // Predicated region
      $region33: #{_encoder_forward_impl.4} parent=31 // pred_check
        %p236 = pneg %p51
      $region34: #{_encoder_forward_impl.4} parent=31 // pred_check_branch
        %238 = sbr.rel (%p236) target = $region36
      $region35: #{_encoder_forward_impl.4} parent=31 // pred_region
        %s239 = smul.u32 %s19, 2
        %s240 = ssub.s32 0, %s239
        %s241 = smul.u32 %s18, %s240
        %s242 = sadd.s32 %s19, %s241
        %s243 = smul.u32 8, %s242
        %p244 = scmp.lt.s32.totalorder %s243, 7
        %s245 = scalar_select %p244, %s243, 7
        %s246 = scalar_lea.vmem %s0, %s245
        %s247 = smul.u32 %s19, 2
        %s248 = ssub.s32 0, %s247
        %s249 = smul.u32 %s18, %s248
        %s250 = sadd.s32 %s19, %s249
        %s251 = smul.u32 8, %s250
      $region36: #{_encoder_forward_impl.4} parent=31 // pred_fallthru
        _
    $region32: #{_encoder_forward_impl.4} parent=5 // pred_fallthru
      _
    %p252 = scmp.le.s32.totalorder 1, %s11
    %p253 = scmp.lt.s32.totalorder %s11, 3
    %p254 = pnand %p252, %p253
    %p255 = pneg %p254
    // Predicated region
    $region37: #{_encoder_forward_impl.4} parent=5 // pred_check
      _
    $region38: #{_encoder_forward_impl.4} parent=5 // pred_check_branch
      %257 = sbr.rel (%p254) target = $region40
    $region39: #{_encoder_forward_impl.4} parent=5 // pred_region
      %s258 = ssub.s32 %s11, 1
      %s259 = smul.u32 %s21, 2
      %s260 = ssub.s32 0, %s259
      %s261 = smul.u32 %s20, %s260
      %s262 = sadd.s32 %s21, %s261
      %s263 = smul.u32 8, %s262
      %p264 = scmp.lt.s32.totalorder %s263, 7
      %s265 = scalar_select %p264, %s263, 7
      %s266 = scalar_lea.vmem %s0, %s265
      %p267 = pneg %p57
      %p268 = pneg %p54
      %p269 = scmp.lt.s32.totalorder %s20, 1
      %s270 = scalar_select %p269, %s20, 1
      %s271 = smul.addr %s270, 4
      %s272 = smul.addr %s271, 4
      %s273 = scalar_lea.vmem %s1, %s272
      %p274 = pneg %p83
      %p275 = pneg %p80
      %p276 = scmp.lt.s32.totalorder %s20, 1
      %s277 = scalar_select %p276, %s20, 1
      %s278 = smul.addr %s277, 4
      %s279 = smul.addr %s278, 4
      %s280 = scalar_lea.vmem %s2, %s279
      %p281 = pneg %p109
      %p282 = pneg %p106
      %p283 = scmp.lt.s32.totalorder %s20, 1
      %s284 = scalar_select %p283, %s20, 1
      %s285 = scalar_lea.vmem %s3, %s284
      %p286 = pneg %p135
      %p287 = pneg %p132
      %p288 = pneg %p156
      %p289 = pneg %p153
      %p290 = pneg %p192
      %p291 = pneg %p189
      %s292 = smul.u32 %s21, 2
      %s293 = ssub.s32 0, %s292
      %s294 = smul.u32 %s20, %s293
      %s295 = sadd.s32 %s21, %s294
      %s296 = smul.u32 8, %s295
      %p297 = scmp.lt.s32.totalorder %s20, 1
      %s298 = scalar_select %p297, %s20, 1
      %p299 = scmp.lt.s32.totalorder %s296, 7
      %s300 = scalar_select %p299, %s296, 7
      %s301 = smul.addr %s298, 8
      %s302 = sadd.s32 %s300, %s301
      %s303 = scalar_lea.vmem %s5, %s302
      %s304 = smul.u32 %s21, 2
      %s305 = ssub.s32 0, %s304
      %s306 = smul.u32 %s20, %s305
      %s307 = sadd.s32 %s21, %s306
      %s308 = smul.u32 8, %s307
      %p309 = scmp.lt.s32.totalorder %s308, 7
      %s310 = scalar_select %p309, %s308, 7
      %s311 = scalar_lea.vmem %s0, %s310
      %s312 = smul.u32 %s21, 2
      %s313 = ssub.s32 0, %s312
      %s314 = smul.u32 %s20, %s313
      %s315 = sadd.s32 %s21, %s314
      %s316 = smul.u32 8, %s315
      %p317 = scmp.lt.s32.totalorder %s20, 1
      %s318 = scalar_select %p317, %s20, 1
      %s319 = smul.addr %s318, 4
      %s320 = smul.addr %s319, 4
      %s321 = scalar_lea.vmem %s1, %s320
      %p322 = scmp.lt.s32.totalorder %s20, 1
      %s323 = scalar_select %p322, %s20, 1
      %s324 = smul.addr %s323, 4
      %s325 = smul.addr %s324, 4
      %s326 = scalar_lea.vmem %s2, %s325
      %p327 = scmp.lt.s32.totalorder %s20, 1
      %s328 = scalar_select %p327, %s20, 1
      %s329 = scalar_lea.vmem %s3, %s328
      %s330 = smul.u32 %s21, 2
      %s331 = ssub.s32 0, %s330
      %s332 = smul.u32 %s20, %s331
      %s333 = sadd.s32 %s21, %s332
      %s334 = smul.u32 8, %s333
      %p335 = scmp.lt.s32.totalorder %s20, 1
      %s336 = scalar_select %p335, %s20, 1
      %p337 = scmp.lt.s32.totalorder %s334, 7
      %s338 = scalar_select %p337, %s334, 7
      %s339 = smul.addr %s336, 8
      %s340 = sadd.s32 %s338, %s339
      %s341 = scalar_lea.vmem %s5, %s340
      %s342 = smul.u32 %s21, 2
      %s343 = ssub.s32 0, %s342
      %s344 = smul.u32 %s20, %s343
      %s345 = sadd.s32 %s21, %s344
      %s346 = smul.u32 8, %s345
      %p348 = scmp.eq.s32.totalorder %s21, 0
      // Predicated region
      $region41: #{_encoder_forward_impl.4} parent=39 // pred_check
        %p349 = pneg %p348
      $region42: #{_encoder_forward_impl.4} parent=39 // pred_check_branch
        %351 = sbr.rel (%p349) target = $region44
      $region43: #{_encoder_forward_impl.4} parent=39 // pred_region
        %vm352 = vcmask 254976
        %353 = vst.msk [vmem:[#allocation2] sm:$0x3] %vm352, 0.0
        %354 = vst.msk [vmem:[#allocation3] sm:$0x3] %vm352, 0.0
      $region44: #{_encoder_forward_impl.4} parent=39 // pred_fallthru
        _
      %v355 = vld [vmem:[%s321] sm:$0xf]
      %v356 = vld [vmem:[%s321 + $0x4] sm:$0xf]
      %v357 = vld [vmem:[%s321 + $0x8] sm:$0xf]
      %v358 = vld [vmem:[%s321 + $0xc] sm:$0xf]
      %v359 = vld [vmem:[%s326] sm:$0xf]
      %v360 = vld [vmem:[%s326 + $0x4] sm:$0xf]
      %v361 = vld [vmem:[%s326 + $0x8] sm:$0xf]
      %v362 = vld [vmem:[%s326 + $0xc] sm:$0xf]
      %v363 = vld [vmem:[%s329] sm:$0x1]
      %v364 = vld [vmem:[%s4] sm:$0x3]
      %s365 = smul.u32 %s21, 2
      %s366 = ssub.s32 0, %s365
      %s367 = smul.u32 %s20, %s366
      %s368 = sadd.s32 %s21, %s367
      %s369 = smul.u32 %s368, 8
      %v370 = vld [vmem:[#allocation2] sm:$0x3]
      %v371 = vld [vmem:[#allocation3] sm:$0x3]
      %s372 = smul.u32 %s20, 7
      %s373 = scalar_lea.vmem %s311, %s372
      %v374 = vld [vmem:[%s373] sm:$0x1]
      %v375 = vpack.c.bf16 %v370, %v370
      %v380 = vunpack.c.l.b16 %v359
      %v381 = vunpack.c.l.b16 %v360
      %v382 = vunpack.c.l.b16 %v361
      %v383 = vunpack.c.l.b16 %v362
      %v384 = vpack.c.b16 %v381, %v380
      %v385 = vpack.c.b16 %v383, %v382
      %vm388 = vcmask 261120
      %v390 = vsel %vm388, %v375, 0
      %392 = vmatpush.bf16.msra.mxu0 0
      %393 = vmatpush.bf16.msra.mxu0 0
      %394 = vmatpush.bf16.msra.mxu0 0
      %395 = vmatpush.bf16.msra.mxu0 0
      %396 = vmatpush.bf16.msra.mxu0 0
      %397 = vmatpush.bf16.msra.mxu0 0
      %398 = vmatpush.bf16.msra.mxu0 %v385
      %399 = vmatpush.bf16.msra.mxu0 %v384
      %400 = vmatmul.bf16.gmra.mxu0 %v390
      %v401 = vpop.f32.mrf.mxu0
      %v402 = vadd.f32 0.0, %v401
      %v403 = vpop.f32.mrf.mxu0
      %404 = vdwg.mxu0
      %v409 = vunpack.c.l.b16 %v355
      %v410 = vunpack.c.l.b16 %v356
      %v411 = vunpack.c.l.b16 %v357
      %v412 = vunpack.c.l.b16 %v358
      %v413 = vpack.c.b16 %v410, %v409
      %v414 = vpack.c.b16 %v412, %v411
      %v418 = vsel %vm388, %v374, 0
      %420 = vmatpush.bf16.msra.mxu0 0
      %421 = vmatpush.bf16.msra.mxu0 0
      %422 = vmatpush.bf16.msra.mxu0 0
      %423 = vmatpush.bf16.msra.mxu0 0
      %424 = vmatpush.bf16.msra.mxu0 0
      %425 = vmatpush.bf16.msra.mxu0 0
      %426 = vmatpush.bf16.msra.mxu0 %v414
      %427 = vmatpush.bf16.msra.mxu0 %v413
      %428 = vmatmul.bf16.gmra.mxu0 %v418
      %v429 = vpop.f32.mrf.mxu0
      %v430 = vadd.f32 %v402, %v429
      %v431 = vpop.f32.mrf.mxu0
      %432 = vdwg.mxu0
      %v434 = vperm.slane %v363, 0
      %v436 = vadd.f32 %v430, %v434
      %v437 = vxor.u32 %v436, 2147483648
      %v438 = vmul.f32 %v437, 1.442695
      %v439 = vpow.pop %v438
      %v440 = vadd.f32 %v439, 1.0
      %v441 = vrcp.pop %v440
      %v442 = vmul.f32 %v440, %v441
      %v443 = vsub.f32 1.0, %v442
      %v444 = vmul.f32 %v441, %v443
      %v445 = vadd.f32 %v441, %v444
      %vm446 = vweird.f32 %v440
      %vm447 = vweird.f32 %v441
      %vm448 = vmor %vm446, %vm447
      %v449 = vsel %vm448, %v441, %v445
      %v450 = vand.u32 2147483647, %v440
      %vm451 = vcmp.eq.f32.partialorder %v450, 8.507059e+37
      %v452 = vand.u32 %v440, 2147483648
      %v453 = vor.u32 1.1754944e-38, %v452
      %v454 = vsel %vm451, %v453, %v449
      %v455 = vmul.f32 1.0, %v454
      %v456 = vtanh.pop %v436
      %458 = vrot.lane.b32.xlu0 %v371, 32
      %v459 = vpop.permute.xlu0 %458
      %v461 = vmul.f32 %v455, %v459
      %463 = vrot.lane.b32.xlu0 %v456, 64
      %v464 = vpop.permute.xlu0 %463
      %v466 = vmul.f32 %v455, %v464
      %468 = vrot.lane.b32.xlu0 %v466, 32
      %v469 = vpop.permute.xlu0 %468
      %v471 = vadd.f32 %v461, %v469
      %v472 = vtanh.pop %v471
      %474 = vrot.lane.b32.xlu0 %v472, 64
      %v475 = vpop.permute.xlu0 %474
      %v477 = vmul.f32 %v455, %v475
      %s478 = sadd.s32 %s369, %s372
      %v479 = vstv %s478
      %vm480 = vcmp.gt.s32.totalorder %v364, %v479
      %v481 = vsel %vm480, 1, 0
      %482 = vset.pattern.permute.xlu0 0
      %483 = vperm.xlu0 %482, %v481
      %v484 = vpop.permute.xlu0 %483
      %vm485 = vcmp.eq.s32.totalorder %v484, 1
      %487 = vrot.lane.b32.xlu0 %v370, 96
      %v488 = vpop.permute.xlu0 %487
      %v490 = vsel %vm485, %v477, %v488
      %v491 = vsel %vm485, %v471, %v459
      %v492 = vsel %vm485, %v477, 0.0
      %v493 = vpack.c.bf16 %v492, %v492
      %v495 = vrot.slane %v493, 3
      %vm496 = vcmask 1040384
      %v499 = vsel %vm496, %v493, %v495
      %501 = vrot.lane.b32.xlu0 %v499, 32
      %v502 = vpop.permute.xlu0 %501
      %s504 = scalar_lea.vmem %s341, %s372
      %vm505 = vcmask 253952
      %506 = vst.msk [vmem:[%s504] sm:$0x1] %vm505, %v502
      %s507 = smul.u32 %s20, 5
      %s508 = sadd.s32 %s507, 1
      %s509 = scalar_lea.vmem %s311, %s508
      %v510 = vld [vmem:[%s509] sm:$0x1]
      %v511 = vpack.c.bf16 %v490, %v490
      %513 = vrot.lane.b32.xlu0 %v511, 32
      %v514 = vpop.permute.xlu0 %513
      %v516 = vsel %vm388, %v514, 0
      %518 = vmatpush.bf16.msra.mxu0 0
      %519 = vmatpush.bf16.msra.mxu0 0
      %520 = vmatpush.bf16.msra.mxu0 0
      %521 = vmatpush.bf16.msra.mxu0 0
      %522 = vmatpush.bf16.msra.mxu0 0
      %523 = vmatpush.bf16.msra.mxu0 0
      %524 = vmatpush.bf16.msra.mxu0 %v385
      %525 = vmatpush.bf16.msra.mxu0 %v384
      %526 = vmatmul.bf16.gmra.mxu0 %v516
      %v527 = vpop.f32.mrf.mxu0
      %v528 = vadd.f32 0.0, %v527
      %v529 = vpop.f32.mrf.mxu0
      %530 = vdwg.mxu0
      %v532 = vsel %vm388, %v510, 0
      %534 = vmatpush.bf16.msra.mxu0 0
      %535 = vmatpush.bf16.msra.mxu0 0
      %536 = vmatpush.bf16.msra.mxu0 0
      %537 = vmatpush.bf16.msra.mxu0 0
      %538 = vmatpush.bf16.msra.mxu0 0
      %539 = vmatpush.bf16.msra.mxu0 0
      %540 = vmatpush.bf16.msra.mxu0 %v414
      %541 = vmatpush.bf16.msra.mxu0 %v413
      %542 = vmatmul.bf16.gmra.mxu0 %v532
      %v543 = vpop.f32.mrf.mxu0
      %v544 = vadd.f32 %v528, %v543
      %v545 = vpop.f32.mrf.mxu0
      %546 = vdwg.mxu0
      %v547 = vadd.f32 %v544, %v434
      %v548 = vxor.u32 %v547, 2147483648
      %v549 = vmul.f32 %v548, 1.442695
      %v550 = vpow.pop %v549
      %v551 = vadd.f32 %v550, 1.0
      %v552 = vrcp.pop %v551
      %v553 = vmul.f32 %v551, %v552
      %v554 = vsub.f32 1.0, %v553
      %v555 = vmul.f32 %v552, %v554
      %v556 = vadd.f32 %v552, %v555
      %vm557 = vweird.f32 %v551
      %vm558 = vweird.f32 %v552
      %vm559 = vmor %vm557, %vm558
      %v560 = vsel %vm559, %v552, %v556
      %v561 = vand.u32 2147483647, %v551
      %vm562 = vcmp.eq.f32.partialorder %v561, 8.507059e+37
      %v563 = vand.u32 %v551, 2147483648
      %v564 = vor.u32 1.1754944e-38, %v563
      %v565 = vsel %vm562, %v564, %v560
      %v566 = vmul.f32 1.0, %v565
      %v567 = vtanh.pop %v547
      %v568 = vmul.f32 %v566, %v491
      %570 = vrot.lane.b32.xlu0 %v567, 64
      %v571 = vpop.permute.xlu0 %570
      %v573 = vmul.f32 %v566, %v571
      %575 = vrot.lane.b32.xlu0 %v573, 32
      %v576 = vpop.permute.xlu0 %575
      %v578 = vadd.f32 %v568, %v576
      %v579 = vtanh.pop %v578
      %581 = vrot.lane.b32.xlu0 %v579, 64
      %v582 = vpop.permute.xlu0 %581
      %v584 = vmul.f32 %v566, %v582
      %s585 = sadd.s32 %s369, %s508
      %v586 = vstv %s585
      %vm587 = vcmp.gt.s32.totalorder %v364, %v586
      %v588 = vsel %vm587, 1, 0
      %589 = vset.pattern.permute.xlu0 0
      %590 = vperm.xlu0 %589, %v588
      %v591 = vpop.permute.xlu0 %590
      %vm592 = vcmp.eq.s32.totalorder %v591, 1
      %v593 = vsel %vm592, %v584, %v490
      %v594 = vsel %vm592, %v578, %v491
      %v595 = vsel %vm592, %v584, 0.0
      %v596 = vpack.c.bf16 %v595, %v595
      %v598 = vrot.slane %v596, 3
      %v601 = vsel %vm496, %v596, %v598
      %603 = vrot.lane.b32.xlu0 %v601, 32
      %v604 = vpop.permute.xlu0 %603
      %s606 = scalar_lea.vmem %s341, %s508
      %607 = vst.msk [vmem:[%s606] sm:$0x1] %vm505, %v604
      %s608 = smul.u32 %s20, 3
      %s609 = sadd.s32 %s608, 2
      %s610 = scalar_lea.vmem %s311, %s609
      %v611 = vld [vmem:[%s610] sm:$0x1]
      %v612 = vpack.c.bf16 %v593, %v593
      %614 = vrot.lane.b32.xlu0 %v612, 32
      %v615 = vpop.permute.xlu0 %614
      %v617 = vsel %vm388, %v615, 0
      %619 = vmatpush.bf16.msra.mxu0 0
      %620 = vmatpush.bf16.msra.mxu0 0
      %621 = vmatpush.bf16.msra.mxu0 0
      %622 = vmatpush.bf16.msra.mxu0 0
      %623 = vmatpush.bf16.msra.mxu0 0
      %624 = vmatpush.bf16.msra.mxu0 0
      %625 = vmatpush.bf16.msra.mxu0 %v385
      %626 = vmatpush.bf16.msra.mxu0 %v384
      %627 = vmatmul.bf16.gmra.mxu0 %v617
      %v628 = vpop.f32.mrf.mxu0
      %v629 = vadd.f32 0.0, %v628
      %v630 = vpop.f32.mrf.mxu0
      %631 = vdwg.mxu0
      %v633 = vsel %vm388, %v611, 0
      %635 = vmatpush.bf16.msra.mxu0 0
      %636 = vmatpush.bf16.msra.mxu0 0
      %637 = vmatpush.bf16.msra.mxu0 0
      %638 = vmatpush.bf16.msra.mxu0 0
      %639 = vmatpush.bf16.msra.mxu0 0
      %640 = vmatpush.bf16.msra.mxu0 0
      %641 = vmatpush.bf16.msra.mxu0 %v414
      %642 = vmatpush.bf16.msra.mxu0 %v413
      %643 = vmatmul.bf16.gmra.mxu0 %v633
      %v644 = vpop.f32.mrf.mxu0
      %v645 = vadd.f32 %v629, %v644
      %v646 = vpop.f32.mrf.mxu0
      %647 = vdwg.mxu0
      %v648 = vadd.f32 %v645, %v434
      %v649 = vxor.u32 %v648, 2147483648
      %v650 = vmul.f32 %v649, 1.442695
      %v651 = vpow.pop %v650
      %v652 = vadd.f32 %v651, 1.0
      %v653 = vrcp.pop %v652
      %v654 = vmul.f32 %v652, %v653
      %v655 = vsub.f32 1.0, %v654
      %v656 = vmul.f32 %v653, %v655
      %v657 = vadd.f32 %v653, %v656
      %vm658 = vweird.f32 %v652
      %vm659 = vweird.f32 %v653
      %vm660 = vmor %vm658, %vm659
      %v661 = vsel %vm660, %v653, %v657
      %v662 = vand.u32 2147483647, %v652
      %vm663 = vcmp.eq.f32.partialorder %v662, 8.507059e+37
      %v664 = vand.u32 %v652, 2147483648
      %v665 = vor.u32 1.1754944e-38, %v664
      %v666 = vsel %vm663, %v665, %v661
      %v667 = vmul.f32 1.0, %v666
      %v668 = vtanh.pop %v648
      %v669 = vmul.f32 %v667, %v594
      %671 = vrot.lane.b32.xlu0 %v668, 64
      %v672 = vpop.permute.xlu0 %671
      %v674 = vmul.f32 %v667, %v672
      %676 = vrot.lane.b32.xlu0 %v674, 32
      %v677 = vpop.permute.xlu0 %676
      %v679 = vadd.f32 %v669, %v677
      %v680 = vtanh.pop %v679
      %682 = vrot.lane.b32.xlu0 %v680, 64
      %v683 = vpop.permute.xlu0 %682
      %v685 = vmul.f32 %v667, %v683
      %s686 = sadd.s32 %s369, %s609
      %v687 = vstv %s686
      %vm688 = vcmp.gt.s32.totalorder %v364, %v687
      %v689 = vsel %vm688, 1, 0
      %690 = vset.pattern.permute.xlu0 0
      %691 = vperm.xlu0 %690, %v689
      %v692 = vpop.permute.xlu0 %691
      %vm693 = vcmp.eq.s32.totalorder %v692, 1
      %v694 = vsel %vm693, %v685, %v593
      %v695 = vsel %vm693, %v679, %v594
      %v696 = vsel %vm693, %v685, 0.0
      %v697 = vpack.c.bf16 %v696, %v696
      %v699 = vrot.slane %v697, 3
      %v702 = vsel %vm496, %v697, %v699
      %704 = vrot.lane.b32.xlu0 %v702, 32
      %v705 = vpop.permute.xlu0 %704
      %s707 = scalar_lea.vmem %s341, %s609
      %708 = vst.msk [vmem:[%s707] sm:$0x1] %vm505, %v705
      %s709 = sadd.s32 %s20, 3
      %s710 = scalar_lea.vmem %s311, %s709
      %v711 = vld [vmem:[%s710] sm:$0x1]
      %v712 = vpack.c.bf16 %v694, %v694
      %714 = vrot.lane.b32.xlu0 %v712, 32
      %v715 = vpop.permute.xlu0 %714
      %v717 = vsel %vm388, %v715, 0
      %719 = vmatpush.bf16.msra.mxu0 0
      %720 = vmatpush.bf16.msra.mxu0 0
      %721 = vmatpush.bf16.msra.mxu0 0
      %722 = vmatpush.bf16.msra.mxu0 0
      %723 = vmatpush.bf16.msra.mxu0 0
      %724 = vmatpush.bf16.msra.mxu0 0
      %725 = vmatpush.bf16.msra.mxu0 %v385
      %726 = vmatpush.bf16.msra.mxu0 %v384
      %727 = vmatmul.bf16.gmra.mxu0 %v717
      %v728 = vpop.f32.mrf.mxu0
      %v729 = vadd.f32 0.0, %v728
      %v730 = vpop.f32.mrf.mxu0
      %731 = vdwg.mxu0
      %v733 = vsel %vm388, %v711, 0
      %735 = vmatpush.bf16.msra.mxu0 0
      %736 = vmatpush.bf16.msra.mxu0 0
      %737 = vmatpush.bf16.msra.mxu0 0
      %738 = vmatpush.bf16.msra.mxu0 0
      %739 = vmatpush.bf16.msra.mxu0 0
      %740 = vmatpush.bf16.msra.mxu0 0
      %741 = vmatpush.bf16.msra.mxu0 %v414
      %742 = vmatpush.bf16.msra.mxu0 %v413
      %743 = vmatmul.bf16.gmra.mxu0 %v733
      %v744 = vpop.f32.mrf.mxu0
      %v745 = vadd.f32 %v729, %v744
      %v746 = vpop.f32.mrf.mxu0
      %747 = vdwg.mxu0
      %v748 = vadd.f32 %v745, %v434
      %v749 = vxor.u32 %v748, 2147483648
      %v750 = vmul.f32 %v749, 1.442695
      %v751 = vpow.pop %v750
      %v752 = vadd.f32 %v751, 1.0
      %v753 = vrcp.pop %v752
      %v754 = vmul.f32 %v752, %v753
      %v755 = vsub.f32 1.0, %v754
      %v756 = vmul.f32 %v753, %v755
      %v757 = vadd.f32 %v753, %v756
      %vm758 = vweird.f32 %v752
      %vm759 = vweird.f32 %v753
      %vm760 = vmor %vm758, %vm759
      %v761 = vsel %vm760, %v753, %v757
      %v762 = vand.u32 2147483647, %v752
      %vm763 = vcmp.eq.f32.partialorder %v762, 8.507059e+37
      %v764 = vand.u32 %v752, 2147483648
      %v765 = vor.u32 1.1754944e-38, %v764
      %v766 = vsel %vm763, %v765, %v761
      %v767 = vmul.f32 1.0, %v766
      %v768 = vtanh.pop %v748
      %v769 = vmul.f32 %v767, %v695
      %771 = vrot.lane.b32.xlu0 %v768, 64
      %v772 = vpop.permute.xlu0 %771
      %v774 = vmul.f32 %v767, %v772
      %776 = vrot.lane.b32.xlu0 %v774, 32
      %v777 = vpop.permute.xlu0 %776
      %v779 = vadd.f32 %v769, %v777
      %v780 = vtanh.pop %v779
      %782 = vrot.lane.b32.xlu0 %v780, 64
      %v783 = vpop.permute.xlu0 %782
      %v785 = vmul.f32 %v767, %v783
      %s786 = sadd.s32 %s369, %s709
      %v787 = vstv %s786
      %vm788 = vcmp.gt.s32.totalorder %v364, %v787
      %v789 = vsel %vm788, 1, 0
      %790 = vset.pattern.permute.xlu0 0
      %791 = vperm.xlu0 %790, %v789
      %v792 = vpop.permute.xlu0 %791
      %vm793 = vcmp.eq.s32.totalorder %v792, 1
      %v794 = vsel %vm793, %v785, %v694
      %v795 = vsel %vm793, %v779, %v695
      %v796 = vsel %vm793, %v785, 0.0
      %v797 = vpack.c.bf16 %v796, %v796
      %v799 = vrot.slane %v797, 3
      %v802 = vsel %vm496, %v797, %v799
      %804 = vrot.lane.b32.xlu0 %v802, 32
      %v805 = vpop.permute.xlu0 %804
      %s807 = scalar_lea.vmem %s341, %s709
      %808 = vst.msk [vmem:[%s807] sm:$0x1] %vm505, %v805
      %s809 = ssub.s32 4, %s20
      %s810 = scalar_lea.vmem %s311, %s809
      %v811 = vld [vmem:[%s810] sm:$0x1]
      %v812 = vpack.c.bf16 %v794, %v794
      %814 = vrot.lane.b32.xlu0 %v812, 32
      %v815 = vpop.permute.xlu0 %814
      %v817 = vsel %vm388, %v815, 0
      %819 = vmatpush.bf16.msra.mxu0 0
      %820 = vmatpush.bf16.msra.mxu0 0
      %821 = vmatpush.bf16.msra.mxu0 0
      %822 = vmatpush.bf16.msra.mxu0 0
      %823 = vmatpush.bf16.msra.mxu0 0
      %824 = vmatpush.bf16.msra.mxu0 0
      %825 = vmatpush.bf16.msra.mxu0 %v385
      %826 = vmatpush.bf16.msra.mxu0 %v384
      %827 = vmatmul.bf16.gmra.mxu0 %v817
      %v828 = vpop.f32.mrf.mxu0
      %v829 = vadd.f32 0.0, %v828
      %v830 = vpop.f32.mrf.mxu0
      %831 = vdwg.mxu0
      %v833 = vsel %vm388, %v811, 0
      %835 = vmatpush.bf16.msra.mxu0 0
      %836 = vmatpush.bf16.msra.mxu0 0
      %837 = vmatpush.bf16.msra.mxu0 0
      %838 = vmatpush.bf16.msra.mxu0 0
      %839 = vmatpush.bf16.msra.mxu0 0
      %840 = vmatpush.bf16.msra.mxu0 0
      %841 = vmatpush.bf16.msra.mxu0 %v414
      %842 = vmatpush.bf16.msra.mxu0 %v413
      %843 = vmatmul.bf16.gmra.mxu0 %v833
      %v844 = vpop.f32.mrf.mxu0
      %v845 = vadd.f32 %v829, %v844
      %v846 = vpop.f32.mrf.mxu0
      %847 = vdwg.mxu0
      %v848 = vadd.f32 %v845, %v434
      %v849 = vxor.u32 %v848, 2147483648
      %v850 = vmul.f32 %v849, 1.442695
      %v851 = vpow.pop %v850
      %v852 = vadd.f32 %v851, 1.0
      %v853 = vrcp.pop %v852
      %v854 = vmul.f32 %v852, %v853
      %v855 = vsub.f32 1.0, %v854
      %v856 = vmul.f32 %v853, %v855
      %v857 = vadd.f32 %v853, %v856
      %vm858 = vweird.f32 %v852
      %vm859 = vweird.f32 %v853
      %vm860 = vmor %vm858, %vm859
      %v861 = vsel %vm860, %v853, %v857
      %v862 = vand.u32 2147483647, %v852
      %vm863 = vcmp.eq.f32.partialorder %v862, 8.507059e+37
      %v864 = vand.u32 %v852, 2147483648
      %v865 = vor.u32 1.1754944e-38, %v864
      %v866 = vsel %vm863, %v865, %v861
      %v867 = vmul.f32 1.0, %v866
      %v868 = vtanh.pop %v848
      %v869 = vmul.f32 %v867, %v795
      %871 = vrot.lane.b32.xlu0 %v868, 64
      %v872 = vpop.permute.xlu0 %871
      %v874 = vmul.f32 %v867, %v872
      %876 = vrot.lane.b32.xlu0 %v874, 32
      %v877 = vpop.permute.xlu0 %876
      %v879 = vadd.f32 %v869, %v877
      %v880 = vtanh.pop %v879
      %882 = vrot.lane.b32.xlu0 %v880, 64
      %v883 = vpop.permute.xlu0 %882
      %v885 = vmul.f32 %v867, %v883
      %s886 = sadd.s32 %s369, %s809
      %v887 = vstv %s886
      %vm888 = vcmp.gt.s32.totalorder %v364, %v887
      %v889 = vsel %vm888, 1, 0
      %890 = vset.pattern.permute.xlu0 0
      %891 = vperm.xlu0 %890, %v889
      %v892 = vpop.permute.xlu0 %891
      %vm893 = vcmp.eq.s32.totalorder %v892, 1
      %v894 = vsel %vm893, %v885, %v794
      %v895 = vsel %vm893, %v879, %v795
      %v896 = vsel %vm893, %v885, 0.0
      %v897 = vpack.c.bf16 %v896, %v896
      %v899 = vrot.slane %v897, 3
      %v902 = vsel %vm496, %v897, %v899
      %904 = vrot.lane.b32.xlu0 %v902, 32
      %v905 = vpop.permute.xlu0 %904
      %s907 = scalar_lea.vmem %s341, %s809
      %908 = vst.msk [vmem:[%s907] sm:$0x1] %vm505, %v905
      %s909 = smul.u32 %s20, 4294967293
      %s910 = sadd.s32 %s909, 5
      %s911 = scalar_lea.vmem %s311, %s910
      %v912 = vld [vmem:[%s911] sm:$0x1]
      %v913 = vpack.c.bf16 %v894, %v894
      %915 = vrot.lane.b32.xlu0 %v913, 32
      %v916 = vpop.permute.xlu0 %915
      %v918 = vsel %vm388, %v916, 0
      %920 = vmatpush.bf16.msra.mxu0 0
      %921 = vmatpush.bf16.msra.mxu0 0
      %922 = vmatpush.bf16.msra.mxu0 0
      %923 = vmatpush.bf16.msra.mxu0 0
      %924 = vmatpush.bf16.msra.mxu0 0
      %925 = vmatpush.bf16.msra.mxu0 0
      %926 = vmatpush.bf16.msra.mxu0 %v385
      %927 = vmatpush.bf16.msra.mxu0 %v384
      %928 = vmatmul.bf16.gmra.mxu0 %v918
      %v929 = vpop.f32.mrf.mxu0
      %v930 = vadd.f32 0.0, %v929
      %v931 = vpop.f32.mrf.mxu0
      %932 = vdwg.mxu0
      %v934 = vsel %vm388, %v912, 0
      %936 = vmatpush.bf16.msra.mxu0 0
      %937 = vmatpush.bf16.msra.mxu0 0
      %938 = vmatpush.bf16.msra.mxu0 0
      %939 = vmatpush.bf16.msra.mxu0 0
      %940 = vmatpush.bf16.msra.mxu0 0
      %941 = vmatpush.bf16.msra.mxu0 0
      %942 = vmatpush.bf16.msra.mxu0 %v414
      %943 = vmatpush.bf16.msra.mxu0 %v413
      %944 = vmatmul.bf16.gmra.mxu0 %v934
      %v945 = vpop.f32.mrf.mxu0
      %v946 = vadd.f32 %v930, %v945
      %v947 = vpop.f32.mrf.mxu0
      %948 = vdwg.mxu0
      %v949 = vadd.f32 %v946, %v434
      %v950 = vxor.u32 %v949, 2147483648
      %v951 = vmul.f32 %v950, 1.442695
      %v952 = vpow.pop %v951
      %v953 = vadd.f32 %v952, 1.0
      %v954 = vrcp.pop %v953
      %v955 = vmul.f32 %v953, %v954
      %v956 = vsub.f32 1.0, %v955
      %v957 = vmul.f32 %v954, %v956
      %v958 = vadd.f32 %v954, %v957
      %vm959 = vweird.f32 %v953
      %vm960 = vweird.f32 %v954
      %vm961 = vmor %vm959, %vm960
      %v962 = vsel %vm961, %v954, %v958
      %v963 = vand.u32 2147483647, %v953
      %vm964 = vcmp.eq.f32.partialorder %v963, 8.507059e+37
      %v965 = vand.u32 %v953, 2147483648
      %v966 = vor.u32 1.1754944e-38, %v965
      %v967 = vsel %vm964, %v966, %v962
      %v968 = vmul.f32 1.0, %v967
      %v969 = vtanh.pop %v949
      %v970 = vmul.f32 %v968, %v895
      %972 = vrot.lane.b32.xlu0 %v969, 64
      %v973 = vpop.permute.xlu0 %972
      %v975 = vmul.f32 %v968, %v973
      %977 = vrot.lane.b32.xlu0 %v975, 32
      %v978 = vpop.permute.xlu0 %977
      %v980 = vadd.f32 %v970, %v978
      %v981 = vtanh.pop %v980
      %983 = vrot.lane.b32.xlu0 %v981, 64
      %v984 = vpop.permute.xlu0 %983
      %v986 = vmul.f32 %v968, %v984
      %s987 = sadd.s32 %s369, %s910
      %v988 = vstv %s987
      %vm989 = vcmp.gt.s32.totalorder %v364, %v988
      %v990 = vsel %vm989, 1, 0
      %991 = vset.pattern.permute.xlu0 0
      %992 = vperm.xlu0 %991, %v990
      %v993 = vpop.permute.xlu0 %992
      %vm994 = vcmp.eq.s32.totalorder %v993, 1
      %v995 = vsel %vm994, %v986, %v894
      %v996 = vsel %vm994, %v980, %v895
      %v997 = vsel %vm994, %v986, 0.0
      %v998 = vpack.c.bf16 %v997, %v997
      %v1000 = vrot.slane %v998, 3
      %v1003 = vsel %vm496, %v998, %v1000
      %1005 = vrot.lane.b32.xlu0 %v1003, 32
      %v1006 = vpop.permute.xlu0 %1005
      %s1008 = scalar_lea.vmem %s341, %s910
      %1009 = vst.msk [vmem:[%s1008] sm:$0x1] %vm505, %v1006
      %s1010 = smul.u32 %s20, 4294967291
      %s1011 = sadd.s32 %s1010, 6
      %s1012 = scalar_lea.vmem %s311, %s1011
      %v1013 = vld [vmem:[%s1012] sm:$0x1]
      %v1014 = vpack.c.bf16 %v995, %v995
      %1016 = vrot.lane.b32.xlu0 %v1014, 32
      %v1017 = vpop.permute.xlu0 %1016
      %v1019 = vsel %vm388, %v1017, 0
      %1021 = vmatpush.bf16.msra.mxu0 0
      %1022 = vmatpush.bf16.msra.mxu0 0
      %1023 = vmatpush.bf16.msra.mxu0 0
      %1024 = vmatpush.bf16.msra.mxu0 0
      %1025 = vmatpush.bf16.msra.mxu0 0
      %1026 = vmatpush.bf16.msra.mxu0 0
      %1027 = vmatpush.bf16.msra.mxu0 %v385
      %1028 = vmatpush.bf16.msra.mxu0 %v384
      %1029 = vmatmul.bf16.gmra.mxu0 %v1019
      %v1030 = vpop.f32.mrf.mxu0
      %v1031 = vadd.f32 0.0, %v1030
      %v1032 = vpop.f32.mrf.mxu0
      %1033 = vdwg.mxu0
      %v1035 = vsel %vm388, %v1013, 0
      %1037 = vmatpush.bf16.msra.mxu0 0
      %1038 = vmatpush.bf16.msra.mxu0 0
      %1039 = vmatpush.bf16.msra.mxu0 0
      %1040 = vmatpush.bf16.msra.mxu0 0
      %1041 = vmatpush.bf16.msra.mxu0 0
      %1042 = vmatpush.bf16.msra.mxu0 0
      %1043 = vmatpush.bf16.msra.mxu0 %v414
      %1044 = vmatpush.bf16.msra.mxu0 %v413
      %1045 = vmatmul.bf16.gmra.mxu0 %v1035
      %v1046 = vpop.f32.mrf.mxu0
      %v1047 = vadd.f32 %v1031, %v1046
      %v1048 = vpop.f32.mrf.mxu0
      %1049 = vdwg.mxu0
      %v1050 = vadd.f32 %v1047, %v434
      %v1051 = vxor.u32 %v1050, 2147483648
      %v1052 = vmul.f32 %v1051, 1.442695
      %v1053 = vpow.pop %v1052
      %v1054 = vadd.f32 %v1053, 1.0
      %v1055 = vrcp.pop %v1054
      %v1056 = vmul.f32 %v1054, %v1055
      %v1057 = vsub.f32 1.0, %v1056
      %v1058 = vmul.f32 %v1055, %v1057
      %v1059 = vadd.f32 %v1055, %v1058
      %vm1060 = vweird.f32 %v1054
      %vm1061 = vweird.f32 %v1055
      %vm1062 = vmor %vm1060, %vm1061
      %v1063 = vsel %vm1062, %v1055, %v1059
      %v1064 = vand.u32 2147483647, %v1054
      %vm1065 = vcmp.eq.f32.partialorder %v1064, 8.507059e+37
      %v1066 = vand.u32 %v1054, 2147483648
      %v1067 = vor.u32 1.1754944e-38, %v1066
      %v1068 = vsel %vm1065, %v1067, %v1063
      %v1069 = vmul.f32 1.0, %v1068
      %v1070 = vtanh.pop %v1050
      %v1071 = vmul.f32 %v1069, %v996
      %1073 = vrot.lane.b32.xlu0 %v1070, 64
      %v1074 = vpop.permute.xlu0 %1073
      %v1076 = vmul.f32 %v1069, %v1074
      %1078 = vrot.lane.b32.xlu0 %v1076, 32
      %v1079 = vpop.permute.xlu0 %1078
      %v1081 = vadd.f32 %v1071, %v1079
      %v1082 = vtanh.pop %v1081
      %1084 = vrot.lane.b32.xlu0 %v1082, 64
      %v1085 = vpop.permute.xlu0 %1084
      %v1087 = vmul.f32 %v1069, %v1085
      %s1088 = sadd.s32 %s369, %s1011
      %v1089 = vstv %s1088
      %vm1090 = vcmp.gt.s32.totalorder %v364, %v1089
      %v1091 = vsel %vm1090, 1, 0
      %1092 = vset.pattern.permute.xlu0 0
      %1093 = vperm.xlu0 %1092, %v1091
      %v1094 = vpop.permute.xlu0 %1093
      %vm1095 = vcmp.eq.s32.totalorder %v1094, 1
      %v1096 = vsel %vm1095, %v1087, %v995
      %v1097 = vsel %vm1095, %v1081, %v996
      %v1098 = vsel %vm1095, %v1087, 0.0
      %v1099 = vpack.c.bf16 %v1098, %v1098
      %v1101 = vrot.slane %v1099, 3
      %v1104 = vsel %vm496, %v1099, %v1101
      %1106 = vrot.lane.b32.xlu0 %v1104, 32
      %v1107 = vpop.permute.xlu0 %1106
      %s1109 = scalar_lea.vmem %s341, %s1011
      %1110 = vst.msk [vmem:[%s1109] sm:$0x1] %vm505, %v1107
      %s1111 = smul.u32 %s20, 4294967289
      %s1112 = sadd.s32 %s1111, 7
      %s1113 = scalar_lea.vmem %s311, %s1112
      %v1114 = vld [vmem:[%s1113] sm:$0x1]
      %v1115 = vpack.c.bf16 %v1096, %v1096
      %1117 = vrot.lane.b32.xlu0 %v1115, 32
      %v1118 = vpop.permute.xlu0 %1117
      %v1120 = vsel %vm388, %v1118, 0
      %1122 = vmatpush.bf16.msra.mxu0 0
      %1123 = vmatpush.bf16.msra.mxu0 0
      %1124 = vmatpush.bf16.msra.mxu0 0
      %1125 = vmatpush.bf16.msra.mxu0 0
      %1126 = vmatpush.bf16.msra.mxu0 0
      %1127 = vmatpush.bf16.msra.mxu0 0
      %1128 = vmatpush.bf16.msra.mxu0 %v385
      %1129 = vmatpush.bf16.msra.mxu0 %v384
      %1130 = vmatmul.bf16.gmra.mxu0 %v1120
      %v1131 = vpop.f32.mrf.mxu0
      %v1132 = vadd.f32 0.0, %v1131
      %v1133 = vpop.f32.mrf.mxu0
      %1134 = vdwg.mxu0
      %v1136 = vsel %vm388, %v1114, 0
      %1138 = vmatpush.bf16.msra.mxu0 0
      %1139 = vmatpush.bf16.msra.mxu0 0
      %1140 = vmatpush.bf16.msra.mxu0 0
      %1141 = vmatpush.bf16.msra.mxu0 0
      %1142 = vmatpush.bf16.msra.mxu0 0
      %1143 = vmatpush.bf16.msra.mxu0 0
      %1144 = vmatpush.bf16.msra.mxu0 %v414
      %1145 = vmatpush.bf16.msra.mxu0 %v413
      %1146 = vmatmul.bf16.gmra.mxu0 %v1136
      %v1147 = vpop.f32.mrf.mxu0
      %v1148 = vadd.f32 %v1132, %v1147
      %v1149 = vpop.f32.mrf.mxu0
      %1150 = vdwg.mxu0
      %v1151 = vadd.f32 %v1148, %v434
      %v1152 = vxor.u32 %v1151, 2147483648
      %v1153 = vmul.f32 %v1152, 1.442695
      %v1154 = vpow.pop %v1153
      %v1155 = vadd.f32 %v1154, 1.0
      %v1156 = vrcp.pop %v1155
      %v1157 = vmul.f32 %v1155, %v1156
      %v1158 = vsub.f32 1.0, %v1157
      %v1159 = vmul.f32 %v1156, %v1158
      %v1160 = vadd.f32 %v1156, %v1159
      %vm1161 = vweird.f32 %v1155
      %vm1162 = vweird.f32 %v1156
      %vm1163 = vmor %vm1161, %vm1162
      %v1164 = vsel %vm1163, %v1156, %v1160
      %v1165 = vand.u32 2147483647, %v1155
      %vm1166 = vcmp.eq.f32.partialorder %v1165, 8.507059e+37
      %v1167 = vand.u32 %v1155, 2147483648
      %v1168 = vor.u32 1.1754944e-38, %v1167
      %v1169 = vsel %vm1166, %v1168, %v1164
      %v1170 = vmul.f32 1.0, %v1169
      %v1171 = vtanh.pop %v1151
      %v1172 = vmul.f32 %v1170, %v1097
      %1174 = vrot.lane.b32.xlu0 %v1171, 64
      %v1175 = vpop.permute.xlu0 %1174
      %v1177 = vmul.f32 %v1170, %v1175
      %1179 = vrot.lane.b32.xlu0 %v1177, 32
      %v1180 = vpop.permute.xlu0 %1179
      %v1182 = vadd.f32 %v1172, %v1180
      %v1183 = vtanh.pop %v1182
      %1185 = vrot.lane.b32.xlu0 %v1183, 64
      %v1186 = vpop.permute.xlu0 %1185
      %v1188 = vmul.f32 %v1170, %v1186
      %s1189 = sadd.s32 %s369, %s1112
      %v1190 = vstv %s1189
      %vm1191 = vcmp.gt.s32.totalorder %v364, %v1190
      %v1192 = vsel %vm1191, 1, 0
      %1193 = vset.pattern.permute.xlu0 0
      %1194 = vperm.xlu0 %1193, %v1192
      %v1195 = vpop.permute.xlu0 %1194
      %vm1196 = vcmp.eq.s32.totalorder %v1195, 1
      %v1197 = vsel %vm1196, %v1188, %v1096
      %v1198 = vsel %vm1196, %v1182, %v1097
      %v1199 = vsel %vm1196, %v1188, 0.0
      %v1200 = vpack.c.bf16 %v1199, %v1199
      %v1202 = vrot.slane %v1200, 3
      %v1205 = vsel %vm496, %v1200, %v1202
      %1207 = vrot.lane.b32.xlu0 %v1205, 32
      %v1208 = vpop.permute.xlu0 %1207
      %s1210 = scalar_lea.vmem %s341, %s1112
      %1211 = vst.msk [vmem:[%s1210] sm:$0x1] %vm505, %v1208
      %1213 = vrot.lane.b32.xlu0 %v1197, 32
      %v1214 = vpop.permute.xlu0 %1213
      %vm1216 = vcmask 254976
      %1217 = vst.msk [vmem:[#allocation2] sm:$0x3] %vm1216, %v1214
      %1219 = vrot.lane.b32.xlu0 %v1198, 96
      %v1220 = vpop.permute.xlu0 %1219
      %1222 = vst.msk [vmem:[#allocation3] sm:$0x3] %vm1216, %v1220
      %s1223 = smul.u32 %s21, 2
      %s1224 = ssub.s32 0, %s1223
      %s1225 = smul.u32 %s20, %s1224
      %s1226 = sadd.s32 %s21, %s1225
      %s1227 = smul.u32 8, %s1226
      %p1228 = scmp.lt.s32.totalorder %s20, 1
      %s1229 = scalar_select %p1228, %s20, 1
      %p1230 = scmp.lt.s32.totalorder %s1227, 7
      %s1231 = scalar_select %p1230, %s1227, 7
      %s1232 = smul.addr %s1229, 8
      %s1233 = sadd.s32 %s1231, %s1232
      %s1234 = scalar_lea.vmem %s5, %s1233
      // Predicated region
      $region45: #{_encoder_forward_impl.4} parent=39 // pred_check
        %p1235 = pneg %p189
      $region46: #{_encoder_forward_impl.4} parent=39 // pred_check_branch
        %1237 = sbr.rel (%p1235) target = $region48
      $region47: #{_encoder_forward_impl.4} parent=39 // pred_region
        %s1238 = smul.u32 %s21, 2
        %s1239 = ssub.s32 0, %s1238
        %s1240 = smul.u32 %s20, %s1239
        %s1241 = sadd.s32 %s21, %s1240
        %s1242 = smul.u32 8, %s1241
      $region48: #{_encoder_forward_impl.4} parent=39 // pred_fallthru
        _
    $region40: #{_encoder_forward_impl.4} parent=5 // pred_fallthru
      _
    %p1243 = scmp.le.s32.totalorder 2, %s11
    // Predicated region
    $region49: #{_encoder_forward_impl.4} parent=5 // pred_check
      %p1244 = pneg %p1243
    $region50: #{_encoder_forward_impl.4} parent=5 // pred_check_branch
      %1246 = sbr.rel (%p1244) target = $region52
    $region51: #{_encoder_forward_impl.4} parent=5 // pred_region
      %s1247 = ssub.s32 %s11, 2
      // Predicated region
      $region53: #{_encoder_forward_impl.4} parent=51 // pred_check
        %p1248 = pneg %p195
      $region54: #{_encoder_forward_impl.4} parent=51 // pred_check_branch
        %1250 = sbr.rel (%p1248) target = $region56
      $region55: #{_encoder_forward_impl.4} parent=51 // pred_region
        %s1251 = smul.u32 %s23, 2
        %s1252 = ssub.s32 0, %s1251
        %s1253 = smul.u32 %s22, %s1252
        %s1254 = sadd.s32 %s23, %s1253
        %s1255 = smul.u32 8, %s1254
        %p1256 = scmp.lt.s32.totalorder %s22, 1
        %s1257 = scalar_select %p1256, %s22, 1
        %p1258 = scmp.lt.s32.totalorder %s1255, 7
        %s1259 = scalar_select %p1258, %s1255, 7
        %s1260 = smul.addr %s1257, 8
        %s1261 = sadd.s32 %s1259, %s1260
        %s1262 = scalar_lea.vmem %s5, %s1261
      $region56: #{_encoder_forward_impl.4} parent=51 // pred_fallthru
        _
    $region52: #{_encoder_forward_impl.4} parent=5 // pred_fallthru
      _
  $region6: #{_encoder_forward_impl.4} parent=0 // loop_footer
    %s15 = sadd.s32 1, %s11
  $region7: #{_encoder_forward_impl.4} parent=0 // loop_footer_branch
    %10 = sbr.rel target = $region3
  $region8: #{_encoder_forward_impl.4} parent=0 // loop_exit
    _

</llo_original>
